<compile_context>
chip_gen: v7x
topology: tpu7x:2x2x1
jax: 0.10.0
libtpu: 0.0.40
codegen_flags: <defaults>
</compile_context>

<pallas_src>
import functools
import math

import numpy as np
import jax
import jax.numpy as jnp
from jax.experimental import pallas as pl
from jax.experimental.pallas import tpu as pltpu


# ----------------------------------------------------------------------------
# Single fused Pallas kernel: whole encoder for one image per grid step.
# ----------------------------------------------------------------------------
def _encoder_kernel(p1_ref, w1_ref, b1_ref,
                    g2_ref, w2_ref, b2_ref,
                    g3_ref, w3_ref, b3_ref, w4_ref, b4_ref,
                    wo_ref, bo_ref, o_ref, *, mxu_dtype):
    def mm(a, b):
        return jnp.dot(a.astype(mxu_dtype), b.astype(mxu_dtype),
                       preferred_element_type=jnp.float32)

    num_res = w3_ref.shape[0]
    nt2 = g2_ref.shape[0]          # 16 taps for the 4x4 conv
    nt3 = g3_ref.shape[0]          # 9 taps for the 3x3 conv
    m2 = g2_ref.shape[1]           # rows after second downsample
    c = w1_ref.shape[1]            # hidden channels

    # --- downsample conv 1: 4x4 s2 (wrapper-staged patches) + folded BN ------
    h = mm(p1_ref[0], w1_ref[...]) + b1_ref[...]                    # (M1, C)

    # --- ReLU -> downsample conv 2: 4x4 s2 via tap gathers + folded BN -------
    a = jnp.maximum(h, 0.0)                                         # ReLU once
    acc = jnp.zeros((m2, c), jnp.float32)
    for t in range(nt2):
        acc = acc + mm(mm(g2_ref[t], a), w2_ref[t])
    h = acc + b2_ref[...]                                           # (M2, C)

    # --- residual blocks: x + BN(conv1x1(ReLU(BN(conv3x3(ReLU(x)))))) --------
    for r in range(num_res):
        a = jnp.maximum(h, 0.0)
        acc = jnp.zeros((m2, c), jnp.float32)
        for t in range(nt3):
            acc = acc + mm(mm(g3_ref[t], a), w3_ref[r, t])
        t1 = jnp.maximum(acc + b3_ref[r], 0.0)
        h = h + mm(t1, w4_ref[r]) + b4_ref[r]

    # --- final 1x1 conv (bias, no BN/ReLU) -----------------------------------
    # NOTE: out_channels=8 -> masked lane store, but the total output is ~1 KB;
    # a lane-dense repack would cost an in-kernel relayout for no gain here.
    o_ref[0] = (mm(h, wo_ref[...]) + bo_ref[...]).astype(o_ref.dtype)


# ----------------------------------------------------------------------------
# Wrapper-side glue: layout only (no intermediate HBM traffic).
# ----------------------------------------------------------------------------
def _im2col(x_nhwc, kh, kw, stride, pad):
    n, h, w, c = x_nhwc.shape
    xp = jnp.pad(x_nhwc, ((0, 0), (pad, pad), (pad, pad), (0, 0)))
    oh = (h + 2 * pad - kh) // stride + 1
    ow = (w + 2 * pad - kw) // stride + 1
    cols = []
    for i in range(kh):
        for j in range(kw):
            cols.append(xp[:, i:i + stride * oh:stride, j:j + stride * ow:stride, :])
    p = jnp.stack(cols, axis=-1)                      # (n, oh, ow, c, kh*kw)
    return p.reshape(n, oh * ow, c * kh * kw), (oh, ow)


def _gather_mats(h, w, kh, kw, stride, pad):
    """Constant 0/1 row-gather matrices, one per conv tap (zero rows = padding)."""
    oh = (h + 2 * pad - kh) // stride + 1
    ow = (w + 2 * pad - kw) // stride + 1
    g = np.zeros((kh * kw, oh * ow, h * w), np.float32)
    for i in range(kh):
        for j in range(kw):
            t = i * kw + j
            for a in range(oh):
                for b in range(ow):
                    r = a * stride + i - pad
                    c = b * stride + j - pad
                    if 0 <= r < h and 0 <= c < w:
                        g[t, a * ow + b, r * w + c] = 1.0
    return jnp.asarray(g), (oh, ow)


def _fold2d(w_oihw, scale=None):
    """(Cout,Cin,KH,KW) -> (Cin*KH*KW, Cout) with BN scale folded per column."""
    cout = w_oihw.shape[0]
    w2d = w_oihw.reshape(cout, -1).T
    if scale is not None:
        w2d = w2d * scale.reshape(1, cout)
    return w2d


def _fold_taps(w_oihw, scale=None):
    """(Cout,Cin,KH,KW) -> (KH*KW, Cin, Cout) with BN scale folded per Cout."""
    cout, cin, kh, kw = w_oihw.shape
    w = jnp.transpose(w_oihw, (2, 3, 1, 0)).reshape(kh * kw, cin, cout)
    if scale is not None:
        w = w * scale.reshape(1, 1, cout)
    return w


# ----------------------------------------------------------------------------
# Encoder forward (single fused pallas_call)
# ----------------------------------------------------------------------------
def encoder_forward_pallas(x_nchw, params, channels, out_channels,
                           input_shift=-0.5, mxu_dtype=jnp.float32):
    n, cin, _, _ = x_nchw.shape
    c = channels
    num_res = len(params["res"])

    # --- layout-only wrapper glue: NHWC, shift (before zero-pad), layer-1 patches
    x = jnp.transpose(x_nchw, (0, 2, 3, 1)).astype(jnp.float32) + input_shift
    patches1, (h1, w1) = _im2col(x, 4, 4, 2, 1)           # (n, m1, cin*16)
    m1 = h1 * w1
    k1 = cin * 16

    g2, (h2, w2) = _gather_mats(h1, w1, 4, 4, 2, 1)       # (16, m2, m1)
    m2 = h2 * w2
    g3, _ = _gather_mats(h2, w2, 3, 3, 1, 1)              # (9, m2, m2)

    # --- fold BatchNorm scales into the conv weights (free at prep time) -----
    w1f = _fold2d(params["w1"], params["s1"])             # (k1, c)
    w2f = _fold_taps(params["w2"], params["s2"])          # (16, c, c)
    w3f = jnp.stack([_fold_taps(b["w3"], b["s3"]) for b in params["res"]])
    b3s = jnp.stack([b["b3"] for b in params["res"]])     # (R, 1, c)
    w4f = jnp.stack([_fold2d(b["w4"], b["s4"]) for b in params["res"]])
    b4s = jnp.stack([b["b4"] for b in params["res"]])     # (R, 1, c)
    wo = _fold2d(params["w_out"])                         # (c, out_channels)
    bo = params["b_out"].reshape(1, out_channels)

    def rep(shape):
        nd = len(shape)
        return pl.BlockSpec(shape, lambda i, _nd=nd: (0,) * _nd)

    out = pl.pallas_call(
        functools.partial(_encoder_kernel, mxu_dtype=mxu_dtype),
        grid=(n,),
        in_specs=[
            pl.BlockSpec((1, m1, k1), lambda i: (i, 0, 0)),   # per-image patches
            rep((k1, c)), rep((1, c)),                        # conv1 + BN1
            rep((16, m2, m1)), rep((16, c, c)), rep((1, c)),  # conv2 + BN2
            rep((9, m2, m2)),                                 # 3x3 tap gathers
            rep((num_res, 9, c, c)), rep((num_res, 1, c)),    # residual conv3x3
            rep((num_res, c, c)), rep((num_res, 1, c)),       # residual conv1x1
            rep((c, out_channels)), rep((1, out_channels)),   # final 1x1 conv
        ],
        out_specs=pl.BlockSpec((1, m2, out_channels), lambda i: (i, 0, 0)),
        out_shape=jax.ShapeDtypeStruct((n, m2, out_channels), jnp.float32),
        compiler_params=pltpu.CompilerParams(
            dimension_semantics=("parallel",)),
    )(patches1, w1f, params["b1"], g2, w2f, params["b2"],
      g3, w3f, b3s, w4f, b4s, wo, bo)

    out = out.reshape(n, h2, w2, out_channels)
    return jnp.transpose(out, (0, 3, 1, 2))                # back to NCHW


# ----------------------------------------------------------------------------
# Parameter init (deterministic, synthetic); BN already as inference affine.
# ----------------------------------------------------------------------------
def _conv_w(key, cout, cin, kh, kw):
    fan_in = cin * kh * kw
    return (jax.random.normal(key, (cout, cin, kh, kw), jnp.float32)
            / math.sqrt(fan_in))


def _bn_affine(key, c, eps=1e-5):
    k1, k2, k3, k4 = jax.random.split(key, 4)
    gamma = 1.0 + 0.1 * jax.random.normal(k1, (c,), jnp.float32)
    beta = 0.1 * jax.random.normal(k2, (c,), jnp.float32)
    mean = 0.05 * jax.random.normal(k3, (c,), jnp.float32)
    var = 1.0 + 0.1 * jax.random.uniform(k4, (c,), jnp.float32)
    scale = gamma / jnp.sqrt(var + eps)
    bias = beta - mean * scale
    return scale.reshape(1, c), bias.reshape(1, c)


def init_encoder_params(key, channels, in_channels, out_channels, num_residual_layers):
    ks = jax.random.split(key, 6 + 4 * num_residual_layers)
    p = {}
    p["w1"] = _conv_w(ks[0], channels, in_channels, 4, 4)
    p["s1"], p["b1"] = _bn_affine(ks[1], channels)
    p["w2"] = _conv_w(ks[2], channels, channels, 4, 4)
    p["s2"], p["b2"] = _bn_affine(ks[3], channels)
    p["res"] = []
    for r in range(num_residual_layers):
        kb = ks[4 + 4 * r:8 + 4 * r]
        blk = {}
        blk["w3"] = _conv_w(kb[0], channels, channels, 3, 3)
        blk["s3"], blk["b3"] = _bn_affine(kb[1], channels)
        blk["w4"] = _conv_w(kb[2], channels, channels, 1, 1)
        blk["s4"], blk["b4"] = _bn_affine(kb[3], channels)
        p["res"].append(blk)
    p["w_out"] = _conv_w(ks[-2], out_channels, channels, 1, 1)
    p["b_out"] = 0.1 * jax.random.normal(ks[-1], (out_channels,), jnp.float32)
    return p


# ----------------------------------------------------------------------------
# Pure-JAX (XLA conv) reference for validation
# ----------------------------------------------------------------------------
def _conv_ref(x, w, stride, pad):
    return jax.lax.conv_general_dilated(
        x, w, (stride, stride), [(pad, pad), (pad, pad)],
        dimension_numbers=("NCHW", "OIHW", "NCHW"))


def _affine(x, s, b):
    return x * s.reshape(1, -1, 1, 1) + b.reshape(1, -1, 1, 1)


def encoder_forward_ref(x_nchw, p, input_shift=-0.5):
    h = x_nchw.astype(jnp.float32) + input_shift
    h = _affine(_conv_ref(h, p["w1"], 2, 1), p["s1"], p["b1"])
    h = _affine(_conv_ref(jax.nn.relu(h), p["w2"], 2, 1), p["s2"], p["b2"])
    for blk in p["res"]:
        t = _affine(_conv_ref(jax.nn.relu(h), blk["w3"], 1, 1), blk["s3"], blk["b3"])
        t = _affine(_conv_ref(jax.nn.relu(t), blk["w4"], 1, 0), blk["s4"], blk["b4"])
        h = h + t
    out = _conv_ref(h, p["w_out"], 1, 0) + p["b_out"].reshape(1, -1, 1, 1)
    return out


# ----------------------------------------------------------------------------
if __name__ == "__main__":
    batch, in_channels, H, W = 2, 3, 16, 16
    channels = 32
    latent_dim, embedding_dim = 2, 4
    out_channels = latent_dim * embedding_dim     # 8
    num_residual_layers = 2

    key = jax.random.PRNGKey(0)
    kx, kp = jax.random.split(key)
    x = jax.random.uniform(kx, (batch, in_channels, H, W), jnp.float32)
    params = init_encoder_params(kp, channels, in_channels, out_channels,
                                 num_residual_layers)

    fwd = jax.jit(functools.partial(encoder_forward_pallas,
                                    channels=channels,
                                    out_channels=out_channels))
    out = jax.block_until_ready(fwd(x, params))
    assert out.shape == (batch, out_channels, H // 4, W // 4), out.shape

    ref = jax.block_until_ready(encoder_forward_ref(x, params))
    max_err = float(jnp.max(jnp.abs(out - ref)))
    assert max_err < 2e-3, f"mismatch vs XLA reference: {max_err}"

    print("KERNEL_OK")
</pallas_src>

<mosaic_0001>
module attributes {stable_mosaic.version = 11 : i64} {
  func.func @_encoder_kernel(%arg0: i32, %arg1: memref<1x64x48xf32, #tpu.memory_space<vmem>>, %arg2: memref<48x32xf32, #tpu.memory_space<vmem>>, %arg3: memref<1x32xf32, #tpu.memory_space<vmem>>, %arg4: memref<16x16x64xf32, #tpu.memory_space<vmem>>, %arg5: memref<16x32x32xf32, #tpu.memory_space<vmem>>, %arg6: memref<1x32xf32, #tpu.memory_space<vmem>>, %arg7: memref<9x16x16xf32, #tpu.memory_space<vmem>>, %arg8: memref<2x9x32x32xf32, #tpu.memory_space<vmem>>, %arg9: memref<2x1x32xf32, #tpu.memory_space<vmem>>, %arg10: memref<2x32x32xf32, #tpu.memory_space<vmem>>, %arg11: memref<2x1x32xf32, #tpu.memory_space<vmem>>, %arg12: memref<32x8xf32, #tpu.memory_space<vmem>>, %arg13: memref<1x8xf32, #tpu.memory_space<vmem>>, %arg14: memref<1x16x8xf32, #tpu.memory_space<vmem>>) attributes {dimension_semantics = [#tpu.dimension_semantics<parallel>], iteration_bounds = array<i64: 2>, scalar_prefetch = 0 : i64, scratch_operands = 0 : i64, tpu.core_type = #tpu.core_type<tc>, window_params = [{transform_indices = @transform_0, window_bounds = array<i64: 1, 64, 48>}, {pipeline_mode = #tpu.pipeline_mode<synchronous>, transform_indices = @transform_1, window_bounds = array<i64: 48, 32>}, {pipeline_mode = #tpu.pipeline_mode<synchronous>, transform_indices = @transform_2, window_bounds = array<i64: 1, 32>}, {pipeline_mode = #tpu.pipeline_mode<synchronous>, transform_indices = @transform_3, window_bounds = array<i64: 16, 16, 64>}, {pipeline_mode = #tpu.pipeline_mode<synchronous>, transform_indices = @transform_4, window_bounds = array<i64: 16, 32, 32>}, {pipeline_mode = #tpu.pipeline_mode<synchronous>, transform_indices = @transform_5, window_bounds = array<i64: 1, 32>}, {pipeline_mode = #tpu.pipeline_mode<synchronous>, transform_indices = @transform_6, window_bounds = array<i64: 9, 16, 16>}, {pipeline_mode = #tpu.pipeline_mode<synchronous>, transform_indices = @transform_7, window_bounds = array<i64: 2, 9, 32, 32>}, {pipeline_mode = #tpu.pipeline_mode<synchronous>, transform_indices = @transform_8, window_bounds = array<i64: 2, 1, 32>}, {pipeline_mode = #tpu.pipeline_mode<synchronous>, transform_indices = @transform_9, window_bounds = array<i64: 2, 32, 32>}, {pipeline_mode = #tpu.pipeline_mode<synchronous>, transform_indices = @transform_10, window_bounds = array<i64: 2, 1, 32>}, {pipeline_mode = #tpu.pipeline_mode<synchronous>, transform_indices = @transform_11, window_bounds = array<i64: 32, 8>}, {pipeline_mode = #tpu.pipeline_mode<synchronous>, transform_indices = @transform_12, window_bounds = array<i64: 1, 8>}, {transform_indices = @transform_13, window_bounds = array<i64: 1, 16, 8>}]} {
    %c0 = arith.constant 0 : index
    %c0_0 = arith.constant 0 : index
    %c0_1 = arith.constant 0 : index
    %0 = vector.load %arg1[%c0, %c0_0, %c0_1] : memref<1x64x48xf32, #tpu.memory_space<vmem>>, vector<1x64x48xf32>
    %1 = vector.shape_cast %0 : vector<1x64x48xf32> to vector<64x48xf32>
    %c0_2 = arith.constant 0 : index
    %c0_3 = arith.constant 0 : index
    %2 = vector.load %arg2[%c0_2, %c0_3] : memref<48x32xf32, #tpu.memory_space<vmem>>, vector<48x32xf32>
    %cst = arith.constant dense<0.000000e+00> : vector<64x32xf32>
    %3 = tpu.matmul %1, %2, %cst {dimension_numbers = #tpu.dot_dimension_numbers<[1], [0], [0], [1], [0, 0, 1, 1], [], []>} : vector<64x48xf32>, vector<48x32xf32>, vector<64x32xf32> -> vector<64x32xf32>
    %c0_4 = arith.constant 0 : index
    %c0_5 = arith.constant 0 : index
    %4 = vector.load %arg3[%c0_4, %c0_5] : memref<1x32xf32, #tpu.memory_space<vmem>>, vector<1x32xf32>
    %5 = vector.broadcast %4 : vector<1x32xf32> to vector<64x32xf32>
    %6 = arith.addf %3, %5 : vector<64x32xf32>
    %cst_6 = arith.constant 0.000000e+00 : f32
    %7 = vector.broadcast %cst_6 : f32 to vector<64x32xf32>
    %8 = arith.maximumf %6, %7 : vector<64x32xf32>
    %cst_7 = arith.constant 0.000000e+00 : f32
    %9 = vector.broadcast %cst_7 : f32 to vector<16x32xf32>
    %c0_8 = arith.constant 0 : index
    %c0_9 = arith.constant 0 : index
    %c0_10 = arith.constant 0 : index
    %10 = vector.load %arg4[%c0_8, %c0_9, %c0_10] : memref<16x16x64xf32, #tpu.memory_space<vmem>>, vector<1x16x64xf32>
    %11 = vector.shape_cast %10 : vector<1x16x64xf32> to vector<16x64xf32>
    %cst_11 = arith.constant dense<0.000000e+00> : vector<16x32xf32>
    %12 = tpu.matmul %11, %8, %cst_11 {dimension_numbers = #tpu.dot_dimension_numbers<[1], [0], [0], [1], [0, 0, 1, 1], [], []>} : vector<16x64xf32>, vector<64x32xf32>, vector<16x32xf32> -> vector<16x32xf32>
    %c0_12 = arith.constant 0 : index
    %c0_13 = arith.constant 0 : index
    %c0_14 = arith.constant 0 : index
    %13 = vector.load %arg5[%c0_12, %c0_13, %c0_14] : memref<16x32x32xf32, #tpu.memory_space<vmem>>, vector<1x32x32xf32>
    %14 = vector.shape_cast %13 : vector<1x32x32xf32> to vector<32x32xf32>
    %cst_15 = arith.constant dense<0.000000e+00> : vector<16x32xf32>
    %15 = tpu.matmul %12, %14, %cst_15 {dimension_numbers = #tpu.dot_dimension_numbers<[1], [0], [0], [1], [0, 0, 1, 1], [], []>} : vector<16x32xf32>, vector<32x32xf32>, vector<16x32xf32> -> vector<16x32xf32>
    %16 = arith.addf %9, %15 : vector<16x32xf32>
    %c1 = arith.constant 1 : index
    %c0_16 = arith.constant 0 : index
    %c0_17 = arith.constant 0 : index
    %17 = vector.load %arg4[%c1, %c0_16, %c0_17] : memref<16x16x64xf32, #tpu.memory_space<vmem>>, vector<1x16x64xf32>
    %18 = vector.shape_cast %17 : vector<1x16x64xf32> to vector<16x64xf32>
    %cst_18 = arith.constant dense<0.000000e+00> : vector<16x32xf32>
    %19 = tpu.matmul %18, %8, %cst_18 {dimension_numbers = #tpu.dot_dimension_numbers<[1], [0], [0], [1], [0, 0, 1, 1], [], []>} : vector<16x64xf32>, vector<64x32xf32>, vector<16x32xf32> -> vector<16x32xf32>
    %c1_19 = arith.constant 1 : index
    %c0_20 = arith.constant 0 : index
    %c0_21 = arith.constant 0 : index
    %20 = vector.load %arg5[%c1_19, %c0_20, %c0_21] : memref<16x32x32xf32, #tpu.memory_space<vmem>>, vector<1x32x32xf32>
    %21 = vector.shape_cast %20 : vector<1x32x32xf32> to vector<32x32xf32>
    %cst_22 = arith.constant dense<0.000000e+00> : vector<16x32xf32>
    %22 = tpu.matmul %19, %21, %cst_22 {dimension_numbers = #tpu.dot_dimension_numbers<[1], [0], [0], [1], [0, 0, 1, 1], [], []>} : vector<16x32xf32>, vector<32x32xf32>, vector<16x32xf32> -> vector<16x32xf32>
    %23 = arith.addf %16, %22 : vector<16x32xf32>
    %c2 = arith.constant 2 : index
    %c0_23 = arith.constant 0 : index
    %c0_24 = arith.constant 0 : index
    %24 = vector.load %arg4[%c2, %c0_23, %c0_24] : memref<16x16x64xf32, #tpu.memory_space<vmem>>, vector<1x16x64xf32>
    %25 = vector.shape_cast %24 : vector<1x16x64xf32> to vector<16x64xf32>
    %cst_25 = arith.constant dense<0.000000e+00> : vector<16x32xf32>
    %26 = tpu.matmul %25, %8, %cst_25 {dimension_numbers = #tpu.dot_dimension_numbers<[1], [0], [0], [1], [0, 0, 1, 1], [], []>} : vector<16x64xf32>, vector<64x32xf32>, vector<16x32xf32> -> vector<16x32xf32>
    %c2_26 = arith.constant 2 : index
    %c0_27 = arith.constant 0 : index
    %c0_28 = arith.constant 0 : index
    %27 = vector.load %arg5[%c2_26, %c0_27, %c0_28] : memref<16x32x32xf32, #tpu.memory_space<vmem>>, vector<1x32x32xf32>
    %28 = vector.shape_cast %27 : vector<1x32x32xf32> to vector<32x32xf32>
    %cst_29 = arith.constant dense<0.000000e+00> : vector<16x32xf32>
    %29 = tpu.matmul %26, %28, %cst_29 {dimension_numbers = #tpu.dot_dimension_numbers<[1], [0], [0], [1], [0, 0, 1, 1], [], []>} : vector<16x32xf32>, vector<32x32xf32>, vector<16x32xf32> -> vector<16x32xf32>
    %30 = arith.addf %23, %29 : vector<16x32xf32>
    %c3 = arith.constant 3 : index
    %c0_30 = arith.constant 0 : index
    %c0_31 = arith.constant 0 : index
    %31 = vector.load %arg4[%c3, %c0_30, %c0_31] : memref<16x16x64xf32, #tpu.memory_space<vmem>>, vector<1x16x64xf32>
    %32 = vector.shape_cast %31 : vector<1x16x64xf32> to vector<16x64xf32>
    %cst_32 = arith.constant dense<0.000000e+00> : vector<16x32xf32>
    %33 = tpu.matmul %32, %8, %cst_32 {dimension_numbers = #tpu.dot_dimension_numbers<[1], [0], [0], [1], [0, 0, 1, 1], [], []>} : vector<16x64xf32>, vector<64x32xf32>, vector<16x32xf32> -> vector<16x32xf32>
    %c3_33 = arith.constant 3 : index
    %c0_34 = arith.constant 0 : index
    %c0_35 = arith.constant 0 : index
    %34 = vector.load %arg5[%c3_33, %c0_34, %c0_35] : memref<16x32x32xf32, #tpu.memory_space<vmem>>, vector<1x32x32xf32>
    %35 = vector.shape_cast %34 : vector<1x32x32xf32> to vector<32x32xf32>
    %cst_36 = arith.constant dense<0.000000e+00> : vector<16x32xf32>
    %36 = tpu.matmul %33, %35, %cst_36 {dimension_numbers = #tpu.dot_dimension_numbers<[1], [0], [0], [1], [0, 0, 1, 1], [], []>} : vector<16x32xf32>, vector<32x32xf32>, vector<16x32xf32> -> vector<16x32xf32>
    %37 = arith.addf %30, %36 : vector<16x32xf32>
    %c4 = arith.constant 4 : index
    %c0_37 = arith.constant 0 : index
    %c0_38 = arith.constant 0 : index
    %38 = vector.load %arg4[%c4, %c0_37, %c0_38] : memref<16x16x64xf32, #tpu.memory_space<vmem>>, vector<1x16x64xf32>
    %39 = vector.shape_cast %38 : vector<1x16x64xf32> to vector<16x64xf32>
    %cst_39 = arith.constant dense<0.000000e+00> : vector<16x32xf32>
    %40 = tpu.matmul %39, %8, %cst_39 {dimension_numbers = #tpu.dot_dimension_numbers<[1], [0], [0], [1], [0, 0, 1, 1], [], []>} : vector<16x64xf32>, vector<64x32xf32>, vector<16x32xf32> -> vector<16x32xf32>
    %c4_40 = arith.constant 4 : index
    %c0_41 = arith.constant 0 : index
    %c0_42 = arith.constant 0 : index
    %41 = vector.load %arg5[%c4_40, %c0_41, %c0_42] : memref<16x32x32xf32, #tpu.memory_space<vmem>>, vector<1x32x32xf32>
    %42 = vector.shape_cast %41 : vector<1x32x32xf32> to vector<32x32xf32>
    %cst_43 = arith.constant dense<0.000000e+00> : vector<16x32xf32>
    %43 = tpu.matmul %40, %42, %cst_43 {dimension_numbers = #tpu.dot_dimension_numbers<[1], [0], [0], [1], [0, 0, 1, 1], [], []>} : vector<16x32xf32>, vector<32x32xf32>, vector<16x32xf32> -> vector<16x32xf32>
    %44 = arith.addf %37, %43 : vector<16x32xf32>
    %c5 = arith.constant 5 : index
    %c0_44 = arith.constant 0 : index
    %c0_45 = arith.constant 0 : index
    %45 = vector.load %arg4[%c5, %c0_44, %c0_45] : memref<16x16x64xf32, #tpu.memory_space<vmem>>, vector<1x16x64xf32>
    %46 = vector.shape_cast %45 : vector<1x16x64xf32> to vector<16x64xf32>
    %cst_46 = arith.constant dense<0.000000e+00> : vector<16x32xf32>
    %47 = tpu.matmul %46, %8, %cst_46 {dimension_numbers = #tpu.dot_dimension_numbers<[1], [0], [0], [1], [0, 0, 1, 1], [], []>} : vector<16x64xf32>, vector<64x32xf32>, vector<16x32xf32> -> vector<16x32xf32>
    %c5_47 = arith.constant 5 : index
    %c0_48 = arith.constant 0 : index
    %c0_49 = arith.constant 0 : index
    %48 = vector.load %arg5[%c5_47, %c0_48, %c0_49] : memref<16x32x32xf32, #tpu.memory_space<vmem>>, vector<1x32x32xf32>
    %49 = vector.shape_cast %48 : vector<1x32x32xf32> to vector<32x32xf32>
    %cst_50 = arith.constant dense<0.000000e+00> : vector<16x32xf32>
    %50 = tpu.matmul %47, %49, %cst_50 {dimension_numbers = #tpu.dot_dimension_numbers<[1], [0], [0], [1], [0, 0, 1, 1], [], []>} : vector<16x32xf32>, vector<32x32xf32>, vector<16x32xf32> -> vector<16x32xf32>
    %51 = arith.addf %44, %50 : vector<16x32xf32>
    %c6 = arith.constant 6 : index
    %c0_51 = arith.constant 0 : index
    %c0_52 = arith.constant 0 : index
    %52 = vector.load %arg4[%c6, %c0_51, %c0_52] : memref<16x16x64xf32, #tpu.memory_space<vmem>>, vector<1x16x64xf32>
    %53 = vector.shape_cast %52 : vector<1x16x64xf32> to vector<16x64xf32>
    %cst_53 = arith.constant dense<0.000000e+00> : vector<16x32xf32>
    %54 = tpu.matmul %53, %8, %cst_53 {dimension_numbers = #tpu.dot_dimension_numbers<[1], [0], [0], [1], [0, 0, 1, 1], [], []>} : vector<16x64xf32>, vector<64x32xf32>, vector<16x32xf32> -> vector<16x32xf32>
    %c6_54 = arith.constant 6 : index
    %c0_55 = arith.constant 0 : index
    %c0_56 = arith.constant 0 : index
    %55 = vector.load %arg5[%c6_54, %c0_55, %c0_56] : memref<16x32x32xf32, #tpu.memory_space<vmem>>, vector<1x32x32xf32>
    %56 = vector.shape_cast %55 : vector<1x32x32xf32> to vector<32x32xf32>
    %cst_57 = arith.constant dense<0.000000e+00> : vector<16x32xf32>
    %57 = tpu.matmul %54, %56, %cst_57 {dimension_numbers = #tpu.dot_dimension_numbers<[1], [0], [0], [1], [0, 0, 1, 1], [], []>} : vector<16x32xf32>, vector<32x32xf32>, vector<16x32xf32> -> vector<16x32xf32>
    %58 = arith.addf %51, %57 : vector<16x32xf32>
    %c7 = arith.constant 7 : index
    %c0_58 = arith.constant 0 : index
    %c0_59 = arith.constant 0 : index
    %59 = vector.load %arg4[%c7, %c0_58, %c0_59] : memref<16x16x64xf32, #tpu.memory_space<vmem>>, vector<1x16x64xf32>
    %60 = vector.shape_cast %59 : vector<1x16x64xf32> to vector<16x64xf32>
    %cst_60 = arith.constant dense<0.000000e+00> : vector<16x32xf32>
    %61 = tpu.matmul %60, %8, %cst_60 {dimension_numbers = #tpu.dot_dimension_numbers<[1], [0], [0], [1], [0, 0, 1, 1], [], []>} : vector<16x64xf32>, vector<64x32xf32>, vector<16x32xf32> -> vector<16x32xf32>
    %c7_61 = arith.constant 7 : index
    %c0_62 = arith.constant 0 : index
    %c0_63 = arith.constant 0 : index
    %62 = vector.load %arg5[%c7_61, %c0_62, %c0_63] : memref<16x32x32xf32, #tpu.memory_space<vmem>>, vector<1x32x32xf32>
    %63 = vector.shape_cast %62 : vector<1x32x32xf32> to vector<32x32xf32>
    %cst_64 = arith.constant dense<0.000000e+00> : vector<16x32xf32>
    %64 = tpu.matmul %61, %63, %cst_64 {dimension_numbers = #tpu.dot_dimension_numbers<[1], [0], [0], [1], [0, 0, 1, 1], [], []>} : vector<16x32xf32>, vector<32x32xf32>, vector<16x32xf32> -> vector<16x32xf32>
    %65 = arith.addf %58, %64 : vector<16x32xf32>
    %c8 = arith.constant 8 : index
    %c0_65 = arith.constant 0 : index
    %c0_66 = arith.constant 0 : index
    %66 = vector.load %arg4[%c8, %c0_65, %c0_66] : memref<16x16x64xf32, #tpu.memory_space<vmem>>, vector<1x16x64xf32>
    %67 = vector.shape_cast %66 : vector<1x16x64xf32> to vector<16x64xf32>
    %cst_67 = arith.constant dense<0.000000e+00> : vector<16x32xf32>
    %68 = tpu.matmul %67, %8, %cst_67 {dimension_numbers = #tpu.dot_dimension_numbers<[1], [0], [0], [1], [0, 0, 1, 1], [], []>} : vector<16x64xf32>, vector<64x32xf32>, vector<16x32xf32> -> vector<16x32xf32>
    %c8_68 = arith.constant 8 : index
    %c0_69 = arith.constant 0 : index
    %c0_70 = arith.constant 0 : index
    %69 = vector.load %arg5[%c8_68, %c0_69, %c0_70] : memref<16x32x32xf32, #tpu.memory_space<vmem>>, vector<1x32x32xf32>
    %70 = vector.shape_cast %69 : vector<1x32x32xf32> to vector<32x32xf32>
    %cst_71 = arith.constant dense<0.000000e+00> : vector<16x32xf32>
    %71 = tpu.matmul %68, %70, %cst_71 {dimension_numbers = #tpu.dot_dimension_numbers<[1], [0], [0], [1], [0, 0, 1, 1], [], []>} : vector<16x32xf32>, vector<32x32xf32>, vector<16x32xf32> -> vector<16x32xf32>
    %72 = arith.addf %65, %71 : vector<16x32xf32>
    %c9 = arith.constant 9 : index
    %c0_72 = arith.constant 0 : index
    %c0_73 = arith.constant 0 : index
    %73 = vector.load %arg4[%c9, %c0_72, %c0_73] : memref<16x16x64xf32, #tpu.memory_space<vmem>>, vector<1x16x64xf32>
    %74 = vector.shape_cast %73 : vector<1x16x64xf32> to vector<16x64xf32>
    %cst_74 = arith.constant dense<0.000000e+00> : vector<16x32xf32>
    %75 = tpu.matmul %74, %8, %cst_74 {dimension_numbers = #tpu.dot_dimension_numbers<[1], [0], [0], [1], [0, 0, 1, 1], [], []>} : vector<16x64xf32>, vector<64x32xf32>, vector<16x32xf32> -> vector<16x32xf32>
    %c9_75 = arith.constant 9 : index
    %c0_76 = arith.constant 0 : index
    %c0_77 = arith.constant 0 : index
    %76 = vector.load %arg5[%c9_75, %c0_76, %c0_77] : memref<16x32x32xf32, #tpu.memory_space<vmem>>, vector<1x32x32xf32>
    %77 = vector.shape_cast %76 : vector<1x32x32xf32> to vector<32x32xf32>
    %cst_78 = arith.constant dense<0.000000e+00> : vector<16x32xf32>
    %78 = tpu.matmul %75, %77, %cst_78 {dimension_numbers = #tpu.dot_dimension_numbers<[1], [0], [0], [1], [0, 0, 1, 1], [], []>} : vector<16x32xf32>, vector<32x32xf32>, vector<16x32xf32> -> vector<16x32xf32>
    %79 = arith.addf %72, %78 : vector<16x32xf32>
    %c10 = arith.constant 10 : index
    %c0_79 = arith.constant 0 : index
    %c0_80 = arith.constant 0 : index
    %80 = vector.load %arg4[%c10, %c0_79, %c0_80] : memref<16x16x64xf32, #tpu.memory_space<vmem>>, vector<1x16x64xf32>
    %81 = vector.shape_cast %80 : vector<1x16x64xf32> to vector<16x64xf32>
    %cst_81 = arith.constant dense<0.000000e+00> : vector<16x32xf32>
    %82 = tpu.matmul %81, %8, %cst_81 {dimension_numbers = #tpu.dot_dimension_numbers<[1], [0], [0], [1], [0, 0, 1, 1], [], []>} : vector<16x64xf32>, vector<64x32xf32>, vector<16x32xf32> -> vector<16x32xf32>
    %c10_82 = arith.constant 10 : index
    %c0_83 = arith.constant 0 : index
    %c0_84 = arith.constant 0 : index
    %83 = vector.load %arg5[%c10_82, %c0_83, %c0_84] : memref<16x32x32xf32, #tpu.memory_space<vmem>>, vector<1x32x32xf32>
    %84 = vector.shape_cast %83 : vector<1x32x32xf32> to vector<32x32xf32>
    %cst_85 = arith.constant dense<0.000000e+00> : vector<16x32xf32>
    %85 = tpu.matmul %82, %84, %cst_85 {dimension_numbers = #tpu.dot_dimension_numbers<[1], [0], [0], [1], [0, 0, 1, 1], [], []>} : vector<16x32xf32>, vector<32x32xf32>, vector<16x32xf32> -> vector<16x32xf32>
    %86 = arith.addf %79, %85 : vector<16x32xf32>
    %c11 = arith.constant 11 : index
    %c0_86 = arith.constant 0 : index
    %c0_87 = arith.constant 0 : index
    %87 = vector.load %arg4[%c11, %c0_86, %c0_87] : memref<16x16x64xf32, #tpu.memory_space<vmem>>, vector<1x16x64xf32>
    %88 = vector.shape_cast %87 : vector<1x16x64xf32> to vector<16x64xf32>
    %cst_88 = arith.constant dense<0.000000e+00> : vector<16x32xf32>
    %89 = tpu.matmul %88, %8, %cst_88 {dimension_numbers = #tpu.dot_dimension_numbers<[1], [0], [0], [1], [0, 0, 1, 1], [], []>} : vector<16x64xf32>, vector<64x32xf32>, vector<16x32xf32> -> vector<16x32xf32>
    %c11_89 = arith.constant 11 : index
    %c0_90 = arith.constant 0 : index
    %c0_91 = arith.constant 0 : index
    %90 = vector.load %arg5[%c11_89, %c0_90, %c0_91] : memref<16x32x32xf32, #tpu.memory_space<vmem>>, vector<1x32x32xf32>
    %91 = vector.shape_cast %90 : vector<1x32x32xf32> to vector<32x32xf32>
    %cst_92 = arith.constant dense<0.000000e+00> : vector<16x32xf32>
    %92 = tpu.matmul %89, %91, %cst_92 {dimension_numbers = #tpu.dot_dimension_numbers<[1], [0], [0], [1], [0, 0, 1, 1], [], []>} : vector<16x32xf32>, vector<32x32xf32>, vector<16x32xf32> -> vector<16x32xf32>
    %93 = arith.addf %86, %92 : vector<16x32xf32>
    %c12 = arith.constant 12 : index
    %c0_93 = arith.constant 0 : index
    %c0_94 = arith.constant 0 : index
    %94 = vector.load %arg4[%c12, %c0_93, %c0_94] : memref<16x16x64xf32, #tpu.memory_space<vmem>>, vector<1x16x64xf32>
    %95 = vector.shape_cast %94 : vector<1x16x64xf32> to vector<16x64xf32>
    %cst_95 = arith.constant dense<0.000000e+00> : vector<16x32xf32>
    %96 = tpu.matmul %95, %8, %cst_95 {dimension_numbers = #tpu.dot_dimension_numbers<[1], [0], [0], [1], [0, 0, 1, 1], [], []>} : vector<16x64xf32>, vector<64x32xf32>, vector<16x32xf32> -> vector<16x32xf32>
    %c12_96 = arith.constant 12 : index
    %c0_97 = arith.constant 0 : index
    %c0_98 = arith.constant 0 : index
    %97 = vector.load %arg5[%c12_96, %c0_97, %c0_98] : memref<16x32x32xf32, #tpu.memory_space<vmem>>, vector<1x32x32xf32>
    %98 = vector.shape_cast %97 : vector<1x32x32xf32> to vector<32x32xf32>
    %cst_99 = arith.constant dense<0.000000e+00> : vector<16x32xf32>
    %99 = tpu.matmul %96, %98, %cst_99 {dimension_numbers = #tpu.dot_dimension_numbers<[1], [0], [0], [1], [0, 0, 1, 1], [], []>} : vector<16x32xf32>, vector<32x32xf32>, vector<16x32xf32> -> vector<16x32xf32>
    %100 = arith.addf %93, %99 : vector<16x32xf32>
    %c13 = arith.constant 13 : index
    %c0_100 = arith.constant 0 : index
    %c0_101 = arith.constant 0 : index
    %101 = vector.load %arg4[%c13, %c0_100, %c0_101] : memref<16x16x64xf32, #tpu.memory_space<vmem>>, vector<1x16x64xf32>
    %102 = vector.shape_cast %101 : vector<1x16x64xf32> to vector<16x64xf32>
    %cst_102 = arith.constant dense<0.000000e+00> : vector<16x32xf32>
    %103 = tpu.matmul %102, %8, %cst_102 {dimension_numbers = #tpu.dot_dimension_numbers<[1], [0], [0], [1], [0, 0, 1, 1], [], []>} : vector<16x64xf32>, vector<64x32xf32>, vector<16x32xf32> -> vector<16x32xf32>
    %c13_103 = arith.constant 13 : index
    %c0_104 = arith.constant 0 : index
    %c0_105 = arith.constant 0 : index
    %104 = vector.load %arg5[%c13_103, %c0_104, %c0_105] : memref<16x32x32xf32, #tpu.memory_space<vmem>>, vector<1x32x32xf32>
    %105 = vector.shape_cast %104 : vector<1x32x32xf32> to vector<32x32xf32>
    %cst_106 = arith.constant dense<0.000000e+00> : vector<16x32xf32>
    %106 = tpu.matmul %103, %105, %cst_106 {dimension_numbers = #tpu.dot_dimension_numbers<[1], [0], [0], [1], [0, 0, 1, 1], [], []>} : vector<16x32xf32>, vector<32x32xf32>, vector<16x32xf32> -> vector<16x32xf32>
    %107 = arith.addf %100, %106 : vector<16x32xf32>
    %c14 = arith.constant 14 : index
    %c0_107 = arith.constant 0 : index
    %c0_108 = arith.constant 0 : index
    %108 = vector.load %arg4[%c14, %c0_107, %c0_108] : memref<16x16x64xf32, #tpu.memory_space<vmem>>, vector<1x16x64xf32>
    %109 = vector.shape_cast %108 : vector<1x16x64xf32> to vector<16x64xf32>
    %cst_109 = arith.constant dense<0.000000e+00> : vector<16x32xf32>
    %110 = tpu.matmul %109, %8, %cst_109 {dimension_numbers = #tpu.dot_dimension_numbers<[1], [0], [0], [1], [0, 0, 1, 1], [], []>} : vector<16x64xf32>, vector<64x32xf32>, vector<16x32xf32> -> vector<16x32xf32>
    %c14_110 = arith.constant 14 : index
    %c0_111 = arith.constant 0 : index
    %c0_112 = arith.constant 0 : index
    %111 = vector.load %arg5[%c14_110, %c0_111, %c0_112] : memref<16x32x32xf32, #tpu.memory_space<vmem>>, vector<1x32x32xf32>
    %112 = vector.shape_cast %111 : vector<1x32x32xf32> to vector<32x32xf32>
    %cst_113 = arith.constant dense<0.000000e+00> : vector<16x32xf32>
    %113 = tpu.matmul %110, %112, %cst_113 {dimension_numbers = #tpu.dot_dimension_numbers<[1], [0], [0], [1], [0, 0, 1, 1], [], []>} : vector<16x32xf32>, vector<32x32xf32>, vector<16x32xf32> -> vector<16x32xf32>
    %114 = arith.addf %107, %113 : vector<16x32xf32>
    %c15 = arith.constant 15 : index
    %c0_114 = arith.constant 0 : index
    %c0_115 = arith.constant 0 : index
    %115 = vector.load %arg4[%c15, %c0_114, %c0_115] : memref<16x16x64xf32, #tpu.memory_space<vmem>>, vector<1x16x64xf32>
    %116 = vector.shape_cast %115 : vector<1x16x64xf32> to vector<16x64xf32>
    %cst_116 = arith.constant dense<0.000000e+00> : vector<16x32xf32>
    %117 = tpu.matmul %116, %8, %cst_116 {dimension_numbers = #tpu.dot_dimension_numbers<[1], [0], [0], [1], [0, 0, 1, 1], [], []>} : vector<16x64xf32>, vector<64x32xf32>, vector<16x32xf32> -> vector<16x32xf32>
    %c15_117 = arith.constant 15 : index
    %c0_118 = arith.constant 0 : index
    %c0_119 = arith.constant 0 : index
    %118 = vector.load %arg5[%c15_117, %c0_118, %c0_119] : memref<16x32x32xf32, #tpu.memory_space<vmem>>, vector<1x32x32xf32>
    %119 = vector.shape_cast %118 : vector<1x32x32xf32> to vector<32x32xf32>
    %cst_120 = arith.constant dense<0.000000e+00> : vector<16x32xf32>
    %120 = tpu.matmul %117, %119, %cst_120 {dimension_numbers = #tpu.dot_dimension_numbers<[1], [0], [0], [1], [0, 0, 1, 1], [], []>} : vector<16x32xf32>, vector<32x32xf32>, vector<16x32xf32> -> vector<16x32xf32>
    %121 = arith.addf %114, %120 : vector<16x32xf32>
    %c0_121 = arith.constant 0 : index
    %c0_122 = arith.constant 0 : index
    %122 = vector.load %arg6[%c0_121, %c0_122] : memref<1x32xf32, #tpu.memory_space<vmem>>, vector<1x32xf32>
    %123 = vector.broadcast %122 : vector<1x32xf32> to vector<16x32xf32>
    %124 = arith.addf %121, %123 : vector<16x32xf32>
    %cst_123 = arith.constant 0.000000e+00 : f32
    %125 = vector.broadcast %cst_123 : f32 to vector<16x32xf32>
    %126 = arith.maximumf %124, %125 : vector<16x32xf32>
    %cst_124 = arith.constant 0.000000e+00 : f32
    %127 = vector.broadcast %cst_124 : f32 to vector<16x32xf32>
    %c0_125 = arith.constant 0 : index
    %c0_126 = arith.constant 0 : index
    %c0_127 = arith.constant 0 : index
    %128 = vector.load %arg7[%c0_125, %c0_126, %c0_127] : memref<9x16x16xf32, #tpu.memory_space<vmem>>, vector<1x16x16xf32>
    %129 = vector.shape_cast %128 : vector<1x16x16xf32> to vector<16x16xf32>
    %cst_128 = arith.constant dense<0.000000e+00> : vector<16x32xf32>
    %130 = tpu.matmul %129, %126, %cst_128 {dimension_numbers = #tpu.dot_dimension_numbers<[1], [0], [0], [1], [0, 0, 1, 1], [], []>} : vector<16x16xf32>, vector<16x32xf32>, vector<16x32xf32> -> vector<16x32xf32>
    %c0_129 = arith.constant 0 : index
    %c0_130 = arith.constant 0 : index
    %c0_131 = arith.constant 0 : index
    %c0_132 = arith.constant 0 : index
    %131 = vector.load %arg8[%c0_129, %c0_130, %c0_131, %c0_132] : memref<2x9x32x32xf32, #tpu.memory_space<vmem>>, vector<1x1x32x32xf32>
    %132 = vector.shape_cast %131 : vector<1x1x32x32xf32> to vector<32x32xf32>
    %cst_133 = arith.constant dense<0.000000e+00> : vector<16x32xf32>
    %133 = tpu.matmul %130, %132, %cst_133 {dimension_numbers = #tpu.dot_dimension_numbers<[1], [0], [0], [1], [0, 0, 1, 1], [], []>} : vector<16x32xf32>, vector<32x32xf32>, vector<16x32xf32> -> vector<16x32xf32>
    %134 = arith.addf %127, %133 : vector<16x32xf32>
    %c1_134 = arith.constant 1 : index
    %c0_135 = arith.constant 0 : index
    %c0_136 = arith.constant 0 : index
    %135 = vector.load %arg7[%c1_134, %c0_135, %c0_136] : memref<9x16x16xf32, #tpu.memory_space<vmem>>, vector<1x16x16xf32>
    %136 = vector.shape_cast %135 : vector<1x16x16xf32> to vector<16x16xf32>
    %cst_137 = arith.constant dense<0.000000e+00> : vector<16x32xf32>
    %137 = tpu.matmul %136, %126, %cst_137 {dimension_numbers = #tpu.dot_dimension_numbers<[1], [0], [0], [1], [0, 0, 1, 1], [], []>} : vector<16x16xf32>, vector<16x32xf32>, vector<16x32xf32> -> vector<16x32xf32>
    %c0_138 = arith.constant 0 : index
    %c1_139 = arith.constant 1 : index
    %c0_140 = arith.constant 0 : index
    %c0_141 = arith.constant 0 : index
    %138 = vector.load %arg8[%c0_138, %c1_139, %c0_140, %c0_141] : memref<2x9x32x32xf32, #tpu.memory_space<vmem>>, vector<1x1x32x32xf32>
    %139 = vector.shape_cast %138 : vector<1x1x32x32xf32> to vector<32x32xf32>
    %cst_142 = arith.constant dense<0.000000e+00> : vector<16x32xf32>
    %140 = tpu.matmul %137, %139, %cst_142 {dimension_numbers = #tpu.dot_dimension_numbers<[1], [0], [0], [1], [0, 0, 1, 1], [], []>} : vector<16x32xf32>, vector<32x32xf32>, vector<16x32xf32> -> vector<16x32xf32>
    %141 = arith.addf %134, %140 : vector<16x32xf32>
    %c2_143 = arith.constant 2 : index
    %c0_144 = arith.constant 0 : index
    %c0_145 = arith.constant 0 : index
    %142 = vector.load %arg7[%c2_143, %c0_144, %c0_145] : memref<9x16x16xf32, #tpu.memory_space<vmem>>, vector<1x16x16xf32>
    %143 = vector.shape_cast %142 : vector<1x16x16xf32> to vector<16x16xf32>
    %cst_146 = arith.constant dense<0.000000e+00> : vector<16x32xf32>
    %144 = tpu.matmul %143, %126, %cst_146 {dimension_numbers = #tpu.dot_dimension_numbers<[1], [0], [0], [1], [0, 0, 1, 1], [], []>} : vector<16x16xf32>, vector<16x32xf32>, vector<16x32xf32> -> vector<16x32xf32>
    %c0_147 = arith.constant 0 : index
    %c2_148 = arith.constant 2 : index
    %c0_149 = arith.constant 0 : index
    %c0_150 = arith.constant 0 : index
    %145 = vector.load %arg8[%c0_147, %c2_148, %c0_149, %c0_150] : memref<2x9x32x32xf32, #tpu.memory_space<vmem>>, vector<1x1x32x32xf32>
    %146 = vector.shape_cast %145 : vector<1x1x32x32xf32> to vector<32x32xf32>
    %cst_151 = arith.constant dense<0.000000e+00> : vector<16x32xf32>
    %147 = tpu.matmul %144, %146, %cst_151 {dimension_numbers = #tpu.dot_dimension_numbers<[1], [0], [0], [1], [0, 0, 1, 1], [], []>} : vector<16x32xf32>, vector<32x32xf32>, vector<16x32xf32> -> vector<16x32xf32>
    %148 = arith.addf %141, %147 : vector<16x32xf32>
    %c3_152 = arith.constant 3 : index
    %c0_153 = arith.constant 0 : index
    %c0_154 = arith.constant 0 : index
    %149 = vector.load %arg7[%c3_152, %c0_153, %c0_154] : memref<9x16x16xf32, #tpu.memory_space<vmem>>, vector<1x16x16xf32>
    %150 = vector.shape_cast %149 : vector<1x16x16xf32> to vector<16x16xf32>
    %cst_155 = arith.constant dense<0.000000e+00> : vector<16x32xf32>
    %151 = tpu.matmul %150, %126, %cst_155 {dimension_numbers = #tpu.dot_dimension_numbers<[1], [0], [0], [1], [0, 0, 1, 1], [], []>} : vector<16x16xf32>, vector<16x32xf32>, vector<16x32xf32> -> vector<16x32xf32>
    %c0_156 = arith.constant 0 : index
    %c3_157 = arith.constant 3 : index
    %c0_158 = arith.constant 0 : index
    %c0_159 = arith.constant 0 : index
    %152 = vector.load %arg8[%c0_156, %c3_157, %c0_158, %c0_159] : memref<2x9x32x32xf32, #tpu.memory_space<vmem>>, vector<1x1x32x32xf32>
    %153 = vector.shape_cast %152 : vector<1x1x32x32xf32> to vector<32x32xf32>
    %cst_160 = arith.constant dense<0.000000e+00> : vector<16x32xf32>
    %154 = tpu.matmul %151, %153, %cst_160 {dimension_numbers = #tpu.dot_dimension_numbers<[1], [0], [0], [1], [0, 0, 1, 1], [], []>} : vector<16x32xf32>, vector<32x32xf32>, vector<16x32xf32> -> vector<16x32xf32>
    %155 = arith.addf %148, %154 : vector<16x32xf32>
    %c4_161 = arith.constant 4 : index
    %c0_162 = arith.constant 0 : index
    %c0_163 = arith.constant 0 : index
    %156 = vector.load %arg7[%c4_161, %c0_162, %c0_163] : memref<9x16x16xf32, #tpu.memory_space<vmem>>, vector<1x16x16xf32>
    %157 = vector.shape_cast %156 : vector<1x16x16xf32> to vector<16x16xf32>
    %cst_164 = arith.constant dense<0.000000e+00> : vector<16x32xf32>
    %158 = tpu.matmul %157, %126, %cst_164 {dimension_numbers = #tpu.dot_dimension_numbers<[1], [0], [0], [1], [0, 0, 1, 1], [], []>} : vector<16x16xf32>, vector<16x32xf32>, vector<16x32xf32> -> vector<16x32xf32>
    %c0_165 = arith.constant 0 : index
    %c4_166 = arith.constant 4 : index
    %c0_167 = arith.constant 0 : index
    %c0_168 = arith.constant 0 : index
    %159 = vector.load %arg8[%c0_165, %c4_166, %c0_167, %c0_168] : memref<2x9x32x32xf32, #tpu.memory_space<vmem>>, vector<1x1x32x32xf32>
    %160 = vector.shape_cast %159 : vector<1x1x32x32xf32> to vector<32x32xf32>
    %cst_169 = arith.constant dense<0.000000e+00> : vector<16x32xf32>
    %161 = tpu.matmul %158, %160, %cst_169 {dimension_numbers = #tpu.dot_dimension_numbers<[1], [0], [0], [1], [0, 0, 1, 1], [], []>} : vector<16x32xf32>, vector<32x32xf32>, vector<16x32xf32> -> vector<16x32xf32>
    %162 = arith.addf %155, %161 : vector<16x32xf32>
    %c5_170 = arith.constant 5 : index
    %c0_171 = arith.constant 0 : index
    %c0_172 = arith.constant 0 : index
    %163 = vector.load %arg7[%c5_170, %c0_171, %c0_172] : memref<9x16x16xf32, #tpu.memory_space<vmem>>, vector<1x16x16xf32>
    %164 = vector.shape_cast %163 : vector<1x16x16xf32> to vector<16x16xf32>
    %cst_173 = arith.constant dense<0.000000e+00> : vector<16x32xf32>
    %165 = tpu.matmul %164, %126, %cst_173 {dimension_numbers = #tpu.dot_dimension_numbers<[1], [0], [0], [1], [0, 0, 1, 1], [], []>} : vector<16x16xf32>, vector<16x32xf32>, vector<16x32xf32> -> vector<16x32xf32>
    %c0_174 = arith.constant 0 : index
    %c5_175 = arith.constant 5 : index
    %c0_176 = arith.constant 0 : index
    %c0_177 = arith.constant 0 : index
    %166 = vector.load %arg8[%c0_174, %c5_175, %c0_176, %c0_177] : memref<2x9x32x32xf32, #tpu.memory_space<vmem>>, vector<1x1x32x32xf32>
    %167 = vector.shape_cast %166 : vector<1x1x32x32xf32> to vector<32x32xf32>
    %cst_178 = arith.constant dense<0.000000e+00> : vector<16x32xf32>
    %168 = tpu.matmul %165, %167, %cst_178 {dimension_numbers = #tpu.dot_dimension_numbers<[1], [0], [0], [1], [0, 0, 1, 1], [], []>} : vector<16x32xf32>, vector<32x32xf32>, vector<16x32xf32> -> vector<16x32xf32>
    %169 = arith.addf %162, %168 : vector<16x32xf32>
    %c6_179 = arith.constant 6 : index
    %c0_180 = arith.constant 0 : index
    %c0_181 = arith.constant 0 : index
    %170 = vector.load %arg7[%c6_179, %c0_180, %c0_181] : memref<9x16x16xf32, #tpu.memory_space<vmem>>, vector<1x16x16xf32>
    %171 = vector.shape_cast %170 : vector<1x16x16xf32> to vector<16x16xf32>
    %cst_182 = arith.constant dense<0.000000e+00> : vector<16x32xf32>
    %172 = tpu.matmul %171, %126, %cst_182 {dimension_numbers = #tpu.dot_dimension_numbers<[1], [0], [0], [1], [0, 0, 1, 1], [], []>} : vector<16x16xf32>, vector<16x32xf32>, vector<16x32xf32> -> vector<16x32xf32>
    %c0_183 = arith.constant 0 : index
    %c6_184 = arith.constant 6 : index
    %c0_185 = arith.constant 0 : index
    %c0_186 = arith.constant 0 : index
    %173 = vector.load %arg8[%c0_183, %c6_184, %c0_185, %c0_186] : memref<2x9x32x32xf32, #tpu.memory_space<vmem>>, vector<1x1x32x32xf32>
    %174 = vector.shape_cast %173 : vector<1x1x32x32xf32> to vector<32x32xf32>
    %cst_187 = arith.constant dense<0.000000e+00> : vector<16x32xf32>
    %175 = tpu.matmul %172, %174, %cst_187 {dimension_numbers = #tpu.dot_dimension_numbers<[1], [0], [0], [1], [0, 0, 1, 1], [], []>} : vector<16x32xf32>, vector<32x32xf32>, vector<16x32xf32> -> vector<16x32xf32>
    %176 = arith.addf %169, %175 : vector<16x32xf32>
    %c7_188 = arith.constant 7 : index
    %c0_189 = arith.constant 0 : index
    %c0_190 = arith.constant 0 : index
    %177 = vector.load %arg7[%c7_188, %c0_189, %c0_190] : memref<9x16x16xf32, #tpu.memory_space<vmem>>, vector<1x16x16xf32>
    %178 = vector.shape_cast %177 : vector<1x16x16xf32> to vector<16x16xf32>
    %cst_191 = arith.constant dense<0.000000e+00> : vector<16x32xf32>
    %179 = tpu.matmul %178, %126, %cst_191 {dimension_numbers = #tpu.dot_dimension_numbers<[1], [0], [0], [1], [0, 0, 1, 1], [], []>} : vector<16x16xf32>, vector<16x32xf32>, vector<16x32xf32> -> vector<16x32xf32>
    %c0_192 = arith.constant 0 : index
    %c7_193 = arith.constant 7 : index
    %c0_194 = arith.constant 0 : index
    %c0_195 = arith.constant 0 : index
    %180 = vector.load %arg8[%c0_192, %c7_193, %c0_194, %c0_195] : memref<2x9x32x32xf32, #tpu.memory_space<vmem>>, vector<1x1x32x32xf32>
    %181 = vector.shape_cast %180 : vector<1x1x32x32xf32> to vector<32x32xf32>
    %cst_196 = arith.constant dense<0.000000e+00> : vector<16x32xf32>
    %182 = tpu.matmul %179, %181, %cst_196 {dimension_numbers = #tpu.dot_dimension_numbers<[1], [0], [0], [1], [0, 0, 1, 1], [], []>} : vector<16x32xf32>, vector<32x32xf32>, vector<16x32xf32> -> vector<16x32xf32>
    %183 = arith.addf %176, %182 : vector<16x32xf32>
    %c8_197 = arith.constant 8 : index
    %c0_198 = arith.constant 0 : index
    %c0_199 = arith.constant 0 : index
    %184 = vector.load %arg7[%c8_197, %c0_198, %c0_199] : memref<9x16x16xf32, #tpu.memory_space<vmem>>, vector<1x16x16xf32>
    %185 = vector.shape_cast %184 : vector<1x16x16xf32> to vector<16x16xf32>
    %cst_200 = arith.constant dense<0.000000e+00> : vector<16x32xf32>
    %186 = tpu.matmul %185, %126, %cst_200 {dimension_numbers = #tpu.dot_dimension_numbers<[1], [0], [0], [1], [0, 0, 1, 1], [], []>} : vector<16x16xf32>, vector<16x32xf32>, vector<16x32xf32> -> vector<16x32xf32>
    %c0_201 = arith.constant 0 : index
    %c8_202 = arith.constant 8 : index
    %c0_203 = arith.constant 0 : index
    %c0_204 = arith.constant 0 : index
    %187 = vector.load %arg8[%c0_201, %c8_202, %c0_203, %c0_204] : memref<2x9x32x32xf32, #tpu.memory_space<vmem>>, vector<1x1x32x32xf32>
    %188 = vector.shape_cast %187 : vector<1x1x32x32xf32> to vector<32x32xf32>
    %cst_205 = arith.constant dense<0.000000e+00> : vector<16x32xf32>
    %189 = tpu.matmul %186, %188, %cst_205 {dimension_numbers = #tpu.dot_dimension_numbers<[1], [0], [0], [1], [0, 0, 1, 1], [], []>} : vector<16x32xf32>, vector<32x32xf32>, vector<16x32xf32> -> vector<16x32xf32>
    %190 = arith.addf %183, %189 : vector<16x32xf32>
    %c0_206 = arith.constant 0 : index
    %c0_207 = arith.constant 0 : index
    %c0_208 = arith.constant 0 : index
    %191 = vector.load %arg9[%c0_206, %c0_207, %c0_208] : memref<2x1x32xf32, #tpu.memory_space<vmem>>, vector<1x1x32xf32>
    %192 = vector.shape_cast %191 : vector<1x1x32xf32> to vector<1x32xf32>
    %193 = vector.broadcast %192 : vector<1x32xf32> to vector<16x32xf32>
    %194 = arith.addf %190, %193 : vector<16x32xf32>
    %cst_209 = arith.constant 0.000000e+00 : f32
    %195 = vector.broadcast %cst_209 : f32 to vector<16x32xf32>
    %196 = arith.maximumf %194, %195 : vector<16x32xf32>
    %c0_210 = arith.constant 0 : index
    %c0_211 = arith.constant 0 : index
    %c0_212 = arith.constant 0 : index
    %197 = vector.load %arg10[%c0_210, %c0_211, %c0_212] : memref<2x32x32xf32, #tpu.memory_space<vmem>>, vector<1x32x32xf32>
    %198 = vector.shape_cast %197 : vector<1x32x32xf32> to vector<32x32xf32>
    %cst_213 = arith.constant dense<0.000000e+00> : vector<16x32xf32>
    %199 = tpu.matmul %196, %198, %cst_213 {dimension_numbers = #tpu.dot_dimension_numbers<[1], [0], [0], [1], [0, 0, 1, 1], [], []>} : vector<16x32xf32>, vector<32x32xf32>, vector<16x32xf32> -> vector<16x32xf32>
    %200 = arith.addf %124, %199 : vector<16x32xf32>
    %c0_214 = arith.constant 0 : index
    %c0_215 = arith.constant 0 : index
    %c0_216 = arith.constant 0 : index
    %201 = vector.load %arg11[%c0_214, %c0_215, %c0_216] : memref<2x1x32xf32, #tpu.memory_space<vmem>>, vector<1x1x32xf32>
    %202 = vector.shape_cast %201 : vector<1x1x32xf32> to vector<1x32xf32>
    %203 = vector.broadcast %202 : vector<1x32xf32> to vector<16x32xf32>
    %204 = arith.addf %200, %203 : vector<16x32xf32>
    %cst_217 = arith.constant 0.000000e+00 : f32
    %205 = vector.broadcast %cst_217 : f32 to vector<16x32xf32>
    %206 = arith.maximumf %204, %205 : vector<16x32xf32>
    %cst_218 = arith.constant 0.000000e+00 : f32
    %207 = vector.broadcast %cst_218 : f32 to vector<16x32xf32>
    %c0_219 = arith.constant 0 : index
    %c0_220 = arith.constant 0 : index
    %c0_221 = arith.constant 0 : index
    %208 = vector.load %arg7[%c0_219, %c0_220, %c0_221] : memref<9x16x16xf32, #tpu.memory_space<vmem>>, vector<1x16x16xf32>
    %209 = vector.shape_cast %208 : vector<1x16x16xf32> to vector<16x16xf32>
    %cst_222 = arith.constant dense<0.000000e+00> : vector<16x32xf32>
    %210 = tpu.matmul %209, %206, %cst_222 {dimension_numbers = #tpu.dot_dimension_numbers<[1], [0], [0], [1], [0, 0, 1, 1], [], []>} : vector<16x16xf32>, vector<16x32xf32>, vector<16x32xf32> -> vector<16x32xf32>
    %c1_223 = arith.constant 1 : index
    %c0_224 = arith.constant 0 : index
    %c0_225 = arith.constant 0 : index
    %c0_226 = arith.constant 0 : index
    %211 = vector.load %arg8[%c1_223, %c0_224, %c0_225, %c0_226] : memref<2x9x32x32xf32, #tpu.memory_space<vmem>>, vector<1x1x32x32xf32>
    %212 = vector.shape_cast %211 : vector<1x1x32x32xf32> to vector<32x32xf32>
    %cst_227 = arith.constant dense<0.000000e+00> : vector<16x32xf32>
    %213 = tpu.matmul %210, %212, %cst_227 {dimension_numbers = #tpu.dot_dimension_numbers<[1], [0], [0], [1], [0, 0, 1, 1], [], []>} : vector<16x32xf32>, vector<32x32xf32>, vector<16x32xf32> -> vector<16x32xf32>
    %214 = arith.addf %207, %213 : vector<16x32xf32>
    %c1_228 = arith.constant 1 : index
    %c0_229 = arith.constant 0 : index
    %c0_230 = arith.constant 0 : index
    %215 = vector.load %arg7[%c1_228, %c0_229, %c0_230] : memref<9x16x16xf32, #tpu.memory_space<vmem>>, vector<1x16x16xf32>
    %216 = vector.shape_cast %215 : vector<1x16x16xf32> to vector<16x16xf32>
    %cst_231 = arith.constant dense<0.000000e+00> : vector<16x32xf32>
    %217 = tpu.matmul %216, %206, %cst_231 {dimension_numbers = #tpu.dot_dimension_numbers<[1], [0], [0], [1], [0, 0, 1, 1], [], []>} : vector<16x16xf32>, vector<16x32xf32>, vector<16x32xf32> -> vector<16x32xf32>
    %c1_232 = arith.constant 1 : index
    %c1_233 = arith.constant 1 : index
    %c0_234 = arith.constant 0 : index
    %c0_235 = arith.constant 0 : index
    %218 = vector.load %arg8[%c1_232, %c1_233, %c0_234, %c0_235] : memref<2x9x32x32xf32, #tpu.memory_space<vmem>>, vector<1x1x32x32xf32>
    %219 = vector.shape_cast %218 : vector<1x1x32x32xf32> to vector<32x32xf32>
    %cst_236 = arith.constant dense<0.000000e+00> : vector<16x32xf32>
    %220 = tpu.matmul %217, %219, %cst_236 {dimension_numbers = #tpu.dot_dimension_numbers<[1], [0], [0], [1], [0, 0, 1, 1], [], []>} : vector<16x32xf32>, vector<32x32xf32>, vector<16x32xf32> -> vector<16x32xf32>
    %221 = arith.addf %214, %220 : vector<16x32xf32>
    %c2_237 = arith.constant 2 : index
    %c0_238 = arith.constant 0 : index
    %c0_239 = arith.constant 0 : index
    %222 = vector.load %arg7[%c2_237, %c0_238, %c0_239] : memref<9x16x16xf32, #tpu.memory_space<vmem>>, vector<1x16x16xf32>
    %223 = vector.shape_cast %222 : vector<1x16x16xf32> to vector<16x16xf32>
    %cst_240 = arith.constant dense<0.000000e+00> : vector<16x32xf32>
    %224 = tpu.matmul %223, %206, %cst_240 {dimension_numbers = #tpu.dot_dimension_numbers<[1], [0], [0], [1], [0, 0, 1, 1], [], []>} : vector<16x16xf32>, vector<16x32xf32>, vector<16x32xf32> -> vector<16x32xf32>
    %c1_241 = arith.constant 1 : index
    %c2_242 = arith.constant 2 : index
    %c0_243 = arith.constant 0 : index
    %c0_244 = arith.constant 0 : index
    %225 = vector.load %arg8[%c1_241, %c2_242, %c0_243, %c0_244] : memref<2x9x32x32xf32, #tpu.memory_space<vmem>>, vector<1x1x32x32xf32>
    %226 = vector.shape_cast %225 : vector<1x1x32x32xf32> to vector<32x32xf32>
    %cst_245 = arith.constant dense<0.000000e+00> : vector<16x32xf32>
    %227 = tpu.matmul %224, %226, %cst_245 {dimension_numbers = #tpu.dot_dimension_numbers<[1], [0], [0], [1], [0, 0, 1, 1], [], []>} : vector<16x32xf32>, vector<32x32xf32>, vector<16x32xf32> -> vector<16x32xf32>
    %228 = arith.addf %221, %227 : vector<16x32xf32>
    %c3_246 = arith.constant 3 : index
    %c0_247 = arith.constant 0 : index
    %c0_248 = arith.constant 0 : index
    %229 = vector.load %arg7[%c3_246, %c0_247, %c0_248] : memref<9x16x16xf32, #tpu.memory_space<vmem>>, vector<1x16x16xf32>
    %230 = vector.shape_cast %229 : vector<1x16x16xf32> to vector<16x16xf32>
    %cst_249 = arith.constant dense<0.000000e+00> : vector<16x32xf32>
    %231 = tpu.matmul %230, %206, %cst_249 {dimension_numbers = #tpu.dot_dimension_numbers<[1], [0], [0], [1], [0, 0, 1, 1], [], []>} : vector<16x16xf32>, vector<16x32xf32>, vector<16x32xf32> -> vector<16x32xf32>
    %c1_250 = arith.constant 1 : index
    %c3_251 = arith.constant 3 : index
    %c0_252 = arith.constant 0 : index
    %c0_253 = arith.constant 0 : index
    %232 = vector.load %arg8[%c1_250, %c3_251, %c0_252, %c0_253] : memref<2x9x32x32xf32, #tpu.memory_space<vmem>>, vector<1x1x32x32xf32>
    %233 = vector.shape_cast %232 : vector<1x1x32x32xf32> to vector<32x32xf32>
    %cst_254 = arith.constant dense<0.000000e+00> : vector<16x32xf32>
    %234 = tpu.matmul %231, %233, %cst_254 {dimension_numbers = #tpu.dot_dimension_numbers<[1], [0], [0], [1], [0, 0, 1, 1], [], []>} : vector<16x32xf32>, vector<32x32xf32>, vector<16x32xf32> -> vector<16x32xf32>
    %235 = arith.addf %228, %234 : vector<16x32xf32>
    %c4_255 = arith.constant 4 : index
    %c0_256 = arith.constant 0 : index
    %c0_257 = arith.constant 0 : index
    %236 = vector.load %arg7[%c4_255, %c0_256, %c0_257] : memref<9x16x16xf32, #tpu.memory_space<vmem>>, vector<1x16x16xf32>
    %237 = vector.shape_cast %236 : vector<1x16x16xf32> to vector<16x16xf32>
    %cst_258 = arith.constant dense<0.000000e+00> : vector<16x32xf32>
    %238 = tpu.matmul %237, %206, %cst_258 {dimension_numbers = #tpu.dot_dimension_numbers<[1], [0], [0], [1], [0, 0, 1, 1], [], []>} : vector<16x16xf32>, vector<16x32xf32>, vector<16x32xf32> -> vector<16x32xf32>
    %c1_259 = arith.constant 1 : index
    %c4_260 = arith.constant 4 : index
    %c0_261 = arith.constant 0 : index
    %c0_262 = arith.constant 0 : index
    %239 = vector.load %arg8[%c1_259, %c4_260, %c0_261, %c0_262] : memref<2x9x32x32xf32, #tpu.memory_space<vmem>>, vector<1x1x32x32xf32>
    %240 = vector.shape_cast %239 : vector<1x1x32x32xf32> to vector<32x32xf32>
    %cst_263 = arith.constant dense<0.000000e+00> : vector<16x32xf32>
    %241 = tpu.matmul %238, %240, %cst_263 {dimension_numbers = #tpu.dot_dimension_numbers<[1], [0], [0], [1], [0, 0, 1, 1], [], []>} : vector<16x32xf32>, vector<32x32xf32>, vector<16x32xf32> -> vector<16x32xf32>
    %242 = arith.addf %235, %241 : vector<16x32xf32>
    %c5_264 = arith.constant 5 : index
    %c0_265 = arith.constant 0 : index
    %c0_266 = arith.constant 0 : index
    %243 = vector.load %arg7[%c5_264, %c0_265, %c0_266] : memref<9x16x16xf32, #tpu.memory_space<vmem>>, vector<1x16x16xf32>
    %244 = vector.shape_cast %243 : vector<1x16x16xf32> to vector<16x16xf32>
    %cst_267 = arith.constant dense<0.000000e+00> : vector<16x32xf32>
    %245 = tpu.matmul %244, %206, %cst_267 {dimension_numbers = #tpu.dot_dimension_numbers<[1], [0], [0], [1], [0, 0, 1, 1], [], []>} : vector<16x16xf32>, vector<16x32xf32>, vector<16x32xf32> -> vector<16x32xf32>
    %c1_268 = arith.constant 1 : index
    %c5_269 = arith.constant 5 : index
    %c0_270 = arith.constant 0 : index
    %c0_271 = arith.constant 0 : index
    %246 = vector.load %arg8[%c1_268, %c5_269, %c0_270, %c0_271] : memref<2x9x32x32xf32, #tpu.memory_space<vmem>>, vector<1x1x32x32xf32>
    %247 = vector.shape_cast %246 : vector<1x1x32x32xf32> to vector<32x32xf32>
    %cst_272 = arith.constant dense<0.000000e+00> : vector<16x32xf32>
    %248 = tpu.matmul %245, %247, %cst_272 {dimension_numbers = #tpu.dot_dimension_numbers<[1], [0], [0], [1], [0, 0, 1, 1], [], []>} : vector<16x32xf32>, vector<32x32xf32>, vector<16x32xf32> -> vector<16x32xf32>
    %249 = arith.addf %242, %248 : vector<16x32xf32>
    %c6_273 = arith.constant 6 : index
    %c0_274 = arith.constant 0 : index
    %c0_275 = arith.constant 0 : index
    %250 = vector.load %arg7[%c6_273, %c0_274, %c0_275] : memref<9x16x16xf32, #tpu.memory_space<vmem>>, vector<1x16x16xf32>
    %251 = vector.shape_cast %250 : vector<1x16x16xf32> to vector<16x16xf32>
    %cst_276 = arith.constant dense<0.000000e+00> : vector<16x32xf32>
    %252 = tpu.matmul %251, %206, %cst_276 {dimension_numbers = #tpu.dot_dimension_numbers<[1], [0], [0], [1], [0, 0, 1, 1], [], []>} : vector<16x16xf32>, vector<16x32xf32>, vector<16x32xf32> -> vector<16x32xf32>
    %c1_277 = arith.constant 1 : index
    %c6_278 = arith.constant 6 : index
    %c0_279 = arith.constant 0 : index
    %c0_280 = arith.constant 0 : index
    %253 = vector.load %arg8[%c1_277, %c6_278, %c0_279, %c0_280] : memref<2x9x32x32xf32, #tpu.memory_space<vmem>>, vector<1x1x32x32xf32>
    %254 = vector.shape_cast %253 : vector<1x1x32x32xf32> to vector<32x32xf32>
    %cst_281 = arith.constant dense<0.000000e+00> : vector<16x32xf32>
    %255 = tpu.matmul %252, %254, %cst_281 {dimension_numbers = #tpu.dot_dimension_numbers<[1], [0], [0], [1], [0, 0, 1, 1], [], []>} : vector<16x32xf32>, vector<32x32xf32>, vector<16x32xf32> -> vector<16x32xf32>
    %256 = arith.addf %249, %255 : vector<16x32xf32>
    %c7_282 = arith.constant 7 : index
    %c0_283 = arith.constant 0 : index
    %c0_284 = arith.constant 0 : index
    %257 = vector.load %arg7[%c7_282, %c0_283, %c0_284] : memref<9x16x16xf32, #tpu.memory_space<vmem>>, vector<1x16x16xf32>
    %258 = vector.shape_cast %257 : vector<1x16x16xf32> to vector<16x16xf32>
    %cst_285 = arith.constant dense<0.000000e+00> : vector<16x32xf32>
    %259 = tpu.matmul %258, %206, %cst_285 {dimension_numbers = #tpu.dot_dimension_numbers<[1], [0], [0], [1], [0, 0, 1, 1], [], []>} : vector<16x16xf32>, vector<16x32xf32>, vector<16x32xf32> -> vector<16x32xf32>
    %c1_286 = arith.constant 1 : index
    %c7_287 = arith.constant 7 : index
    %c0_288 = arith.constant 0 : index
    %c0_289 = arith.constant 0 : index
    %260 = vector.load %arg8[%c1_286, %c7_287, %c0_288, %c0_289] : memref<2x9x32x32xf32, #tpu.memory_space<vmem>>, vector<1x1x32x32xf32>
    %261 = vector.shape_cast %260 : vector<1x1x32x32xf32> to vector<32x32xf32>
    %cst_290 = arith.constant dense<0.000000e+00> : vector<16x32xf32>
    %262 = tpu.matmul %259, %261, %cst_290 {dimension_numbers = #tpu.dot_dimension_numbers<[1], [0], [0], [1], [0, 0, 1, 1], [], []>} : vector<16x32xf32>, vector<32x32xf32>, vector<16x32xf32> -> vector<16x32xf32>
    %263 = arith.addf %256, %262 : vector<16x32xf32>
    %c8_291 = arith.constant 8 : index
    %c0_292 = arith.constant 0 : index
    %c0_293 = arith.constant 0 : index
    %264 = vector.load %arg7[%c8_291, %c0_292, %c0_293] : memref<9x16x16xf32, #tpu.memory_space<vmem>>, vector<1x16x16xf32>
    %265 = vector.shape_cast %264 : vector<1x16x16xf32> to vector<16x16xf32>
    %cst_294 = arith.constant dense<0.000000e+00> : vector<16x32xf32>
    %266 = tpu.matmul %265, %206, %cst_294 {dimension_numbers = #tpu.dot_dimension_numbers<[1], [0], [0], [1], [0, 0, 1, 1], [], []>} : vector<16x16xf32>, vector<16x32xf32>, vector<16x32xf32> -> vector<16x32xf32>
    %c1_295 = arith.constant 1 : index
    %c8_296 = arith.constant 8 : index
    %c0_297 = arith.constant 0 : index
    %c0_298 = arith.constant 0 : index
    %267 = vector.load %arg8[%c1_295, %c8_296, %c0_297, %c0_298] : memref<2x9x32x32xf32, #tpu.memory_space<vmem>>, vector<1x1x32x32xf32>
    %268 = vector.shape_cast %267 : vector<1x1x32x32xf32> to vector<32x32xf32>
    %cst_299 = arith.constant dense<0.000000e+00> : vector<16x32xf32>
    %269 = tpu.matmul %266, %268, %cst_299 {dimension_numbers = #tpu.dot_dimension_numbers<[1], [0], [0], [1], [0, 0, 1, 1], [], []>} : vector<16x32xf32>, vector<32x32xf32>, vector<16x32xf32> -> vector<16x32xf32>
    %270 = arith.addf %263, %269 : vector<16x32xf32>
    %c1_300 = arith.constant 1 : index
    %c0_301 = arith.constant 0 : index
    %c0_302 = arith.constant 0 : index
    %271 = vector.load %arg9[%c1_300, %c0_301, %c0_302] : memref<2x1x32xf32, #tpu.memory_space<vmem>>, vector<1x1x32xf32>
    %272 = vector.shape_cast %271 : vector<1x1x32xf32> to vector<1x32xf32>
    %273 = vector.broadcast %272 : vector<1x32xf32> to vector<16x32xf32>
    %274 = arith.addf %270, %273 : vector<16x32xf32>
    %cst_303 = arith.constant 0.000000e+00 : f32
    %275 = vector.broadcast %cst_303 : f32 to vector<16x32xf32>
    %276 = arith.maximumf %274, %275 : vector<16x32xf32>
    %c1_304 = arith.constant 1 : index
    %c0_305 = arith.constant 0 : index
    %c0_306 = arith.constant 0 : index
    %277 = vector.load %arg10[%c1_304, %c0_305, %c0_306] : memref<2x32x32xf32, #tpu.memory_space<vmem>>, vector<1x32x32xf32>
    %278 = vector.shape_cast %277 : vector<1x32x32xf32> to vector<32x32xf32>
    %cst_307 = arith.constant dense<0.000000e+00> : vector<16x32xf32>
    %279 = tpu.matmul %276, %278, %cst_307 {dimension_numbers = #tpu.dot_dimension_numbers<[1], [0], [0], [1], [0, 0, 1, 1], [], []>} : vector<16x32xf32>, vector<32x32xf32>, vector<16x32xf32> -> vector<16x32xf32>
    %280 = arith.addf %204, %279 : vector<16x32xf32>
    %c1_308 = arith.constant 1 : index
    %c0_309 = arith.constant 0 : index
    %c0_310 = arith.constant 0 : index
    %281 = vector.load %arg11[%c1_308, %c0_309, %c0_310] : memref<2x1x32xf32, #tpu.memory_space<vmem>>, vector<1x1x32xf32>
    %282 = vector.shape_cast %281 : vector<1x1x32xf32> to vector<1x32xf32>
    %283 = vector.broadcast %282 : vector<1x32xf32> to vector<16x32xf32>
    %284 = arith.addf %280, %283 : vector<16x32xf32>
    %c0_311 = arith.constant 0 : index
    %c0_312 = arith.constant 0 : index
    %285 = vector.load %arg12[%c0_311, %c0_312] : memref<32x8xf32, #tpu.memory_space<vmem>>, vector<32x8xf32>
    %cst_313 = arith.constant dense<0.000000e+00> : vector<16x8xf32>
    %286 = tpu.matmul %284, %285, %cst_313 {dimension_numbers = #tpu.dot_dimension_numbers<[1], [0], [0], [1], [0, 0, 1, 1], [], []>} : vector<16x32xf32>, vector<32x8xf32>, vector<16x8xf32> -> vector<16x8xf32>
    %c0_314 = arith.constant 0 : index
    %c0_315 = arith.constant 0 : index
    %287 = vector.load %arg13[%c0_314, %c0_315] : memref<1x8xf32, #tpu.memory_space<vmem>>, vector<1x8xf32>
    %288 = vector.broadcast %287 : vector<1x8xf32> to vector<16x8xf32>
    %289 = arith.addf %286, %288 : vector<16x8xf32>
    %c0_316 = arith.constant 0 : index
    %c0_317 = arith.constant 0 : index
    %c0_318 = arith.constant 0 : index
    %290 = vector.load %arg14[%c0_316, %c0_317, %c0_318] : memref<1x16x8xf32, #tpu.memory_space<vmem>>, vector<1x16x8xf32>
    %291 = vector.shape_cast %290 : vector<1x16x8xf32> to vector<16x8xf32>
    %292 = vector.shape_cast %289 : vector<16x8xf32> to vector<1x16x8xf32>
    tpu.vector_store %arg14[%c0_316, %c0_317, %c0_318], %292 {strides = array<i32>} : memref<1x16x8xf32, #tpu.memory_space<vmem>>, vector<1x16x8xf32>,
    return
  }
  func.func @transform_0(%arg0: i32) -> (i32, i32, i32) {
    %c0_i32 = arith.constant 0 : i32
    %c0_i32_0 = arith.constant 0 : i32
    %c0_i32_1 = arith.constant 0 : i32
    return %arg0, %c0_i32, %c0_i32_0 : i32, i32, i32
  }
  func.func @transform_1(%arg0: i32) -> (i32, i32) {
    %c0_i32 = arith.constant 0 : i32
    %c0_i32_0 = arith.constant 0 : i32
    %c0_i32_1 = arith.constant 0 : i32
    return %c0_i32, %c0_i32_0 : i32, i32
  }
  func.func @transform_2(%arg0: i32) -> (i32, i32) {
    %c0_i32 = arith.constant 0 : i32
    %c0_i32_0 = arith.constant 0 : i32
    %c0_i32_1 = arith.constant 0 : i32
    return %c0_i32, %c0_i32_0 : i32, i32
  }
  func.func @transform_3(%arg0: i32) -> (i32, i32, i32) {
    %c0_i32 = arith.constant 0 : i32
    %c0_i32_0 = arith.constant 0 : i32
    %c0_i32_1 = arith.constant 0 : i32
    %c0_i32_2 = arith.constant 0 : i32
    return %c0_i32, %c0_i32_0, %c0_i32_1 : i32, i32, i32
  }
  func.func @transform_4(%arg0: i32) -> (i32, i32, i32) {
    %c0_i32 = arith.constant 0 : i32
    %c0_i32_0 = arith.constant 0 : i32
    %c0_i32_1 = arith.constant 0 : i32
    %c0_i32_2 = arith.constant 0 : i32
    return %c0_i32, %c0_i32_0, %c0_i32_1 : i32, i32, i32
  }
  func.func @transform_5(%arg0: i32) -> (i32, i32) {
    %c0_i32 = arith.constant 0 : i32
    %c0_i32_0 = arith.constant 0 : i32
    %c0_i32_1 = arith.constant 0 : i32
    return %c0_i32, %c0_i32_0 : i32, i32
  }
  func.func @transform_6(%arg0: i32) -> (i32, i32, i32) {
    %c0_i32 = arith.constant 0 : i32
    %c0_i32_0 = arith.constant 0 : i32
    %c0_i32_1 = arith.constant 0 : i32
    %c0_i32_2 = arith.constant 0 : i32
    return %c0_i32, %c0_i32_0, %c0_i32_1 : i32, i32, i32
  }
  func.func @transform_7(%arg0: i32) -> (i32, i32, i32, i32) {
    %c0_i32 = arith.constant 0 : i32
    %c0_i32_0 = arith.constant 0 : i32
    %c0_i32_1 = arith.constant 0 : i32
    %c0_i32_2 = arith.constant 0 : i32
    %c0_i32_3 = arith.constant 0 : i32
    return %c0_i32, %c0_i32_0, %c0_i32_1, %c0_i32_2 : i32, i32, i32, i32
  }
  func.func @transform_8(%arg0: i32) -> (i32, i32, i32) {
    %c0_i32 = arith.constant 0 : i32
    %c0_i32_0 = arith.constant 0 : i32
    %c0_i32_1 = arith.constant 0 : i32
    %c0_i32_2 = arith.constant 0 : i32
    return %c0_i32, %c0_i32_0, %c0_i32_1 : i32, i32, i32
  }
  func.func @transform_9(%arg0: i32) -> (i32, i32, i32) {
    %c0_i32 = arith.constant 0 : i32
    %c0_i32_0 = arith.constant 0 : i32
    %c0_i32_1 = arith.constant 0 : i32
    %c0_i32_2 = arith.constant 0 : i32
    return %c0_i32, %c0_i32_0, %c0_i32_1 : i32, i32, i32
  }
  func.func @transform_10(%arg0: i32) -> (i32, i32, i32) {
    %c0_i32 = arith.constant 0 : i32
    %c0_i32_0 = arith.constant 0 : i32
    %c0_i32_1 = arith.constant 0 : i32
    %c0_i32_2 = arith.constant 0 : i32
    return %c0_i32, %c0_i32_0, %c0_i32_1 : i32, i32, i32
  }
  func.func @transform_11(%arg0: i32) -> (i32, i32) {
    %c0_i32 = arith.constant 0 : i32
    %c0_i32_0 = arith.constant 0 : i32
    %c0_i32_1 = arith.constant 0 : i32
    return %c0_i32, %c0_i32_0 : i32, i32
  }
  func.func @transform_12(%arg0: i32) -> (i32, i32) {
    %c0_i32 = arith.constant 0 : i32
    %c0_i32_0 = arith.constant 0 : i32
    %c0_i32_1 = arith.constant 0 : i32
    return %c0_i32, %c0_i32_0 : i32, i32
  }
  func.func @transform_13(%arg0: i32) -> (i32, i32, i32) {
    %c0_i32 = arith.constant 0 : i32
    %c0_i32_0 = arith.constant 0 : i32
    %c0_i32_1 = arith.constant 0 : i32
    return %arg0, %c0_i32, %c0_i32_0 : i32, i32, i32
  }
}

</mosaic_0001>

<llo_original>
// kernel: encoder_forward_pallas.1
$region0: #{encoder_forward_pallas.1}
  #allocation0 [shape = 'u32[]', space=smem, size = 0x4, offset = 0x4, fixed_abs, tag = 'smem constant byte address 0x4 - core index']
  #allocation1 [shape = 'u32[144,128]{1,0:T(1,128)}', space=vmem, size = 0x12000, scoped, tag = 'internal scratch']
  %s0 = inlined_call_operand.vmem [shape: f32[2,64,48], index: 0, kind: input, shape index: {}]
  %s1 = inlined_call_operand.vmem [shape: f32[48,32], index: 1, kind: input, shape index: {}]
  %s2 = inlined_call_operand.vmem [shape: f32[1,32], index: 2, kind: input, shape index: {}]
  %s3 = inlined_call_operand.vmem [shape: f32[16,16,64], index: 3, kind: input, shape index: {}]
  %s4 = inlined_call_operand.vmem [shape: f32[16,32,32], index: 4, kind: input, shape index: {}]
  %s5 = inlined_call_operand.vmem [shape: f32[1,32], index: 5, kind: input, shape index: {}]
  %s6 = inlined_call_operand.vmem [shape: f32[9,16,16], index: 6, kind: input, shape index: {}]
  %s7 = inlined_call_operand.vmem [shape: f32[2,9,32,32], index: 7, kind: input, shape index: {}]
  %s8 = inlined_call_operand.vmem [shape: f32[2,1,32], index: 8, kind: input, shape index: {}]
  %s9 = inlined_call_operand.vmem [shape: f32[2,32,32], index: 9, kind: input, shape index: {}]
  %s10 = inlined_call_operand.vmem [shape: f32[2,1,32], index: 10, kind: input, shape index: {}]
  %s11 = inlined_call_operand.vmem [shape: f32[32,8], index: 11, kind: input, shape index: {}]
  %s12 = inlined_call_operand.vmem [shape: f32[1,8], index: 12, kind: input, shape index: {}]
  %s13 = inlined_call_operand.hbm [shape: f32[2,16,8], index: 13, kind: output, shape index: {}]
  %s14 = sld [smem:[#allocation0]]
  $region85: #{encoder_forward_pallas.1} parent=0
    _
  %s16 = ssub.s32 1, %s14
  %s17 = scalar_select 0, %s16, %s14
  $region1: #{encoder_forward_pallas.1} parent=0
    #allocation2 [shape = 'u8[16384]{0}', space=vmem, size = 0x4000, scoped, tag = 'output window, operand 0']
    #allocation3 [shape = 's32[2]{0}', space=sflag, size = 0x8, scoped, tag = 'scoped memory for encoder_forward_pallas.1']
    %18 = vsyncpa [#allocation3], 0
    %s19 = scalar_lea.sflag [#allocation3], 1
    %20 = vsyncpa %s19, 0
    loop: start=0, step=1, limit=4
    $region2: #{encoder_forward_pallas.1} parent=1 // loop_pre_header
      _
    $region3: #{encoder_forward_pallas.1} parent=1 // loop_header
      %s22 = sphi 0, %s26
      %p23 = scmp.ge.s32.totalorder %s22, 4
      %s32 = sphi 0, %s34
      %s35 = sphi 0, %s32
      %s36 = sphi 0, %s35
      %s52 = sphi 0, %s36
      %s56 = sphi 0, %s56
      %s58 = sphi 0, %s56
      %s59 = sphi 0, %s58
      %s73 = sphi 0, %s59
      %s77 = sphi 0, %s77
      %s79 = sphi 0, %s77
      %s80 = sphi 0, %s79
      %s94 = sphi 0, %s80
      %s98 = sphi 0, %s98
      %s100 = sphi 0, %s98
      %s101 = sphi 0, %s100
      %s115 = sphi 0, %s101
      %s119 = sphi 0, %s119
      %s121 = sphi 0, %s119
      %s122 = sphi 0, %s121
      %s136 = sphi 0, %s122
      %s140 = sphi 0, %s140
      %s142 = sphi 0, %s140
      %s143 = sphi 0, %s142
      %s157 = sphi 0, %s143
      %s161 = sphi 0, %s161
      %s163 = sphi 0, %s161
      %s164 = sphi 0, %s163
      %s178 = sphi 0, %s164
      %s182 = sphi 0, %s182
      %s184 = sphi 0, %s182
      %s185 = sphi 0, %s184
      %s199 = sphi 0, %s185
      %s203 = sphi 0, %s203
      %s205 = sphi 0, %s203
      %s206 = sphi 0, %s205
      %s220 = sphi 0, %s206
      %s224 = sphi 0, %s224
      %s226 = sphi 0, %s224
      %s227 = sphi 0, %s226
      %s241 = sphi 0, %s227
      %s245 = sphi 0, %s245
      %s247 = sphi 0, %s245
      %s248 = sphi 0, %s247
      %s262 = sphi 0, %s248
      %s266 = sphi 0, %s266
      %s268 = sphi 0, %s266
      %s269 = sphi 0, %s268
      %s283 = sphi 0, %s269
      %s287 = sphi 0, %s287
      %s289 = sphi 0, %s287
      %s290 = sphi 0, %s289
      %s304 = sphi 0, %s290
      %s310 = sphi 0, %s312
      %s313 = sphi 0, %s310
      %s314 = sphi 0, %s313
      %s330 = sphi 0, %s314
    $region4: #{encoder_forward_pallas.1} parent=1 // loop_header_branch
      %25 = sbr.rel (%p23) target = $region8
    $region5: #{encoder_forward_pallas.1} parent=1 // loop_body
      %s27 = ssub.s32 %s22, 1
      %s28 = ssub.s32 %s22, 2
      %s29 = sadd.s32 %s22, 1
      %s30 = ssub.s32 %s22, %s29
      %p31 = scmp.eq.s32.totalorder %s30, 0
      %s33 = sadd.s32 %s32, 1
      %s34 = scalar_select %p31, %s32, %s33
      %p37 = pneg %p31
      %p38 = scmp.eq.s32.totalorder %s22, 1
      %p39 = por %p37, %p38
      %p40 = scmp.ne.s32.totalorder %s32, %s35
      %p41 = scmp.eq.s32.totalorder %s22, 0
      %p42 = por %p40, %p41
      %p43 = scmp.ne.s32.totalorder %s32, %s35
      %p44 = scmp.eq.s32.totalorder %s27, 1
      %p45 = por %p43, %p44
      %p46 = scmp.ne.s32.totalorder %s35, %s36
      %p47 = scmp.eq.s32.totalorder %s27, 0
      %p48 = por %p46, %p47
      %p49 = scmp.ne.s32.totalorder %s35, %s36
      %p50 = scmp.eq.s32.totalorder %s28, 1
      %p51 = por %p49, %p50
      %p53 = scmp.ne.s32.totalorder %s36, %s52
      %p54 = scmp.eq.s32.totalorder %s28, 0
      %p55 = por %p53, %p54
      %s57 = sadd.s32 %s56, 1
      %p60 = scmp.eq.s32.totalorder %s22, 1
      %p61 = scmp.ne.s32.totalorder %s56, %s58
      %p62 = scmp.eq.s32.totalorder %s22, 0
      %p63 = por %p61, %p62
      %p64 = scmp.ne.s32.totalorder %s56, %s58
      %p65 = scmp.eq.s32.totalorder %s27, 1
      %p66 = por %p64, %p65
      %p67 = scmp.ne.s32.totalorder %s58, %s59
      %p68 = scmp.eq.s32.totalorder %s27, 0
      %p69 = por %p67, %p68
      %p70 = scmp.ne.s32.totalorder %s58, %s59
      %p71 = scmp.eq.s32.totalorder %s28, 1
      %p72 = por %p70, %p71
      %p74 = scmp.ne.s32.totalorder %s59, %s73
      %p75 = scmp.eq.s32.totalorder %s28, 0
      %p76 = por %p74, %p75
      %s78 = sadd.s32 %s77, 1
      %p81 = scmp.eq.s32.totalorder %s22, 1
      %p82 = scmp.ne.s32.totalorder %s77, %s79
      %p83 = scmp.eq.s32.totalorder %s22, 0
      %p84 = por %p82, %p83
      %p85 = scmp.ne.s32.totalorder %s77, %s79
      %p86 = scmp.eq.s32.totalorder %s27, 1
      %p87 = por %p85, %p86
      %p88 = scmp.ne.s32.totalorder %s79, %s80
      %p89 = scmp.eq.s32.totalorder %s27, 0
      %p90 = por %p88, %p89
      %p91 = scmp.ne.s32.totalorder %s79, %s80
      %p92 = scmp.eq.s32.totalorder %s28, 1
      %p93 = por %p91, %p92
      %p95 = scmp.ne.s32.totalorder %s80, %s94
      %p96 = scmp.eq.s32.totalorder %s28, 0
      %p97 = por %p95, %p96
      %s99 = sadd.s32 %s98, 1
      %p102 = scmp.eq.s32.totalorder %s22, 1
      %p103 = scmp.ne.s32.totalorder %s98, %s100
      %p104 = scmp.eq.s32.totalorder %s22, 0
      %p105 = por %p103, %p104
      %p106 = scmp.ne.s32.totalorder %s98, %s100
      %p107 = scmp.eq.s32.totalorder %s27, 1
      %p108 = por %p106, %p107
      %p109 = scmp.ne.s32.totalorder %s100, %s101
      %p110 = scmp.eq.s32.totalorder %s27, 0
      %p111 = por %p109, %p110
      %p112 = scmp.ne.s32.totalorder %s100, %s101
      %p113 = scmp.eq.s32.totalorder %s28, 1
      %p114 = por %p112, %p113
      %p116 = scmp.ne.s32.totalorder %s101, %s115
      %p117 = scmp.eq.s32.totalorder %s28, 0
      %p118 = por %p116, %p117
      %s120 = sadd.s32 %s119, 1
      %p123 = scmp.eq.s32.totalorder %s22, 1
      %p124 = scmp.ne.s32.totalorder %s119, %s121
      %p125 = scmp.eq.s32.totalorder %s22, 0
      %p126 = por %p124, %p125
      %p127 = scmp.ne.s32.totalorder %s119, %s121
      %p128 = scmp.eq.s32.totalorder %s27, 1
      %p129 = por %p127, %p128
      %p130 = scmp.ne.s32.totalorder %s121, %s122
      %p131 = scmp.eq.s32.totalorder %s27, 0
      %p132 = por %p130, %p131
      %p133 = scmp.ne.s32.totalorder %s121, %s122
      %p134 = scmp.eq.s32.totalorder %s28, 1
      %p135 = por %p133, %p134
      %p137 = scmp.ne.s32.totalorder %s122, %s136
      %p138 = scmp.eq.s32.totalorder %s28, 0
      %p139 = por %p137, %p138
      %s141 = sadd.s32 %s140, 1
      %p144 = scmp.eq.s32.totalorder %s22, 1
      %p145 = scmp.ne.s32.totalorder %s140, %s142
      %p146 = scmp.eq.s32.totalorder %s22, 0
      %p147 = por %p145, %p146
      %p148 = scmp.ne.s32.totalorder %s140, %s142
      %p149 = scmp.eq.s32.totalorder %s27, 1
      %p150 = por %p148, %p149
      %p151 = scmp.ne.s32.totalorder %s142, %s143
      %p152 = scmp.eq.s32.totalorder %s27, 0
      %p153 = por %p151, %p152
      %p154 = scmp.ne.s32.totalorder %s142, %s143
      %p155 = scmp.eq.s32.totalorder %s28, 1
      %p156 = por %p154, %p155
      %p158 = scmp.ne.s32.totalorder %s143, %s157
      %p159 = scmp.eq.s32.totalorder %s28, 0
      %p160 = por %p158, %p159
      %s162 = sadd.s32 %s161, 1
      %p165 = scmp.eq.s32.totalorder %s22, 1
      %p166 = scmp.ne.s32.totalorder %s161, %s163
      %p167 = scmp.eq.s32.totalorder %s22, 0
      %p168 = por %p166, %p167
      %p169 = scmp.ne.s32.totalorder %s161, %s163
      %p170 = scmp.eq.s32.totalorder %s27, 1
      %p171 = por %p169, %p170
      %p172 = scmp.ne.s32.totalorder %s163, %s164
      %p173 = scmp.eq.s32.totalorder %s27, 0
      %p174 = por %p172, %p173
      %p175 = scmp.ne.s32.totalorder %s163, %s164
      %p176 = scmp.eq.s32.totalorder %s28, 1
      %p177 = por %p175, %p176
      %p179 = scmp.ne.s32.totalorder %s164, %s178
      %p180 = scmp.eq.s32.totalorder %s28, 0
      %p181 = por %p179, %p180
      %s183 = sadd.s32 %s182, 1
      %p186 = scmp.eq.s32.totalorder %s22, 1
      %p187 = scmp.ne.s32.totalorder %s182, %s184
      %p188 = scmp.eq.s32.totalorder %s22, 0
      %p189 = por %p187, %p188
      %p190 = scmp.ne.s32.totalorder %s182, %s184
      %p191 = scmp.eq.s32.totalorder %s27, 1
      %p192 = por %p190, %p191
      %p193 = scmp.ne.s32.totalorder %s184, %s185
      %p194 = scmp.eq.s32.totalorder %s27, 0
      %p195 = por %p193, %p194
      %p196 = scmp.ne.s32.totalorder %s184, %s185
      %p197 = scmp.eq.s32.totalorder %s28, 1
      %p198 = por %p196, %p197
      %p200 = scmp.ne.s32.totalorder %s185, %s199
      %p201 = scmp.eq.s32.totalorder %s28, 0
      %p202 = por %p200, %p201
      %s204 = sadd.s32 %s203, 1
      %p207 = scmp.eq.s32.totalorder %s22, 1
      %p208 = scmp.ne.s32.totalorder %s203, %s205
      %p209 = scmp.eq.s32.totalorder %s22, 0
      %p210 = por %p208, %p209
      %p211 = scmp.ne.s32.totalorder %s203, %s205
      %p212 = scmp.eq.s32.totalorder %s27, 1
      %p213 = por %p211, %p212
      %p214 = scmp.ne.s32.totalorder %s205, %s206
      %p215 = scmp.eq.s32.totalorder %s27, 0
      %p216 = por %p214, %p215
      %p217 = scmp.ne.s32.totalorder %s205, %s206
      %p218 = scmp.eq.s32.totalorder %s28, 1
      %p219 = por %p217, %p218
      %p221 = scmp.ne.s32.totalorder %s206, %s220
      %p222 = scmp.eq.s32.totalorder %s28, 0
      %p223 = por %p221, %p222
      %s225 = sadd.s32 %s224, 1
      %p228 = scmp.eq.s32.totalorder %s22, 1
      %p229 = scmp.ne.s32.totalorder %s224, %s226
      %p230 = scmp.eq.s32.totalorder %s22, 0
      %p231 = por %p229, %p230
      %p232 = scmp.ne.s32.totalorder %s224, %s226
      %p233 = scmp.eq.s32.totalorder %s27, 1
      %p234 = por %p232, %p233
      %p235 = scmp.ne.s32.totalorder %s226, %s227
      %p236 = scmp.eq.s32.totalorder %s27, 0
      %p237 = por %p235, %p236
      %p238 = scmp.ne.s32.totalorder %s226, %s227
      %p239 = scmp.eq.s32.totalorder %s28, 1
      %p240 = por %p238, %p239
      %p242 = scmp.ne.s32.totalorder %s227, %s241
      %p243 = scmp.eq.s32.totalorder %s28, 0
      %p244 = por %p242, %p243
      %s246 = sadd.s32 %s245, 1
      %p249 = scmp.eq.s32.totalorder %s22, 1
      %p250 = scmp.ne.s32.totalorder %s245, %s247
      %p251 = scmp.eq.s32.totalorder %s22, 0
      %p252 = por %p250, %p251
      %p253 = scmp.ne.s32.totalorder %s245, %s247
      %p254 = scmp.eq.s32.totalorder %s27, 1
      %p255 = por %p253, %p254
      %p256 = scmp.ne.s32.totalorder %s247, %s248
      %p257 = scmp.eq.s32.totalorder %s27, 0
      %p258 = por %p256, %p257
      %p259 = scmp.ne.s32.totalorder %s247, %s248
      %p260 = scmp.eq.s32.totalorder %s28, 1
      %p261 = por %p259, %p260
      %p263 = scmp.ne.s32.totalorder %s248, %s262
      %p264 = scmp.eq.s32.totalorder %s28, 0
      %p265 = por %p263, %p264
      %s267 = sadd.s32 %s266, 1
      %p270 = scmp.eq.s32.totalorder %s22, 1
      %p271 = scmp.ne.s32.totalorder %s266, %s268
      %p272 = scmp.eq.s32.totalorder %s22, 0
      %p273 = por %p271, %p272
      %p274 = scmp.ne.s32.totalorder %s266, %s268
      %p275 = scmp.eq.s32.totalorder %s27, 1
      %p276 = por %p274, %p275
      %p277 = scmp.ne.s32.totalorder %s268, %s269
      %p278 = scmp.eq.s32.totalorder %s27, 0
      %p279 = por %p277, %p278
      %p280 = scmp.ne.s32.totalorder %s268, %s269
      %p281 = scmp.eq.s32.totalorder %s28, 1
      %p282 = por %p280, %p281
      %p284 = scmp.ne.s32.totalorder %s269, %s283
      %p285 = scmp.eq.s32.totalorder %s28, 0
      %p286 = por %p284, %p285
      %s288 = sadd.s32 %s287, 1
      %p291 = scmp.eq.s32.totalorder %s22, 1
      %p292 = scmp.ne.s32.totalorder %s287, %s289
      %p293 = scmp.eq.s32.totalorder %s22, 0
      %p294 = por %p292, %p293
      %p295 = scmp.ne.s32.totalorder %s287, %s289
      %p296 = scmp.eq.s32.totalorder %s27, 1
      %p297 = por %p295, %p296
      %p298 = scmp.ne.s32.totalorder %s289, %s290
      %p299 = scmp.eq.s32.totalorder %s27, 0
      %p300 = por %p298, %p299
      %p301 = scmp.ne.s32.totalorder %s289, %s290
      %p302 = scmp.eq.s32.totalorder %s28, 1
      %p303 = por %p301, %p302
      %p305 = scmp.ne.s32.totalorder %s290, %s304
      %p306 = scmp.eq.s32.totalorder %s28, 0
      %p307 = por %p305, %p306
      %s308 = ssub.s32 %s22, %s29
      %p309 = scmp.eq.s32.totalorder %s308, 0
      %s311 = sadd.s32 %s310, 1
      %s312 = scalar_select %p309, %s310, %s311
      %p315 = pneg %p309
      %p316 = scmp.eq.s32.totalorder %s22, 1
      %p317 = por %p315, %p316
      %p318 = scmp.ne.s32.totalorder %s310, %s313
      %p319 = scmp.eq.s32.totalorder %s22, 0
      %p320 = por %p318, %p319
      %p321 = scmp.ne.s32.totalorder %s310, %s313
      %p322 = scmp.eq.s32.totalorder %s27, 1
      %p323 = por %p321, %p322
      %p324 = scmp.ne.s32.totalorder %s313, %s314
      %p325 = scmp.eq.s32.totalorder %s27, 0
      %p326 = por %p324, %p325
      %p327 = scmp.ne.s32.totalorder %s313, %s314
      %p328 = scmp.eq.s32.totalorder %s28, 1
      %p329 = por %p327, %p328
      %p331 = scmp.ne.s32.totalorder %s314, %s330
      %p332 = scmp.eq.s32.totalorder %s28, 0
      %p333 = por %p331, %p332
      %p334 = scmp.le.s32.totalorder 1, %s22
      %p335 = scmp.lt.s32.totalorder %s22, 3
      %p336 = pnand %p334, %p335
      %p337 = pneg %p336
      // Predicated region
      $region9: #{encoder_forward_pallas.1} parent=5 // pred_check
        _
      $region10: #{encoder_forward_pallas.1} parent=5 // pred_check_branch
        %339 = sbr.rel (%p336) target = $region12
      $region11: #{encoder_forward_pallas.1} parent=5 // pred_region
        %s340 = ssub.s32 %s22, 1
        // Predicated region
        $region13: #{encoder_forward_pallas.1} parent=11 // pred_check
          %p341 = pneg %p69
        $region14: #{encoder_forward_pallas.1} parent=11 // pred_check_branch
          %343 = sbr.rel (%p341) target = $region16
        $region15: #{encoder_forward_pallas.1} parent=11 // pred_region
          _
        $region16: #{encoder_forward_pallas.1} parent=11 // pred_fallthru
          _
        // Predicated region
        $region17: #{encoder_forward_pallas.1} parent=11 // pred_check
          %p344 = pneg %p90
        $region18: #{encoder_forward_pallas.1} parent=11 // pred_check_branch
          %346 = sbr.rel (%p344) target = $region20
        $region19: #{encoder_forward_pallas.1} parent=11 // pred_region
          _
        $region20: #{encoder_forward_pallas.1} parent=11 // pred_fallthru
          _
        // Predicated region
        $region21: #{encoder_forward_pallas.1} parent=11 // pred_check
          %p347 = pneg %p111
        $region22: #{encoder_forward_pallas.1} parent=11 // pred_check_branch
          %349 = sbr.rel (%p347) target = $region24
        $region23: #{encoder_forward_pallas.1} parent=11 // pred_region
          _
        $region24: #{encoder_forward_pallas.1} parent=11 // pred_fallthru
          _
        // Predicated region
        $region25: #{encoder_forward_pallas.1} parent=11 // pred_check
          %p350 = pneg %p132
        $region26: #{encoder_forward_pallas.1} parent=11 // pred_check_branch
          %352 = sbr.rel (%p350) target = $region28
        $region27: #{encoder_forward_pallas.1} parent=11 // pred_region
          _
        $region28: #{encoder_forward_pallas.1} parent=11 // pred_fallthru
          _
        // Predicated region
        $region29: #{encoder_forward_pallas.1} parent=11 // pred_check
          %p353 = pneg %p153
        $region30: #{encoder_forward_pallas.1} parent=11 // pred_check_branch
          %355 = sbr.rel (%p353) target = $region32
        $region31: #{encoder_forward_pallas.1} parent=11 // pred_region
          _
        $region32: #{encoder_forward_pallas.1} parent=11 // pred_fallthru
          _
        // Predicated region
        $region33: #{encoder_forward_pallas.1} parent=11 // pred_check
          %p356 = pneg %p174
        $region34: #{encoder_forward_pallas.1} parent=11 // pred_check_branch
          %358 = sbr.rel (%p356) target = $region36
        $region35: #{encoder_forward_pallas.1} parent=11 // pred_region
          _
        $region36: #{encoder_forward_pallas.1} parent=11 // pred_fallthru
          _
        // Predicated region
        $region37: #{encoder_forward_pallas.1} parent=11 // pred_check
          %p359 = pneg %p195
        $region38: #{encoder_forward_pallas.1} parent=11 // pred_check_branch
          %361 = sbr.rel (%p359) target = $region40
        $region39: #{encoder_forward_pallas.1} parent=11 // pred_region
          _
        $region40: #{encoder_forward_pallas.1} parent=11 // pred_fallthru
          _
        // Predicated region
        $region41: #{encoder_forward_pallas.1} parent=11 // pred_check
          %p362 = pneg %p216
        $region42: #{encoder_forward_pallas.1} parent=11 // pred_check_branch
          %364 = sbr.rel (%p362) target = $region44
        $region43: #{encoder_forward_pallas.1} parent=11 // pred_region
          _
        $region44: #{encoder_forward_pallas.1} parent=11 // pred_fallthru
          _
        // Predicated region
        $region45: #{encoder_forward_pallas.1} parent=11 // pred_check
          %p365 = pneg %p237
        $region46: #{encoder_forward_pallas.1} parent=11 // pred_check_branch
          %367 = sbr.rel (%p365) target = $region48
        $region47: #{encoder_forward_pallas.1} parent=11 // pred_region
          _
        $region48: #{encoder_forward_pallas.1} parent=11 // pred_fallthru
          _
        // Predicated region
        $region49: #{encoder_forward_pallas.1} parent=11 // pred_check
          %p368 = pneg %p258
        $region50: #{encoder_forward_pallas.1} parent=11 // pred_check_branch
          %370 = sbr.rel (%p368) target = $region52
        $region51: #{encoder_forward_pallas.1} parent=11 // pred_region
          _
        $region52: #{encoder_forward_pallas.1} parent=11 // pred_fallthru
          _
        // Predicated region
        $region53: #{encoder_forward_pallas.1} parent=11 // pred_check
          %p371 = pneg %p279
        $region54: #{encoder_forward_pallas.1} parent=11 // pred_check_branch
          %373 = sbr.rel (%p371) target = $region56
        $region55: #{encoder_forward_pallas.1} parent=11 // pred_region
          _
        $region56: #{encoder_forward_pallas.1} parent=11 // pred_fallthru
          _
        // Predicated region
        $region57: #{encoder_forward_pallas.1} parent=11 // pred_check
          %p374 = pneg %p300
        $region58: #{encoder_forward_pallas.1} parent=11 // pred_check_branch
          %376 = sbr.rel (%p374) target = $region60
        $region59: #{encoder_forward_pallas.1} parent=11 // pred_region
          _
        $region60: #{encoder_forward_pallas.1} parent=11 // pred_fallthru
          _
      $region12: #{encoder_forward_pallas.1} parent=5 // pred_fallthru
        _
      %p377 = scmp.lt.s32.totalorder %s22, 2
      // Predicated region
      $region61: #{encoder_forward_pallas.1} parent=5 // pred_check
        %p378 = pneg %p377
      $region62: #{encoder_forward_pallas.1} parent=5 // pred_check_branch
        %380 = sbr.rel (%p378) target = $region64
      $region63: #{encoder_forward_pallas.1} parent=5 // pred_region
        // Predicated region
        $region65: #{encoder_forward_pallas.1} parent=63 // pred_check
          %p381 = pneg %p42
        $region66: #{encoder_forward_pallas.1} parent=63 // pred_check_branch
          %383 = sbr.rel (%p381) target = $region68
        $region67: #{encoder_forward_pallas.1} parent=63 // pred_region
          %p384 = scmp.lt.s32.totalorder %s22, 1
          %s385 = scalar_select %p384, %s22, 1
          %s386 = smul.addr %s385, 8
          %s387 = smul.addr %s386, 8
          %s388 = scalar_lea.vmem %s0, %s387
        $region68: #{encoder_forward_pallas.1} parent=63 // pred_fallthru
          _
      $region64: #{encoder_forward_pallas.1} parent=5 // pred_fallthru
        _
      %p389 = scmp.le.s32.totalorder 1, %s22
      %p390 = scmp.lt.s32.totalorder %s22, 3
      %p391 = pnand %p389, %p390
      %p392 = pneg %p391
      // Predicated region
      $region69: #{encoder_forward_pallas.1} parent=5 // pred_check
        _
      $region70: #{encoder_forward_pallas.1} parent=5 // pred_check_branch
        %394 = sbr.rel (%p391) target = $region72
      $region71: #{encoder_forward_pallas.1} parent=5 // pred_region
        %s395 = ssub.s32 %s22, 1
        %p396 = scmp.lt.s32.totalorder %s27, 1
        %s397 = scalar_select %p396, %s27, 1
        %s398 = smul.addr %s397, 8
        %s399 = smul.addr %s398, 8
        %s400 = scalar_lea.vmem %s0, %s399
        %p401 = pneg %p48
        %p402 = pneg %p45
        %p403 = pneg %p69
        %p404 = pneg %p66
        %p405 = pneg %p90
        %p406 = pneg %p87
        %p407 = pneg %p111
        %p408 = pneg %p108
        %p409 = pneg %p132
        %p410 = pneg %p129
        %p411 = pneg %p153
        %p412 = pneg %p150
        %p413 = pneg %p174
        %p414 = pneg %p171
        %p415 = pneg %p195
        %p416 = pneg %p192
        %p417 = pneg %p216
        %p418 = pneg %p213
        %p419 = pneg %p237
        %p420 = pneg %p234
        %p421 = pneg %p258
        %p422 = pneg %p255
        %p423 = pneg %p279
        %p424 = pneg %p276
        %p425 = pneg %p300
        %p426 = pneg %p297
        %p427 = pneg %p326
        %p428 = pneg %p323
        %s429 = sand.u32 %s313, 1
        %s430 = scalar_lea.sflag [#allocation3], %s429
        %s431 = sand.u32 %s313, 1
        %s432 = smul.addr %s431, 16
        %s433 = scalar_lea.vmem [#allocation2], %s432
        %p434 = scmp.lt.s32.totalorder %s27, 1
        %s435 = scalar_select %p434, %s27, 1
        %s436 = smul.addr %s435, 8
        %s437 = smul.addr %s436, 8
        %s438 = scalar_lea.vmem %s0, %s437
        %v439 = vld [vmem:[%s438] sm:$0xff]
        %v440 = vld [vmem:[%s438 + $0x8] sm:$0xff]
        %v441 = vld [vmem:[%s438 + $0x10] sm:$0xff]
        %v442 = vld [vmem:[%s438 + $0x18] sm:$0xff]
        %v443 = vld [vmem:[%s438 + $0x20] sm:$0xff]
        %v444 = vld [vmem:[%s438 + $0x28] sm:$0xff]
        %v445 = vld [vmem:[%s438 + $0x30] sm:$0xff]
        %v446 = vld [vmem:[%s438 + $0x38] sm:$0xff]
        %v447 = vld [vmem:[%s1] sm:$0xff]
        %v448 = vld [vmem:[%s1 + $0x8] sm:$0xff]
        %v449 = vld [vmem:[%s1 + $0x10] sm:$0xff]
        %v450 = vld [vmem:[%s1 + $0x18] sm:$0xff]
        %v451 = vld [vmem:[%s1 + $0x20] sm:$0xff]
        %v452 = vld [vmem:[%s1 + $0x28] sm:$0xff]
        %v453 = vld [vmem:[%s2] sm:$0x1]
        %v455 = vlaneseq
        %v456 = vshrl.u32 %v455, 7
        %v457 = vsub.s32 0, %v456
        %v458 = vrot.slane %v453, %v457
        %vm460 = vcmask 392192
        %v462 = vsel %vm460, %v439, 0
        %v465 = vsel %vm460, %v440, 0
        %v468 = vsel %vm460, %v441, 0
        %v471 = vsel %vm460, %v442, 0
        %v474 = vsel %vm460, %v443, 0
        %v477 = vsel %vm460, %v444, 0
        %v480 = vsel %vm460, %v445, 0
        %v483 = vsel %vm460, %v446, 0
        %485 = vmatprep.subr.mxu0 0.0
        %486 = vmatpush1.msra.mxu0 %v447
        %487 = vmatprep.subr.mxu0 0.0
        %488 = vmatpush1.msra.mxu0 %v448
        %489 = vmatprep.subr.mxu0 0.0
        %490 = vmatpush1.msra.mxu0 %v449
        %491 = vmatprep.subr.mxu0 0.0
        %492 = vmatpush1.msra.mxu0 %v450
        %493 = vmatprep.subr.mxu0 0.0
        %494 = vmatpush1.msra.mxu0 %v451
        %495 = vmatprep.subr.mxu0 0.0
        %496 = vmatpush1.msra.mxu0 %v452
        %497 = vmatprep.subr.mxu0 0.0
        %498 = vmatpush1.msra.mxu0 0.0
        %499 = vmatprep.subr.mxu0 0.0
        %500 = vmatpush1.msra.mxu0 0.0
        %501 = vmatprep.subr.mxu0 0.0
        %502 = vmatpush1.msra.mxu0 0.0
        %503 = vmatprep.subr.mxu0 0.0
        %504 = vmatpush1.msra.mxu0 0.0
        %505 = vmatprep.subr.mxu0 0.0
        %506 = vmatpush1.msra.mxu0 0.0
        %507 = vmatprep.subr.mxu0 0.0
        %508 = vmatpush1.msra.mxu0 0.0
        %509 = vmatprep.subr.mxu0 0.0
        %510 = vmatpush1.msra.mxu0 0.0
        %511 = vmatprep.subr.mxu0 0.0
        %512 = vmatpush1.msra.mxu0 0.0
        %513 = vmatprep.subr.mxu0 0.0
        %514 = vmatpush1.msra.mxu0 0.0
        %515 = vmatprep.subr.mxu0 0.0
        %516 = vmatpush1.msra.mxu0 0.0
        %517 = vmatprep.subr.mxu0 0.0
        %518 = vmatpush1.msra.mxu0 0.0
        %519 = vmatprep.subr.mxu0 0.0
        %520 = vmatpush1.msra.mxu0 0.0
        %521 = vmatprep.subr.mxu0 0.0
        %522 = vmatpush1.msra.mxu0 0.0
        %523 = vmatprep.subr.mxu0 0.0
        %524 = vmatpush1.msra.mxu0 0.0
        %525 = vmatprep.subr.mxu0 0.0
        %526 = vmatpush1.msra.mxu0 0.0
        %527 = vmatprep.subr.mxu0 0.0
        %528 = vmatpush1.msra.mxu0 0.0
        %529 = vmatprep.subr.mxu0 0.0
        %530 = vmatpush1.msra.mxu0 0.0
        %531 = vmatprep.subr.mxu0 0.0
        %532 = vmatpush1.msra.mxu0 0.0
        %533 = vmatprep.subr.mxu0 0.0
        %534 = vmatpush1.msra.mxu0 0.0
        %535 = vmatprep.subr.mxu0 0.0
        %536 = vmatpush1.msra.mxu0 0.0
        %537 = vmatprep.subr.mxu0 0.0
        %538 = vmatpush1.msra.mxu0 0.0
        %539 = vmatprep.subr.mxu0 0.0
        %540 = vmatpush1.msra.mxu0 0.0
        %541 = vmatprep.subr.mxu0 0.0
        %542 = vmatpush1.msra.mxu0 0.0
        %543 = vmatprep.subr.mxu0 0.0
        %544 = vmatpush1.msra.mxu0 0.0
        %545 = vmatprep.subr.mxu0 0.0
        %546 = vmatpush1.msra.mxu0 0.0
        %547 = vmatprep.subr.mxu0 0.0
        %548 = vmatpush1.msra.mxu0 0.0
        %549 = vmatprep.mubr.f32.mxu0 0.0
        %550 = vmatmul.mubr.f32.gmra.mrb[0].mxu0 %v462
        %v551 = vpop.f32.mrb[0].mxu0
        %v552 = vadd.f32 %v458, %v551
        %v553 = vpop.f32.mrb[0].mxu0
        %554 = vmatprep.mubr.f32.mxu0 0.0
        %555 = vmatmul.mubr.f32.gmra.mrb[0].mxu0 %v465
        %v556 = vpop.f32.mrb[0].mxu0
        %v557 = vadd.f32 %v458, %v556
        %v558 = vpop.f32.mrb[0].mxu0
        %559 = vmatprep.mubr.f32.mxu0 0.0
        %560 = vmatmul.mubr.f32.gmra.mrb[0].mxu0 %v468
        %v561 = vpop.f32.mrb[0].mxu0
        %v562 = vadd.f32 %v458, %v561
        %v563 = vpop.f32.mrb[0].mxu0
        %564 = vmatprep.mubr.f32.mxu0 0.0
        %565 = vmatmul.mubr.f32.gmra.mrb[0].mxu0 %v471
        %v566 = vpop.f32.mrb[0].mxu0
        %v567 = vadd.f32 %v458, %v566
        %v568 = vpop.f32.mrb[0].mxu0
        %569 = vmatprep.mubr.f32.mxu0 0.0
        %570 = vmatmul.mubr.f32.gmra.mrb[0].mxu0 %v474
        %v571 = vpop.f32.mrb[0].mxu0
        %v572 = vadd.f32 %v458, %v571
        %v573 = vpop.f32.mrb[0].mxu0
        %574 = vmatprep.mubr.f32.mxu0 0.0
        %575 = vmatmul.mubr.f32.gmra.mrb[0].mxu0 %v477
        %v576 = vpop.f32.mrb[0].mxu0
        %v577 = vadd.f32 %v458, %v576
        %v578 = vpop.f32.mrb[0].mxu0
        %579 = vmatprep.mubr.f32.mxu0 0.0
        %580 = vmatmul.mubr.f32.gmra.mrb[0].mxu0 %v480
        %v581 = vpop.f32.mrb[0].mxu0
        %v582 = vadd.f32 %v458, %v581
        %v583 = vpop.f32.mrb[0].mxu0
        %584 = vmatprep.mubr.f32.mxu0 0.0
        %585 = vmatmul.mubr.f32.gmra.mrb[0].mxu0 %v483
        %v586 = vpop.f32.mrb[0].mxu0
        %v587 = vadd.f32 %v458, %v586
        %v588 = vpop.f32.mrb[0].mxu0
        %589 = vdwg.mxu0
        %v590 = vmax.f32 %v552, 0.0
        %v591 = vmax.f32 %v557, 0.0
        %v592 = vmax.f32 %v562, 0.0
        %v593 = vmax.f32 %v567, 0.0
        %v594 = vmax.f32 %v572, 0.0
        %v595 = vmax.f32 %v577, 0.0
        %v596 = vmax.f32 %v582, 0.0
        %v597 = vmax.f32 %v587, 0.0
        %v598 = vld [vmem:[%s3] sm:$0xff]
        %v599 = vld [vmem:[%s3 + $0x8] sm:$0xff]
        %vm600 = vcmask 523264
        %v602 = vsel %vm600, %v598, 0
        %v605 = vsel %vm600, %v599, 0
        %607 = vmatprep.subr.mxu0 0.0
        %608 = vmatpush1.msra.mxu0 %v590
        %609 = vmatprep.subr.mxu0 0.0
        %610 = vmatpush1.msra.mxu0 %v591
        %611 = vmatprep.subr.mxu0 0.0
        %612 = vmatpush1.msra.mxu0 %v592
        %613 = vmatprep.subr.mxu0 0.0
        %614 = vmatpush1.msra.mxu0 %v593
        %615 = vmatprep.subr.mxu0 0.0
        %616 = vmatpush1.msra.mxu0 %v594
        %617 = vmatprep.subr.mxu0 0.0
        %618 = vmatpush1.msra.mxu0 %v595
        %619 = vmatprep.subr.mxu0 0.0
        %620 = vmatpush1.msra.mxu0 %v596
        %621 = vmatprep.subr.mxu0 0.0
        %622 = vmatpush1.msra.mxu0 %v597
        %623 = vmatprep.subr.mxu0 0.0
        %624 = vmatpush1.msra.mxu0 0.0
        %625 = vmatprep.subr.mxu0 0.0
        %626 = vmatpush1.msra.mxu0 0.0
        %627 = vmatprep.subr.mxu0 0.0
        %628 = vmatpush1.msra.mxu0 0.0
        %629 = vmatprep.subr.mxu0 0.0
        %630 = vmatpush1.msra.mxu0 0.0
        %631 = vmatprep.subr.mxu0 0.0
        %632 = vmatpush1.msra.mxu0 0.0
        %633 = vmatprep.subr.mxu0 0.0
        %634 = vmatpush1.msra.mxu0 0.0
        %635 = vmatprep.subr.mxu0 0.0
        %636 = vmatpush1.msra.mxu0 0.0
        %637 = vmatprep.subr.mxu0 0.0
        %638 = vmatpush1.msra.mxu0 0.0
        %639 = vmatprep.subr.mxu0 0.0
        %640 = vmatpush1.msra.mxu0 0.0
        %641 = vmatprep.subr.mxu0 0.0
        %642 = vmatpush1.msra.mxu0 0.0
        %643 = vmatprep.subr.mxu0 0.0
        %644 = vmatpush1.msra.mxu0 0.0
        %645 = vmatprep.subr.mxu0 0.0
        %646 = vmatpush1.msra.mxu0 0.0
        %647 = vmatprep.subr.mxu0 0.0
        %648 = vmatpush1.msra.mxu0 0.0
        %649 = vmatprep.subr.mxu0 0.0
        %650 = vmatpush1.msra.mxu0 0.0
        %651 = vmatprep.subr.mxu0 0.0
        %652 = vmatpush1.msra.mxu0 0.0
        %653 = vmatprep.subr.mxu0 0.0
        %654 = vmatpush1.msra.mxu0 0.0
        %655 = vmatprep.subr.mxu0 0.0
        %656 = vmatpush1.msra.mxu0 0.0
        %657 = vmatprep.subr.mxu0 0.0
        %658 = vmatpush1.msra.mxu0 0.0
        %659 = vmatprep.subr.mxu0 0.0
        %660 = vmatpush1.msra.mxu0 0.0
        %661 = vmatprep.subr.mxu0 0.0
        %662 = vmatpush1.msra.mxu0 0.0
        %663 = vmatprep.subr.mxu0 0.0
        %664 = vmatpush1.msra.mxu0 0.0
        %665 = vmatprep.subr.mxu0 0.0
        %666 = vmatpush1.msra.mxu0 0.0
        %667 = vmatprep.subr.mxu0 0.0
        %668 = vmatpush1.msra.mxu0 0.0
        %669 = vmatprep.subr.mxu0 0.0
        %670 = vmatpush1.msra.mxu0 0.0
        %671 = vmatprep.mubr.f32.mxu0 0.0
        %672 = vmatmul.mubr.f32.gmra.mrb[0].mxu0 %v602
        %v673 = vpop.f32.mrb[0].mxu0
        %v674 = vadd.f32 0.0, %v673
        %v675 = vpop.f32.mrb[0].mxu0
        %676 = vmatprep.mubr.f32.mxu0 0.0
        %677 = vmatmul.mubr.f32.gmra.mrb[0].mxu0 %v605
        %v678 = vpop.f32.mrb[0].mxu0
        %v679 = vadd.f32 0.0, %v678
        %v680 = vpop.f32.mrb[0].mxu0
        %681 = vdwg.mxu0
        %v682 = vld [vmem:[%s4] sm:$0xff]
        %v683 = vld [vmem:[%s4 + $0x8] sm:$0xff]
        %v684 = vld [vmem:[%s4 + $0x10] sm:$0xff]
        %v685 = vld [vmem:[%s4 + $0x18] sm:$0xff]
        %s686 = scalar_lea.vmem %s3, 16
        %v687 = vld [vmem:[%s686] sm:$0xff]
        %v688 = vld [vmem:[%s686 + $0x8] sm:$0xff]
        %v690 = vsel %vm600, %v687, 0
        %v693 = vsel %vm600, %v688, 0
        %695 = vmatprep.subr.mxu0 0.0
        %696 = vmatpush1.msra.mxu0 %v590
        %697 = vmatprep.subr.mxu0 0.0
        %698 = vmatpush1.msra.mxu0 %v591
        %699 = vmatprep.subr.mxu0 0.0
        %700 = vmatpush1.msra.mxu0 %v592
        %701 = vmatprep.subr.mxu0 0.0
        %702 = vmatpush1.msra.mxu0 %v593
        %703 = vmatprep.subr.mxu0 0.0
        %704 = vmatpush1.msra.mxu0 %v594
        %705 = vmatprep.subr.mxu0 0.0
        %706 = vmatpush1.msra.mxu0 %v595
        %707 = vmatprep.subr.mxu0 0.0
        %708 = vmatpush1.msra.mxu0 %v596
        %709 = vmatprep.subr.mxu0 0.0
        %710 = vmatpush1.msra.mxu0 %v597
        %711 = vmatprep.subr.mxu0 0.0
        %712 = vmatpush1.msra.mxu0 0.0
        %713 = vmatprep.subr.mxu0 0.0
        %714 = vmatpush1.msra.mxu0 0.0
        %715 = vmatprep.subr.mxu0 0.0
        %716 = vmatpush1.msra.mxu0 0.0
        %717 = vmatprep.subr.mxu0 0.0
        %718 = vmatpush1.msra.mxu0 0.0
        %719 = vmatprep.subr.mxu0 0.0
        %720 = vmatpush1.msra.mxu0 0.0
        %721 = vmatprep.subr.mxu0 0.0
        %722 = vmatpush1.msra.mxu0 0.0
        %723 = vmatprep.subr.mxu0 0.0
        %724 = vmatpush1.msra.mxu0 0.0
        %725 = vmatprep.subr.mxu0 0.0
        %726 = vmatpush1.msra.mxu0 0.0
        %727 = vmatprep.subr.mxu0 0.0
        %728 = vmatpush1.msra.mxu0 0.0
        %729 = vmatprep.subr.mxu0 0.0
        %730 = vmatpush1.msra.mxu0 0.0
        %731 = vmatprep.subr.mxu0 0.0
        %732 = vmatpush1.msra.mxu0 0.0
        %733 = vmatprep.subr.mxu0 0.0
        %734 = vmatpush1.msra.mxu0 0.0
        %735 = vmatprep.subr.mxu0 0.0
        %736 = vmatpush1.msra.mxu0 0.0
        %737 = vmatprep.subr.mxu0 0.0
        %738 = vmatpush1.msra.mxu0 0.0
        %739 = vmatprep.subr.mxu0 0.0
        %740 = vmatpush1.msra.mxu0 0.0
        %741 = vmatprep.subr.mxu0 0.0
        %742 = vmatpush1.msra.mxu0 0.0
        %743 = vmatprep.subr.mxu0 0.0
        %744 = vmatpush1.msra.mxu0 0.0
        %745 = vmatprep.subr.mxu0 0.0
        %746 = vmatpush1.msra.mxu0 0.0
        %747 = vmatprep.subr.mxu0 0.0
        %748 = vmatpush1.msra.mxu0 0.0
        %749 = vmatprep.subr.mxu0 0.0
        %750 = vmatpush1.msra.mxu0 0.0
        %751 = vmatprep.subr.mxu0 0.0
        %752 = vmatpush1.msra.mxu0 0.0
        %753 = vmatprep.subr.mxu0 0.0
        %754 = vmatpush1.msra.mxu0 0.0
        %755 = vmatprep.subr.mxu0 0.0
        %756 = vmatpush1.msra.mxu0 0.0
        %757 = vmatprep.subr.mxu0 0.0
        %758 = vmatpush1.msra.mxu0 0.0
        %759 = vmatprep.mubr.f32.mxu0 0.0
        %760 = vmatmul.mubr.f32.gmra.mrb[0].mxu0 %v690
        %v761 = vpop.f32.mrb[0].mxu0
        %v762 = vadd.f32 0.0, %v761
        %v763 = vpop.f32.mrb[0].mxu0
        %764 = vmatprep.mubr.f32.mxu0 0.0
        %765 = vmatmul.mubr.f32.gmra.mrb[0].mxu0 %v693
        %v766 = vpop.f32.mrb[0].mxu0
        %v767 = vadd.f32 0.0, %v766
        %v768 = vpop.f32.mrb[0].mxu0
        %769 = vdwg.mxu0
        %s770 = scalar_lea.vmem %s4, 32
        %v771 = vld [vmem:[%s770] sm:$0xff]
        %v772 = vld [vmem:[%s770 + $0x8] sm:$0xff]
        %v773 = vld [vmem:[%s770 + $0x10] sm:$0xff]
        %v774 = vld [vmem:[%s770 + $0x18] sm:$0xff]
        %vm775 = vcmask 261120
        %v777 = vsel %vm775, %v762, 0
        %v780 = vsel %vm775, %v767, 0
        %782 = vmatprep.subr.mxu0 0.0
        %783 = vmatpush1.msra.mxu0 %v771
        %784 = vmatprep.subr.mxu0 0.0
        %785 = vmatpush1.msra.mxu0 %v772
        %786 = vmatprep.subr.mxu0 0.0
        %787 = vmatpush1.msra.mxu0 %v773
        %788 = vmatprep.subr.mxu0 0.0
        %789 = vmatpush1.msra.mxu0 %v774
        %790 = vmatprep.subr.mxu0 0.0
        %791 = vmatpush1.msra.mxu0 0.0
        %792 = vmatprep.subr.mxu0 0.0
        %793 = vmatpush1.msra.mxu0 0.0
        %794 = vmatprep.subr.mxu0 0.0
        %795 = vmatpush1.msra.mxu0 0.0
        %796 = vmatprep.subr.mxu0 0.0
        %797 = vmatpush1.msra.mxu0 0.0
        %798 = vmatprep.subr.mxu0 0.0
        %799 = vmatpush1.msra.mxu0 0.0
        %800 = vmatprep.subr.mxu0 0.0
        %801 = vmatpush1.msra.mxu0 0.0
        %802 = vmatprep.subr.mxu0 0.0
        %803 = vmatpush1.msra.mxu0 0.0
        %804 = vmatprep.subr.mxu0 0.0
        %805 = vmatpush1.msra.mxu0 0.0
        %806 = vmatprep.subr.mxu0 0.0
        %807 = vmatpush1.msra.mxu0 0.0
        %808 = vmatprep.subr.mxu0 0.0
        %809 = vmatpush1.msra.mxu0 0.0
        %810 = vmatprep.subr.mxu0 0.0
        %811 = vmatpush1.msra.mxu0 0.0
        %812 = vmatprep.subr.mxu0 0.0
        %813 = vmatpush1.msra.mxu0 0.0
        %814 = vmatprep.subr.mxu0 0.0
        %815 = vmatpush1.msra.mxu0 0.0
        %816 = vmatprep.subr.mxu0 0.0
        %817 = vmatpush1.msra.mxu0 0.0
        %818 = vmatprep.subr.mxu0 0.0
        %819 = vmatpush1.msra.mxu0 0.0
        %820 = vmatprep.subr.mxu0 0.0
        %821 = vmatpush1.msra.mxu0 0.0
        %822 = vmatprep.subr.mxu0 0.0
        %823 = vmatpush1.msra.mxu0 0.0
        %824 = vmatprep.subr.mxu0 0.0
        %825 = vmatpush1.msra.mxu0 0.0
        %826 = vmatprep.subr.mxu0 0.0
        %827 = vmatpush1.msra.mxu0 0.0
        %828 = vmatprep.subr.mxu0 0.0
        %829 = vmatpush1.msra.mxu0 0.0
        %830 = vmatprep.subr.mxu0 0.0
        %831 = vmatpush1.msra.mxu0 0.0
        %832 = vmatprep.subr.mxu0 0.0
        %833 = vmatpush1.msra.mxu0 0.0
        %834 = vmatprep.subr.mxu0 0.0
        %835 = vmatpush1.msra.mxu0 0.0
        %836 = vmatprep.subr.mxu0 0.0
        %837 = vmatpush1.msra.mxu0 0.0
        %838 = vmatprep.subr.mxu0 0.0
        %839 = vmatpush1.msra.mxu0 0.0
        %840 = vmatprep.subr.mxu0 0.0
        %841 = vmatpush1.msra.mxu0 0.0
        %842 = vmatprep.subr.mxu0 0.0
        %843 = vmatpush1.msra.mxu0 0.0
        %844 = vmatprep.subr.mxu0 0.0
        %845 = vmatpush1.msra.mxu0 0.0
        %846 = vmatprep.mubr.f32.mxu0 0.0
        %847 = vmatmul.mubr.f32.gmra.mrb[0].mxu0 %v777
        %v848 = vpop.f32.mrb[0].mxu0
        %v849 = vadd.f32 0.0, %v848
        %v850 = vpop.f32.mrb[0].mxu0
        %851 = vmatprep.mubr.f32.mxu0 0.0
        %852 = vmatmul.mubr.f32.gmra.mrb[0].mxu0 %v780
        %v853 = vpop.f32.mrb[0].mxu0
        %v854 = vadd.f32 0.0, %v853
        %v855 = vpop.f32.mrb[0].mxu0
        %856 = vdwg.mxu0
        %v858 = vsel %vm775, %v674, 0
        %v861 = vsel %vm775, %v679, 0
        %863 = vmatprep.subr.mxu0 0.0
        %864 = vmatpush1.msra.mxu0 %v682
        %865 = vmatprep.subr.mxu0 0.0
        %866 = vmatpush1.msra.mxu0 %v683
        %867 = vmatprep.subr.mxu0 0.0
        %868 = vmatpush1.msra.mxu0 %v684
        %869 = vmatprep.subr.mxu0 0.0
        %870 = vmatpush1.msra.mxu0 %v685
        %871 = vmatprep.subr.mxu0 0.0
        %872 = vmatpush1.msra.mxu0 0.0
        %873 = vmatprep.subr.mxu0 0.0
        %874 = vmatpush1.msra.mxu0 0.0
        %875 = vmatprep.subr.mxu0 0.0
        %876 = vmatpush1.msra.mxu0 0.0
        %877 = vmatprep.subr.mxu0 0.0
        %878 = vmatpush1.msra.mxu0 0.0
        %879 = vmatprep.subr.mxu0 0.0
        %880 = vmatpush1.msra.mxu0 0.0
        %881 = vmatprep.subr.mxu0 0.0
        %882 = vmatpush1.msra.mxu0 0.0
        %883 = vmatprep.subr.mxu0 0.0
        %884 = vmatpush1.msra.mxu0 0.0
        %885 = vmatprep.subr.mxu0 0.0
        %886 = vmatpush1.msra.mxu0 0.0
        %887 = vmatprep.subr.mxu0 0.0
        %888 = vmatpush1.msra.mxu0 0.0
        %889 = vmatprep.subr.mxu0 0.0
        %890 = vmatpush1.msra.mxu0 0.0
        %891 = vmatprep.subr.mxu0 0.0
        %892 = vmatpush1.msra.mxu0 0.0
        %893 = vmatprep.subr.mxu0 0.0
        %894 = vmatpush1.msra.mxu0 0.0
        %895 = vmatprep.subr.mxu0 0.0
        %896 = vmatpush1.msra.mxu0 0.0
        %897 = vmatprep.subr.mxu0 0.0
        %898 = vmatpush1.msra.mxu0 0.0
        %899 = vmatprep.subr.mxu0 0.0
        %900 = vmatpush1.msra.mxu0 0.0
        %901 = vmatprep.subr.mxu0 0.0
        %902 = vmatpush1.msra.mxu0 0.0
        %903 = vmatprep.subr.mxu0 0.0
        %904 = vmatpush1.msra.mxu0 0.0
        %905 = vmatprep.subr.mxu0 0.0
        %906 = vmatpush1.msra.mxu0 0.0
        %907 = vmatprep.subr.mxu0 0.0
        %908 = vmatpush1.msra.mxu0 0.0
        %909 = vmatprep.subr.mxu0 0.0
        %910 = vmatpush1.msra.mxu0 0.0
        %911 = vmatprep.subr.mxu0 0.0
        %912 = vmatpush1.msra.mxu0 0.0
        %913 = vmatprep.subr.mxu0 0.0
        %914 = vmatpush1.msra.mxu0 0.0
        %915 = vmatprep.subr.mxu0 0.0
        %916 = vmatpush1.msra.mxu0 0.0
        %917 = vmatprep.subr.mxu0 0.0
        %918 = vmatpush1.msra.mxu0 0.0
        %919 = vmatprep.subr.mxu0 0.0
        %920 = vmatpush1.msra.mxu0 0.0
        %921 = vmatprep.subr.mxu0 0.0
        %922 = vmatpush1.msra.mxu0 0.0
        %923 = vmatprep.subr.mxu0 0.0
        %924 = vmatpush1.msra.mxu0 0.0
        %925 = vmatprep.subr.mxu0 0.0
        %926 = vmatpush1.msra.mxu0 0.0
        %927 = vmatprep.mubr.f32.mxu0 0.0
        %928 = vmatmul.mubr.f32.gmra.mrb[0].mxu0 %v858
        %v929 = vpop.f32.mrb[0].mxu0
        %v930 = vadd.f32 %v849, %v929
        %v931 = vpop.f32.mrb[0].mxu0
        %932 = vmatprep.mubr.f32.mxu0 0.0
        %933 = vmatmul.mubr.f32.gmra.mrb[0].mxu0 %v861
        %v934 = vpop.f32.mrb[0].mxu0
        %v935 = vadd.f32 %v854, %v934
        %v936 = vpop.f32.mrb[0].mxu0
        %937 = vdwg.mxu0
        %s938 = scalar_lea.vmem %s3, 32
        %v939 = vld [vmem:[%s938] sm:$0xff]
        %v940 = vld [vmem:[%s938 + $0x8] sm:$0xff]
        %v942 = vsel %vm600, %v939, 0
        %v945 = vsel %vm600, %v940, 0
        %947 = vmatprep.subr.mxu0 0.0
        %948 = vmatpush1.msra.mxu0 %v590
        %949 = vmatprep.subr.mxu0 0.0
        %950 = vmatpush1.msra.mxu0 %v591
        %951 = vmatprep.subr.mxu0 0.0
        %952 = vmatpush1.msra.mxu0 %v592
        %953 = vmatprep.subr.mxu0 0.0
        %954 = vmatpush1.msra.mxu0 %v593
        %955 = vmatprep.subr.mxu0 0.0
        %956 = vmatpush1.msra.mxu0 %v594
        %957 = vmatprep.subr.mxu0 0.0
        %958 = vmatpush1.msra.mxu0 %v595
        %959 = vmatprep.subr.mxu0 0.0
        %960 = vmatpush1.msra.mxu0 %v596
        %961 = vmatprep.subr.mxu0 0.0
        %962 = vmatpush1.msra.mxu0 %v597
        %963 = vmatprep.subr.mxu0 0.0
        %964 = vmatpush1.msra.mxu0 0.0
        %965 = vmatprep.subr.mxu0 0.0
        %966 = vmatpush1.msra.mxu0 0.0
        %967 = vmatprep.subr.mxu0 0.0
        %968 = vmatpush1.msra.mxu0 0.0
        %969 = vmatprep.subr.mxu0 0.0
        %970 = vmatpush1.msra.mxu0 0.0
        %971 = vmatprep.subr.mxu0 0.0
        %972 = vmatpush1.msra.mxu0 0.0
        %973 = vmatprep.subr.mxu0 0.0
        %974 = vmatpush1.msra.mxu0 0.0
        %975 = vmatprep.subr.mxu0 0.0
        %976 = vmatpush1.msra.mxu0 0.0
        %977 = vmatprep.subr.mxu0 0.0
        %978 = vmatpush1.msra.mxu0 0.0
        %979 = vmatprep.subr.mxu0 0.0
        %980 = vmatpush1.msra.mxu0 0.0
        %981 = vmatprep.subr.mxu0 0.0
        %982 = vmatpush1.msra.mxu0 0.0
        %983 = vmatprep.subr.mxu0 0.0
        %984 = vmatpush1.msra.mxu0 0.0
        %985 = vmatprep.subr.mxu0 0.0
        %986 = vmatpush1.msra.mxu0 0.0
        %987 = vmatprep.subr.mxu0 0.0
        %988 = vmatpush1.msra.mxu0 0.0
        %989 = vmatprep.subr.mxu0 0.0
        %990 = vmatpush1.msra.mxu0 0.0
        %991 = vmatprep.subr.mxu0 0.0
        %992 = vmatpush1.msra.mxu0 0.0
        %993 = vmatprep.subr.mxu0 0.0
        %994 = vmatpush1.msra.mxu0 0.0
        %995 = vmatprep.subr.mxu0 0.0
        %996 = vmatpush1.msra.mxu0 0.0
        %997 = vmatprep.subr.mxu0 0.0
        %998 = vmatpush1.msra.mxu0 0.0
        %999 = vmatprep.subr.mxu0 0.0
        %1000 = vmatpush1.msra.mxu0 0.0
        %1001 = vmatprep.subr.mxu0 0.0
        %1002 = vmatpush1.msra.mxu0 0.0
        %1003 = vmatprep.subr.mxu0 0.0
        %1004 = vmatpush1.msra.mxu0 0.0
        %1005 = vmatprep.subr.mxu0 0.0
        %1006 = vmatpush1.msra.mxu0 0.0
        %1007 = vmatprep.subr.mxu0 0.0
        %1008 = vmatpush1.msra.mxu0 0.0
        %1009 = vmatprep.subr.mxu0 0.0
        %1010 = vmatpush1.msra.mxu0 0.0
        %1011 = vmatprep.mubr.f32.mxu0 0.0
        %1012 = vmatmul.mubr.f32.gmra.mrb[0].mxu0 %v942
        %v1013 = vpop.f32.mrb[0].mxu0
        %v1014 = vadd.f32 0.0, %v1013
        %v1015 = vpop.f32.mrb[0].mxu0
        %1016 = vmatprep.mubr.f32.mxu0 0.0
        %1017 = vmatmul.mubr.f32.gmra.mrb[0].mxu0 %v945
        %v1018 = vpop.f32.mrb[0].mxu0
        %v1019 = vadd.f32 0.0, %v1018
        %v1020 = vpop.f32.mrb[0].mxu0
        %1021 = vdwg.mxu0
        %s1022 = scalar_lea.vmem %s4, 64
        %v1023 = vld [vmem:[%s1022] sm:$0xff]
        %v1024 = vld [vmem:[%s1022 + $0x8] sm:$0xff]
        %v1025 = vld [vmem:[%s1022 + $0x10] sm:$0xff]
        %v1026 = vld [vmem:[%s1022 + $0x18] sm:$0xff]
        %v1028 = vsel %vm775, %v1014, 0
        %v1031 = vsel %vm775, %v1019, 0
        %1033 = vmatprep.subr.mxu0 0.0
        %1034 = vmatpush1.msra.mxu0 %v1023
        %1035 = vmatprep.subr.mxu0 0.0
        %1036 = vmatpush1.msra.mxu0 %v1024
        %1037 = vmatprep.subr.mxu0 0.0
        %1038 = vmatpush1.msra.mxu0 %v1025
        %1039 = vmatprep.subr.mxu0 0.0
        %1040 = vmatpush1.msra.mxu0 %v1026
        %1041 = vmatprep.subr.mxu0 0.0
        %1042 = vmatpush1.msra.mxu0 0.0
        %1043 = vmatprep.subr.mxu0 0.0
        %1044 = vmatpush1.msra.mxu0 0.0
        %1045 = vmatprep.subr.mxu0 0.0
        %1046 = vmatpush1.msra.mxu0 0.0
        %1047 = vmatprep.subr.mxu0 0.0
        %1048 = vmatpush1.msra.mxu0 0.0
        %1049 = vmatprep.subr.mxu0 0.0
        %1050 = vmatpush1.msra.mxu0 0.0
        %1051 = vmatprep.subr.mxu0 0.0
        %1052 = vmatpush1.msra.mxu0 0.0
        %1053 = vmatprep.subr.mxu0 0.0
        %1054 = vmatpush1.msra.mxu0 0.0
        %1055 = vmatprep.subr.mxu0 0.0
        %1056 = vmatpush1.msra.mxu0 0.0
        %1057 = vmatprep.subr.mxu0 0.0
        %1058 = vmatpush1.msra.mxu0 0.0
        %1059 = vmatprep.subr.mxu0 0.0
        %1060 = vmatpush1.msra.mxu0 0.0
        %1061 = vmatprep.subr.mxu0 0.0
        %1062 = vmatpush1.msra.mxu0 0.0
        %1063 = vmatprep.subr.mxu0 0.0
        %1064 = vmatpush1.msra.mxu0 0.0
        %1065 = vmatprep.subr.mxu0 0.0
        %1066 = vmatpush1.msra.mxu0 0.0
        %1067 = vmatprep.subr.mxu0 0.0
        %1068 = vmatpush1.msra.mxu0 0.0
        %1069 = vmatprep.subr.mxu0 0.0
        %1070 = vmatpush1.msra.mxu0 0.0
        %1071 = vmatprep.subr.mxu0 0.0
        %1072 = vmatpush1.msra.mxu0 0.0
        %1073 = vmatprep.subr.mxu0 0.0
        %1074 = vmatpush1.msra.mxu0 0.0
        %1075 = vmatprep.subr.mxu0 0.0
        %1076 = vmatpush1.msra.mxu0 0.0
        %1077 = vmatprep.subr.mxu0 0.0
        %1078 = vmatpush1.msra.mxu0 0.0
        %1079 = vmatprep.subr.mxu0 0.0
        %1080 = vmatpush1.msra.mxu0 0.0
        %1081 = vmatprep.subr.mxu0 0.0
        %1082 = vmatpush1.msra.mxu0 0.0
        %1083 = vmatprep.subr.mxu0 0.0
        %1084 = vmatpush1.msra.mxu0 0.0
        %1085 = vmatprep.subr.mxu0 0.0
        %1086 = vmatpush1.msra.mxu0 0.0
        %1087 = vmatprep.subr.mxu0 0.0
        %1088 = vmatpush1.msra.mxu0 0.0
        %1089 = vmatprep.subr.mxu0 0.0
        %1090 = vmatpush1.msra.mxu0 0.0
        %1091 = vmatprep.subr.mxu0 0.0
        %1092 = vmatpush1.msra.mxu0 0.0
        %1093 = vmatprep.subr.mxu0 0.0
        %1094 = vmatpush1.msra.mxu0 0.0
        %1095 = vmatprep.subr.mxu0 0.0
        %1096 = vmatpush1.msra.mxu0 0.0
        %1097 = vmatprep.mubr.f32.mxu0 0.0
        %1098 = vmatmul.mubr.f32.gmra.mrb[0].mxu0 %v1028
        %v1099 = vpop.f32.mrb[0].mxu0
        %v1100 = vadd.f32 0.0, %v1099
        %v1101 = vpop.f32.mrb[0].mxu0
        %1102 = vmatprep.mubr.f32.mxu0 0.0
        %1103 = vmatmul.mubr.f32.gmra.mrb[0].mxu0 %v1031
        %v1104 = vpop.f32.mrb[0].mxu0
        %v1105 = vadd.f32 0.0, %v1104
        %v1106 = vpop.f32.mrb[0].mxu0
        %1107 = vdwg.mxu0
        %v1108 = vadd.f32 %v930, %v1100
        %v1109 = vadd.f32 %v935, %v1105
        %s1110 = scalar_lea.vmem %s3, 48
        %v1111 = vld [vmem:[%s1110] sm:$0xff]
        %v1112 = vld [vmem:[%s1110 + $0x8] sm:$0xff]
        %v1114 = vsel %vm600, %v1111, 0
        %v1117 = vsel %vm600, %v1112, 0
        %1119 = vmatprep.subr.mxu0 0.0
        %1120 = vmatpush1.msra.mxu0 %v590
        %1121 = vmatprep.subr.mxu0 0.0
        %1122 = vmatpush1.msra.mxu0 %v591
        %1123 = vmatprep.subr.mxu0 0.0
        %1124 = vmatpush1.msra.mxu0 %v592
        %1125 = vmatprep.subr.mxu0 0.0
        %1126 = vmatpush1.msra.mxu0 %v593
        %1127 = vmatprep.subr.mxu0 0.0
        %1128 = vmatpush1.msra.mxu0 %v594
        %1129 = vmatprep.subr.mxu0 0.0
        %1130 = vmatpush1.msra.mxu0 %v595
        %1131 = vmatprep.subr.mxu0 0.0
        %1132 = vmatpush1.msra.mxu0 %v596
        %1133 = vmatprep.subr.mxu0 0.0
        %1134 = vmatpush1.msra.mxu0 %v597
        %1135 = vmatprep.subr.mxu0 0.0
        %1136 = vmatpush1.msra.mxu0 0.0
        %1137 = vmatprep.subr.mxu0 0.0
        %1138 = vmatpush1.msra.mxu0 0.0
        %1139 = vmatprep.subr.mxu0 0.0
        %1140 = vmatpush1.msra.mxu0 0.0
        %1141 = vmatprep.subr.mxu0 0.0
        %1142 = vmatpush1.msra.mxu0 0.0
        %1143 = vmatprep.subr.mxu0 0.0
        %1144 = vmatpush1.msra.mxu0 0.0
        %1145 = vmatprep.subr.mxu0 0.0
        %1146 = vmatpush1.msra.mxu0 0.0
        %1147 = vmatprep.subr.mxu0 0.0
        %1148 = vmatpush1.msra.mxu0 0.0
        %1149 = vmatprep.subr.mxu0 0.0
        %1150 = vmatpush1.msra.mxu0 0.0
        %1151 = vmatprep.subr.mxu0 0.0
        %1152 = vmatpush1.msra.mxu0 0.0
        %1153 = vmatprep.subr.mxu0 0.0
        %1154 = vmatpush1.msra.mxu0 0.0
        %1155 = vmatprep.subr.mxu0 0.0
        %1156 = vmatpush1.msra.mxu0 0.0
        %1157 = vmatprep.subr.mxu0 0.0
        %1158 = vmatpush1.msra.mxu0 0.0
        %1159 = vmatprep.subr.mxu0 0.0
        %1160 = vmatpush1.msra.mxu0 0.0
        %1161 = vmatprep.subr.mxu0 0.0
        %1162 = vmatpush1.msra.mxu0 0.0
        %1163 = vmatprep.subr.mxu0 0.0
        %1164 = vmatpush1.msra.mxu0 0.0
        %1165 = vmatprep.subr.mxu0 0.0
        %1166 = vmatpush1.msra.mxu0 0.0
        %1167 = vmatprep.subr.mxu0 0.0
        %1168 = vmatpush1.msra.mxu0 0.0
        %1169 = vmatprep.subr.mxu0 0.0
        %1170 = vmatpush1.msra.mxu0 0.0
        %1171 = vmatprep.subr.mxu0 0.0
        %1172 = vmatpush1.msra.mxu0 0.0
        %1173 = vmatprep.subr.mxu0 0.0
        %1174 = vmatpush1.msra.mxu0 0.0
        %1175 = vmatprep.subr.mxu0 0.0
        %1176 = vmatpush1.msra.mxu0 0.0
        %1177 = vmatprep.subr.mxu0 0.0
        %1178 = vmatpush1.msra.mxu0 0.0
        %1179 = vmatprep.subr.mxu0 0.0
        %1180 = vmatpush1.msra.mxu0 0.0
        %1181 = vmatprep.subr.mxu0 0.0
        %1182 = vmatpush1.msra.mxu0 0.0
        %1183 = vmatprep.mubr.f32.mxu0 0.0
        %1184 = vmatmul.mubr.f32.gmra.mrb[0].mxu0 %v1114
        %v1185 = vpop.f32.mrb[0].mxu0
        %v1186 = vadd.f32 0.0, %v1185
        %v1187 = vpop.f32.mrb[0].mxu0
        %1188 = vmatprep.mubr.f32.mxu0 0.0
        %1189 = vmatmul.mubr.f32.gmra.mrb[0].mxu0 %v1117
        %v1190 = vpop.f32.mrb[0].mxu0
        %v1191 = vadd.f32 0.0, %v1190
        %v1192 = vpop.f32.mrb[0].mxu0
        %1193 = vdwg.mxu0
        %s1194 = scalar_lea.vmem %s4, 96
        %v1195 = vld [vmem:[%s1194] sm:$0xff]
        %v1196 = vld [vmem:[%s1194 + $0x8] sm:$0xff]
        %v1197 = vld [vmem:[%s1194 + $0x10] sm:$0xff]
        %v1198 = vld [vmem:[%s1194 + $0x18] sm:$0xff]
        %v1200 = vsel %vm775, %v1186, 0
        %v1203 = vsel %vm775, %v1191, 0
        %1205 = vmatprep.subr.mxu0 0.0
        %1206 = vmatpush1.msra.mxu0 %v1195
        %1207 = vmatprep.subr.mxu0 0.0
        %1208 = vmatpush1.msra.mxu0 %v1196
        %1209 = vmatprep.subr.mxu0 0.0
        %1210 = vmatpush1.msra.mxu0 %v1197
        %1211 = vmatprep.subr.mxu0 0.0
        %1212 = vmatpush1.msra.mxu0 %v1198
        %1213 = vmatprep.subr.mxu0 0.0
        %1214 = vmatpush1.msra.mxu0 0.0
        %1215 = vmatprep.subr.mxu0 0.0
        %1216 = vmatpush1.msra.mxu0 0.0
        %1217 = vmatprep.subr.mxu0 0.0
        %1218 = vmatpush1.msra.mxu0 0.0
        %1219 = vmatprep.subr.mxu0 0.0
        %1220 = vmatpush1.msra.mxu0 0.0
        %1221 = vmatprep.subr.mxu0 0.0
        %1222 = vmatpush1.msra.mxu0 0.0
        %1223 = vmatprep.subr.mxu0 0.0
        %1224 = vmatpush1.msra.mxu0 0.0
        %1225 = vmatprep.subr.mxu0 0.0
        %1226 = vmatpush1.msra.mxu0 0.0
        %1227 = vmatprep.subr.mxu0 0.0
        %1228 = vmatpush1.msra.mxu0 0.0
        %1229 = vmatprep.subr.mxu0 0.0
        %1230 = vmatpush1.msra.mxu0 0.0
        %1231 = vmatprep.subr.mxu0 0.0
        %1232 = vmatpush1.msra.mxu0 0.0
        %1233 = vmatprep.subr.mxu0 0.0
        %1234 = vmatpush1.msra.mxu0 0.0
        %1235 = vmatprep.subr.mxu0 0.0
        %1236 = vmatpush1.msra.mxu0 0.0
        %1237 = vmatprep.subr.mxu0 0.0
        %1238 = vmatpush1.msra.mxu0 0.0
        %1239 = vmatprep.subr.mxu0 0.0
        %1240 = vmatpush1.msra.mxu0 0.0
        %1241 = vmatprep.subr.mxu0 0.0
        %1242 = vmatpush1.msra.mxu0 0.0
        %1243 = vmatprep.subr.mxu0 0.0
        %1244 = vmatpush1.msra.mxu0 0.0
        %1245 = vmatprep.subr.mxu0 0.0
        %1246 = vmatpush1.msra.mxu0 0.0
        %1247 = vmatprep.subr.mxu0 0.0
        %1248 = vmatpush1.msra.mxu0 0.0
        %1249 = vmatprep.subr.mxu0 0.0
        %1250 = vmatpush1.msra.mxu0 0.0
        %1251 = vmatprep.subr.mxu0 0.0
        %1252 = vmatpush1.msra.mxu0 0.0
        %1253 = vmatprep.subr.mxu0 0.0
        %1254 = vmatpush1.msra.mxu0 0.0
        %1255 = vmatprep.subr.mxu0 0.0
        %1256 = vmatpush1.msra.mxu0 0.0
        %1257 = vmatprep.subr.mxu0 0.0
        %1258 = vmatpush1.msra.mxu0 0.0
        %1259 = vmatprep.subr.mxu0 0.0
        %1260 = vmatpush1.msra.mxu0 0.0
        %1261 = vmatprep.subr.mxu0 0.0
        %1262 = vmatpush1.msra.mxu0 0.0
        %1263 = vmatprep.subr.mxu0 0.0
        %1264 = vmatpush1.msra.mxu0 0.0
        %1265 = vmatprep.subr.mxu0 0.0
        %1266 = vmatpush1.msra.mxu0 0.0
        %1267 = vmatprep.subr.mxu0 0.0
        %1268 = vmatpush1.msra.mxu0 0.0
        %1269 = vmatprep.mubr.f32.mxu0 0.0
        %1270 = vmatmul.mubr.f32.gmra.mrb[0].mxu0 %v1200
        %v1271 = vpop.f32.mrb[0].mxu0
        %v1272 = vadd.f32 0.0, %v1271
        %v1273 = vpop.f32.mrb[0].mxu0
        %1274 = vmatprep.mubr.f32.mxu0 0.0
        %1275 = vmatmul.mubr.f32.gmra.mrb[0].mxu0 %v1203
        %v1276 = vpop.f32.mrb[0].mxu0
        %v1277 = vadd.f32 0.0, %v1276
        %v1278 = vpop.f32.mrb[0].mxu0
        %1279 = vdwg.mxu0
        %v1280 = vadd.f32 %v1108, %v1272
        %v1281 = vadd.f32 %v1109, %v1277
        %s1282 = scalar_lea.vmem %s3, 64
        %v1283 = vld [vmem:[%s1282] sm:$0xff]
        %v1284 = vld [vmem:[%s1282 + $0x8] sm:$0xff]
        %v1286 = vsel %vm600, %v1283, 0
        %v1289 = vsel %vm600, %v1284, 0
        %1291 = vmatprep.subr.mxu0 0.0
        %1292 = vmatpush1.msra.mxu0 %v590
        %1293 = vmatprep.subr.mxu0 0.0
        %1294 = vmatpush1.msra.mxu0 %v591
        %1295 = vmatprep.subr.mxu0 0.0
        %1296 = vmatpush1.msra.mxu0 %v592
        %1297 = vmatprep.subr.mxu0 0.0
        %1298 = vmatpush1.msra.mxu0 %v593
        %1299 = vmatprep.subr.mxu0 0.0
        %1300 = vmatpush1.msra.mxu0 %v594
        %1301 = vmatprep.subr.mxu0 0.0
        %1302 = vmatpush1.msra.mxu0 %v595
        %1303 = vmatprep.subr.mxu0 0.0
        %1304 = vmatpush1.msra.mxu0 %v596
        %1305 = vmatprep.subr.mxu0 0.0
        %1306 = vmatpush1.msra.mxu0 %v597
        %1307 = vmatprep.subr.mxu0 0.0
        %1308 = vmatpush1.msra.mxu0 0.0
        %1309 = vmatprep.subr.mxu0 0.0
        %1310 = vmatpush1.msra.mxu0 0.0
        %1311 = vmatprep.subr.mxu0 0.0
        %1312 = vmatpush1.msra.mxu0 0.0
        %1313 = vmatprep.subr.mxu0 0.0
        %1314 = vmatpush1.msra.mxu0 0.0
        %1315 = vmatprep.subr.mxu0 0.0
        %1316 = vmatpush1.msra.mxu0 0.0
        %1317 = vmatprep.subr.mxu0 0.0
        %1318 = vmatpush1.msra.mxu0 0.0
        %1319 = vmatprep.subr.mxu0 0.0
        %1320 = vmatpush1.msra.mxu0 0.0
        %1321 = vmatprep.subr.mxu0 0.0
        %1322 = vmatpush1.msra.mxu0 0.0
        %1323 = vmatprep.subr.mxu0 0.0
        %1324 = vmatpush1.msra.mxu0 0.0
        %1325 = vmatprep.subr.mxu0 0.0
        %1326 = vmatpush1.msra.mxu0 0.0
        %1327 = vmatprep.subr.mxu0 0.0
        %1328 = vmatpush1.msra.mxu0 0.0
        %1329 = vmatprep.subr.mxu0 0.0
        %1330 = vmatpush1.msra.mxu0 0.0
        %1331 = vmatprep.subr.mxu0 0.0
        %1332 = vmatpush1.msra.mxu0 0.0
        %1333 = vmatprep.subr.mxu0 0.0
        %1334 = vmatpush1.msra.mxu0 0.0
        %1335 = vmatprep.subr.mxu0 0.0
        %1336 = vmatpush1.msra.mxu0 0.0
        %1337 = vmatprep.subr.mxu0 0.0
        %1338 = vmatpush1.msra.mxu0 0.0
        %1339 = vmatprep.subr.mxu0 0.0
        %1340 = vmatpush1.msra.mxu0 0.0
        %1341 = vmatprep.subr.mxu0 0.0
        %1342 = vmatpush1.msra.mxu0 0.0
        %1343 = vmatprep.subr.mxu0 0.0
        %1344 = vmatpush1.msra.mxu0 0.0
        %1345 = vmatprep.subr.mxu0 0.0
        %1346 = vmatpush1.msra.mxu0 0.0
        %1347 = vmatprep.subr.mxu0 0.0
        %1348 = vmatpush1.msra.mxu0 0.0
        %1349 = vmatprep.subr.mxu0 0.0
        %1350 = vmatpush1.msra.mxu0 0.0
        %1351 = vmatprep.subr.mxu0 0.0
        %1352 = vmatpush1.msra.mxu0 0.0
        %1353 = vmatprep.subr.mxu0 0.0
        %1354 = vmatpush1.msra.mxu0 0.0
        %1355 = vmatprep.mubr.f32.mxu0 0.0
        %1356 = vmatmul.mubr.f32.gmra.mrb[0].mxu0 %v1286
        %v1357 = vpop.f32.mrb[0].mxu0
        %v1358 = vadd.f32 0.0, %v1357
        %v1359 = vpop.f32.mrb[0].mxu0
        %1360 = vmatprep.mubr.f32.mxu0 0.0
        %1361 = vmatmul.mubr.f32.gmra.mrb[0].mxu0 %v1289
        %v1362 = vpop.f32.mrb[0].mxu0
        %v1363 = vadd.f32 0.0, %v1362
        %v1364 = vpop.f32.mrb[0].mxu0
        %1365 = vdwg.mxu0
        %s1366 = scalar_lea.vmem %s4, 128
        %v1367 = vld [vmem:[%s1366] sm:$0xff]
        %v1368 = vld [vmem:[%s1366 + $0x8] sm:$0xff]
        %v1369 = vld [vmem:[%s1366 + $0x10] sm:$0xff]
        %v1370 = vld [vmem:[%s1366 + $0x18] sm:$0xff]
        %v1372 = vsel %vm775, %v1358, 0
        %v1375 = vsel %vm775, %v1363, 0
        %1377 = vmatprep.subr.mxu0 0.0
        %1378 = vmatpush1.msra.mxu0 %v1367
        %1379 = vmatprep.subr.mxu0 0.0
        %1380 = vmatpush1.msra.mxu0 %v1368
        %1381 = vmatprep.subr.mxu0 0.0
        %1382 = vmatpush1.msra.mxu0 %v1369
        %1383 = vmatprep.subr.mxu0 0.0
        %1384 = vmatpush1.msra.mxu0 %v1370
        %1385 = vmatprep.subr.mxu0 0.0
        %1386 = vmatpush1.msra.mxu0 0.0
        %1387 = vmatprep.subr.mxu0 0.0
        %1388 = vmatpush1.msra.mxu0 0.0
        %1389 = vmatprep.subr.mxu0 0.0
        %1390 = vmatpush1.msra.mxu0 0.0
        %1391 = vmatprep.subr.mxu0 0.0
        %1392 = vmatpush1.msra.mxu0 0.0
        %1393 = vmatprep.subr.mxu0 0.0
        %1394 = vmatpush1.msra.mxu0 0.0
        %1395 = vmatprep.subr.mxu0 0.0
        %1396 = vmatpush1.msra.mxu0 0.0
        %1397 = vmatprep.subr.mxu0 0.0
        %1398 = vmatpush1.msra.mxu0 0.0
        %1399 = vmatprep.subr.mxu0 0.0
        %1400 = vmatpush1.msra.mxu0 0.0
        %1401 = vmatprep.subr.mxu0 0.0
        %1402 = vmatpush1.msra.mxu0 0.0
        %1403 = vmatprep.subr.mxu0 0.0
        %1404 = vmatpush1.msra.mxu0 0.0
        %1405 = vmatprep.subr.mxu0 0.0
        %1406 = vmatpush1.msra.mxu0 0.0
        %1407 = vmatprep.subr.mxu0 0.0
        %1408 = vmatpush1.msra.mxu0 0.0
        %1409 = vmatprep.subr.mxu0 0.0
        %1410 = vmatpush1.msra.mxu0 0.0
        %1411 = vmatprep.subr.mxu0 0.0
        %1412 = vmatpush1.msra.mxu0 0.0
        %1413 = vmatprep.subr.mxu0 0.0
        %1414 = vmatpush1.msra.mxu0 0.0
        %1415 = vmatprep.subr.mxu0 0.0
        %1416 = vmatpush1.msra.mxu0 0.0
        %1417 = vmatprep.subr.mxu0 0.0
        %1418 = vmatpush1.msra.mxu0 0.0
        %1419 = vmatprep.subr.mxu0 0.0
        %1420 = vmatpush1.msra.mxu0 0.0
        %1421 = vmatprep.subr.mxu0 0.0
        %1422 = vmatpush1.msra.mxu0 0.0
        %1423 = vmatprep.subr.mxu0 0.0
        %1424 = vmatpush1.msra.mxu0 0.0
        %1425 = vmatprep.subr.mxu0 0.0
        %1426 = vmatpush1.msra.mxu0 0.0
        %1427 = vmatprep.subr.mxu0 0.0
        %1428 = vmatpush1.msra.mxu0 0.0
        %1429 = vmatprep.subr.mxu0 0.0
        %1430 = vmatpush1.msra.mxu0 0.0
        %1431 = vmatprep.subr.mxu0 0.0
        %1432 = vmatpush1.msra.mxu0 0.0
        %1433 = vmatprep.subr.mxu0 0.0
        %1434 = vmatpush1.msra.mxu0 0.0
        %1435 = vmatprep.subr.mxu0 0.0
        %1436 = vmatpush1.msra.mxu0 0.0
        %1437 = vmatprep.subr.mxu0 0.0
        %1438 = vmatpush1.msra.mxu0 0.0
        %1439 = vmatprep.subr.mxu0 0.0
        %1440 = vmatpush1.msra.mxu0 0.0
        %1441 = vmatprep.mubr.f32.mxu0 0.0
        %1442 = vmatmul.mubr.f32.gmra.mrb[0].mxu0 %v1372
        %v1443 = vpop.f32.mrb[0].mxu0
        %v1444 = vadd.f32 0.0, %v1443
        %v1445 = vpop.f32.mrb[0].mxu0
        %1446 = vmatprep.mubr.f32.mxu0 0.0
        %1447 = vmatmul.mubr.f32.gmra.mrb[0].mxu0 %v1375
        %v1448 = vpop.f32.mrb[0].mxu0
        %v1449 = vadd.f32 0.0, %v1448
        %v1450 = vpop.f32.mrb[0].mxu0
        %1451 = vdwg.mxu0
        %v1452 = vadd.f32 %v1280, %v1444
        %v1453 = vadd.f32 %v1281, %v1449
        %s1454 = scalar_lea.vmem %s3, 80
        %v1455 = vld [vmem:[%s1454] sm:$0xff]
        %v1456 = vld [vmem:[%s1454 + $0x8] sm:$0xff]
        %v1458 = vsel %vm600, %v1455, 0
        %v1461 = vsel %vm600, %v1456, 0
        %1463 = vmatprep.subr.mxu0 0.0
        %1464 = vmatpush1.msra.mxu0 %v590
        %1465 = vmatprep.subr.mxu0 0.0
        %1466 = vmatpush1.msra.mxu0 %v591
        %1467 = vmatprep.subr.mxu0 0.0
        %1468 = vmatpush1.msra.mxu0 %v592
        %1469 = vmatprep.subr.mxu0 0.0
        %1470 = vmatpush1.msra.mxu0 %v593
        %1471 = vmatprep.subr.mxu0 0.0
        %1472 = vmatpush1.msra.mxu0 %v594
        %1473 = vmatprep.subr.mxu0 0.0
        %1474 = vmatpush1.msra.mxu0 %v595
        %1475 = vmatprep.subr.mxu0 0.0
        %1476 = vmatpush1.msra.mxu0 %v596
        %1477 = vmatprep.subr.mxu0 0.0
        %1478 = vmatpush1.msra.mxu0 %v597
        %1479 = vmatprep.subr.mxu0 0.0
        %1480 = vmatpush1.msra.mxu0 0.0
        %1481 = vmatprep.subr.mxu0 0.0
        %1482 = vmatpush1.msra.mxu0 0.0
        %1483 = vmatprep.subr.mxu0 0.0
        %1484 = vmatpush1.msra.mxu0 0.0
        %1485 = vmatprep.subr.mxu0 0.0
        %1486 = vmatpush1.msra.mxu0 0.0
        %1487 = vmatprep.subr.mxu0 0.0
        %1488 = vmatpush1.msra.mxu0 0.0
        %1489 = vmatprep.subr.mxu0 0.0
        %1490 = vmatpush1.msra.mxu0 0.0
        %1491 = vmatprep.subr.mxu0 0.0
        %1492 = vmatpush1.msra.mxu0 0.0
        %1493 = vmatprep.subr.mxu0 0.0
        %1494 = vmatpush1.msra.mxu0 0.0
        %1495 = vmatprep.subr.mxu0 0.0
        %1496 = vmatpush1.msra.mxu0 0.0
        %1497 = vmatprep.subr.mxu0 0.0
        %1498 = vmatpush1.msra.mxu0 0.0
        %1499 = vmatprep.subr.mxu0 0.0
        %1500 = vmatpush1.msra.mxu0 0.0
        %1501 = vmatprep.subr.mxu0 0.0
        %1502 = vmatpush1.msra.mxu0 0.0
        %1503 = vmatprep.subr.mxu0 0.0
        %1504 = vmatpush1.msra.mxu0 0.0
        %1505 = vmatprep.subr.mxu0 0.0
        %1506 = vmatpush1.msra.mxu0 0.0
        %1507 = vmatprep.subr.mxu0 0.0
        %1508 = vmatpush1.msra.mxu0 0.0
        %1509 = vmatprep.subr.mxu0 0.0
        %1510 = vmatpush1.msra.mxu0 0.0
        %1511 = vmatprep.subr.mxu0 0.0
        %1512 = vmatpush1.msra.mxu0 0.0
        %1513 = vmatprep.subr.mxu0 0.0
        %1514 = vmatpush1.msra.mxu0 0.0
        %1515 = vmatprep.subr.mxu0 0.0
        %1516 = vmatpush1.msra.mxu0 0.0
        %1517 = vmatprep.subr.mxu0 0.0
        %1518 = vmatpush1.msra.mxu0 0.0
        %1519 = vmatprep.subr.mxu0 0.0
        %1520 = vmatpush1.msra.mxu0 0.0
        %1521 = vmatprep.subr.mxu0 0.0
        %1522 = vmatpush1.msra.mxu0 0.0
        %1523 = vmatprep.subr.mxu0 0.0
        %1524 = vmatpush1.msra.mxu0 0.0
        %1525 = vmatprep.subr.mxu0 0.0
        %1526 = vmatpush1.msra.mxu0 0.0
        %1527 = vmatprep.mubr.f32.mxu0 0.0
        %1528 = vmatmul.mubr.f32.gmra.mrb[0].mxu0 %v1458
        %v1529 = vpop.f32.mrb[0].mxu0
        %v1530 = vadd.f32 0.0, %v1529
        %v1531 = vpop.f32.mrb[0].mxu0
        %1532 = vmatprep.mubr.f32.mxu0 0.0
        %1533 = vmatmul.mubr.f32.gmra.mrb[0].mxu0 %v1461
        %v1534 = vpop.f32.mrb[0].mxu0
        %v1535 = vadd.f32 0.0, %v1534
        %v1536 = vpop.f32.mrb[0].mxu0
        %1537 = vdwg.mxu0
        %s1538 = scalar_lea.vmem %s4, 160
        %v1539 = vld [vmem:[%s1538] sm:$0xff]
        %v1540 = vld [vmem:[%s1538 + $0x8] sm:$0xff]
        %v1541 = vld [vmem:[%s1538 + $0x10] sm:$0xff]
        %v1542 = vld [vmem:[%s1538 + $0x18] sm:$0xff]
        %v1544 = vsel %vm775, %v1530, 0
        %v1547 = vsel %vm775, %v1535, 0
        %1549 = vmatprep.subr.mxu0 0.0
        %1550 = vmatpush1.msra.mxu0 %v1539
        %1551 = vmatprep.subr.mxu0 0.0
        %1552 = vmatpush1.msra.mxu0 %v1540
        %1553 = vmatprep.subr.mxu0 0.0
        %1554 = vmatpush1.msra.mxu0 %v1541
        %1555 = vmatprep.subr.mxu0 0.0
        %1556 = vmatpush1.msra.mxu0 %v1542
        %1557 = vmatprep.subr.mxu0 0.0
        %1558 = vmatpush1.msra.mxu0 0.0
        %1559 = vmatprep.subr.mxu0 0.0
        %1560 = vmatpush1.msra.mxu0 0.0
        %1561 = vmatprep.subr.mxu0 0.0
        %1562 = vmatpush1.msra.mxu0 0.0
        %1563 = vmatprep.subr.mxu0 0.0
        %1564 = vmatpush1.msra.mxu0 0.0
        %1565 = vmatprep.subr.mxu0 0.0
        %1566 = vmatpush1.msra.mxu0 0.0
        %1567 = vmatprep.subr.mxu0 0.0
        %1568 = vmatpush1.msra.mxu0 0.0
        %1569 = vmatprep.subr.mxu0 0.0
        %1570 = vmatpush1.msra.mxu0 0.0
        %1571 = vmatprep.subr.mxu0 0.0
        %1572 = vmatpush1.msra.mxu0 0.0
        %1573 = vmatprep.subr.mxu0 0.0
        %1574 = vmatpush1.msra.mxu0 0.0
        %1575 = vmatprep.subr.mxu0 0.0
        %1576 = vmatpush1.msra.mxu0 0.0
        %1577 = vmatprep.subr.mxu0 0.0
        %1578 = vmatpush1.msra.mxu0 0.0
        %1579 = vmatprep.subr.mxu0 0.0
        %1580 = vmatpush1.msra.mxu0 0.0
        %1581 = vmatprep.subr.mxu0 0.0
        %1582 = vmatpush1.msra.mxu0 0.0
        %1583 = vmatprep.subr.mxu0 0.0
        %1584 = vmatpush1.msra.mxu0 0.0
        %1585 = vmatprep.subr.mxu0 0.0
        %1586 = vmatpush1.msra.mxu0 0.0
        %1587 = vmatprep.subr.mxu0 0.0
        %1588 = vmatpush1.msra.mxu0 0.0
        %1589 = vmatprep.subr.mxu0 0.0
        %1590 = vmatpush1.msra.mxu0 0.0
        %1591 = vmatprep.subr.mxu0 0.0
        %1592 = vmatpush1.msra.mxu0 0.0
        %1593 = vmatprep.subr.mxu0 0.0
        %1594 = vmatpush1.msra.mxu0 0.0
        %1595 = vmatprep.subr.mxu0 0.0
        %1596 = vmatpush1.msra.mxu0 0.0
        %1597 = vmatprep.subr.mxu0 0.0
        %1598 = vmatpush1.msra.mxu0 0.0
        %1599 = vmatprep.subr.mxu0 0.0
        %1600 = vmatpush1.msra.mxu0 0.0
        %1601 = vmatprep.subr.mxu0 0.0
        %1602 = vmatpush1.msra.mxu0 0.0
        %1603 = vmatprep.subr.mxu0 0.0
        %1604 = vmatpush1.msra.mxu0 0.0
        %1605 = vmatprep.subr.mxu0 0.0
        %1606 = vmatpush1.msra.mxu0 0.0
        %1607 = vmatprep.subr.mxu0 0.0
        %1608 = vmatpush1.msra.mxu0 0.0
        %1609 = vmatprep.subr.mxu0 0.0
        %1610 = vmatpush1.msra.mxu0 0.0
        %1611 = vmatprep.subr.mxu0 0.0
        %1612 = vmatpush1.msra.mxu0 0.0
        %1613 = vmatprep.mubr.f32.mxu0 0.0
        %1614 = vmatmul.mubr.f32.gmra.mrb[0].mxu0 %v1544
        %v1615 = vpop.f32.mrb[0].mxu0
        %v1616 = vadd.f32 0.0, %v1615
        %v1617 = vpop.f32.mrb[0].mxu0
        %1618 = vmatprep.mubr.f32.mxu0 0.0
        %1619 = vmatmul.mubr.f32.gmra.mrb[0].mxu0 %v1547
        %v1620 = vpop.f32.mrb[0].mxu0
        %v1621 = vadd.f32 0.0, %v1620
        %v1622 = vpop.f32.mrb[0].mxu0
        %1623 = vdwg.mxu0
        %v1624 = vadd.f32 %v1452, %v1616
        %v1625 = vadd.f32 %v1453, %v1621
        %s1626 = scalar_lea.vmem %s3, 96
        %v1627 = vld [vmem:[%s1626] sm:$0xff]
        %v1628 = vld [vmem:[%s1626 + $0x8] sm:$0xff]
        %v1630 = vsel %vm600, %v1627, 0
        %v1633 = vsel %vm600, %v1628, 0
        %1635 = vmatprep.subr.mxu0 0.0
        %1636 = vmatpush1.msra.mxu0 %v590
        %1637 = vmatprep.subr.mxu0 0.0
        %1638 = vmatpush1.msra.mxu0 %v591
        %1639 = vmatprep.subr.mxu0 0.0
        %1640 = vmatpush1.msra.mxu0 %v592
        %1641 = vmatprep.subr.mxu0 0.0
        %1642 = vmatpush1.msra.mxu0 %v593
        %1643 = vmatprep.subr.mxu0 0.0
        %1644 = vmatpush1.msra.mxu0 %v594
        %1645 = vmatprep.subr.mxu0 0.0
        %1646 = vmatpush1.msra.mxu0 %v595
        %1647 = vmatprep.subr.mxu0 0.0
        %1648 = vmatpush1.msra.mxu0 %v596
        %1649 = vmatprep.subr.mxu0 0.0
        %1650 = vmatpush1.msra.mxu0 %v597
        %1651 = vmatprep.subr.mxu0 0.0
        %1652 = vmatpush1.msra.mxu0 0.0
        %1653 = vmatprep.subr.mxu0 0.0
        %1654 = vmatpush1.msra.mxu0 0.0
        %1655 = vmatprep.subr.mxu0 0.0
        %1656 = vmatpush1.msra.mxu0 0.0
        %1657 = vmatprep.subr.mxu0 0.0
        %1658 = vmatpush1.msra.mxu0 0.0
        %1659 = vmatprep.subr.mxu0 0.0
        %1660 = vmatpush1.msra.mxu0 0.0
        %1661 = vmatprep.subr.mxu0 0.0
        %1662 = vmatpush1.msra.mxu0 0.0
        %1663 = vmatprep.subr.mxu0 0.0
        %1664 = vmatpush1.msra.mxu0 0.0
        %1665 = vmatprep.subr.mxu0 0.0
        %1666 = vmatpush1.msra.mxu0 0.0
        %1667 = vmatprep.subr.mxu0 0.0
        %1668 = vmatpush1.msra.mxu0 0.0
        %1669 = vmatprep.subr.mxu0 0.0
        %1670 = vmatpush1.msra.mxu0 0.0
        %1671 = vmatprep.subr.mxu0 0.0
        %1672 = vmatpush1.msra.mxu0 0.0
        %1673 = vmatprep.subr.mxu0 0.0
        %1674 = vmatpush1.msra.mxu0 0.0
        %1675 = vmatprep.subr.mxu0 0.0
        %1676 = vmatpush1.msra.mxu0 0.0
        %1677 = vmatprep.subr.mxu0 0.0
        %1678 = vmatpush1.msra.mxu0 0.0
        %1679 = vmatprep.subr.mxu0 0.0
        %1680 = vmatpush1.msra.mxu0 0.0
        %1681 = vmatprep.subr.mxu0 0.0
        %1682 = vmatpush1.msra.mxu0 0.0
        %1683 = vmatprep.subr.mxu0 0.0
        %1684 = vmatpush1.msra.mxu0 0.0
        %1685 = vmatprep.subr.mxu0 0.0
        %1686 = vmatpush1.msra.mxu0 0.0
        %1687 = vmatprep.subr.mxu0 0.0
        %1688 = vmatpush1.msra.mxu0 0.0
        %1689 = vmatprep.subr.mxu0 0.0
        %1690 = vmatpush1.msra.mxu0 0.0
        %1691 = vmatprep.subr.mxu0 0.0
        %1692 = vmatpush1.msra.mxu0 0.0
        %1693 = vmatprep.subr.mxu0 0.0
        %1694 = vmatpush1.msra.mxu0 0.0
        %1695 = vmatprep.subr.mxu0 0.0
        %1696 = vmatpush1.msra.mxu0 0.0
        %1697 = vmatprep.subr.mxu0 0.0
        %1698 = vmatpush1.msra.mxu0 0.0
        %1699 = vmatprep.mubr.f32.mxu0 0.0
        %1700 = vmatmul.mubr.f32.gmra.mrb[0].mxu0 %v1630
        %v1701 = vpop.f32.mrb[0].mxu0
        %v1702 = vadd.f32 0.0, %v1701
        %v1703 = vpop.f32.mrb[0].mxu0
        %1704 = vmatprep.mubr.f32.mxu0 0.0
        %1705 = vmatmul.mubr.f32.gmra.mrb[0].mxu0 %v1633
        %v1706 = vpop.f32.mrb[0].mxu0
        %v1707 = vadd.f32 0.0, %v1706
        %v1708 = vpop.f32.mrb[0].mxu0
        %1709 = vdwg.mxu0
        %s1710 = scalar_lea.vmem %s4, 192
        %v1711 = vld [vmem:[%s1710] sm:$0xff]
        %v1712 = vld [vmem:[%s1710 + $0x8] sm:$0xff]
        %v1713 = vld [vmem:[%s1710 + $0x10] sm:$0xff]
        %v1714 = vld [vmem:[%s1710 + $0x18] sm:$0xff]
        %v1716 = vsel %vm775, %v1702, 0
        %v1719 = vsel %vm775, %v1707, 0
        %1721 = vmatprep.subr.mxu0 0.0
        %1722 = vmatpush1.msra.mxu0 %v1711
        %1723 = vmatprep.subr.mxu0 0.0
        %1724 = vmatpush1.msra.mxu0 %v1712
        %1725 = vmatprep.subr.mxu0 0.0
        %1726 = vmatpush1.msra.mxu0 %v1713
        %1727 = vmatprep.subr.mxu0 0.0
        %1728 = vmatpush1.msra.mxu0 %v1714
        %1729 = vmatprep.subr.mxu0 0.0
        %1730 = vmatpush1.msra.mxu0 0.0
        %1731 = vmatprep.subr.mxu0 0.0
        %1732 = vmatpush1.msra.mxu0 0.0
        %1733 = vmatprep.subr.mxu0 0.0
        %1734 = vmatpush1.msra.mxu0 0.0
        %1735 = vmatprep.subr.mxu0 0.0
        %1736 = vmatpush1.msra.mxu0 0.0
        %1737 = vmatprep.subr.mxu0 0.0
        %1738 = vmatpush1.msra.mxu0 0.0
        %1739 = vmatprep.subr.mxu0 0.0
        %1740 = vmatpush1.msra.mxu0 0.0
        %1741 = vmatprep.subr.mxu0 0.0
        %1742 = vmatpush1.msra.mxu0 0.0
        %1743 = vmatprep.subr.mxu0 0.0
        %1744 = vmatpush1.msra.mxu0 0.0
        %1745 = vmatprep.subr.mxu0 0.0
        %1746 = vmatpush1.msra.mxu0 0.0
        %1747 = vmatprep.subr.mxu0 0.0
        %1748 = vmatpush1.msra.mxu0 0.0
        %1749 = vmatprep.subr.mxu0 0.0
        %1750 = vmatpush1.msra.mxu0 0.0
        %1751 = vmatprep.subr.mxu0 0.0
        %1752 = vmatpush1.msra.mxu0 0.0
        %1753 = vmatprep.subr.mxu0 0.0
        %1754 = vmatpush1.msra.mxu0 0.0
        %1755 = vmatprep.subr.mxu0 0.0
        %1756 = vmatpush1.msra.mxu0 0.0
        %1757 = vmatprep.subr.mxu0 0.0
        %1758 = vmatpush1.msra.mxu0 0.0
        %1759 = vmatprep.subr.mxu0 0.0
        %1760 = vmatpush1.msra.mxu0 0.0
        %1761 = vmatprep.subr.mxu0 0.0
        %1762 = vmatpush1.msra.mxu0 0.0
        %1763 = vmatprep.subr.mxu0 0.0
        %1764 = vmatpush1.msra.mxu0 0.0
        %1765 = vmatprep.subr.mxu0 0.0
        %1766 = vmatpush1.msra.mxu0 0.0
        %1767 = vmatprep.subr.mxu0 0.0
        %1768 = vmatpush1.msra.mxu0 0.0
        %1769 = vmatprep.subr.mxu0 0.0
        %1770 = vmatpush1.msra.mxu0 0.0
        %1771 = vmatprep.subr.mxu0 0.0
        %1772 = vmatpush1.msra.mxu0 0.0
        %1773 = vmatprep.subr.mxu0 0.0
        %1774 = vmatpush1.msra.mxu0 0.0
        %1775 = vmatprep.subr.mxu0 0.0
        %1776 = vmatpush1.msra.mxu0 0.0
        %1777 = vmatprep.subr.mxu0 0.0
        %1778 = vmatpush1.msra.mxu0 0.0
        %1779 = vmatprep.subr.mxu0 0.0
        %1780 = vmatpush1.msra.mxu0 0.0
        %1781 = vmatprep.subr.mxu0 0.0
        %1782 = vmatpush1.msra.mxu0 0.0
        %1783 = vmatprep.subr.mxu0 0.0
        %1784 = vmatpush1.msra.mxu0 0.0
        %1785 = vmatprep.mubr.f32.mxu0 0.0
        %1786 = vmatmul.mubr.f32.gmra.mrb[0].mxu0 %v1716
        %v1787 = vpop.f32.mrb[0].mxu0
        %v1788 = vadd.f32 0.0, %v1787
        %v1789 = vpop.f32.mrb[0].mxu0
        %1790 = vmatprep.mubr.f32.mxu0 0.0
        %1791 = vmatmul.mubr.f32.gmra.mrb[0].mxu0 %v1719
        %v1792 = vpop.f32.mrb[0].mxu0
        %v1793 = vadd.f32 0.0, %v1792
        %v1794 = vpop.f32.mrb[0].mxu0
        %1795 = vdwg.mxu0
        %v1796 = vadd.f32 %v1624, %v1788
        %v1797 = vadd.f32 %v1625, %v1793
        %s1798 = scalar_lea.vmem %s3, 112
        %v1799 = vld [vmem:[%s1798] sm:$0xff]
        %v1800 = vld [vmem:[%s1798 + $0x8] sm:$0xff]
        %v1802 = vsel %vm600, %v1799, 0
        %v1805 = vsel %vm600, %v1800, 0
        %1807 = vmatprep.subr.mxu0 0.0
        %1808 = vmatpush1.msra.mxu0 %v590
        %1809 = vmatprep.subr.mxu0 0.0
        %1810 = vmatpush1.msra.mxu0 %v591
        %1811 = vmatprep.subr.mxu0 0.0
        %1812 = vmatpush1.msra.mxu0 %v592
        %1813 = vmatprep.subr.mxu0 0.0
        %1814 = vmatpush1.msra.mxu0 %v593
        %1815 = vmatprep.subr.mxu0 0.0
        %1816 = vmatpush1.msra.mxu0 %v594
        %1817 = vmatprep.subr.mxu0 0.0
        %1818 = vmatpush1.msra.mxu0 %v595
        %1819 = vmatprep.subr.mxu0 0.0
        %1820 = vmatpush1.msra.mxu0 %v596
        %1821 = vmatprep.subr.mxu0 0.0
        %1822 = vmatpush1.msra.mxu0 %v597
        %1823 = vmatprep.subr.mxu0 0.0
        %1824 = vmatpush1.msra.mxu0 0.0
        %1825 = vmatprep.subr.mxu0 0.0
        %1826 = vmatpush1.msra.mxu0 0.0
        %1827 = vmatprep.subr.mxu0 0.0
        %1828 = vmatpush1.msra.mxu0 0.0
        %1829 = vmatprep.subr.mxu0 0.0
        %1830 = vmatpush1.msra.mxu0 0.0
        %1831 = vmatprep.subr.mxu0 0.0
        %1832 = vmatpush1.msra.mxu0 0.0
        %1833 = vmatprep.subr.mxu0 0.0
        %1834 = vmatpush1.msra.mxu0 0.0
        %1835 = vmatprep.subr.mxu0 0.0
        %1836 = vmatpush1.msra.mxu0 0.0
        %1837 = vmatprep.subr.mxu0 0.0
        %1838 = vmatpush1.msra.mxu0 0.0
        %1839 = vmatprep.subr.mxu0 0.0
        %1840 = vmatpush1.msra.mxu0 0.0
        %1841 = vmatprep.subr.mxu0 0.0
        %1842 = vmatpush1.msra.mxu0 0.0
        %1843 = vmatprep.subr.mxu0 0.0
        %1844 = vmatpush1.msra.mxu0 0.0
        %1845 = vmatprep.subr.mxu0 0.0
        %1846 = vmatpush1.msra.mxu0 0.0
        %1847 = vmatprep.subr.mxu0 0.0
        %1848 = vmatpush1.msra.mxu0 0.0
        %1849 = vmatprep.subr.mxu0 0.0
        %1850 = vmatpush1.msra.mxu0 0.0
        %1851 = vmatprep.subr.mxu0 0.0
        %1852 = vmatpush1.msra.mxu0 0.0
        %1853 = vmatprep.subr.mxu0 0.0
        %1854 = vmatpush1.msra.mxu0 0.0
        %1855 = vmatprep.subr.mxu0 0.0
        %1856 = vmatpush1.msra.mxu0 0.0
        %1857 = vmatprep.subr.mxu0 0.0
        %1858 = vmatpush1.msra.mxu0 0.0
        %1859 = vmatprep.subr.mxu0 0.0
        %1860 = vmatpush1.msra.mxu0 0.0
        %1861 = vmatprep.subr.mxu0 0.0
        %1862 = vmatpush1.msra.mxu0 0.0
        %1863 = vmatprep.subr.mxu0 0.0
        %1864 = vmatpush1.msra.mxu0 0.0
        %1865 = vmatprep.subr.mxu0 0.0
        %1866 = vmatpush1.msra.mxu0 0.0
        %1867 = vmatprep.subr.mxu0 0.0
        %1868 = vmatpush1.msra.mxu0 0.0
        %1869 = vmatprep.subr.mxu0 0.0
        %1870 = vmatpush1.msra.mxu0 0.0
        %1871 = vmatprep.mubr.f32.mxu0 0.0
        %1872 = vmatmul.mubr.f32.gmra.mrb[0].mxu0 %v1802
        %v1873 = vpop.f32.mrb[0].mxu0
        %v1874 = vadd.f32 0.0, %v1873
        %v1875 = vpop.f32.mrb[0].mxu0
        %1876 = vmatprep.mubr.f32.mxu0 0.0
        %1877 = vmatmul.mubr.f32.gmra.mrb[0].mxu0 %v1805
        %v1878 = vpop.f32.mrb[0].mxu0
        %v1879 = vadd.f32 0.0, %v1878
        %v1880 = vpop.f32.mrb[0].mxu0
        %1881 = vdwg.mxu0
        %s1882 = scalar_lea.vmem %s4, 224
        %v1883 = vld [vmem:[%s1882] sm:$0xff]
        %v1884 = vld [vmem:[%s1882 + $0x8] sm:$0xff]
        %v1885 = vld [vmem:[%s1882 + $0x10] sm:$0xff]
        %v1886 = vld [vmem:[%s1882 + $0x18] sm:$0xff]
        %v1888 = vsel %vm775, %v1874, 0
        %v1891 = vsel %vm775, %v1879, 0
        %1893 = vmatprep.subr.mxu0 0.0
        %1894 = vmatpush1.msra.mxu0 %v1883
        %1895 = vmatprep.subr.mxu0 0.0
        %1896 = vmatpush1.msra.mxu0 %v1884
        %1897 = vmatprep.subr.mxu0 0.0
        %1898 = vmatpush1.msra.mxu0 %v1885
        %1899 = vmatprep.subr.mxu0 0.0
        %1900 = vmatpush1.msra.mxu0 %v1886
        %1901 = vmatprep.subr.mxu0 0.0
        %1902 = vmatpush1.msra.mxu0 0.0
        %1903 = vmatprep.subr.mxu0 0.0
        %1904 = vmatpush1.msra.mxu0 0.0
        %1905 = vmatprep.subr.mxu0 0.0
        %1906 = vmatpush1.msra.mxu0 0.0
        %1907 = vmatprep.subr.mxu0 0.0
        %1908 = vmatpush1.msra.mxu0 0.0
        %1909 = vmatprep.subr.mxu0 0.0
        %1910 = vmatpush1.msra.mxu0 0.0
        %1911 = vmatprep.subr.mxu0 0.0
        %1912 = vmatpush1.msra.mxu0 0.0
        %1913 = vmatprep.subr.mxu0 0.0
        %1914 = vmatpush1.msra.mxu0 0.0
        %1915 = vmatprep.subr.mxu0 0.0
        %1916 = vmatpush1.msra.mxu0 0.0
        %1917 = vmatprep.subr.mxu0 0.0
        %1918 = vmatpush1.msra.mxu0 0.0
        %1919 = vmatprep.subr.mxu0 0.0
        %1920 = vmatpush1.msra.mxu0 0.0
        %1921 = vmatprep.subr.mxu0 0.0
        %1922 = vmatpush1.msra.mxu0 0.0
        %1923 = vmatprep.subr.mxu0 0.0
        %1924 = vmatpush1.msra.mxu0 0.0
        %1925 = vmatprep.subr.mxu0 0.0
        %1926 = vmatpush1.msra.mxu0 0.0
        %1927 = vmatprep.subr.mxu0 0.0
        %1928 = vmatpush1.msra.mxu0 0.0
        %1929 = vmatprep.subr.mxu0 0.0
        %1930 = vmatpush1.msra.mxu0 0.0
        %1931 = vmatprep.subr.mxu0 0.0
        %1932 = vmatpush1.msra.mxu0 0.0
        %1933 = vmatprep.subr.mxu0 0.0
        %1934 = vmatpush1.msra.mxu0 0.0
        %1935 = vmatprep.subr.mxu0 0.0
        %1936 = vmatpush1.msra.mxu0 0.0
        %1937 = vmatprep.subr.mxu0 0.0
        %1938 = vmatpush1.msra.mxu0 0.0
        %1939 = vmatprep.subr.mxu0 0.0
        %1940 = vmatpush1.msra.mxu0 0.0
        %1941 = vmatprep.subr.mxu0 0.0
        %1942 = vmatpush1.msra.mxu0 0.0
        %1943 = vmatprep.subr.mxu0 0.0
        %1944 = vmatpush1.msra.mxu0 0.0
        %1945 = vmatprep.subr.mxu0 0.0
        %1946 = vmatpush1.msra.mxu0 0.0
        %1947 = vmatprep.subr.mxu0 0.0
        %1948 = vmatpush1.msra.mxu0 0.0
        %1949 = vmatprep.subr.mxu0 0.0
        %1950 = vmatpush1.msra.mxu0 0.0
        %1951 = vmatprep.subr.mxu0 0.0
        %1952 = vmatpush1.msra.mxu0 0.0
        %1953 = vmatprep.subr.mxu0 0.0
        %1954 = vmatpush1.msra.mxu0 0.0
        %1955 = vmatprep.subr.mxu0 0.0
        %1956 = vmatpush1.msra.mxu0 0.0
        %1957 = vmatprep.mubr.f32.mxu0 0.0
        %1958 = vmatmul.mubr.f32.gmra.mrb[0].mxu0 %v1888
        %v1959 = vpop.f32.mrb[0].mxu0
        %v1960 = vadd.f32 0.0, %v1959
        %v1961 = vpop.f32.mrb[0].mxu0
        %1962 = vmatprep.mubr.f32.mxu0 0.0
        %1963 = vmatmul.mubr.f32.gmra.mrb[0].mxu0 %v1891
        %v1964 = vpop.f32.mrb[0].mxu0
        %v1965 = vadd.f32 0.0, %v1964
        %v1966 = vpop.f32.mrb[0].mxu0
        %1967 = vdwg.mxu0
        %v1968 = vadd.f32 %v1796, %v1960
        %v1969 = vadd.f32 %v1797, %v1965
        %s1970 = scalar_lea.vmem %s3, 128
        %v1971 = vld [vmem:[%s1970] sm:$0xff]
        %v1972 = vld [vmem:[%s1970 + $0x8] sm:$0xff]
        %v1974 = vsel %vm600, %v1971, 0
        %v1977 = vsel %vm600, %v1972, 0
        %1979 = vmatprep.subr.mxu0 0.0
        %1980 = vmatpush1.msra.mxu0 %v590
        %1981 = vmatprep.subr.mxu0 0.0
        %1982 = vmatpush1.msra.mxu0 %v591
        %1983 = vmatprep.subr.mxu0 0.0
        %1984 = vmatpush1.msra.mxu0 %v592
        %1985 = vmatprep.subr.mxu0 0.0
        %1986 = vmatpush1.msra.mxu0 %v593
        %1987 = vmatprep.subr.mxu0 0.0
        %1988 = vmatpush1.msra.mxu0 %v594
        %1989 = vmatprep.subr.mxu0 0.0
        %1990 = vmatpush1.msra.mxu0 %v595
        %1991 = vmatprep.subr.mxu0 0.0
        %1992 = vmatpush1.msra.mxu0 %v596
        %1993 = vmatprep.subr.mxu0 0.0
        %1994 = vmatpush1.msra.mxu0 %v597
        %1995 = vmatprep.subr.mxu0 0.0
        %1996 = vmatpush1.msra.mxu0 0.0
        %1997 = vmatprep.subr.mxu0 0.0
        %1998 = vmatpush1.msra.mxu0 0.0
        %1999 = vmatprep.subr.mxu0 0.0
        %2000 = vmatpush1.msra.mxu0 0.0
        %2001 = vmatprep.subr.mxu0 0.0
        %2002 = vmatpush1.msra.mxu0 0.0
        %2003 = vmatprep.subr.mxu0 0.0
        %2004 = vmatpush1.msra.mxu0 0.0
        %2005 = vmatprep.subr.mxu0 0.0
        %2006 = vmatpush1.msra.mxu0 0.0
        %2007 = vmatprep.subr.mxu0 0.0
        %2008 = vmatpush1.msra.mxu0 0.0
        %2009 = vmatprep.subr.mxu0 0.0
        %2010 = vmatpush1.msra.mxu0 0.0
        %2011 = vmatprep.subr.mxu0 0.0
        %2012 = vmatpush1.msra.mxu0 0.0
        %2013 = vmatprep.subr.mxu0 0.0
        %2014 = vmatpush1.msra.mxu0 0.0
        %2015 = vmatprep.subr.mxu0 0.0
        %2016 = vmatpush1.msra.mxu0 0.0
        %2017 = vmatprep.subr.mxu0 0.0
        %2018 = vmatpush1.msra.mxu0 0.0
        %2019 = vmatprep.subr.mxu0 0.0
        %2020 = vmatpush1.msra.mxu0 0.0
        %2021 = vmatprep.subr.mxu0 0.0
        %2022 = vmatpush1.msra.mxu0 0.0
        %2023 = vmatprep.subr.mxu0 0.0
        %2024 = vmatpush1.msra.mxu0 0.0
        %2025 = vmatprep.subr.mxu0 0.0
        %2026 = vmatpush1.msra.mxu0 0.0
        %2027 = vmatprep.subr.mxu0 0.0
        %2028 = vmatpush1.msra.mxu0 0.0
        %2029 = vmatprep.subr.mxu0 0.0
        %2030 = vmatpush1.msra.mxu0 0.0
        %2031 = vmatprep.subr.mxu0 0.0
        %2032 = vmatpush1.msra.mxu0 0.0
        %2033 = vmatprep.subr.mxu0 0.0
        %2034 = vmatpush1.msra.mxu0 0.0
        %2035 = vmatprep.subr.mxu0 0.0
        %2036 = vmatpush1.msra.mxu0 0.0
        %2037 = vmatprep.subr.mxu0 0.0
        %2038 = vmatpush1.msra.mxu0 0.0
        %2039 = vmatprep.subr.mxu0 0.0
        %2040 = vmatpush1.msra.mxu0 0.0
        %2041 = vmatprep.subr.mxu0 0.0
        %2042 = vmatpush1.msra.mxu0 0.0
        %2043 = vmatprep.mubr.f32.mxu0 0.0
        %2044 = vmatmul.mubr.f32.gmra.mrb[0].mxu0 %v1974
        %v2045 = vpop.f32.mrb[0].mxu0
        %v2046 = vadd.f32 0.0, %v2045
        %v2047 = vpop.f32.mrb[0].mxu0
        %2048 = vmatprep.mubr.f32.mxu0 0.0
        %2049 = vmatmul.mubr.f32.gmra.mrb[0].mxu0 %v1977
        %v2050 = vpop.f32.mrb[0].mxu0
        %v2051 = vadd.f32 0.0, %v2050
        %v2052 = vpop.f32.mrb[0].mxu0
        %2053 = vdwg.mxu0
        %s2054 = scalar_lea.vmem %s4, 256
        %v2055 = vld [vmem:[%s2054] sm:$0xff]
        %v2056 = vld [vmem:[%s2054 + $0x8] sm:$0xff]
        %v2057 = vld [vmem:[%s2054 + $0x10] sm:$0xff]
        %v2058 = vld [vmem:[%s2054 + $0x18] sm:$0xff]
        %v2060 = vsel %vm775, %v2046, 0
        %v2063 = vsel %vm775, %v2051, 0
        %2065 = vmatprep.subr.mxu0 0.0
        %2066 = vmatpush1.msra.mxu0 %v2055
        %2067 = vmatprep.subr.mxu0 0.0
        %2068 = vmatpush1.msra.mxu0 %v2056
        %2069 = vmatprep.subr.mxu0 0.0
        %2070 = vmatpush1.msra.mxu0 %v2057
        %2071 = vmatprep.subr.mxu0 0.0
        %2072 = vmatpush1.msra.mxu0 %v2058
        %2073 = vmatprep.subr.mxu0 0.0
        %2074 = vmatpush1.msra.mxu0 0.0
        %2075 = vmatprep.subr.mxu0 0.0
        %2076 = vmatpush1.msra.mxu0 0.0
        %2077 = vmatprep.subr.mxu0 0.0
        %2078 = vmatpush1.msra.mxu0 0.0
        %2079 = vmatprep.subr.mxu0 0.0
        %2080 = vmatpush1.msra.mxu0 0.0
        %2081 = vmatprep.subr.mxu0 0.0
        %2082 = vmatpush1.msra.mxu0 0.0
        %2083 = vmatprep.subr.mxu0 0.0
        %2084 = vmatpush1.msra.mxu0 0.0
        %2085 = vmatprep.subr.mxu0 0.0
        %2086 = vmatpush1.msra.mxu0 0.0
        %2087 = vmatprep.subr.mxu0 0.0
        %2088 = vmatpush1.msra.mxu0 0.0
        %2089 = vmatprep.subr.mxu0 0.0
        %2090 = vmatpush1.msra.mxu0 0.0
        %2091 = vmatprep.subr.mxu0 0.0
        %2092 = vmatpush1.msra.mxu0 0.0
        %2093 = vmatprep.subr.mxu0 0.0
        %2094 = vmatpush1.msra.mxu0 0.0
        %2095 = vmatprep.subr.mxu0 0.0
        %2096 = vmatpush1.msra.mxu0 0.0
        %2097 = vmatprep.subr.mxu0 0.0
        %2098 = vmatpush1.msra.mxu0 0.0
        %2099 = vmatprep.subr.mxu0 0.0
        %2100 = vmatpush1.msra.mxu0 0.0
        %2101 = vmatprep.subr.mxu0 0.0
        %2102 = vmatpush1.msra.mxu0 0.0
        %2103 = vmatprep.subr.mxu0 0.0
        %2104 = vmatpush1.msra.mxu0 0.0
        %2105 = vmatprep.subr.mxu0 0.0
        %2106 = vmatpush1.msra.mxu0 0.0
        %2107 = vmatprep.subr.mxu0 0.0
        %2108 = vmatpush1.msra.mxu0 0.0
        %2109 = vmatprep.subr.mxu0 0.0
        %2110 = vmatpush1.msra.mxu0 0.0
        %2111 = vmatprep.subr.mxu0 0.0
        %2112 = vmatpush1.msra.mxu0 0.0
        %2113 = vmatprep.subr.mxu0 0.0
        %2114 = vmatpush1.msra.mxu0 0.0
        %2115 = vmatprep.subr.mxu0 0.0
        %2116 = vmatpush1.msra.mxu0 0.0
        %2117 = vmatprep.subr.mxu0 0.0
        %2118 = vmatpush1.msra.mxu0 0.0
        %2119 = vmatprep.subr.mxu0 0.0
        %2120 = vmatpush1.msra.mxu0 0.0
        %2121 = vmatprep.subr.mxu0 0.0
        %2122 = vmatpush1.msra.mxu0 0.0
        %2123 = vmatprep.subr.mxu0 0.0
        %2124 = vmatpush1.msra.mxu0 0.0
        %2125 = vmatprep.subr.mxu0 0.0
        %2126 = vmatpush1.msra.mxu0 0.0
        %2127 = vmatprep.subr.mxu0 0.0
        %2128 = vmatpush1.msra.mxu0 0.0
        %2129 = vmatprep.mubr.f32.mxu0 0.0
        %2130 = vmatmul.mubr.f32.gmra.mrb[0].mxu0 %v2060
        %v2131 = vpop.f32.mrb[0].mxu0
        %v2132 = vadd.f32 0.0, %v2131
        %v2133 = vpop.f32.mrb[0].mxu0
        %2134 = vmatprep.mubr.f32.mxu0 0.0
        %2135 = vmatmul.mubr.f32.gmra.mrb[0].mxu0 %v2063
        %v2136 = vpop.f32.mrb[0].mxu0
        %v2137 = vadd.f32 0.0, %v2136
        %v2138 = vpop.f32.mrb[0].mxu0
        %2139 = vdwg.mxu0
        %v2140 = vadd.f32 %v1968, %v2132
        %v2141 = vadd.f32 %v1969, %v2137
        %s2142 = scalar_lea.vmem %s3, 144
        %v2143 = vld [vmem:[%s2142] sm:$0xff]
        %v2144 = vld [vmem:[%s2142 + $0x8] sm:$0xff]
        %v2146 = vsel %vm600, %v2143, 0
        %v2149 = vsel %vm600, %v2144, 0
        %2151 = vmatprep.subr.mxu0 0.0
        %2152 = vmatpush1.msra.mxu0 %v590
        %2153 = vmatprep.subr.mxu0 0.0
        %2154 = vmatpush1.msra.mxu0 %v591
        %2155 = vmatprep.subr.mxu0 0.0
        %2156 = vmatpush1.msra.mxu0 %v592
        %2157 = vmatprep.subr.mxu0 0.0
        %2158 = vmatpush1.msra.mxu0 %v593
        %2159 = vmatprep.subr.mxu0 0.0
        %2160 = vmatpush1.msra.mxu0 %v594
        %2161 = vmatprep.subr.mxu0 0.0
        %2162 = vmatpush1.msra.mxu0 %v595
        %2163 = vmatprep.subr.mxu0 0.0
        %2164 = vmatpush1.msra.mxu0 %v596
        %2165 = vmatprep.subr.mxu0 0.0
        %2166 = vmatpush1.msra.mxu0 %v597
        %2167 = vmatprep.subr.mxu0 0.0
        %2168 = vmatpush1.msra.mxu0 0.0
        %2169 = vmatprep.subr.mxu0 0.0
        %2170 = vmatpush1.msra.mxu0 0.0
        %2171 = vmatprep.subr.mxu0 0.0
        %2172 = vmatpush1.msra.mxu0 0.0
        %2173 = vmatprep.subr.mxu0 0.0
        %2174 = vmatpush1.msra.mxu0 0.0
        %2175 = vmatprep.subr.mxu0 0.0
        %2176 = vmatpush1.msra.mxu0 0.0
        %2177 = vmatprep.subr.mxu0 0.0
        %2178 = vmatpush1.msra.mxu0 0.0
        %2179 = vmatprep.subr.mxu0 0.0
        %2180 = vmatpush1.msra.mxu0 0.0
        %2181 = vmatprep.subr.mxu0 0.0
        %2182 = vmatpush1.msra.mxu0 0.0
        %2183 = vmatprep.subr.mxu0 0.0
        %2184 = vmatpush1.msra.mxu0 0.0
        %2185 = vmatprep.subr.mxu0 0.0
        %2186 = vmatpush1.msra.mxu0 0.0
        %2187 = vmatprep.subr.mxu0 0.0
        %2188 = vmatpush1.msra.mxu0 0.0
        %2189 = vmatprep.subr.mxu0 0.0
        %2190 = vmatpush1.msra.mxu0 0.0
        %2191 = vmatprep.subr.mxu0 0.0
        %2192 = vmatpush1.msra.mxu0 0.0
        %2193 = vmatprep.subr.mxu0 0.0
        %2194 = vmatpush1.msra.mxu0 0.0
        %2195 = vmatprep.subr.mxu0 0.0
        %2196 = vmatpush1.msra.mxu0 0.0
        %2197 = vmatprep.subr.mxu0 0.0
        %2198 = vmatpush1.msra.mxu0 0.0
        %2199 = vmatprep.subr.mxu0 0.0
        %2200 = vmatpush1.msra.mxu0 0.0
        %2201 = vmatprep.subr.mxu0 0.0
        %2202 = vmatpush1.msra.mxu0 0.0
        %2203 = vmatprep.subr.mxu0 0.0
        %2204 = vmatpush1.msra.mxu0 0.0
        %2205 = vmatprep.subr.mxu0 0.0
        %2206 = vmatpush1.msra.mxu0 0.0
        %2207 = vmatprep.subr.mxu0 0.0
        %2208 = vmatpush1.msra.mxu0 0.0
        %2209 = vmatprep.subr.mxu0 0.0
        %2210 = vmatpush1.msra.mxu0 0.0
        %2211 = vmatprep.subr.mxu0 0.0
        %2212 = vmatpush1.msra.mxu0 0.0
        %2213 = vmatprep.subr.mxu0 0.0
        %2214 = vmatpush1.msra.mxu0 0.0
        %2215 = vmatprep.mubr.f32.mxu0 0.0
        %2216 = vmatmul.mubr.f32.gmra.mrb[0].mxu0 %v2146
        %v2217 = vpop.f32.mrb[0].mxu0
        %v2218 = vadd.f32 0.0, %v2217
        %v2219 = vpop.f32.mrb[0].mxu0
        %2220 = vmatprep.mubr.f32.mxu0 0.0
        %2221 = vmatmul.mubr.f32.gmra.mrb[0].mxu0 %v2149
        %v2222 = vpop.f32.mrb[0].mxu0
        %v2223 = vadd.f32 0.0, %v2222
        %v2224 = vpop.f32.mrb[0].mxu0
        %2225 = vdwg.mxu0
        %s2226 = scalar_lea.vmem %s4, 288
        %v2227 = vld [vmem:[%s2226] sm:$0xff]
        %v2228 = vld [vmem:[%s2226 + $0x8] sm:$0xff]
        %v2229 = vld [vmem:[%s2226 + $0x10] sm:$0xff]
        %v2230 = vld [vmem:[%s2226 + $0x18] sm:$0xff]
        %v2232 = vsel %vm775, %v2218, 0
        %v2235 = vsel %vm775, %v2223, 0
        %2237 = vmatprep.subr.mxu0 0.0
        %2238 = vmatpush1.msra.mxu0 %v2227
        %2239 = vmatprep.subr.mxu0 0.0
        %2240 = vmatpush1.msra.mxu0 %v2228
        %2241 = vmatprep.subr.mxu0 0.0
        %2242 = vmatpush1.msra.mxu0 %v2229
        %2243 = vmatprep.subr.mxu0 0.0
        %2244 = vmatpush1.msra.mxu0 %v2230
        %2245 = vmatprep.subr.mxu0 0.0
        %2246 = vmatpush1.msra.mxu0 0.0
        %2247 = vmatprep.subr.mxu0 0.0
        %2248 = vmatpush1.msra.mxu0 0.0
        %2249 = vmatprep.subr.mxu0 0.0
        %2250 = vmatpush1.msra.mxu0 0.0
        %2251 = vmatprep.subr.mxu0 0.0
        %2252 = vmatpush1.msra.mxu0 0.0
        %2253 = vmatprep.subr.mxu0 0.0
        %2254 = vmatpush1.msra.mxu0 0.0
        %2255 = vmatprep.subr.mxu0 0.0
        %2256 = vmatpush1.msra.mxu0 0.0
        %2257 = vmatprep.subr.mxu0 0.0
        %2258 = vmatpush1.msra.mxu0 0.0
        %2259 = vmatprep.subr.mxu0 0.0
        %2260 = vmatpush1.msra.mxu0 0.0
        %2261 = vmatprep.subr.mxu0 0.0
        %2262 = vmatpush1.msra.mxu0 0.0
        %2263 = vmatprep.subr.mxu0 0.0
        %2264 = vmatpush1.msra.mxu0 0.0
        %2265 = vmatprep.subr.mxu0 0.0
        %2266 = vmatpush1.msra.mxu0 0.0
        %2267 = vmatprep.subr.mxu0 0.0
        %2268 = vmatpush1.msra.mxu0 0.0
        %2269 = vmatprep.subr.mxu0 0.0
        %2270 = vmatpush1.msra.mxu0 0.0
        %2271 = vmatprep.subr.mxu0 0.0
        %2272 = vmatpush1.msra.mxu0 0.0
        %2273 = vmatprep.subr.mxu0 0.0
        %2274 = vmatpush1.msra.mxu0 0.0
        %2275 = vmatprep.subr.mxu0 0.0
        %2276 = vmatpush1.msra.mxu0 0.0
        %2277 = vmatprep.subr.mxu0 0.0
        %2278 = vmatpush1.msra.mxu0 0.0
        %2279 = vmatprep.subr.mxu0 0.0
        %2280 = vmatpush1.msra.mxu0 0.0
        %2281 = vmatprep.subr.mxu0 0.0
        %2282 = vmatpush1.msra.mxu0 0.0
        %2283 = vmatprep.subr.mxu0 0.0
        %2284 = vmatpush1.msra.mxu0 0.0
        %2285 = vmatprep.subr.mxu0 0.0
        %2286 = vmatpush1.msra.mxu0 0.0
        %2287 = vmatprep.subr.mxu0 0.0
        %2288 = vmatpush1.msra.mxu0 0.0
        %2289 = vmatprep.subr.mxu0 0.0
        %2290 = vmatpush1.msra.mxu0 0.0
        %2291 = vmatprep.subr.mxu0 0.0
        %2292 = vmatpush1.msra.mxu0 0.0
        %2293 = vmatprep.subr.mxu0 0.0
        %2294 = vmatpush1.msra.mxu0 0.0
        %2295 = vmatprep.subr.mxu0 0.0
        %2296 = vmatpush1.msra.mxu0 0.0
        %2297 = vmatprep.subr.mxu0 0.0
        %2298 = vmatpush1.msra.mxu0 0.0
        %2299 = vmatprep.subr.mxu0 0.0
        %2300 = vmatpush1.msra.mxu0 0.0
        %2301 = vmatprep.mubr.f32.mxu0 0.0
        %2302 = vmatmul.mubr.f32.gmra.mrb[0].mxu0 %v2232
        %v2303 = vpop.f32.mrb[0].mxu0
        %v2304 = vadd.f32 0.0, %v2303
        %v2305 = vpop.f32.mrb[0].mxu0
        %2306 = vmatprep.mubr.f32.mxu0 0.0
        %2307 = vmatmul.mubr.f32.gmra.mrb[0].mxu0 %v2235
        %v2308 = vpop.f32.mrb[0].mxu0
        %v2309 = vadd.f32 0.0, %v2308
        %v2310 = vpop.f32.mrb[0].mxu0
        %2311 = vdwg.mxu0
        %v2312 = vadd.f32 %v2140, %v2304
        %v2313 = vadd.f32 %v2141, %v2309
        %s2314 = scalar_lea.vmem %s3, 160
        %v2315 = vld [vmem:[%s2314] sm:$0xff]
        %v2316 = vld [vmem:[%s2314 + $0x8] sm:$0xff]
        %v2318 = vsel %vm600, %v2315, 0
        %v2321 = vsel %vm600, %v2316, 0
        %2323 = vmatprep.subr.mxu0 0.0
        %2324 = vmatpush1.msra.mxu0 %v590
        %2325 = vmatprep.subr.mxu0 0.0
        %2326 = vmatpush1.msra.mxu0 %v591
        %2327 = vmatprep.subr.mxu0 0.0
        %2328 = vmatpush1.msra.mxu0 %v592
        %2329 = vmatprep.subr.mxu0 0.0
        %2330 = vmatpush1.msra.mxu0 %v593
        %2331 = vmatprep.subr.mxu0 0.0
        %2332 = vmatpush1.msra.mxu0 %v594
        %2333 = vmatprep.subr.mxu0 0.0
        %2334 = vmatpush1.msra.mxu0 %v595
        %2335 = vmatprep.subr.mxu0 0.0
        %2336 = vmatpush1.msra.mxu0 %v596
        %2337 = vmatprep.subr.mxu0 0.0
        %2338 = vmatpush1.msra.mxu0 %v597
        %2339 = vmatprep.subr.mxu0 0.0
        %2340 = vmatpush1.msra.mxu0 0.0
        %2341 = vmatprep.subr.mxu0 0.0
        %2342 = vmatpush1.msra.mxu0 0.0
        %2343 = vmatprep.subr.mxu0 0.0
        %2344 = vmatpush1.msra.mxu0 0.0
        %2345 = vmatprep.subr.mxu0 0.0
        %2346 = vmatpush1.msra.mxu0 0.0
        %2347 = vmatprep.subr.mxu0 0.0
        %2348 = vmatpush1.msra.mxu0 0.0
        %2349 = vmatprep.subr.mxu0 0.0
        %2350 = vmatpush1.msra.mxu0 0.0
        %2351 = vmatprep.subr.mxu0 0.0
        %2352 = vmatpush1.msra.mxu0 0.0
        %2353 = vmatprep.subr.mxu0 0.0
        %2354 = vmatpush1.msra.mxu0 0.0
        %2355 = vmatprep.subr.mxu0 0.0
        %2356 = vmatpush1.msra.mxu0 0.0
        %2357 = vmatprep.subr.mxu0 0.0
        %2358 = vmatpush1.msra.mxu0 0.0
        %2359 = vmatprep.subr.mxu0 0.0
        %2360 = vmatpush1.msra.mxu0 0.0
        %2361 = vmatprep.subr.mxu0 0.0
        %2362 = vmatpush1.msra.mxu0 0.0
        %2363 = vmatprep.subr.mxu0 0.0
        %2364 = vmatpush1.msra.mxu0 0.0
        %2365 = vmatprep.subr.mxu0 0.0
        %2366 = vmatpush1.msra.mxu0 0.0
        %2367 = vmatprep.subr.mxu0 0.0
        %2368 = vmatpush1.msra.mxu0 0.0
        %2369 = vmatprep.subr.mxu0 0.0
        %2370 = vmatpush1.msra.mxu0 0.0
        %2371 = vmatprep.subr.mxu0 0.0
        %2372 = vmatpush1.msra.mxu0 0.0
        %2373 = vmatprep.subr.mxu0 0.0
        %2374 = vmatpush1.msra.mxu0 0.0
        %2375 = vmatprep.subr.mxu0 0.0
        %2376 = vmatpush1.msra.mxu0 0.0
        %2377 = vmatprep.subr.mxu0 0.0
        %2378 = vmatpush1.msra.mxu0 0.0
        %2379 = vmatprep.subr.mxu0 0.0
        %2380 = vmatpush1.msra.mxu0 0.0
        %2381 = vmatprep.subr.mxu0 0.0
        %2382 = vmatpush1.msra.mxu0 0.0
        %2383 = vmatprep.subr.mxu0 0.0
        %2384 = vmatpush1.msra.mxu0 0.0
        %2385 = vmatprep.subr.mxu0 0.0
        %2386 = vmatpush1.msra.mxu0 0.0
        %2387 = vmatprep.mubr.f32.mxu0 0.0
        %2388 = vmatmul.mubr.f32.gmra.mrb[0].mxu0 %v2318
        %v2389 = vpop.f32.mrb[0].mxu0
        %v2390 = vadd.f32 0.0, %v2389
        %v2391 = vpop.f32.mrb[0].mxu0
        %2392 = vmatprep.mubr.f32.mxu0 0.0
        %2393 = vmatmul.mubr.f32.gmra.mrb[0].mxu0 %v2321
        %v2394 = vpop.f32.mrb[0].mxu0
        %v2395 = vadd.f32 0.0, %v2394
        %v2396 = vpop.f32.mrb[0].mxu0
        %2397 = vdwg.mxu0
        %s2398 = scalar_lea.vmem %s4, 320
        %v2399 = vld [vmem:[%s2398] sm:$0xff]
        %v2400 = vld [vmem:[%s2398 + $0x8] sm:$0xff]
        %v2401 = vld [vmem:[%s2398 + $0x10] sm:$0xff]
        %v2402 = vld [vmem:[%s2398 + $0x18] sm:$0xff]
        %v2404 = vsel %vm775, %v2390, 0
        %v2407 = vsel %vm775, %v2395, 0
        %2409 = vmatprep.subr.mxu0 0.0
        %2410 = vmatpush1.msra.mxu0 %v2399
        %2411 = vmatprep.subr.mxu0 0.0
        %2412 = vmatpush1.msra.mxu0 %v2400
        %2413 = vmatprep.subr.mxu0 0.0
        %2414 = vmatpush1.msra.mxu0 %v2401
        %2415 = vmatprep.subr.mxu0 0.0
        %2416 = vmatpush1.msra.mxu0 %v2402
        %2417 = vmatprep.subr.mxu0 0.0
        %2418 = vmatpush1.msra.mxu0 0.0
        %2419 = vmatprep.subr.mxu0 0.0
        %2420 = vmatpush1.msra.mxu0 0.0
        %2421 = vmatprep.subr.mxu0 0.0
        %2422 = vmatpush1.msra.mxu0 0.0
        %2423 = vmatprep.subr.mxu0 0.0
        %2424 = vmatpush1.msra.mxu0 0.0
        %2425 = vmatprep.subr.mxu0 0.0
        %2426 = vmatpush1.msra.mxu0 0.0
        %2427 = vmatprep.subr.mxu0 0.0
        %2428 = vmatpush1.msra.mxu0 0.0
        %2429 = vmatprep.subr.mxu0 0.0
        %2430 = vmatpush1.msra.mxu0 0.0
        %2431 = vmatprep.subr.mxu0 0.0
        %2432 = vmatpush1.msra.mxu0 0.0
        %2433 = vmatprep.subr.mxu0 0.0
        %2434 = vmatpush1.msra.mxu0 0.0
        %2435 = vmatprep.subr.mxu0 0.0
        %2436 = vmatpush1.msra.mxu0 0.0
        %2437 = vmatprep.subr.mxu0 0.0
        %2438 = vmatpush1.msra.mxu0 0.0
        %2439 = vmatprep.subr.mxu0 0.0
        %2440 = vmatpush1.msra.mxu0 0.0
        %2441 = vmatprep.subr.mxu0 0.0
        %2442 = vmatpush1.msra.mxu0 0.0
        %2443 = vmatprep.subr.mxu0 0.0
        %2444 = vmatpush1.msra.mxu0 0.0
        %2445 = vmatprep.subr.mxu0 0.0
        %2446 = vmatpush1.msra.mxu0 0.0
        %2447 = vmatprep.subr.mxu0 0.0
        %2448 = vmatpush1.msra.mxu0 0.0
        %2449 = vmatprep.subr.mxu0 0.0
        %2450 = vmatpush1.msra.mxu0 0.0
        %2451 = vmatprep.subr.mxu0 0.0
        %2452 = vmatpush1.msra.mxu0 0.0
        %2453 = vmatprep.subr.mxu0 0.0
        %2454 = vmatpush1.msra.mxu0 0.0
        %2455 = vmatprep.subr.mxu0 0.0
        %2456 = vmatpush1.msra.mxu0 0.0
        %2457 = vmatprep.subr.mxu0 0.0
        %2458 = vmatpush1.msra.mxu0 0.0
        %2459 = vmatprep.subr.mxu0 0.0
        %2460 = vmatpush1.msra.mxu0 0.0
        %2461 = vmatprep.subr.mxu0 0.0
        %2462 = vmatpush1.msra.mxu0 0.0
        %2463 = vmatprep.subr.mxu0 0.0
        %2464 = vmatpush1.msra.mxu0 0.0
        %2465 = vmatprep.subr.mxu0 0.0
        %2466 = vmatpush1.msra.mxu0 0.0
        %2467 = vmatprep.subr.mxu0 0.0
        %2468 = vmatpush1.msra.mxu0 0.0
        %2469 = vmatprep.subr.mxu0 0.0
        %2470 = vmatpush1.msra.mxu0 0.0
        %2471 = vmatprep.subr.mxu0 0.0
        %2472 = vmatpush1.msra.mxu0 0.0
        %2473 = vmatprep.mubr.f32.mxu0 0.0
        %2474 = vmatmul.mubr.f32.gmra.mrb[0].mxu0 %v2404
        %v2475 = vpop.f32.mrb[0].mxu0
        %v2476 = vadd.f32 0.0, %v2475
        %v2477 = vpop.f32.mrb[0].mxu0
        %2478 = vmatprep.mubr.f32.mxu0 0.0
        %2479 = vmatmul.mubr.f32.gmra.mrb[0].mxu0 %v2407
        %v2480 = vpop.f32.mrb[0].mxu0
        %v2481 = vadd.f32 0.0, %v2480
        %v2482 = vpop.f32.mrb[0].mxu0
        %2483 = vdwg.mxu0
        %v2484 = vadd.f32 %v2312, %v2476
        %v2485 = vadd.f32 %v2313, %v2481
        %s2486 = scalar_lea.vmem %s3, 176
        %v2487 = vld [vmem:[%s2486] sm:$0xff]
        %v2488 = vld [vmem:[%s2486 + $0x8] sm:$0xff]
        %v2490 = vsel %vm600, %v2487, 0
        %v2493 = vsel %vm600, %v2488, 0
        %2495 = vmatprep.subr.mxu0 0.0
        %2496 = vmatpush1.msra.mxu0 %v590
        %2497 = vmatprep.subr.mxu0 0.0
        %2498 = vmatpush1.msra.mxu0 %v591
        %2499 = vmatprep.subr.mxu0 0.0
        %2500 = vmatpush1.msra.mxu0 %v592
        %2501 = vmatprep.subr.mxu0 0.0
        %2502 = vmatpush1.msra.mxu0 %v593
        %2503 = vmatprep.subr.mxu0 0.0
        %2504 = vmatpush1.msra.mxu0 %v594
        %2505 = vmatprep.subr.mxu0 0.0
        %2506 = vmatpush1.msra.mxu0 %v595
        %2507 = vmatprep.subr.mxu0 0.0
        %2508 = vmatpush1.msra.mxu0 %v596
        %2509 = vmatprep.subr.mxu0 0.0
        %2510 = vmatpush1.msra.mxu0 %v597
        %2511 = vmatprep.subr.mxu0 0.0
        %2512 = vmatpush1.msra.mxu0 0.0
        %2513 = vmatprep.subr.mxu0 0.0
        %2514 = vmatpush1.msra.mxu0 0.0
        %2515 = vmatprep.subr.mxu0 0.0
        %2516 = vmatpush1.msra.mxu0 0.0
        %2517 = vmatprep.subr.mxu0 0.0
        %2518 = vmatpush1.msra.mxu0 0.0
        %2519 = vmatprep.subr.mxu0 0.0
        %2520 = vmatpush1.msra.mxu0 0.0
        %2521 = vmatprep.subr.mxu0 0.0
        %2522 = vmatpush1.msra.mxu0 0.0
        %2523 = vmatprep.subr.mxu0 0.0
        %2524 = vmatpush1.msra.mxu0 0.0
        %2525 = vmatprep.subr.mxu0 0.0
        %2526 = vmatpush1.msra.mxu0 0.0
        %2527 = vmatprep.subr.mxu0 0.0
        %2528 = vmatpush1.msra.mxu0 0.0
        %2529 = vmatprep.subr.mxu0 0.0
        %2530 = vmatpush1.msra.mxu0 0.0
        %2531 = vmatprep.subr.mxu0 0.0
        %2532 = vmatpush1.msra.mxu0 0.0
        %2533 = vmatprep.subr.mxu0 0.0
        %2534 = vmatpush1.msra.mxu0 0.0
        %2535 = vmatprep.subr.mxu0 0.0
        %2536 = vmatpush1.msra.mxu0 0.0
        %2537 = vmatprep.subr.mxu0 0.0
        %2538 = vmatpush1.msra.mxu0 0.0
        %2539 = vmatprep.subr.mxu0 0.0
        %2540 = vmatpush1.msra.mxu0 0.0
        %2541 = vmatprep.subr.mxu0 0.0
        %2542 = vmatpush1.msra.mxu0 0.0
        %2543 = vmatprep.subr.mxu0 0.0
        %2544 = vmatpush1.msra.mxu0 0.0
        %2545 = vmatprep.subr.mxu0 0.0
        %2546 = vmatpush1.msra.mxu0 0.0
        %2547 = vmatprep.subr.mxu0 0.0
        %2548 = vmatpush1.msra.mxu0 0.0
        %2549 = vmatprep.subr.mxu0 0.0
        %2550 = vmatpush1.msra.mxu0 0.0
        %2551 = vmatprep.subr.mxu0 0.0
        %2552 = vmatpush1.msra.mxu0 0.0
        %2553 = vmatprep.subr.mxu0 0.0
        %2554 = vmatpush1.msra.mxu0 0.0
        %2555 = vmatprep.subr.mxu0 0.0
        %2556 = vmatpush1.msra.mxu0 0.0
        %2557 = vmatprep.subr.mxu0 0.0
        %2558 = vmatpush1.msra.mxu0 0.0
        %2559 = vmatprep.mubr.f32.mxu0 0.0
        %2560 = vmatmul.mubr.f32.gmra.mrb[0].mxu0 %v2490
        %v2561 = vpop.f32.mrb[0].mxu0
        %v2562 = vadd.f32 0.0, %v2561
        %v2563 = vpop.f32.mrb[0].mxu0
        %2564 = vmatprep.mubr.f32.mxu0 0.0
        %2565 = vmatmul.mubr.f32.gmra.mrb[0].mxu0 %v2493
        %v2566 = vpop.f32.mrb[0].mxu0
        %v2567 = vadd.f32 0.0, %v2566
        %v2568 = vpop.f32.mrb[0].mxu0
        %2569 = vdwg.mxu0
        %s2570 = scalar_lea.vmem %s4, 352
        %v2571 = vld [vmem:[%s2570] sm:$0xff]
        %v2572 = vld [vmem:[%s2570 + $0x8] sm:$0xff]
        %v2573 = vld [vmem:[%s2570 + $0x10] sm:$0xff]
        %v2574 = vld [vmem:[%s2570 + $0x18] sm:$0xff]
        %v2576 = vsel %vm775, %v2562, 0
        %v2579 = vsel %vm775, %v2567, 0
        %2581 = vmatprep.subr.mxu0 0.0
        %2582 = vmatpush1.msra.mxu0 %v2571
        %2583 = vmatprep.subr.mxu0 0.0
        %2584 = vmatpush1.msra.mxu0 %v2572
        %2585 = vmatprep.subr.mxu0 0.0
        %2586 = vmatpush1.msra.mxu0 %v2573
        %2587 = vmatprep.subr.mxu0 0.0
        %2588 = vmatpush1.msra.mxu0 %v2574
        %2589 = vmatprep.subr.mxu0 0.0
        %2590 = vmatpush1.msra.mxu0 0.0
        %2591 = vmatprep.subr.mxu0 0.0
        %2592 = vmatpush1.msra.mxu0 0.0
        %2593 = vmatprep.subr.mxu0 0.0
        %2594 = vmatpush1.msra.mxu0 0.0
        %2595 = vmatprep.subr.mxu0 0.0
        %2596 = vmatpush1.msra.mxu0 0.0
        %2597 = vmatprep.subr.mxu0 0.0
        %2598 = vmatpush1.msra.mxu0 0.0
        %2599 = vmatprep.subr.mxu0 0.0
        %2600 = vmatpush1.msra.mxu0 0.0
        %2601 = vmatprep.subr.mxu0 0.0
        %2602 = vmatpush1.msra.mxu0 0.0
        %2603 = vmatprep.subr.mxu0 0.0
        %2604 = vmatpush1.msra.mxu0 0.0
        %2605 = vmatprep.subr.mxu0 0.0
        %2606 = vmatpush1.msra.mxu0 0.0
        %2607 = vmatprep.subr.mxu0 0.0
        %2608 = vmatpush1.msra.mxu0 0.0
        %2609 = vmatprep.subr.mxu0 0.0
        %2610 = vmatpush1.msra.mxu0 0.0
        %2611 = vmatprep.subr.mxu0 0.0
        %2612 = vmatpush1.msra.mxu0 0.0
        %2613 = vmatprep.subr.mxu0 0.0
        %2614 = vmatpush1.msra.mxu0 0.0
        %2615 = vmatprep.subr.mxu0 0.0
        %2616 = vmatpush1.msra.mxu0 0.0
        %2617 = vmatprep.subr.mxu0 0.0
        %2618 = vmatpush1.msra.mxu0 0.0
        %2619 = vmatprep.subr.mxu0 0.0
        %2620 = vmatpush1.msra.mxu0 0.0
        %2621 = vmatprep.subr.mxu0 0.0
        %2622 = vmatpush1.msra.mxu0 0.0
        %2623 = vmatprep.subr.mxu0 0.0
        %2624 = vmatpush1.msra.mxu0 0.0
        %2625 = vmatprep.subr.mxu0 0.0
        %2626 = vmatpush1.msra.mxu0 0.0
        %2627 = vmatprep.subr.mxu0 0.0
        %2628 = vmatpush1.msra.mxu0 0.0
        %2629 = vmatprep.subr.mxu0 0.0
        %2630 = vmatpush1.msra.mxu0 0.0
        %2631 = vmatprep.subr.mxu0 0.0
        %2632 = vmatpush1.msra.mxu0 0.0
        %2633 = vmatprep.subr.mxu0 0.0
        %2634 = vmatpush1.msra.mxu0 0.0
        %2635 = vmatprep.subr.mxu0 0.0
        %2636 = vmatpush1.msra.mxu0 0.0
        %2637 = vmatprep.subr.mxu0 0.0
        %2638 = vmatpush1.msra.mxu0 0.0
        %2639 = vmatprep.subr.mxu0 0.0
        %2640 = vmatpush1.msra.mxu0 0.0
        %2641 = vmatprep.subr.mxu0 0.0
        %2642 = vmatpush1.msra.mxu0 0.0
        %2643 = vmatprep.subr.mxu0 0.0
        %2644 = vmatpush1.msra.mxu0 0.0
        %2645 = vmatprep.mubr.f32.mxu0 0.0
        %2646 = vmatmul.mubr.f32.gmra.mrb[0].mxu0 %v2576
        %v2647 = vpop.f32.mrb[0].mxu0
        %v2648 = vadd.f32 0.0, %v2647
        %v2649 = vpop.f32.mrb[0].mxu0
        %2650 = vmatprep.mubr.f32.mxu0 0.0
        %2651 = vmatmul.mubr.f32.gmra.mrb[0].mxu0 %v2579
        %v2652 = vpop.f32.mrb[0].mxu0
        %v2653 = vadd.f32 0.0, %v2652
        %v2654 = vpop.f32.mrb[0].mxu0
        %2655 = vdwg.mxu0
        %v2656 = vadd.f32 %v2484, %v2648
        %v2657 = vadd.f32 %v2485, %v2653
        %s2658 = scalar_lea.vmem %s3, 192
        %v2659 = vld [vmem:[%s2658] sm:$0xff]
        %v2660 = vld [vmem:[%s2658 + $0x8] sm:$0xff]
        %v2662 = vsel %vm600, %v2659, 0
        %v2665 = vsel %vm600, %v2660, 0
        %2667 = vmatprep.subr.mxu0 0.0
        %2668 = vmatpush1.msra.mxu0 %v590
        %2669 = vmatprep.subr.mxu0 0.0
        %2670 = vmatpush1.msra.mxu0 %v591
        %2671 = vmatprep.subr.mxu0 0.0
        %2672 = vmatpush1.msra.mxu0 %v592
        %2673 = vmatprep.subr.mxu0 0.0
        %2674 = vmatpush1.msra.mxu0 %v593
        %2675 = vmatprep.subr.mxu0 0.0
        %2676 = vmatpush1.msra.mxu0 %v594
        %2677 = vmatprep.subr.mxu0 0.0
        %2678 = vmatpush1.msra.mxu0 %v595
        %2679 = vmatprep.subr.mxu0 0.0
        %2680 = vmatpush1.msra.mxu0 %v596
        %2681 = vmatprep.subr.mxu0 0.0
        %2682 = vmatpush1.msra.mxu0 %v597
        %2683 = vmatprep.subr.mxu0 0.0
        %2684 = vmatpush1.msra.mxu0 0.0
        %2685 = vmatprep.subr.mxu0 0.0
        %2686 = vmatpush1.msra.mxu0 0.0
        %2687 = vmatprep.subr.mxu0 0.0
        %2688 = vmatpush1.msra.mxu0 0.0
        %2689 = vmatprep.subr.mxu0 0.0
        %2690 = vmatpush1.msra.mxu0 0.0
        %2691 = vmatprep.subr.mxu0 0.0
        %2692 = vmatpush1.msra.mxu0 0.0
        %2693 = vmatprep.subr.mxu0 0.0
        %2694 = vmatpush1.msra.mxu0 0.0
        %2695 = vmatprep.subr.mxu0 0.0
        %2696 = vmatpush1.msra.mxu0 0.0
        %2697 = vmatprep.subr.mxu0 0.0
        %2698 = vmatpush1.msra.mxu0 0.0
        %2699 = vmatprep.subr.mxu0 0.0
        %2700 = vmatpush1.msra.mxu0 0.0
        %2701 = vmatprep.subr.mxu0 0.0
        %2702 = vmatpush1.msra.mxu0 0.0
        %2703 = vmatprep.subr.mxu0 0.0
        %2704 = vmatpush1.msra.mxu0 0.0
        %2705 = vmatprep.subr.mxu0 0.0
        %2706 = vmatpush1.msra.mxu0 0.0
        %2707 = vmatprep.subr.mxu0 0.0
        %2708 = vmatpush1.msra.mxu0 0.0
        %2709 = vmatprep.subr.mxu0 0.0
        %2710 = vmatpush1.msra.mxu0 0.0
        %2711 = vmatprep.subr.mxu0 0.0
        %2712 = vmatpush1.msra.mxu0 0.0
        %2713 = vmatprep.subr.mxu0 0.0
        %2714 = vmatpush1.msra.mxu0 0.0
        %2715 = vmatprep.subr.mxu0 0.0
        %2716 = vmatpush1.msra.mxu0 0.0
        %2717 = vmatprep.subr.mxu0 0.0
        %2718 = vmatpush1.msra.mxu0 0.0
        %2719 = vmatprep.subr.mxu0 0.0
        %2720 = vmatpush1.msra.mxu0 0.0
        %2721 = vmatprep.subr.mxu0 0.0
        %2722 = vmatpush1.msra.mxu0 0.0
        %2723 = vmatprep.subr.mxu0 0.0
        %2724 = vmatpush1.msra.mxu0 0.0
        %2725 = vmatprep.subr.mxu0 0.0
        %2726 = vmatpush1.msra.mxu0 0.0
        %2727 = vmatprep.subr.mxu0 0.0
        %2728 = vmatpush1.msra.mxu0 0.0
        %2729 = vmatprep.subr.mxu0 0.0
        %2730 = vmatpush1.msra.mxu0 0.0
        %2731 = vmatprep.mubr.f32.mxu0 0.0
        %2732 = vmatmul.mubr.f32.gmra.mrb[0].mxu0 %v2662
        %v2733 = vpop.f32.mrb[0].mxu0
        %v2734 = vadd.f32 0.0, %v2733
        %v2735 = vpop.f32.mrb[0].mxu0
        %2736 = vmatprep.mubr.f32.mxu0 0.0
        %2737 = vmatmul.mubr.f32.gmra.mrb[0].mxu0 %v2665
        %v2738 = vpop.f32.mrb[0].mxu0
        %v2739 = vadd.f32 0.0, %v2738
        %v2740 = vpop.f32.mrb[0].mxu0
        %2741 = vdwg.mxu0
        %s2742 = scalar_lea.vmem %s4, 384
        %v2743 = vld [vmem:[%s2742] sm:$0xff]
        %v2744 = vld [vmem:[%s2742 + $0x8] sm:$0xff]
        %v2745 = vld [vmem:[%s2742 + $0x10] sm:$0xff]
        %v2746 = vld [vmem:[%s2742 + $0x18] sm:$0xff]
        %v2748 = vsel %vm775, %v2734, 0
        %v2751 = vsel %vm775, %v2739, 0
        %2753 = vmatprep.subr.mxu0 0.0
        %2754 = vmatpush1.msra.mxu0 %v2743
        %2755 = vmatprep.subr.mxu0 0.0
        %2756 = vmatpush1.msra.mxu0 %v2744
        %2757 = vmatprep.subr.mxu0 0.0
        %2758 = vmatpush1.msra.mxu0 %v2745
        %2759 = vmatprep.subr.mxu0 0.0
        %2760 = vmatpush1.msra.mxu0 %v2746
        %2761 = vmatprep.subr.mxu0 0.0
        %2762 = vmatpush1.msra.mxu0 0.0
        %2763 = vmatprep.subr.mxu0 0.0
        %2764 = vmatpush1.msra.mxu0 0.0
        %2765 = vmatprep.subr.mxu0 0.0
        %2766 = vmatpush1.msra.mxu0 0.0
        %2767 = vmatprep.subr.mxu0 0.0
        %2768 = vmatpush1.msra.mxu0 0.0
        %2769 = vmatprep.subr.mxu0 0.0
        %2770 = vmatpush1.msra.mxu0 0.0
        %2771 = vmatprep.subr.mxu0 0.0
        %2772 = vmatpush1.msra.mxu0 0.0
        %2773 = vmatprep.subr.mxu0 0.0
        %2774 = vmatpush1.msra.mxu0 0.0
        %2775 = vmatprep.subr.mxu0 0.0
        %2776 = vmatpush1.msra.mxu0 0.0
        %2777 = vmatprep.subr.mxu0 0.0
        %2778 = vmatpush1.msra.mxu0 0.0
        %2779 = vmatprep.subr.mxu0 0.0
        %2780 = vmatpush1.msra.mxu0 0.0
        %2781 = vmatprep.subr.mxu0 0.0
        %2782 = vmatpush1.msra.mxu0 0.0
        %2783 = vmatprep.subr.mxu0 0.0
        %2784 = vmatpush1.msra.mxu0 0.0
        %2785 = vmatprep.subr.mxu0 0.0
        %2786 = vmatpush1.msra.mxu0 0.0
        %2787 = vmatprep.subr.mxu0 0.0
        %2788 = vmatpush1.msra.mxu0 0.0
        %2789 = vmatprep.subr.mxu0 0.0
        %2790 = vmatpush1.msra.mxu0 0.0
        %2791 = vmatprep.subr.mxu0 0.0
        %2792 = vmatpush1.msra.mxu0 0.0
        %2793 = vmatprep.subr.mxu0 0.0
        %2794 = vmatpush1.msra.mxu0 0.0
        %2795 = vmatprep.subr.mxu0 0.0
        %2796 = vmatpush1.msra.mxu0 0.0
        %2797 = vmatprep.subr.mxu0 0.0
        %2798 = vmatpush1.msra.mxu0 0.0
        %2799 = vmatprep.subr.mxu0 0.0
        %2800 = vmatpush1.msra.mxu0 0.0
        %2801 = vmatprep.subr.mxu0 0.0
        %2802 = vmatpush1.msra.mxu0 0.0
        %2803 = vmatprep.subr.mxu0 0.0
        %2804 = vmatpush1.msra.mxu0 0.0
        %2805 = vmatprep.subr.mxu0 0.0
        %2806 = vmatpush1.msra.mxu0 0.0
        %2807 = vmatprep.subr.mxu0 0.0
        %2808 = vmatpush1.msra.mxu0 0.0
        %2809 = vmatprep.subr.mxu0 0.0
        %2810 = vmatpush1.msra.mxu0 0.0
        %2811 = vmatprep.subr.mxu0 0.0
        %2812 = vmatpush1.msra.mxu0 0.0
        %2813 = vmatprep.subr.mxu0 0.0
        %2814 = vmatpush1.msra.mxu0 0.0
        %2815 = vmatprep.subr.mxu0 0.0
        %2816 = vmatpush1.msra.mxu0 0.0
        %2817 = vmatprep.mubr.f32.mxu0 0.0
        %2818 = vmatmul.mubr.f32.gmra.mrb[0].mxu0 %v2748
        %v2819 = vpop.f32.mrb[0].mxu0
        %v2820 = vadd.f32 0.0, %v2819
        %v2821 = vpop.f32.mrb[0].mxu0
        %2822 = vmatprep.mubr.f32.mxu0 0.0
        %2823 = vmatmul.mubr.f32.gmra.mrb[0].mxu0 %v2751
        %v2824 = vpop.f32.mrb[0].mxu0
        %v2825 = vadd.f32 0.0, %v2824
        %v2826 = vpop.f32.mrb[0].mxu0
        %2827 = vdwg.mxu0
        %v2828 = vadd.f32 %v2656, %v2820
        %v2829 = vadd.f32 %v2657, %v2825
        %s2830 = scalar_lea.vmem %s3, 208
        %v2831 = vld [vmem:[%s2830] sm:$0xff]
        %v2832 = vld [vmem:[%s2830 + $0x8] sm:$0xff]
        %v2834 = vsel %vm600, %v2831, 0
        %v2837 = vsel %vm600, %v2832, 0
        %2839 = vmatprep.subr.mxu0 0.0
        %2840 = vmatpush1.msra.mxu0 %v590
        %2841 = vmatprep.subr.mxu0 0.0
        %2842 = vmatpush1.msra.mxu0 %v591
        %2843 = vmatprep.subr.mxu0 0.0
        %2844 = vmatpush1.msra.mxu0 %v592
        %2845 = vmatprep.subr.mxu0 0.0
        %2846 = vmatpush1.msra.mxu0 %v593
        %2847 = vmatprep.subr.mxu0 0.0
        %2848 = vmatpush1.msra.mxu0 %v594
        %2849 = vmatprep.subr.mxu0 0.0
        %2850 = vmatpush1.msra.mxu0 %v595
        %2851 = vmatprep.subr.mxu0 0.0
        %2852 = vmatpush1.msra.mxu0 %v596
        %2853 = vmatprep.subr.mxu0 0.0
        %2854 = vmatpush1.msra.mxu0 %v597
        %2855 = vmatprep.subr.mxu0 0.0
        %2856 = vmatpush1.msra.mxu0 0.0
        %2857 = vmatprep.subr.mxu0 0.0
        %2858 = vmatpush1.msra.mxu0 0.0
        %2859 = vmatprep.subr.mxu0 0.0
        %2860 = vmatpush1.msra.mxu0 0.0
        %2861 = vmatprep.subr.mxu0 0.0
        %2862 = vmatpush1.msra.mxu0 0.0
        %2863 = vmatprep.subr.mxu0 0.0
        %2864 = vmatpush1.msra.mxu0 0.0
        %2865 = vmatprep.subr.mxu0 0.0
        %2866 = vmatpush1.msra.mxu0 0.0
        %2867 = vmatprep.subr.mxu0 0.0
        %2868 = vmatpush1.msra.mxu0 0.0
        %2869 = vmatprep.subr.mxu0 0.0
        %2870 = vmatpush1.msra.mxu0 0.0
        %2871 = vmatprep.subr.mxu0 0.0
        %2872 = vmatpush1.msra.mxu0 0.0
        %2873 = vmatprep.subr.mxu0 0.0
        %2874 = vmatpush1.msra.mxu0 0.0
        %2875 = vmatprep.subr.mxu0 0.0
        %2876 = vmatpush1.msra.mxu0 0.0
        %2877 = vmatprep.subr.mxu0 0.0
        %2878 = vmatpush1.msra.mxu0 0.0
        %2879 = vmatprep.subr.mxu0 0.0
        %2880 = vmatpush1.msra.mxu0 0.0
        %2881 = vmatprep.subr.mxu0 0.0
        %2882 = vmatpush1.msra.mxu0 0.0
        %2883 = vmatprep.subr.mxu0 0.0
        %2884 = vmatpush1.msra.mxu0 0.0
        %2885 = vmatprep.subr.mxu0 0.0
        %2886 = vmatpush1.msra.mxu0 0.0
        %2887 = vmatprep.subr.mxu0 0.0
        %2888 = vmatpush1.msra.mxu0 0.0
        %2889 = vmatprep.subr.mxu0 0.0
        %2890 = vmatpush1.msra.mxu0 0.0
        %2891 = vmatprep.subr.mxu0 0.0
        %2892 = vmatpush1.msra.mxu0 0.0
        %2893 = vmatprep.subr.mxu0 0.0
        %2894 = vmatpush1.msra.mxu0 0.0
        %2895 = vmatprep.subr.mxu0 0.0
        %2896 = vmatpush1.msra.mxu0 0.0
        %2897 = vmatprep.subr.mxu0 0.0
        %2898 = vmatpush1.msra.mxu0 0.0
        %2899 = vmatprep.subr.mxu0 0.0
        %2900 = vmatpush1.msra.mxu0 0.0
        %2901 = vmatprep.subr.mxu0 0.0
        %2902 = vmatpush1.msra.mxu0 0.0
        %2903 = vmatprep.mubr.f32.mxu0 0.0
        %2904 = vmatmul.mubr.f32.gmra.mrb[0].mxu0 %v2834
        %v2905 = vpop.f32.mrb[0].mxu0
        %v2906 = vadd.f32 0.0, %v2905
        %v2907 = vpop.f32.mrb[0].mxu0
        %2908 = vmatprep.mubr.f32.mxu0 0.0
        %2909 = vmatmul.mubr.f32.gmra.mrb[0].mxu0 %v2837
        %v2910 = vpop.f32.mrb[0].mxu0
        %v2911 = vadd.f32 0.0, %v2910
        %v2912 = vpop.f32.mrb[0].mxu0
        %2913 = vdwg.mxu0
        %s2914 = scalar_lea.vmem %s4, 416
        %v2915 = vld [vmem:[%s2914] sm:$0xff]
        %v2916 = vld [vmem:[%s2914 + $0x8] sm:$0xff]
        %v2917 = vld [vmem:[%s2914 + $0x10] sm:$0xff]
        %v2918 = vld [vmem:[%s2914 + $0x18] sm:$0xff]
        %v2920 = vsel %vm775, %v2906, 0
        %v2923 = vsel %vm775, %v2911, 0
        %2925 = vmatprep.subr.mxu0 0.0
        %2926 = vmatpush1.msra.mxu0 %v2915
        %2927 = vmatprep.subr.mxu0 0.0
        %2928 = vmatpush1.msra.mxu0 %v2916
        %2929 = vmatprep.subr.mxu0 0.0
        %2930 = vmatpush1.msra.mxu0 %v2917
        %2931 = vmatprep.subr.mxu0 0.0
        %2932 = vmatpush1.msra.mxu0 %v2918
        %2933 = vmatprep.subr.mxu0 0.0
        %2934 = vmatpush1.msra.mxu0 0.0
        %2935 = vmatprep.subr.mxu0 0.0
        %2936 = vmatpush1.msra.mxu0 0.0
        %2937 = vmatprep.subr.mxu0 0.0
        %2938 = vmatpush1.msra.mxu0 0.0
        %2939 = vmatprep.subr.mxu0 0.0
        %2940 = vmatpush1.msra.mxu0 0.0
        %2941 = vmatprep.subr.mxu0 0.0
        %2942 = vmatpush1.msra.mxu0 0.0
        %2943 = vmatprep.subr.mxu0 0.0
        %2944 = vmatpush1.msra.mxu0 0.0
        %2945 = vmatprep.subr.mxu0 0.0
        %2946 = vmatpush1.msra.mxu0 0.0
        %2947 = vmatprep.subr.mxu0 0.0
        %2948 = vmatpush1.msra.mxu0 0.0
        %2949 = vmatprep.subr.mxu0 0.0
        %2950 = vmatpush1.msra.mxu0 0.0
        %2951 = vmatprep.subr.mxu0 0.0
        %2952 = vmatpush1.msra.mxu0 0.0
        %2953 = vmatprep.subr.mxu0 0.0
        %2954 = vmatpush1.msra.mxu0 0.0
        %2955 = vmatprep.subr.mxu0 0.0
        %2956 = vmatpush1.msra.mxu0 0.0
        %2957 = vmatprep.subr.mxu0 0.0
        %2958 = vmatpush1.msra.mxu0 0.0
        %2959 = vmatprep.subr.mxu0 0.0
        %2960 = vmatpush1.msra.mxu0 0.0
        %2961 = vmatprep.subr.mxu0 0.0
        %2962 = vmatpush1.msra.mxu0 0.0
        %2963 = vmatprep.subr.mxu0 0.0
        %2964 = vmatpush1.msra.mxu0 0.0
        %2965 = vmatprep.subr.mxu0 0.0
        %2966 = vmatpush1.msra.mxu0 0.0
        %2967 = vmatprep.subr.mxu0 0.0
        %2968 = vmatpush1.msra.mxu0 0.0
        %2969 = vmatprep.subr.mxu0 0.0
        %2970 = vmatpush1.msra.mxu0 0.0
        %2971 = vmatprep.subr.mxu0 0.0
        %2972 = vmatpush1.msra.mxu0 0.0
        %2973 = vmatprep.subr.mxu0 0.0
        %2974 = vmatpush1.msra.mxu0 0.0
        %2975 = vmatprep.subr.mxu0 0.0
        %2976 = vmatpush1.msra.mxu0 0.0
        %2977 = vmatprep.subr.mxu0 0.0
        %2978 = vmatpush1.msra.mxu0 0.0
        %2979 = vmatprep.subr.mxu0 0.0
        %2980 = vmatpush1.msra.mxu0 0.0
        %2981 = vmatprep.subr.mxu0 0.0
        %2982 = vmatpush1.msra.mxu0 0.0
        %2983 = vmatprep.subr.mxu0 0.0
        %2984 = vmatpush1.msra.mxu0 0.0
        %2985 = vmatprep.subr.mxu0 0.0
        %2986 = vmatpush1.msra.mxu0 0.0
        %2987 = vmatprep.subr.mxu0 0.0
        %2988 = vmatpush1.msra.mxu0 0.0
        %2989 = vmatprep.mubr.f32.mxu0 0.0
        %2990 = vmatmul.mubr.f32.gmra.mrb[0].mxu0 %v2920
        %v2991 = vpop.f32.mrb[0].mxu0
        %v2992 = vadd.f32 0.0, %v2991
        %v2993 = vpop.f32.mrb[0].mxu0
        %2994 = vmatprep.mubr.f32.mxu0 0.0
        %2995 = vmatmul.mubr.f32.gmra.mrb[0].mxu0 %v2923
        %v2996 = vpop.f32.mrb[0].mxu0
        %v2997 = vadd.f32 0.0, %v2996
        %v2998 = vpop.f32.mrb[0].mxu0
        %2999 = vdwg.mxu0
        %v3000 = vadd.f32 %v2828, %v2992
        %v3001 = vadd.f32 %v2829, %v2997
        %s3002 = scalar_lea.vmem %s3, 224
        %v3003 = vld [vmem:[%s3002] sm:$0xff]
        %v3004 = vld [vmem:[%s3002 + $0x8] sm:$0xff]
        %v3006 = vsel %vm600, %v3003, 0
        %v3009 = vsel %vm600, %v3004, 0
        %3011 = vmatprep.subr.mxu0 0.0
        %3012 = vmatpush1.msra.mxu0 %v590
        %3013 = vmatprep.subr.mxu0 0.0
        %3014 = vmatpush1.msra.mxu0 %v591
        %3015 = vmatprep.subr.mxu0 0.0
        %3016 = vmatpush1.msra.mxu0 %v592
        %3017 = vmatprep.subr.mxu0 0.0
        %3018 = vmatpush1.msra.mxu0 %v593
        %3019 = vmatprep.subr.mxu0 0.0
        %3020 = vmatpush1.msra.mxu0 %v594
        %3021 = vmatprep.subr.mxu0 0.0
        %3022 = vmatpush1.msra.mxu0 %v595
        %3023 = vmatprep.subr.mxu0 0.0
        %3024 = vmatpush1.msra.mxu0 %v596
        %3025 = vmatprep.subr.mxu0 0.0
        %3026 = vmatpush1.msra.mxu0 %v597
        %3027 = vmatprep.subr.mxu0 0.0
        %3028 = vmatpush1.msra.mxu0 0.0
        %3029 = vmatprep.subr.mxu0 0.0
        %3030 = vmatpush1.msra.mxu0 0.0
        %3031 = vmatprep.subr.mxu0 0.0
        %3032 = vmatpush1.msra.mxu0 0.0
        %3033 = vmatprep.subr.mxu0 0.0
        %3034 = vmatpush1.msra.mxu0 0.0
        %3035 = vmatprep.subr.mxu0 0.0
        %3036 = vmatpush1.msra.mxu0 0.0
        %3037 = vmatprep.subr.mxu0 0.0
        %3038 = vmatpush1.msra.mxu0 0.0
        %3039 = vmatprep.subr.mxu0 0.0
        %3040 = vmatpush1.msra.mxu0 0.0
        %3041 = vmatprep.subr.mxu0 0.0
        %3042 = vmatpush1.msra.mxu0 0.0
        %3043 = vmatprep.subr.mxu0 0.0
        %3044 = vmatpush1.msra.mxu0 0.0
        %3045 = vmatprep.subr.mxu0 0.0
        %3046 = vmatpush1.msra.mxu0 0.0
        %3047 = vmatprep.subr.mxu0 0.0
        %3048 = vmatpush1.msra.mxu0 0.0
        %3049 = vmatprep.subr.mxu0 0.0
        %3050 = vmatpush1.msra.mxu0 0.0
        %3051 = vmatprep.subr.mxu0 0.0
        %3052 = vmatpush1.msra.mxu0 0.0
        %3053 = vmatprep.subr.mxu0 0.0
        %3054 = vmatpush1.msra.mxu0 0.0
        %3055 = vmatprep.subr.mxu0 0.0
        %3056 = vmatpush1.msra.mxu0 0.0
        %3057 = vmatprep.subr.mxu0 0.0
        %3058 = vmatpush1.msra.mxu0 0.0
        %3059 = vmatprep.subr.mxu0 0.0
        %3060 = vmatpush1.msra.mxu0 0.0
        %3061 = vmatprep.subr.mxu0 0.0
        %3062 = vmatpush1.msra.mxu0 0.0
        %3063 = vmatprep.subr.mxu0 0.0
        %3064 = vmatpush1.msra.mxu0 0.0
        %3065 = vmatprep.subr.mxu0 0.0
        %3066 = vmatpush1.msra.mxu0 0.0
        %3067 = vmatprep.subr.mxu0 0.0
        %3068 = vmatpush1.msra.mxu0 0.0
        %3069 = vmatprep.subr.mxu0 0.0
        %3070 = vmatpush1.msra.mxu0 0.0
        %3071 = vmatprep.subr.mxu0 0.0
        %3072 = vmatpush1.msra.mxu0 0.0
        %3073 = vmatprep.subr.mxu0 0.0
        %3074 = vmatpush1.msra.mxu0 0.0
        %3075 = vmatprep.mubr.f32.mxu0 0.0
        %3076 = vmatmul.mubr.f32.gmra.mrb[0].mxu0 %v3006
        %v3077 = vpop.f32.mrb[0].mxu0
        %v3078 = vadd.f32 0.0, %v3077
        %v3079 = vpop.f32.mrb[0].mxu0
        %3080 = vmatprep.mubr.f32.mxu0 0.0
        %3081 = vmatmul.mubr.f32.gmra.mrb[0].mxu0 %v3009
        %v3082 = vpop.f32.mrb[0].mxu0
        %v3083 = vadd.f32 0.0, %v3082
        %v3084 = vpop.f32.mrb[0].mxu0
        %3085 = vdwg.mxu0
        %s3086 = scalar_lea.vmem %s4, 448
        %v3087 = vld [vmem:[%s3086] sm:$0xff]
        %v3088 = vld [vmem:[%s3086 + $0x8] sm:$0xff]
        %v3089 = vld [vmem:[%s3086 + $0x10] sm:$0xff]
        %v3090 = vld [vmem:[%s3086 + $0x18] sm:$0xff]
        %v3092 = vsel %vm775, %v3078, 0
        %v3095 = vsel %vm775, %v3083, 0
        %3097 = vmatprep.subr.mxu0 0.0
        %3098 = vmatpush1.msra.mxu0 %v3087
        %3099 = vmatprep.subr.mxu0 0.0
        %3100 = vmatpush1.msra.mxu0 %v3088
        %3101 = vmatprep.subr.mxu0 0.0
        %3102 = vmatpush1.msra.mxu0 %v3089
        %3103 = vmatprep.subr.mxu0 0.0
        %3104 = vmatpush1.msra.mxu0 %v3090
        %3105 = vmatprep.subr.mxu0 0.0
        %3106 = vmatpush1.msra.mxu0 0.0
        %3107 = vmatprep.subr.mxu0 0.0
        %3108 = vmatpush1.msra.mxu0 0.0
        %3109 = vmatprep.subr.mxu0 0.0
        %3110 = vmatpush1.msra.mxu0 0.0
        %3111 = vmatprep.subr.mxu0 0.0
        %3112 = vmatpush1.msra.mxu0 0.0
        %3113 = vmatprep.subr.mxu0 0.0
        %3114 = vmatpush1.msra.mxu0 0.0
        %3115 = vmatprep.subr.mxu0 0.0
        %3116 = vmatpush1.msra.mxu0 0.0
        %3117 = vmatprep.subr.mxu0 0.0
        %3118 = vmatpush1.msra.mxu0 0.0
        %3119 = vmatprep.subr.mxu0 0.0
        %3120 = vmatpush1.msra.mxu0 0.0
        %3121 = vmatprep.subr.mxu0 0.0
        %3122 = vmatpush1.msra.mxu0 0.0
        %3123 = vmatprep.subr.mxu0 0.0
        %3124 = vmatpush1.msra.mxu0 0.0
        %3125 = vmatprep.subr.mxu0 0.0
        %3126 = vmatpush1.msra.mxu0 0.0
        %3127 = vmatprep.subr.mxu0 0.0
        %3128 = vmatpush1.msra.mxu0 0.0
        %3129 = vmatprep.subr.mxu0 0.0
        %3130 = vmatpush1.msra.mxu0 0.0
        %3131 = vmatprep.subr.mxu0 0.0
        %3132 = vmatpush1.msra.mxu0 0.0
        %3133 = vmatprep.subr.mxu0 0.0
        %3134 = vmatpush1.msra.mxu0 0.0
        %3135 = vmatprep.subr.mxu0 0.0
        %3136 = vmatpush1.msra.mxu0 0.0
        %3137 = vmatprep.subr.mxu0 0.0
        %3138 = vmatpush1.msra.mxu0 0.0
        %3139 = vmatprep.subr.mxu0 0.0
        %3140 = vmatpush1.msra.mxu0 0.0
        %3141 = vmatprep.subr.mxu0 0.0
        %3142 = vmatpush1.msra.mxu0 0.0
        %3143 = vmatprep.subr.mxu0 0.0
        %3144 = vmatpush1.msra.mxu0 0.0
        %3145 = vmatprep.subr.mxu0 0.0
        %3146 = vmatpush1.msra.mxu0 0.0
        %3147 = vmatprep.subr.mxu0 0.0
        %3148 = vmatpush1.msra.mxu0 0.0
        %3149 = vmatprep.subr.mxu0 0.0
        %3150 = vmatpush1.msra.mxu0 0.0
        %3151 = vmatprep.subr.mxu0 0.0
        %3152 = vmatpush1.msra.mxu0 0.0
        %3153 = vmatprep.subr.mxu0 0.0
        %3154 = vmatpush1.msra.mxu0 0.0
        %3155 = vmatprep.subr.mxu0 0.0
        %3156 = vmatpush1.msra.mxu0 0.0
        %3157 = vmatprep.subr.mxu0 0.0
        %3158 = vmatpush1.msra.mxu0 0.0
        %3159 = vmatprep.subr.mxu0 0.0
        %3160 = vmatpush1.msra.mxu0 0.0
        %3161 = vmatprep.mubr.f32.mxu0 0.0
        %3162 = vmatmul.mubr.f32.gmra.mrb[0].mxu0 %v3092
        %v3163 = vpop.f32.mrb[0].mxu0
        %v3164 = vadd.f32 0.0, %v3163
        %v3165 = vpop.f32.mrb[0].mxu0
        %3166 = vmatprep.mubr.f32.mxu0 0.0
        %3167 = vmatmul.mubr.f32.gmra.mrb[0].mxu0 %v3095
        %v3168 = vpop.f32.mrb[0].mxu0
        %v3169 = vadd.f32 0.0, %v3168
        %v3170 = vpop.f32.mrb[0].mxu0
        %3171 = vdwg.mxu0
        %v3172 = vadd.f32 %v3000, %v3164
        %v3173 = vadd.f32 %v3001, %v3169
        %s3174 = scalar_lea.vmem %s3, 240
        %v3175 = vld [vmem:[%s3174] sm:$0xff]
        %v3176 = vld [vmem:[%s3174 + $0x8] sm:$0xff]
        %v3178 = vsel %vm600, %v3175, 0
        %v3181 = vsel %vm600, %v3176, 0
        %3183 = vmatprep.subr.mxu0 0.0
        %3184 = vmatpush1.msra.mxu0 %v590
        %3185 = vmatprep.subr.mxu0 0.0
        %3186 = vmatpush1.msra.mxu0 %v591
        %3187 = vmatprep.subr.mxu0 0.0
        %3188 = vmatpush1.msra.mxu0 %v592
        %3189 = vmatprep.subr.mxu0 0.0
        %3190 = vmatpush1.msra.mxu0 %v593
        %3191 = vmatprep.subr.mxu0 0.0
        %3192 = vmatpush1.msra.mxu0 %v594
        %3193 = vmatprep.subr.mxu0 0.0
        %3194 = vmatpush1.msra.mxu0 %v595
        %3195 = vmatprep.subr.mxu0 0.0
        %3196 = vmatpush1.msra.mxu0 %v596
        %3197 = vmatprep.subr.mxu0 0.0
        %3198 = vmatpush1.msra.mxu0 %v597
        %3199 = vmatprep.subr.mxu0 0.0
        %3200 = vmatpush1.msra.mxu0 0.0
        %3201 = vmatprep.subr.mxu0 0.0
        %3202 = vmatpush1.msra.mxu0 0.0
        %3203 = vmatprep.subr.mxu0 0.0
        %3204 = vmatpush1.msra.mxu0 0.0
        %3205 = vmatprep.subr.mxu0 0.0
        %3206 = vmatpush1.msra.mxu0 0.0
        %3207 = vmatprep.subr.mxu0 0.0
        %3208 = vmatpush1.msra.mxu0 0.0
        %3209 = vmatprep.subr.mxu0 0.0
        %3210 = vmatpush1.msra.mxu0 0.0
        %3211 = vmatprep.subr.mxu0 0.0
        %3212 = vmatpush1.msra.mxu0 0.0
        %3213 = vmatprep.subr.mxu0 0.0
        %3214 = vmatpush1.msra.mxu0 0.0
        %3215 = vmatprep.subr.mxu0 0.0
        %3216 = vmatpush1.msra.mxu0 0.0
        %3217 = vmatprep.subr.mxu0 0.0
        %3218 = vmatpush1.msra.mxu0 0.0
        %3219 = vmatprep.subr.mxu0 0.0
        %3220 = vmatpush1.msra.mxu0 0.0
        %3221 = vmatprep.subr.mxu0 0.0
        %3222 = vmatpush1.msra.mxu0 0.0
        %3223 = vmatprep.subr.mxu0 0.0
        %3224 = vmatpush1.msra.mxu0 0.0
        %3225 = vmatprep.subr.mxu0 0.0
        %3226 = vmatpush1.msra.mxu0 0.0
        %3227 = vmatprep.subr.mxu0 0.0
        %3228 = vmatpush1.msra.mxu0 0.0
        %3229 = vmatprep.subr.mxu0 0.0
        %3230 = vmatpush1.msra.mxu0 0.0
        %3231 = vmatprep.subr.mxu0 0.0
        %3232 = vmatpush1.msra.mxu0 0.0
        %3233 = vmatprep.subr.mxu0 0.0
        %3234 = vmatpush1.msra.mxu0 0.0
        %3235 = vmatprep.subr.mxu0 0.0
        %3236 = vmatpush1.msra.mxu0 0.0
        %3237 = vmatprep.subr.mxu0 0.0
        %3238 = vmatpush1.msra.mxu0 0.0
        %3239 = vmatprep.subr.mxu0 0.0
        %3240 = vmatpush1.msra.mxu0 0.0
        %3241 = vmatprep.subr.mxu0 0.0
        %3242 = vmatpush1.msra.mxu0 0.0
        %3243 = vmatprep.subr.mxu0 0.0
        %3244 = vmatpush1.msra.mxu0 0.0
        %3245 = vmatprep.subr.mxu0 0.0
        %3246 = vmatpush1.msra.mxu0 0.0
        %3247 = vmatprep.mubr.f32.mxu0 0.0
        %3248 = vmatmul.mubr.f32.gmra.mrb[0].mxu0 %v3178
        %v3249 = vpop.f32.mrb[0].mxu0
        %v3250 = vadd.f32 0.0, %v3249
        %v3251 = vpop.f32.mrb[0].mxu0
        %3252 = vmatprep.mubr.f32.mxu0 0.0
        %3253 = vmatmul.mubr.f32.gmra.mrb[0].mxu0 %v3181
        %v3254 = vpop.f32.mrb[0].mxu0
        %v3255 = vadd.f32 0.0, %v3254
        %v3256 = vpop.f32.mrb[0].mxu0
        %3257 = vdwg.mxu0
        %s3258 = scalar_lea.vmem %s4, 480
        %v3259 = vld [vmem:[%s3258] sm:$0xff]
        %v3260 = vld [vmem:[%s3258 + $0x8] sm:$0xff]
        %v3261 = vld [vmem:[%s3258 + $0x10] sm:$0xff]
        %v3262 = vld [vmem:[%s3258 + $0x18] sm:$0xff]
        %v3264 = vsel %vm775, %v3250, 0
        %v3267 = vsel %vm775, %v3255, 0
        %3269 = vmatprep.subr.mxu0 0.0
        %3270 = vmatpush1.msra.mxu0 %v3259
        %3271 = vmatprep.subr.mxu0 0.0
        %3272 = vmatpush1.msra.mxu0 %v3260
        %3273 = vmatprep.subr.mxu0 0.0
        %3274 = vmatpush1.msra.mxu0 %v3261
        %3275 = vmatprep.subr.mxu0 0.0
        %3276 = vmatpush1.msra.mxu0 %v3262
        %3277 = vmatprep.subr.mxu0 0.0
        %3278 = vmatpush1.msra.mxu0 0.0
        %3279 = vmatprep.subr.mxu0 0.0
        %3280 = vmatpush1.msra.mxu0 0.0
        %3281 = vmatprep.subr.mxu0 0.0
        %3282 = vmatpush1.msra.mxu0 0.0
        %3283 = vmatprep.subr.mxu0 0.0
        %3284 = vmatpush1.msra.mxu0 0.0
        %3285 = vmatprep.subr.mxu0 0.0
        %3286 = vmatpush1.msra.mxu0 0.0
        %3287 = vmatprep.subr.mxu0 0.0
        %3288 = vmatpush1.msra.mxu0 0.0
        %3289 = vmatprep.subr.mxu0 0.0
        %3290 = vmatpush1.msra.mxu0 0.0
        %3291 = vmatprep.subr.mxu0 0.0
        %3292 = vmatpush1.msra.mxu0 0.0
        %3293 = vmatprep.subr.mxu0 0.0
        %3294 = vmatpush1.msra.mxu0 0.0
        %3295 = vmatprep.subr.mxu0 0.0
        %3296 = vmatpush1.msra.mxu0 0.0
        %3297 = vmatprep.subr.mxu0 0.0
        %3298 = vmatpush1.msra.mxu0 0.0
        %3299 = vmatprep.subr.mxu0 0.0
        %3300 = vmatpush1.msra.mxu0 0.0
        %3301 = vmatprep.subr.mxu0 0.0
        %3302 = vmatpush1.msra.mxu0 0.0
        %3303 = vmatprep.subr.mxu0 0.0
        %3304 = vmatpush1.msra.mxu0 0.0
        %3305 = vmatprep.subr.mxu0 0.0
        %3306 = vmatpush1.msra.mxu0 0.0
        %3307 = vmatprep.subr.mxu0 0.0
        %3308 = vmatpush1.msra.mxu0 0.0
        %3309 = vmatprep.subr.mxu0 0.0
        %3310 = vmatpush1.msra.mxu0 0.0
        %3311 = vmatprep.subr.mxu0 0.0
        %3312 = vmatpush1.msra.mxu0 0.0
        %3313 = vmatprep.subr.mxu0 0.0
        %3314 = vmatpush1.msra.mxu0 0.0
        %3315 = vmatprep.subr.mxu0 0.0
        %3316 = vmatpush1.msra.mxu0 0.0
        %3317 = vmatprep.subr.mxu0 0.0
        %3318 = vmatpush1.msra.mxu0 0.0
        %3319 = vmatprep.subr.mxu0 0.0
        %3320 = vmatpush1.msra.mxu0 0.0
        %3321 = vmatprep.subr.mxu0 0.0
        %3322 = vmatpush1.msra.mxu0 0.0
        %3323 = vmatprep.subr.mxu0 0.0
        %3324 = vmatpush1.msra.mxu0 0.0
        %3325 = vmatprep.subr.mxu0 0.0
        %3326 = vmatpush1.msra.mxu0 0.0
        %3327 = vmatprep.subr.mxu0 0.0
        %3328 = vmatpush1.msra.mxu0 0.0
        %3329 = vmatprep.subr.mxu0 0.0
        %3330 = vmatpush1.msra.mxu0 0.0
        %3331 = vmatprep.subr.mxu0 0.0
        %3332 = vmatpush1.msra.mxu0 0.0
        %3333 = vmatprep.mubr.f32.mxu0 0.0
        %3334 = vmatmul.mubr.f32.gmra.mrb[0].mxu0 %v3264
        %v3335 = vpop.f32.mrb[0].mxu0
        %v3336 = vadd.f32 0.0, %v3335
        %v3337 = vpop.f32.mrb[0].mxu0
        %3338 = vmatprep.mubr.f32.mxu0 0.0
        %3339 = vmatmul.mubr.f32.gmra.mrb[0].mxu0 %v3267
        %v3340 = vpop.f32.mrb[0].mxu0
        %v3341 = vadd.f32 0.0, %v3340
        %v3342 = vpop.f32.mrb[0].mxu0
        %3343 = vdwg.mxu0
        %v3344 = vadd.f32 %v3172, %v3336
        %v3345 = vadd.f32 %v3173, %v3341
        %v3346 = vld [vmem:[%s5] sm:$0x1]
        %v3348 = vlaneseq
        %v3349 = vshrl.u32 %v3348, 7
        %v3350 = vsub.s32 0, %v3349
        %v3351 = vrot.slane %v3346, %v3350
        %v3353 = vadd.f32 %v3344, %v3351
        %v3354 = vadd.f32 %v3345, %v3351
        %v3355 = vmax.f32 %v3353, 0.0
        %v3356 = vmax.f32 %v3354, 0.0
        %v3357 = vld [vmem:[%s6] sm:$0xff]
        %v3358 = vld [vmem:[%s6 + $0x8] sm:$0xff]
        %vm3359 = vcmask 130048
        %v3361 = vsel %vm3359, %v3357, 0
        %v3364 = vsel %vm3359, %v3358, 0
        %3366 = vmatprep.subr.mxu0 0.0
        %3367 = vmatpush1.msra.mxu0 %v3355
        %3368 = vmatprep.subr.mxu0 0.0
        %3369 = vmatpush1.msra.mxu0 %v3356
        %3370 = vmatprep.subr.mxu0 0.0
        %3371 = vmatpush1.msra.mxu0 0.0
        %3372 = vmatprep.subr.mxu0 0.0
        %3373 = vmatpush1.msra.mxu0 0.0
        %3374 = vmatprep.subr.mxu0 0.0
        %3375 = vmatpush1.msra.mxu0 0.0
        %3376 = vmatprep.subr.mxu0 0.0
        %3377 = vmatpush1.msra.mxu0 0.0
        %3378 = vmatprep.subr.mxu0 0.0
        %3379 = vmatpush1.msra.mxu0 0.0
        %3380 = vmatprep.subr.mxu0 0.0
        %3381 = vmatpush1.msra.mxu0 0.0
        %3382 = vmatprep.subr.mxu0 0.0
        %3383 = vmatpush1.msra.mxu0 0.0
        %3384 = vmatprep.subr.mxu0 0.0
        %3385 = vmatpush1.msra.mxu0 0.0
        %3386 = vmatprep.subr.mxu0 0.0
        %3387 = vmatpush1.msra.mxu0 0.0
        %3388 = vmatprep.subr.mxu0 0.0
        %3389 = vmatpush1.msra.mxu0 0.0
        %3390 = vmatprep.subr.mxu0 0.0
        %3391 = vmatpush1.msra.mxu0 0.0
        %3392 = vmatprep.subr.mxu0 0.0
        %3393 = vmatpush1.msra.mxu0 0.0
        %3394 = vmatprep.subr.mxu0 0.0
        %3395 = vmatpush1.msra.mxu0 0.0
        %3396 = vmatprep.subr.mxu0 0.0
        %3397 = vmatpush1.msra.mxu0 0.0
        %3398 = vmatprep.subr.mxu0 0.0
        %3399 = vmatpush1.msra.mxu0 0.0
        %3400 = vmatprep.subr.mxu0 0.0
        %3401 = vmatpush1.msra.mxu0 0.0
        %3402 = vmatprep.subr.mxu0 0.0
        %3403 = vmatpush1.msra.mxu0 0.0
        %3404 = vmatprep.subr.mxu0 0.0
        %3405 = vmatpush1.msra.mxu0 0.0
        %3406 = vmatprep.subr.mxu0 0.0
        %3407 = vmatpush1.msra.mxu0 0.0
        %3408 = vmatprep.subr.mxu0 0.0
        %3409 = vmatpush1.msra.mxu0 0.0
        %3410 = vmatprep.subr.mxu0 0.0
        %3411 = vmatpush1.msra.mxu0 0.0
        %3412 = vmatprep.subr.mxu0 0.0
        %3413 = vmatpush1.msra.mxu0 0.0
        %3414 = vmatprep.subr.mxu0 0.0
        %3415 = vmatpush1.msra.mxu0 0.0
        %3416 = vmatprep.subr.mxu0 0.0
        %3417 = vmatpush1.msra.mxu0 0.0
        %3418 = vmatprep.subr.mxu0 0.0
        %3419 = vmatpush1.msra.mxu0 0.0
        %3420 = vmatprep.subr.mxu0 0.0
        %3421 = vmatpush1.msra.mxu0 0.0
        %3422 = vmatprep.subr.mxu0 0.0
        %3423 = vmatpush1.msra.mxu0 0.0
        %3424 = vmatprep.subr.mxu0 0.0
        %3425 = vmatpush1.msra.mxu0 0.0
        %3426 = vmatprep.subr.mxu0 0.0
        %3427 = vmatpush1.msra.mxu0 0.0
        %3428 = vmatprep.subr.mxu0 0.0
        %3429 = vmatpush1.msra.mxu0 0.0
        %3430 = vmatprep.mubr.f32.mxu0 0.0
        %3431 = vmatmul.mubr.f32.gmra.mrb[0].mxu0 %v3361
        %v3432 = vpop.f32.mrb[0].mxu0
        %v3433 = vadd.f32 0.0, %v3432
        %v3434 = vpop.f32.mrb[0].mxu0
        %3435 = vmatprep.mubr.f32.mxu0 0.0
        %3436 = vmatmul.mubr.f32.gmra.mrb[0].mxu0 %v3364
        %v3437 = vpop.f32.mrb[0].mxu0
        %v3438 = vadd.f32 0.0, %v3437
        %v3439 = vpop.f32.mrb[0].mxu0
        %3440 = vdwg.mxu0
        %v3441 = vld [vmem:[%s7] sm:$0xff]
        %v3442 = vld [vmem:[%s7 + $0x8] sm:$0xff]
        %v3443 = vld [vmem:[%s7 + $0x10] sm:$0xff]
        %v3444 = vld [vmem:[%s7 + $0x18] sm:$0xff]
        %s3445 = scalar_lea.vmem %s6, 16
        %v3446 = vld [vmem:[%s3445] sm:$0xff]
        %v3447 = vld [vmem:[%s3445 + $0x8] sm:$0xff]
        %v3449 = vsel %vm3359, %v3446, 0
        %v3452 = vsel %vm3359, %v3447, 0
        %3454 = vmatprep.subr.mxu0 0.0
        %3455 = vmatpush1.msra.mxu0 %v3355
        %3456 = vmatprep.subr.mxu0 0.0
        %3457 = vmatpush1.msra.mxu0 %v3356
        %3458 = vmatprep.subr.mxu0 0.0
        %3459 = vmatpush1.msra.mxu0 0.0
        %3460 = vmatprep.subr.mxu0 0.0
        %3461 = vmatpush1.msra.mxu0 0.0
        %3462 = vmatprep.subr.mxu0 0.0
        %3463 = vmatpush1.msra.mxu0 0.0
        %3464 = vmatprep.subr.mxu0 0.0
        %3465 = vmatpush1.msra.mxu0 0.0
        %3466 = vmatprep.subr.mxu0 0.0
        %3467 = vmatpush1.msra.mxu0 0.0
        %3468 = vmatprep.subr.mxu0 0.0
        %3469 = vmatpush1.msra.mxu0 0.0
        %3470 = vmatprep.subr.mxu0 0.0
        %3471 = vmatpush1.msra.mxu0 0.0
        %3472 = vmatprep.subr.mxu0 0.0
        %3473 = vmatpush1.msra.mxu0 0.0
        %3474 = vmatprep.subr.mxu0 0.0
        %3475 = vmatpush1.msra.mxu0 0.0
        %3476 = vmatprep.subr.mxu0 0.0
        %3477 = vmatpush1.msra.mxu0 0.0
        %3478 = vmatprep.subr.mxu0 0.0
        %3479 = vmatpush1.msra.mxu0 0.0
        %3480 = vmatprep.subr.mxu0 0.0
        %3481 = vmatpush1.msra.mxu0 0.0
        %3482 = vmatprep.subr.mxu0 0.0
        %3483 = vmatpush1.msra.mxu0 0.0
        %3484 = vmatprep.subr.mxu0 0.0
        %3485 = vmatpush1.msra.mxu0 0.0
        %3486 = vmatprep.subr.mxu0 0.0
        %3487 = vmatpush1.msra.mxu0 0.0
        %3488 = vmatprep.subr.mxu0 0.0
        %3489 = vmatpush1.msra.mxu0 0.0
        %3490 = vmatprep.subr.mxu0 0.0
        %3491 = vmatpush1.msra.mxu0 0.0
        %3492 = vmatprep.subr.mxu0 0.0
        %3493 = vmatpush1.msra.mxu0 0.0
        %3494 = vmatprep.subr.mxu0 0.0
        %3495 = vmatpush1.msra.mxu0 0.0
        %3496 = vmatprep.subr.mxu0 0.0
        %3497 = vmatpush1.msra.mxu0 0.0
        %3498 = vmatprep.subr.mxu0 0.0
        %3499 = vmatpush1.msra.mxu0 0.0
        %3500 = vmatprep.subr.mxu0 0.0
        %3501 = vmatpush1.msra.mxu0 0.0
        %3502 = vmatprep.subr.mxu0 0.0
        %3503 = vmatpush1.msra.mxu0 0.0
        %3504 = vmatprep.subr.mxu0 0.0
        %3505 = vmatpush1.msra.mxu0 0.0
        %3506 = vmatprep.subr.mxu0 0.0
        %3507 = vmatpush1.msra.mxu0 0.0
        %3508 = vmatprep.subr.mxu0 0.0
        %3509 = vmatpush1.msra.mxu0 0.0
        %3510 = vmatprep.subr.mxu0 0.0
        %3511 = vmatpush1.msra.mxu0 0.0
        %3512 = vmatprep.subr.mxu0 0.0
        %3513 = vmatpush1.msra.mxu0 0.0
        %3514 = vmatprep.subr.mxu0 0.0
        %3515 = vmatpush1.msra.mxu0 0.0
        %3516 = vmatprep.subr.mxu0 0.0
        %3517 = vmatpush1.msra.mxu0 0.0
        %3518 = vmatprep.mubr.f32.mxu0 0.0
        %3519 = vmatmul.mubr.f32.gmra.mrb[0].mxu0 %v3449
        %v3520 = vpop.f32.mrb[0].mxu0
        %v3521 = vadd.f32 0.0, %v3520
        %v3522 = vpop.f32.mrb[0].mxu0
        %3523 = vmatprep.mubr.f32.mxu0 0.0
        %3524 = vmatmul.mubr.f32.gmra.mrb[0].mxu0 %v3452
        %v3525 = vpop.f32.mrb[0].mxu0
        %v3526 = vadd.f32 0.0, %v3525
        %v3527 = vpop.f32.mrb[0].mxu0
        %3528 = vdwg.mxu0
        %s3529 = scalar_lea.vmem %s7, 32
        %v3530 = vld [vmem:[%s3529] sm:$0xff]
        %v3531 = vld [vmem:[%s3529 + $0x8] sm:$0xff]
        %v3532 = vld [vmem:[%s3529 + $0x10] sm:$0xff]
        %v3533 = vld [vmem:[%s3529 + $0x18] sm:$0xff]
        %v3535 = vsel %vm775, %v3521, 0
        %v3538 = vsel %vm775, %v3526, 0
        %3540 = vmatprep.subr.mxu0 0.0
        %3541 = vmatpush1.msra.mxu0 %v3530
        %3542 = vmatprep.subr.mxu0 0.0
        %3543 = vmatpush1.msra.mxu0 %v3531
        %3544 = vmatprep.subr.mxu0 0.0
        %3545 = vmatpush1.msra.mxu0 %v3532
        %3546 = vmatprep.subr.mxu0 0.0
        %3547 = vmatpush1.msra.mxu0 %v3533
        %3548 = vmatprep.subr.mxu0 0.0
        %3549 = vmatpush1.msra.mxu0 0.0
        %3550 = vmatprep.subr.mxu0 0.0
        %3551 = vmatpush1.msra.mxu0 0.0
        %3552 = vmatprep.subr.mxu0 0.0
        %3553 = vmatpush1.msra.mxu0 0.0
        %3554 = vmatprep.subr.mxu0 0.0
        %3555 = vmatpush1.msra.mxu0 0.0
        %3556 = vmatprep.subr.mxu0 0.0
        %3557 = vmatpush1.msra.mxu0 0.0
        %3558 = vmatprep.subr.mxu0 0.0
        %3559 = vmatpush1.msra.mxu0 0.0
        %3560 = vmatprep.subr.mxu0 0.0
        %3561 = vmatpush1.msra.mxu0 0.0
        %3562 = vmatprep.subr.mxu0 0.0
        %3563 = vmatpush1.msra.mxu0 0.0
        %3564 = vmatprep.subr.mxu0 0.0
        %3565 = vmatpush1.msra.mxu0 0.0
        %3566 = vmatprep.subr.mxu0 0.0
        %3567 = vmatpush1.msra.mxu0 0.0
        %3568 = vmatprep.subr.mxu0 0.0
        %3569 = vmatpush1.msra.mxu0 0.0
        %3570 = vmatprep.subr.mxu0 0.0
        %3571 = vmatpush1.msra.mxu0 0.0
        %3572 = vmatprep.subr.mxu0 0.0
        %3573 = vmatpush1.msra.mxu0 0.0
        %3574 = vmatprep.subr.mxu0 0.0
        %3575 = vmatpush1.msra.mxu0 0.0
        %3576 = vmatprep.subr.mxu0 0.0
        %3577 = vmatpush1.msra.mxu0 0.0
        %3578 = vmatprep.subr.mxu0 0.0
        %3579 = vmatpush1.msra.mxu0 0.0
        %3580 = vmatprep.subr.mxu0 0.0
        %3581 = vmatpush1.msra.mxu0 0.0
        %3582 = vmatprep.subr.mxu0 0.0
        %3583 = vmatpush1.msra.mxu0 0.0
        %3584 = vmatprep.subr.mxu0 0.0
        %3585 = vmatpush1.msra.mxu0 0.0
        %3586 = vmatprep.subr.mxu0 0.0
        %3587 = vmatpush1.msra.mxu0 0.0
        %3588 = vmatprep.subr.mxu0 0.0
        %3589 = vmatpush1.msra.mxu0 0.0
        %3590 = vmatprep.subr.mxu0 0.0
        %3591 = vmatpush1.msra.mxu0 0.0
        %3592 = vmatprep.subr.mxu0 0.0
        %3593 = vmatpush1.msra.mxu0 0.0
        %3594 = vmatprep.subr.mxu0 0.0
        %3595 = vmatpush1.msra.mxu0 0.0
        %3596 = vmatprep.subr.mxu0 0.0
        %3597 = vmatpush1.msra.mxu0 0.0
        %3598 = vmatprep.subr.mxu0 0.0
        %3599 = vmatpush1.msra.mxu0 0.0
        %3600 = vmatprep.subr.mxu0 0.0
        %3601 = vmatpush1.msra.mxu0 0.0
        %3602 = vmatprep.subr.mxu0 0.0
        %3603 = vmatpush1.msra.mxu0 0.0
        %3604 = vmatprep.mubr.f32.mxu0 0.0
        %3605 = vmatmul.mubr.f32.gmra.mrb[0].mxu0 %v3535
        %v3606 = vpop.f32.mrb[0].mxu0
        %v3607 = vadd.f32 0.0, %v3606
        %v3608 = vpop.f32.mrb[0].mxu0
        %3609 = vmatprep.mubr.f32.mxu0 0.0
        %3610 = vmatmul.mubr.f32.gmra.mrb[0].mxu0 %v3538
        %v3611 = vpop.f32.mrb[0].mxu0
        %v3612 = vadd.f32 0.0, %v3611
        %v3613 = vpop.f32.mrb[0].mxu0
        %3614 = vdwg.mxu0
        %v3616 = vsel %vm775, %v3433, 0
        %v3619 = vsel %vm775, %v3438, 0
        %3621 = vmatprep.subr.mxu0 0.0
        %3622 = vmatpush1.msra.mxu0 %v3441
        %3623 = vmatprep.subr.mxu0 0.0
        %3624 = vmatpush1.msra.mxu0 %v3442
        %3625 = vmatprep.subr.mxu0 0.0
        %3626 = vmatpush1.msra.mxu0 %v3443
        %3627 = vmatprep.subr.mxu0 0.0
        %3628 = vmatpush1.msra.mxu0 %v3444
        %3629 = vmatprep.subr.mxu0 0.0
        %3630 = vmatpush1.msra.mxu0 0.0
        %3631 = vmatprep.subr.mxu0 0.0
        %3632 = vmatpush1.msra.mxu0 0.0
        %3633 = vmatprep.subr.mxu0 0.0
        %3634 = vmatpush1.msra.mxu0 0.0
        %3635 = vmatprep.subr.mxu0 0.0
        %3636 = vmatpush1.msra.mxu0 0.0
        %3637 = vmatprep.subr.mxu0 0.0
        %3638 = vmatpush1.msra.mxu0 0.0
        %3639 = vmatprep.subr.mxu0 0.0
        %3640 = vmatpush1.msra.mxu0 0.0
        %3641 = vmatprep.subr.mxu0 0.0
        %3642 = vmatpush1.msra.mxu0 0.0
        %3643 = vmatprep.subr.mxu0 0.0
        %3644 = vmatpush1.msra.mxu0 0.0
        %3645 = vmatprep.subr.mxu0 0.0
        %3646 = vmatpush1.msra.mxu0 0.0
        %3647 = vmatprep.subr.mxu0 0.0
        %3648 = vmatpush1.msra.mxu0 0.0
        %3649 = vmatprep.subr.mxu0 0.0
        %3650 = vmatpush1.msra.mxu0 0.0
        %3651 = vmatprep.subr.mxu0 0.0
        %3652 = vmatpush1.msra.mxu0 0.0
        %3653 = vmatprep.subr.mxu0 0.0
        %3654 = vmatpush1.msra.mxu0 0.0
        %3655 = vmatprep.subr.mxu0 0.0
        %3656 = vmatpush1.msra.mxu0 0.0
        %3657 = vmatprep.subr.mxu0 0.0
        %3658 = vmatpush1.msra.mxu0 0.0
        %3659 = vmatprep.subr.mxu0 0.0
        %3660 = vmatpush1.msra.mxu0 0.0
        %3661 = vmatprep.subr.mxu0 0.0
        %3662 = vmatpush1.msra.mxu0 0.0
        %3663 = vmatprep.subr.mxu0 0.0
        %3664 = vmatpush1.msra.mxu0 0.0
        %3665 = vmatprep.subr.mxu0 0.0
        %3666 = vmatpush1.msra.mxu0 0.0
        %3667 = vmatprep.subr.mxu0 0.0
        %3668 = vmatpush1.msra.mxu0 0.0
        %3669 = vmatprep.subr.mxu0 0.0
        %3670 = vmatpush1.msra.mxu0 0.0
        %3671 = vmatprep.subr.mxu0 0.0
        %3672 = vmatpush1.msra.mxu0 0.0
        %3673 = vmatprep.subr.mxu0 0.0
        %3674 = vmatpush1.msra.mxu0 0.0
        %3675 = vmatprep.subr.mxu0 0.0
        %3676 = vmatpush1.msra.mxu0 0.0
        %3677 = vmatprep.subr.mxu0 0.0
        %3678 = vmatpush1.msra.mxu0 0.0
        %3679 = vmatprep.subr.mxu0 0.0
        %3680 = vmatpush1.msra.mxu0 0.0
        %3681 = vmatprep.subr.mxu0 0.0
        %3682 = vmatpush1.msra.mxu0 0.0
        %3683 = vmatprep.subr.mxu0 0.0
        %3684 = vmatpush1.msra.mxu0 0.0
        %3685 = vmatprep.mubr.f32.mxu0 0.0
        %3686 = vmatmul.mubr.f32.gmra.mrb[0].mxu0 %v3616
        %v3687 = vpop.f32.mrb[0].mxu0
        %v3688 = vadd.f32 %v3607, %v3687
        %v3689 = vpop.f32.mrb[0].mxu0
        %3690 = vmatprep.mubr.f32.mxu0 0.0
        %3691 = vmatmul.mubr.f32.gmra.mrb[0].mxu0 %v3619
        %v3692 = vpop.f32.mrb[0].mxu0
        %v3693 = vadd.f32 %v3612, %v3692
        %v3694 = vpop.f32.mrb[0].mxu0
        %3695 = vdwg.mxu0
        %s3696 = scalar_lea.vmem %s6, 32
        %v3697 = vld [vmem:[%s3696] sm:$0xff]
        %v3698 = vld [vmem:[%s3696 + $0x8] sm:$0xff]
        %v3700 = vsel %vm3359, %v3697, 0
        %v3703 = vsel %vm3359, %v3698, 0
        %3705 = vmatprep.subr.mxu0 0.0
        %3706 = vmatpush1.msra.mxu0 %v3355
        %3707 = vmatprep.subr.mxu0 0.0
        %3708 = vmatpush1.msra.mxu0 %v3356
        %3709 = vmatprep.subr.mxu0 0.0
        %3710 = vmatpush1.msra.mxu0 0.0
        %3711 = vmatprep.subr.mxu0 0.0
        %3712 = vmatpush1.msra.mxu0 0.0
        %3713 = vmatprep.subr.mxu0 0.0
        %3714 = vmatpush1.msra.mxu0 0.0
        %3715 = vmatprep.subr.mxu0 0.0
        %3716 = vmatpush1.msra.mxu0 0.0
        %3717 = vmatprep.subr.mxu0 0.0
        %3718 = vmatpush1.msra.mxu0 0.0
        %3719 = vmatprep.subr.mxu0 0.0
        %3720 = vmatpush1.msra.mxu0 0.0
        %3721 = vmatprep.subr.mxu0 0.0
        %3722 = vmatpush1.msra.mxu0 0.0
        %3723 = vmatprep.subr.mxu0 0.0
        %3724 = vmatpush1.msra.mxu0 0.0
        %3725 = vmatprep.subr.mxu0 0.0
        %3726 = vmatpush1.msra.mxu0 0.0
        %3727 = vmatprep.subr.mxu0 0.0
        %3728 = vmatpush1.msra.mxu0 0.0
        %3729 = vmatprep.subr.mxu0 0.0
        %3730 = vmatpush1.msra.mxu0 0.0
        %3731 = vmatprep.subr.mxu0 0.0
        %3732 = vmatpush1.msra.mxu0 0.0
        %3733 = vmatprep.subr.mxu0 0.0
        %3734 = vmatpush1.msra.mxu0 0.0
        %3735 = vmatprep.subr.mxu0 0.0
        %3736 = vmatpush1.msra.mxu0 0.0
        %3737 = vmatprep.subr.mxu0 0.0
        %3738 = vmatpush1.msra.mxu0 0.0
        %3739 = vmatprep.subr.mxu0 0.0
        %3740 = vmatpush1.msra.mxu0 0.0
        %3741 = vmatprep.subr.mxu0 0.0
        %3742 = vmatpush1.msra.mxu0 0.0
        %3743 = vmatprep.subr.mxu0 0.0
        %3744 = vmatpush1.msra.mxu0 0.0
        %3745 = vmatprep.subr.mxu0 0.0
        %3746 = vmatpush1.msra.mxu0 0.0
        %3747 = vmatprep.subr.mxu0 0.0
        %3748 = vmatpush1.msra.mxu0 0.0
        %3749 = vmatprep.subr.mxu0 0.0
        %3750 = vmatpush1.msra.mxu0 0.0
        %3751 = vmatprep.subr.mxu0 0.0
        %3752 = vmatpush1.msra.mxu0 0.0
        %3753 = vmatprep.subr.mxu0 0.0
        %3754 = vmatpush1.msra.mxu0 0.0
        %3755 = vmatprep.subr.mxu0 0.0
        %3756 = vmatpush1.msra.mxu0 0.0
        %3757 = vmatprep.subr.mxu0 0.0
        %3758 = vmatpush1.msra.mxu0 0.0
        %3759 = vmatprep.subr.mxu0 0.0
        %3760 = vmatpush1.msra.mxu0 0.0
        %3761 = vmatprep.subr.mxu0 0.0
        %3762 = vmatpush1.msra.mxu0 0.0
        %3763 = vmatprep.subr.mxu0 0.0
        %3764 = vmatpush1.msra.mxu0 0.0
        %3765 = vmatprep.subr.mxu0 0.0
        %3766 = vmatpush1.msra.mxu0 0.0
        %3767 = vmatprep.subr.mxu0 0.0
        %3768 = vmatpush1.msra.mxu0 0.0
        %3769 = vmatprep.mubr.f32.mxu0 0.0
        %3770 = vmatmul.mubr.f32.gmra.mrb[0].mxu0 %v3700
        %v3771 = vpop.f32.mrb[0].mxu0
        %v3772 = vadd.f32 0.0, %v3771
        %v3773 = vpop.f32.mrb[0].mxu0
        %3774 = vmatprep.mubr.f32.mxu0 0.0
        %3775 = vmatmul.mubr.f32.gmra.mrb[0].mxu0 %v3703
        %v3776 = vpop.f32.mrb[0].mxu0
        %v3777 = vadd.f32 0.0, %v3776
        %v3778 = vpop.f32.mrb[0].mxu0
        %3779 = vdwg.mxu0
        %s3780 = scalar_lea.vmem %s7, 64
        %v3781 = vld [vmem:[%s3780] sm:$0xff]
        %v3782 = vld [vmem:[%s3780 + $0x8] sm:$0xff]
        %v3783 = vld [vmem:[%s3780 + $0x10] sm:$0xff]
        %v3784 = vld [vmem:[%s3780 + $0x18] sm:$0xff]
        %v3786 = vsel %vm775, %v3772, 0
        %v3789 = vsel %vm775, %v3777, 0
        %3791 = vmatprep.subr.mxu0 0.0
        %3792 = vmatpush1.msra.mxu0 %v3781
        %3793 = vmatprep.subr.mxu0 0.0
        %3794 = vmatpush1.msra.mxu0 %v3782
        %3795 = vmatprep.subr.mxu0 0.0
        %3796 = vmatpush1.msra.mxu0 %v3783
        %3797 = vmatprep.subr.mxu0 0.0
        %3798 = vmatpush1.msra.mxu0 %v3784
        %3799 = vmatprep.subr.mxu0 0.0
        %3800 = vmatpush1.msra.mxu0 0.0
        %3801 = vmatprep.subr.mxu0 0.0
        %3802 = vmatpush1.msra.mxu0 0.0
        %3803 = vmatprep.subr.mxu0 0.0
        %3804 = vmatpush1.msra.mxu0 0.0
        %3805 = vmatprep.subr.mxu0 0.0
        %3806 = vmatpush1.msra.mxu0 0.0
        %3807 = vmatprep.subr.mxu0 0.0
        %3808 = vmatpush1.msra.mxu0 0.0
        %3809 = vmatprep.subr.mxu0 0.0
        %3810 = vmatpush1.msra.mxu0 0.0
        %3811 = vmatprep.subr.mxu0 0.0
        %3812 = vmatpush1.msra.mxu0 0.0
        %3813 = vmatprep.subr.mxu0 0.0
        %3814 = vmatpush1.msra.mxu0 0.0
        %3815 = vmatprep.subr.mxu0 0.0
        %3816 = vmatpush1.msra.mxu0 0.0
        %3817 = vmatprep.subr.mxu0 0.0
        %3818 = vmatpush1.msra.mxu0 0.0
        %3819 = vmatprep.subr.mxu0 0.0
        %3820 = vmatpush1.msra.mxu0 0.0
        %3821 = vmatprep.subr.mxu0 0.0
        %3822 = vmatpush1.msra.mxu0 0.0
        %3823 = vmatprep.subr.mxu0 0.0
        %3824 = vmatpush1.msra.mxu0 0.0
        %3825 = vmatprep.subr.mxu0 0.0
        %3826 = vmatpush1.msra.mxu0 0.0
        %3827 = vmatprep.subr.mxu0 0.0
        %3828 = vmatpush1.msra.mxu0 0.0
        %3829 = vmatprep.subr.mxu0 0.0
        %3830 = vmatpush1.msra.mxu0 0.0
        %3831 = vmatprep.subr.mxu0 0.0
        %3832 = vmatpush1.msra.mxu0 0.0
        %3833 = vmatprep.subr.mxu0 0.0
        %3834 = vmatpush1.msra.mxu0 0.0
        %3835 = vmatprep.subr.mxu0 0.0
        %3836 = vmatpush1.msra.mxu0 0.0
        %3837 = vmatprep.subr.mxu0 0.0
        %3838 = vmatpush1.msra.mxu0 0.0
        %3839 = vmatprep.subr.mxu0 0.0
        %3840 = vmatpush1.msra.mxu0 0.0
        %3841 = vmatprep.subr.mxu0 0.0
        %3842 = vmatpush1.msra.mxu0 0.0
        %3843 = vmatprep.subr.mxu0 0.0
        %3844 = vmatpush1.msra.mxu0 0.0
        %3845 = vmatprep.subr.mxu0 0.0
        %3846 = vmatpush1.msra.mxu0 0.0
        %3847 = vmatprep.subr.mxu0 0.0
        %3848 = vmatpush1.msra.mxu0 0.0
        %3849 = vmatprep.subr.mxu0 0.0
        %3850 = vmatpush1.msra.mxu0 0.0
        %3851 = vmatprep.subr.mxu0 0.0
        %3852 = vmatpush1.msra.mxu0 0.0
        %3853 = vmatprep.subr.mxu0 0.0
        %3854 = vmatpush1.msra.mxu0 0.0
        %3855 = vmatprep.mubr.f32.mxu0 0.0
        %3856 = vmatmul.mubr.f32.gmra.mrb[0].mxu0 %v3786
        %v3857 = vpop.f32.mrb[0].mxu0
        %v3858 = vadd.f32 0.0, %v3857
        %v3859 = vpop.f32.mrb[0].mxu0
        %3860 = vmatprep.mubr.f32.mxu0 0.0
        %3861 = vmatmul.mubr.f32.gmra.mrb[0].mxu0 %v3789
        %v3862 = vpop.f32.mrb[0].mxu0
        %v3863 = vadd.f32 0.0, %v3862
        %v3864 = vpop.f32.mrb[0].mxu0
        %3865 = vdwg.mxu0
        %v3866 = vadd.f32 %v3688, %v3858
        %v3867 = vadd.f32 %v3693, %v3863
        %s3868 = scalar_lea.vmem %s6, 48
        %v3869 = vld [vmem:[%s3868] sm:$0xff]
        %v3870 = vld [vmem:[%s3868 + $0x8] sm:$0xff]
        %v3872 = vsel %vm3359, %v3869, 0
        %v3875 = vsel %vm3359, %v3870, 0
        %3877 = vmatprep.subr.mxu0 0.0
        %3878 = vmatpush1.msra.mxu0 %v3355
        %3879 = vmatprep.subr.mxu0 0.0
        %3880 = vmatpush1.msra.mxu0 %v3356
        %3881 = vmatprep.subr.mxu0 0.0
        %3882 = vmatpush1.msra.mxu0 0.0
        %3883 = vmatprep.subr.mxu0 0.0
        %3884 = vmatpush1.msra.mxu0 0.0
        %3885 = vmatprep.subr.mxu0 0.0
        %3886 = vmatpush1.msra.mxu0 0.0
        %3887 = vmatprep.subr.mxu0 0.0
        %3888 = vmatpush1.msra.mxu0 0.0
        %3889 = vmatprep.subr.mxu0 0.0
        %3890 = vmatpush1.msra.mxu0 0.0
        %3891 = vmatprep.subr.mxu0 0.0
        %3892 = vmatpush1.msra.mxu0 0.0
        %3893 = vmatprep.subr.mxu0 0.0
        %3894 = vmatpush1.msra.mxu0 0.0
        %3895 = vmatprep.subr.mxu0 0.0
        %3896 = vmatpush1.msra.mxu0 0.0
        %3897 = vmatprep.subr.mxu0 0.0
        %3898 = vmatpush1.msra.mxu0 0.0
        %3899 = vmatprep.subr.mxu0 0.0
        %3900 = vmatpush1.msra.mxu0 0.0
        %3901 = vmatprep.subr.mxu0 0.0
        %3902 = vmatpush1.msra.mxu0 0.0
        %3903 = vmatprep.subr.mxu0 0.0
        %3904 = vmatpush1.msra.mxu0 0.0
        %3905 = vmatprep.subr.mxu0 0.0
        %3906 = vmatpush1.msra.mxu0 0.0
        %3907 = vmatprep.subr.mxu0 0.0
        %3908 = vmatpush1.msra.mxu0 0.0
        %3909 = vmatprep.subr.mxu0 0.0
        %3910 = vmatpush1.msra.mxu0 0.0
        %3911 = vmatprep.subr.mxu0 0.0
        %3912 = vmatpush1.msra.mxu0 0.0
        %3913 = vmatprep.subr.mxu0 0.0
        %3914 = vmatpush1.msra.mxu0 0.0
        %3915 = vmatprep.subr.mxu0 0.0
        %3916 = vmatpush1.msra.mxu0 0.0
        %3917 = vmatprep.subr.mxu0 0.0
        %3918 = vmatpush1.msra.mxu0 0.0
        %3919 = vmatprep.subr.mxu0 0.0
        %3920 = vmatpush1.msra.mxu0 0.0
        %3921 = vmatprep.subr.mxu0 0.0
        %3922 = vmatpush1.msra.mxu0 0.0
        %3923 = vmatprep.subr.mxu0 0.0
        %3924 = vmatpush1.msra.mxu0 0.0
        %3925 = vmatprep.subr.mxu0 0.0
        %3926 = vmatpush1.msra.mxu0 0.0
        %3927 = vmatprep.subr.mxu0 0.0
        %3928 = vmatpush1.msra.mxu0 0.0
        %3929 = vmatprep.subr.mxu0 0.0
        %3930 = vmatpush1.msra.mxu0 0.0
        %3931 = vmatprep.subr.mxu0 0.0
        %3932 = vmatpush1.msra.mxu0 0.0
        %3933 = vmatprep.subr.mxu0 0.0
        %3934 = vmatpush1.msra.mxu0 0.0
        %3935 = vmatprep.subr.mxu0 0.0
        %3936 = vmatpush1.msra.mxu0 0.0
        %3937 = vmatprep.subr.mxu0 0.0
        %3938 = vmatpush1.msra.mxu0 0.0
        %3939 = vmatprep.subr.mxu0 0.0
        %3940 = vmatpush1.msra.mxu0 0.0
        %3941 = vmatprep.mubr.f32.mxu0 0.0
        %3942 = vmatmul.mubr.f32.gmra.mrb[0].mxu0 %v3872
        %v3943 = vpop.f32.mrb[0].mxu0
        %v3944 = vadd.f32 0.0, %v3943
        %v3945 = vpop.f32.mrb[0].mxu0
        %3946 = vmatprep.mubr.f32.mxu0 0.0
        %3947 = vmatmul.mubr.f32.gmra.mrb[0].mxu0 %v3875
        %v3948 = vpop.f32.mrb[0].mxu0
        %v3949 = vadd.f32 0.0, %v3948
        %v3950 = vpop.f32.mrb[0].mxu0
        %3951 = vdwg.mxu0
        %s3952 = scalar_lea.vmem %s7, 96
        %v3953 = vld [vmem:[%s3952] sm:$0xff]
        %v3954 = vld [vmem:[%s3952 + $0x8] sm:$0xff]
        %v3955 = vld [vmem:[%s3952 + $0x10] sm:$0xff]
        %v3956 = vld [vmem:[%s3952 + $0x18] sm:$0xff]
        %v3958 = vsel %vm775, %v3944, 0
        %v3961 = vsel %vm775, %v3949, 0
        %3963 = vmatprep.subr.mxu0 0.0
        %3964 = vmatpush1.msra.mxu0 %v3953
        %3965 = vmatprep.subr.mxu0 0.0
        %3966 = vmatpush1.msra.mxu0 %v3954
        %3967 = vmatprep.subr.mxu0 0.0
        %3968 = vmatpush1.msra.mxu0 %v3955
        %3969 = vmatprep.subr.mxu0 0.0
        %3970 = vmatpush1.msra.mxu0 %v3956
        %3971 = vmatprep.subr.mxu0 0.0
        %3972 = vmatpush1.msra.mxu0 0.0
        %3973 = vmatprep.subr.mxu0 0.0
        %3974 = vmatpush1.msra.mxu0 0.0
        %3975 = vmatprep.subr.mxu0 0.0
        %3976 = vmatpush1.msra.mxu0 0.0
        %3977 = vmatprep.subr.mxu0 0.0
        %3978 = vmatpush1.msra.mxu0 0.0
        %3979 = vmatprep.subr.mxu0 0.0
        %3980 = vmatpush1.msra.mxu0 0.0
        %3981 = vmatprep.subr.mxu0 0.0
        %3982 = vmatpush1.msra.mxu0 0.0
        %3983 = vmatprep.subr.mxu0 0.0
        %3984 = vmatpush1.msra.mxu0 0.0
        %3985 = vmatprep.subr.mxu0 0.0
        %3986 = vmatpush1.msra.mxu0 0.0
        %3987 = vmatprep.subr.mxu0 0.0
        %3988 = vmatpush1.msra.mxu0 0.0
        %3989 = vmatprep.subr.mxu0 0.0
        %3990 = vmatpush1.msra.mxu0 0.0
        %3991 = vmatprep.subr.mxu0 0.0
        %3992 = vmatpush1.msra.mxu0 0.0
        %3993 = vmatprep.subr.mxu0 0.0
        %3994 = vmatpush1.msra.mxu0 0.0
        %3995 = vmatprep.subr.mxu0 0.0
        %3996 = vmatpush1.msra.mxu0 0.0
        %3997 = vmatprep.subr.mxu0 0.0
        %3998 = vmatpush1.msra.mxu0 0.0
        %3999 = vmatprep.subr.mxu0 0.0
        %4000 = vmatpush1.msra.mxu0 0.0
        %4001 = vmatprep.subr.mxu0 0.0
        %4002 = vmatpush1.msra.mxu0 0.0
        %4003 = vmatprep.subr.mxu0 0.0
        %4004 = vmatpush1.msra.mxu0 0.0
        %4005 = vmatprep.subr.mxu0 0.0
        %4006 = vmatpush1.msra.mxu0 0.0
        %4007 = vmatprep.subr.mxu0 0.0
        %4008 = vmatpush1.msra.mxu0 0.0
        %4009 = vmatprep.subr.mxu0 0.0
        %4010 = vmatpush1.msra.mxu0 0.0
        %4011 = vmatprep.subr.mxu0 0.0
        %4012 = vmatpush1.msra.mxu0 0.0
        %4013 = vmatprep.subr.mxu0 0.0
        %4014 = vmatpush1.msra.mxu0 0.0
        %4015 = vmatprep.subr.mxu0 0.0
        %4016 = vmatpush1.msra.mxu0 0.0
        %4017 = vmatprep.subr.mxu0 0.0
        %4018 = vmatpush1.msra.mxu0 0.0
        %4019 = vmatprep.subr.mxu0 0.0
        %4020 = vmatpush1.msra.mxu0 0.0
        %4021 = vmatprep.subr.mxu0 0.0
        %4022 = vmatpush1.msra.mxu0 0.0
        %4023 = vmatprep.subr.mxu0 0.0
        %4024 = vmatpush1.msra.mxu0 0.0
        %4025 = vmatprep.subr.mxu0 0.0
        %4026 = vmatpush1.msra.mxu0 0.0
        %4027 = vmatprep.mubr.f32.mxu0 0.0
        %4028 = vmatmul.mubr.f32.gmra.mrb[0].mxu0 %v3958
        %v4029 = vpop.f32.mrb[0].mxu0
        %v4030 = vadd.f32 0.0, %v4029
        %v4031 = vpop.f32.mrb[0].mxu0
        %4032 = vmatprep.mubr.f32.mxu0 0.0
        %4033 = vmatmul.mubr.f32.gmra.mrb[0].mxu0 %v3961
        %v4034 = vpop.f32.mrb[0].mxu0
        %v4035 = vadd.f32 0.0, %v4034
        %v4036 = vpop.f32.mrb[0].mxu0
        %4037 = vdwg.mxu0
        %v4038 = vadd.f32 %v3866, %v4030
        %v4039 = vadd.f32 %v3867, %v4035
        %s4040 = scalar_lea.vmem %s6, 64
        %v4041 = vld [vmem:[%s4040] sm:$0xff]
        %v4042 = vld [vmem:[%s4040 + $0x8] sm:$0xff]
        %v4044 = vsel %vm3359, %v4041, 0
        %v4047 = vsel %vm3359, %v4042, 0
        %4049 = vmatprep.subr.mxu0 0.0
        %4050 = vmatpush1.msra.mxu0 %v3355
        %4051 = vmatprep.subr.mxu0 0.0
        %4052 = vmatpush1.msra.mxu0 %v3356
        %4053 = vmatprep.subr.mxu0 0.0
        %4054 = vmatpush1.msra.mxu0 0.0
        %4055 = vmatprep.subr.mxu0 0.0
        %4056 = vmatpush1.msra.mxu0 0.0
        %4057 = vmatprep.subr.mxu0 0.0
        %4058 = vmatpush1.msra.mxu0 0.0
        %4059 = vmatprep.subr.mxu0 0.0
        %4060 = vmatpush1.msra.mxu0 0.0
        %4061 = vmatprep.subr.mxu0 0.0
        %4062 = vmatpush1.msra.mxu0 0.0
        %4063 = vmatprep.subr.mxu0 0.0
        %4064 = vmatpush1.msra.mxu0 0.0
        %4065 = vmatprep.subr.mxu0 0.0
        %4066 = vmatpush1.msra.mxu0 0.0
        %4067 = vmatprep.subr.mxu0 0.0
        %4068 = vmatpush1.msra.mxu0 0.0
        %4069 = vmatprep.subr.mxu0 0.0
        %4070 = vmatpush1.msra.mxu0 0.0
        %4071 = vmatprep.subr.mxu0 0.0
        %4072 = vmatpush1.msra.mxu0 0.0
        %4073 = vmatprep.subr.mxu0 0.0
        %4074 = vmatpush1.msra.mxu0 0.0
        %4075 = vmatprep.subr.mxu0 0.0
        %4076 = vmatpush1.msra.mxu0 0.0
        %4077 = vmatprep.subr.mxu0 0.0
        %4078 = vmatpush1.msra.mxu0 0.0
        %4079 = vmatprep.subr.mxu0 0.0
        %4080 = vmatpush1.msra.mxu0 0.0
        %4081 = vmatprep.subr.mxu0 0.0
        %4082 = vmatpush1.msra.mxu0 0.0
        %4083 = vmatprep.subr.mxu0 0.0
        %4084 = vmatpush1.msra.mxu0 0.0
        %4085 = vmatprep.subr.mxu0 0.0
        %4086 = vmatpush1.msra.mxu0 0.0
        %4087 = vmatprep.subr.mxu0 0.0
        %4088 = vmatpush1.msra.mxu0 0.0
        %4089 = vmatprep.subr.mxu0 0.0
        %4090 = vmatpush1.msra.mxu0 0.0
        %4091 = vmatprep.subr.mxu0 0.0
        %4092 = vmatpush1.msra.mxu0 0.0
        %4093 = vmatprep.subr.mxu0 0.0
        %4094 = vmatpush1.msra.mxu0 0.0
        %4095 = vmatprep.subr.mxu0 0.0
        %4096 = vmatpush1.msra.mxu0 0.0
        %4097 = vmatprep.subr.mxu0 0.0
        %4098 = vmatpush1.msra.mxu0 0.0
        %4099 = vmatprep.subr.mxu0 0.0
        %4100 = vmatpush1.msra.mxu0 0.0
        %4101 = vmatprep.subr.mxu0 0.0
        %4102 = vmatpush1.msra.mxu0 0.0
        %4103 = vmatprep.subr.mxu0 0.0
        %4104 = vmatpush1.msra.mxu0 0.0
        %4105 = vmatprep.subr.mxu0 0.0
        %4106 = vmatpush1.msra.mxu0 0.0
        %4107 = vmatprep.subr.mxu0 0.0
        %4108 = vmatpush1.msra.mxu0 0.0
        %4109 = vmatprep.subr.mxu0 0.0
        %4110 = vmatpush1.msra.mxu0 0.0
        %4111 = vmatprep.subr.mxu0 0.0
        %4112 = vmatpush1.msra.mxu0 0.0
        %4113 = vmatprep.mubr.f32.mxu0 0.0
        %4114 = vmatmul.mubr.f32.gmra.mrb[0].mxu0 %v4044
        %v4115 = vpop.f32.mrb[0].mxu0
        %v4116 = vadd.f32 0.0, %v4115
        %v4117 = vpop.f32.mrb[0].mxu0
        %4118 = vmatprep.mubr.f32.mxu0 0.0
        %4119 = vmatmul.mubr.f32.gmra.mrb[0].mxu0 %v4047
        %v4120 = vpop.f32.mrb[0].mxu0
        %v4121 = vadd.f32 0.0, %v4120
        %v4122 = vpop.f32.mrb[0].mxu0
        %4123 = vdwg.mxu0
        %s4124 = scalar_lea.vmem %s7, 128
        %v4125 = vld [vmem:[%s4124] sm:$0xff]
        %v4126 = vld [vmem:[%s4124 + $0x8] sm:$0xff]
        %v4127 = vld [vmem:[%s4124 + $0x10] sm:$0xff]
        %v4128 = vld [vmem:[%s4124 + $0x18] sm:$0xff]
        %v4130 = vsel %vm775, %v4116, 0
        %v4133 = vsel %vm775, %v4121, 0
        %4135 = vmatprep.subr.mxu0 0.0
        %4136 = vmatpush1.msra.mxu0 %v4125
        %4137 = vmatprep.subr.mxu0 0.0
        %4138 = vmatpush1.msra.mxu0 %v4126
        %4139 = vmatprep.subr.mxu0 0.0
        %4140 = vmatpush1.msra.mxu0 %v4127
        %4141 = vmatprep.subr.mxu0 0.0
        %4142 = vmatpush1.msra.mxu0 %v4128
        %4143 = vmatprep.subr.mxu0 0.0
        %4144 = vmatpush1.msra.mxu0 0.0
        %4145 = vmatprep.subr.mxu0 0.0
        %4146 = vmatpush1.msra.mxu0 0.0
        %4147 = vmatprep.subr.mxu0 0.0
        %4148 = vmatpush1.msra.mxu0 0.0
        %4149 = vmatprep.subr.mxu0 0.0
        %4150 = vmatpush1.msra.mxu0 0.0
        %4151 = vmatprep.subr.mxu0 0.0
        %4152 = vmatpush1.msra.mxu0 0.0
        %4153 = vmatprep.subr.mxu0 0.0
        %4154 = vmatpush1.msra.mxu0 0.0
        %4155 = vmatprep.subr.mxu0 0.0
        %4156 = vmatpush1.msra.mxu0 0.0
        %4157 = vmatprep.subr.mxu0 0.0
        %4158 = vmatpush1.msra.mxu0 0.0
        %4159 = vmatprep.subr.mxu0 0.0
        %4160 = vmatpush1.msra.mxu0 0.0
        %4161 = vmatprep.subr.mxu0 0.0
        %4162 = vmatpush1.msra.mxu0 0.0
        %4163 = vmatprep.subr.mxu0 0.0
        %4164 = vmatpush1.msra.mxu0 0.0
        %4165 = vmatprep.subr.mxu0 0.0
        %4166 = vmatpush1.msra.mxu0 0.0
        %4167 = vmatprep.subr.mxu0 0.0
        %4168 = vmatpush1.msra.mxu0 0.0
        %4169 = vmatprep.subr.mxu0 0.0
        %4170 = vmatpush1.msra.mxu0 0.0
        %4171 = vmatprep.subr.mxu0 0.0
        %4172 = vmatpush1.msra.mxu0 0.0
        %4173 = vmatprep.subr.mxu0 0.0
        %4174 = vmatpush1.msra.mxu0 0.0
        %4175 = vmatprep.subr.mxu0 0.0
        %4176 = vmatpush1.msra.mxu0 0.0
        %4177 = vmatprep.subr.mxu0 0.0
        %4178 = vmatpush1.msra.mxu0 0.0
        %4179 = vmatprep.subr.mxu0 0.0
        %4180 = vmatpush1.msra.mxu0 0.0
        %4181 = vmatprep.subr.mxu0 0.0
        %4182 = vmatpush1.msra.mxu0 0.0
        %4183 = vmatprep.subr.mxu0 0.0
        %4184 = vmatpush1.msra.mxu0 0.0
        %4185 = vmatprep.subr.mxu0 0.0
        %4186 = vmatpush1.msra.mxu0 0.0
        %4187 = vmatprep.subr.mxu0 0.0
        %4188 = vmatpush1.msra.mxu0 0.0
        %4189 = vmatprep.subr.mxu0 0.0
        %4190 = vmatpush1.msra.mxu0 0.0
        %4191 = vmatprep.subr.mxu0 0.0
        %4192 = vmatpush1.msra.mxu0 0.0
        %4193 = vmatprep.subr.mxu0 0.0
        %4194 = vmatpush1.msra.mxu0 0.0
        %4195 = vmatprep.subr.mxu0 0.0
        %4196 = vmatpush1.msra.mxu0 0.0
        %4197 = vmatprep.subr.mxu0 0.0
        %4198 = vmatpush1.msra.mxu0 0.0
        %4199 = vmatprep.mubr.f32.mxu0 0.0
        %4200 = vmatmul.mubr.f32.gmra.mrb[0].mxu0 %v4130
        %v4201 = vpop.f32.mrb[0].mxu0
        %v4202 = vadd.f32 0.0, %v4201
        %v4203 = vpop.f32.mrb[0].mxu0
        %4204 = vmatprep.mubr.f32.mxu0 0.0
        %4205 = vmatmul.mubr.f32.gmra.mrb[0].mxu0 %v4133
        %v4206 = vpop.f32.mrb[0].mxu0
        %v4207 = vadd.f32 0.0, %v4206
        %v4208 = vpop.f32.mrb[0].mxu0
        %4209 = vdwg.mxu0
        %v4210 = vadd.f32 %v4038, %v4202
        %v4211 = vadd.f32 %v4039, %v4207
        %s4212 = scalar_lea.vmem %s6, 80
        %v4213 = vld [vmem:[%s4212] sm:$0xff]
        %v4214 = vld [vmem:[%s4212 + $0x8] sm:$0xff]
        %v4216 = vsel %vm3359, %v4213, 0
        %v4219 = vsel %vm3359, %v4214, 0
        %4221 = vmatprep.subr.mxu0 0.0
        %4222 = vmatpush1.msra.mxu0 %v3355
        %4223 = vmatprep.subr.mxu0 0.0
        %4224 = vmatpush1.msra.mxu0 %v3356
        %4225 = vmatprep.subr.mxu0 0.0
        %4226 = vmatpush1.msra.mxu0 0.0
        %4227 = vmatprep.subr.mxu0 0.0
        %4228 = vmatpush1.msra.mxu0 0.0
        %4229 = vmatprep.subr.mxu0 0.0
        %4230 = vmatpush1.msra.mxu0 0.0
        %4231 = vmatprep.subr.mxu0 0.0
        %4232 = vmatpush1.msra.mxu0 0.0
        %4233 = vmatprep.subr.mxu0 0.0
        %4234 = vmatpush1.msra.mxu0 0.0
        %4235 = vmatprep.subr.mxu0 0.0
        %4236 = vmatpush1.msra.mxu0 0.0
        %4237 = vmatprep.subr.mxu0 0.0
        %4238 = vmatpush1.msra.mxu0 0.0
        %4239 = vmatprep.subr.mxu0 0.0
        %4240 = vmatpush1.msra.mxu0 0.0
        %4241 = vmatprep.subr.mxu0 0.0
        %4242 = vmatpush1.msra.mxu0 0.0
        %4243 = vmatprep.subr.mxu0 0.0
        %4244 = vmatpush1.msra.mxu0 0.0
        %4245 = vmatprep.subr.mxu0 0.0
        %4246 = vmatpush1.msra.mxu0 0.0
        %4247 = vmatprep.subr.mxu0 0.0
        %4248 = vmatpush1.msra.mxu0 0.0
        %4249 = vmatprep.subr.mxu0 0.0
        %4250 = vmatpush1.msra.mxu0 0.0
        %4251 = vmatprep.subr.mxu0 0.0
        %4252 = vmatpush1.msra.mxu0 0.0
        %4253 = vmatprep.subr.mxu0 0.0
        %4254 = vmatpush1.msra.mxu0 0.0
        %4255 = vmatprep.subr.mxu0 0.0
        %4256 = vmatpush1.msra.mxu0 0.0
        %4257 = vmatprep.subr.mxu0 0.0
        %4258 = vmatpush1.msra.mxu0 0.0
        %4259 = vmatprep.subr.mxu0 0.0
        %4260 = vmatpush1.msra.mxu0 0.0
        %4261 = vmatprep.subr.mxu0 0.0
        %4262 = vmatpush1.msra.mxu0 0.0
        %4263 = vmatprep.subr.mxu0 0.0
        %4264 = vmatpush1.msra.mxu0 0.0
        %4265 = vmatprep.subr.mxu0 0.0
        %4266 = vmatpush1.msra.mxu0 0.0
        %4267 = vmatprep.subr.mxu0 0.0
        %4268 = vmatpush1.msra.mxu0 0.0
        %4269 = vmatprep.subr.mxu0 0.0
        %4270 = vmatpush1.msra.mxu0 0.0
        %4271 = vmatprep.subr.mxu0 0.0
        %4272 = vmatpush1.msra.mxu0 0.0
        %4273 = vmatprep.subr.mxu0 0.0
        %4274 = vmatpush1.msra.mxu0 0.0
        %4275 = vmatprep.subr.mxu0 0.0
        %4276 = vmatpush1.msra.mxu0 0.0
        %4277 = vmatprep.subr.mxu0 0.0
        %4278 = vmatpush1.msra.mxu0 0.0
        %4279 = vmatprep.subr.mxu0 0.0
        %4280 = vmatpush1.msra.mxu0 0.0
        %4281 = vmatprep.subr.mxu0 0.0
        %4282 = vmatpush1.msra.mxu0 0.0
        %4283 = vmatprep.subr.mxu0 0.0
        %4284 = vmatpush1.msra.mxu0 0.0
        %4285 = vmatprep.mubr.f32.mxu0 0.0
        %4286 = vmatmul.mubr.f32.gmra.mrb[0].mxu0 %v4216
        %v4287 = vpop.f32.mrb[0].mxu0
        %v4288 = vadd.f32 0.0, %v4287
        %v4289 = vpop.f32.mrb[0].mxu0
        %4290 = vmatprep.mubr.f32.mxu0 0.0
        %4291 = vmatmul.mubr.f32.gmra.mrb[0].mxu0 %v4219
        %v4292 = vpop.f32.mrb[0].mxu0
        %v4293 = vadd.f32 0.0, %v4292
        %v4294 = vpop.f32.mrb[0].mxu0
        %4295 = vdwg.mxu0
        %s4296 = scalar_lea.vmem %s7, 160
        %v4297 = vld [vmem:[%s4296] sm:$0xff]
        %v4298 = vld [vmem:[%s4296 + $0x8] sm:$0xff]
        %v4299 = vld [vmem:[%s4296 + $0x10] sm:$0xff]
        %v4300 = vld [vmem:[%s4296 + $0x18] sm:$0xff]
        %v4302 = vsel %vm775, %v4288, 0
        %v4305 = vsel %vm775, %v4293, 0
        %4307 = vmatprep.subr.mxu0 0.0
        %4308 = vmatpush1.msra.mxu0 %v4297
        %4309 = vmatprep.subr.mxu0 0.0
        %4310 = vmatpush1.msra.mxu0 %v4298
        %4311 = vmatprep.subr.mxu0 0.0
        %4312 = vmatpush1.msra.mxu0 %v4299
        %4313 = vmatprep.subr.mxu0 0.0
        %4314 = vmatpush1.msra.mxu0 %v4300
        %4315 = vmatprep.subr.mxu0 0.0
        %4316 = vmatpush1.msra.mxu0 0.0
        %4317 = vmatprep.subr.mxu0 0.0
        %4318 = vmatpush1.msra.mxu0 0.0
        %4319 = vmatprep.subr.mxu0 0.0
        %4320 = vmatpush1.msra.mxu0 0.0
        %4321 = vmatprep.subr.mxu0 0.0
        %4322 = vmatpush1.msra.mxu0 0.0
        %4323 = vmatprep.subr.mxu0 0.0
        %4324 = vmatpush1.msra.mxu0 0.0
        %4325 = vmatprep.subr.mxu0 0.0
        %4326 = vmatpush1.msra.mxu0 0.0
        %4327 = vmatprep.subr.mxu0 0.0
        %4328 = vmatpush1.msra.mxu0 0.0
        %4329 = vmatprep.subr.mxu0 0.0
        %4330 = vmatpush1.msra.mxu0 0.0
        %4331 = vmatprep.subr.mxu0 0.0
        %4332 = vmatpush1.msra.mxu0 0.0
        %4333 = vmatprep.subr.mxu0 0.0
        %4334 = vmatpush1.msra.mxu0 0.0
        %4335 = vmatprep.subr.mxu0 0.0
        %4336 = vmatpush1.msra.mxu0 0.0
        %4337 = vmatprep.subr.mxu0 0.0
        %4338 = vmatpush1.msra.mxu0 0.0
        %4339 = vmatprep.subr.mxu0 0.0
        %4340 = vmatpush1.msra.mxu0 0.0
        %4341 = vmatprep.subr.mxu0 0.0
        %4342 = vmatpush1.msra.mxu0 0.0
        %4343 = vmatprep.subr.mxu0 0.0
        %4344 = vmatpush1.msra.mxu0 0.0
        %4345 = vmatprep.subr.mxu0 0.0
        %4346 = vmatpush1.msra.mxu0 0.0
        %4347 = vmatprep.subr.mxu0 0.0
        %4348 = vmatpush1.msra.mxu0 0.0
        %4349 = vmatprep.subr.mxu0 0.0
        %4350 = vmatpush1.msra.mxu0 0.0
        %4351 = vmatprep.subr.mxu0 0.0
        %4352 = vmatpush1.msra.mxu0 0.0
        %4353 = vmatprep.subr.mxu0 0.0
        %4354 = vmatpush1.msra.mxu0 0.0
        %4355 = vmatprep.subr.mxu0 0.0
        %4356 = vmatpush1.msra.mxu0 0.0
        %4357 = vmatprep.subr.mxu0 0.0
        %4358 = vmatpush1.msra.mxu0 0.0
        %4359 = vmatprep.subr.mxu0 0.0
        %4360 = vmatpush1.msra.mxu0 0.0
        %4361 = vmatprep.subr.mxu0 0.0
        %4362 = vmatpush1.msra.mxu0 0.0
        %4363 = vmatprep.subr.mxu0 0.0
        %4364 = vmatpush1.msra.mxu0 0.0
        %4365 = vmatprep.subr.mxu0 0.0
        %4366 = vmatpush1.msra.mxu0 0.0
        %4367 = vmatprep.subr.mxu0 0.0
        %4368 = vmatpush1.msra.mxu0 0.0
        %4369 = vmatprep.subr.mxu0 0.0
        %4370 = vmatpush1.msra.mxu0 0.0
        %4371 = vmatprep.mubr.f32.mxu0 0.0
        %4372 = vmatmul.mubr.f32.gmra.mrb[0].mxu0 %v4302
        %v4373 = vpop.f32.mrb[0].mxu0
        %v4374 = vadd.f32 0.0, %v4373
        %v4375 = vpop.f32.mrb[0].mxu0
        %4376 = vmatprep.mubr.f32.mxu0 0.0
        %4377 = vmatmul.mubr.f32.gmra.mrb[0].mxu0 %v4305
        %v4378 = vpop.f32.mrb[0].mxu0
        %v4379 = vadd.f32 0.0, %v4378
        %v4380 = vpop.f32.mrb[0].mxu0
        %4381 = vdwg.mxu0
        %v4382 = vadd.f32 %v4210, %v4374
        %v4383 = vadd.f32 %v4211, %v4379
        %s4384 = scalar_lea.vmem %s6, 96
        %v4385 = vld [vmem:[%s4384] sm:$0xff]
        %v4386 = vld [vmem:[%s4384 + $0x8] sm:$0xff]
        %v4388 = vsel %vm3359, %v4385, 0
        %v4391 = vsel %vm3359, %v4386, 0
        %4393 = vmatprep.subr.mxu0 0.0
        %4394 = vmatpush1.msra.mxu0 %v3355
        %4395 = vmatprep.subr.mxu0 0.0
        %4396 = vmatpush1.msra.mxu0 %v3356
        %4397 = vmatprep.subr.mxu0 0.0
        %4398 = vmatpush1.msra.mxu0 0.0
        %4399 = vmatprep.subr.mxu0 0.0
        %4400 = vmatpush1.msra.mxu0 0.0
        %4401 = vmatprep.subr.mxu0 0.0
        %4402 = vmatpush1.msra.mxu0 0.0
        %4403 = vmatprep.subr.mxu0 0.0
        %4404 = vmatpush1.msra.mxu0 0.0
        %4405 = vmatprep.subr.mxu0 0.0
        %4406 = vmatpush1.msra.mxu0 0.0
        %4407 = vmatprep.subr.mxu0 0.0
        %4408 = vmatpush1.msra.mxu0 0.0
        %4409 = vmatprep.subr.mxu0 0.0
        %4410 = vmatpush1.msra.mxu0 0.0
        %4411 = vmatprep.subr.mxu0 0.0
        %4412 = vmatpush1.msra.mxu0 0.0
        %4413 = vmatprep.subr.mxu0 0.0
        %4414 = vmatpush1.msra.mxu0 0.0
        %4415 = vmatprep.subr.mxu0 0.0
        %4416 = vmatpush1.msra.mxu0 0.0
        %4417 = vmatprep.subr.mxu0 0.0
        %4418 = vmatpush1.msra.mxu0 0.0
        %4419 = vmatprep.subr.mxu0 0.0
        %4420 = vmatpush1.msra.mxu0 0.0
        %4421 = vmatprep.subr.mxu0 0.0
        %4422 = vmatpush1.msra.mxu0 0.0
        %4423 = vmatprep.subr.mxu0 0.0
        %4424 = vmatpush1.msra.mxu0 0.0
        %4425 = vmatprep.subr.mxu0 0.0
        %4426 = vmatpush1.msra.mxu0 0.0
        %4427 = vmatprep.subr.mxu0 0.0
        %4428 = vmatpush1.msra.mxu0 0.0
        %4429 = vmatprep.subr.mxu0 0.0
        %4430 = vmatpush1.msra.mxu0 0.0
        %4431 = vmatprep.subr.mxu0 0.0
        %4432 = vmatpush1.msra.mxu0 0.0
        %4433 = vmatprep.subr.mxu0 0.0
        %4434 = vmatpush1.msra.mxu0 0.0
        %4435 = vmatprep.subr.mxu0 0.0
        %4436 = vmatpush1.msra.mxu0 0.0
        %4437 = vmatprep.subr.mxu0 0.0
        %4438 = vmatpush1.msra.mxu0 0.0
        %4439 = vmatprep.subr.mxu0 0.0
        %4440 = vmatpush1.msra.mxu0 0.0
        %4441 = vmatprep.subr.mxu0 0.0
        %4442 = vmatpush1.msra.mxu0 0.0
        %4443 = vmatprep.subr.mxu0 0.0
        %4444 = vmatpush1.msra.mxu0 0.0
        %4445 = vmatprep.subr.mxu0 0.0
        %4446 = vmatpush1.msra.mxu0 0.0
        %4447 = vmatprep.subr.mxu0 0.0
        %4448 = vmatpush1.msra.mxu0 0.0
        %4449 = vmatprep.subr.mxu0 0.0
        %4450 = vmatpush1.msra.mxu0 0.0
        %4451 = vmatprep.subr.mxu0 0.0
        %4452 = vmatpush1.msra.mxu0 0.0
        %4453 = vmatprep.subr.mxu0 0.0
        %4454 = vmatpush1.msra.mxu0 0.0
        %4455 = vmatprep.subr.mxu0 0.0
        %4456 = vmatpush1.msra.mxu0 0.0
        %4457 = vmatprep.mubr.f32.mxu0 0.0
        %4458 = vmatmul.mubr.f32.gmra.mrb[0].mxu0 %v4388
        %v4459 = vpop.f32.mrb[0].mxu0
        %v4460 = vadd.f32 0.0, %v4459
        %v4461 = vpop.f32.mrb[0].mxu0
        %4462 = vmatprep.mubr.f32.mxu0 0.0
        %4463 = vmatmul.mubr.f32.gmra.mrb[0].mxu0 %v4391
        %v4464 = vpop.f32.mrb[0].mxu0
        %v4465 = vadd.f32 0.0, %v4464
        %v4466 = vpop.f32.mrb[0].mxu0
        %4467 = vdwg.mxu0
        %s4468 = scalar_lea.vmem %s7, 192
        %v4469 = vld [vmem:[%s4468] sm:$0xff]
        %v4470 = vld [vmem:[%s4468 + $0x8] sm:$0xff]
        %v4471 = vld [vmem:[%s4468 + $0x10] sm:$0xff]
        %v4472 = vld [vmem:[%s4468 + $0x18] sm:$0xff]
        %v4474 = vsel %vm775, %v4460, 0
        %v4477 = vsel %vm775, %v4465, 0
        %4479 = vmatprep.subr.mxu0 0.0
        %4480 = vmatpush1.msra.mxu0 %v4469
        %4481 = vmatprep.subr.mxu0 0.0
        %4482 = vmatpush1.msra.mxu0 %v4470
        %4483 = vmatprep.subr.mxu0 0.0
        %4484 = vmatpush1.msra.mxu0 %v4471
        %4485 = vmatprep.subr.mxu0 0.0
        %4486 = vmatpush1.msra.mxu0 %v4472
        %4487 = vmatprep.subr.mxu0 0.0
        %4488 = vmatpush1.msra.mxu0 0.0
        %4489 = vmatprep.subr.mxu0 0.0
        %4490 = vmatpush1.msra.mxu0 0.0
        %4491 = vmatprep.subr.mxu0 0.0
        %4492 = vmatpush1.msra.mxu0 0.0
        %4493 = vmatprep.subr.mxu0 0.0
        %4494 = vmatpush1.msra.mxu0 0.0
        %4495 = vmatprep.subr.mxu0 0.0
        %4496 = vmatpush1.msra.mxu0 0.0
        %4497 = vmatprep.subr.mxu0 0.0
        %4498 = vmatpush1.msra.mxu0 0.0
        %4499 = vmatprep.subr.mxu0 0.0
        %4500 = vmatpush1.msra.mxu0 0.0
        %4501 = vmatprep.subr.mxu0 0.0
        %4502 = vmatpush1.msra.mxu0 0.0
        %4503 = vmatprep.subr.mxu0 0.0
        %4504 = vmatpush1.msra.mxu0 0.0
        %4505 = vmatprep.subr.mxu0 0.0
        %4506 = vmatpush1.msra.mxu0 0.0
        %4507 = vmatprep.subr.mxu0 0.0
        %4508 = vmatpush1.msra.mxu0 0.0
        %4509 = vmatprep.subr.mxu0 0.0
        %4510 = vmatpush1.msra.mxu0 0.0
        %4511 = vmatprep.subr.mxu0 0.0
        %4512 = vmatpush1.msra.mxu0 0.0
        %4513 = vmatprep.subr.mxu0 0.0
        %4514 = vmatpush1.msra.mxu0 0.0
        %4515 = vmatprep.subr.mxu0 0.0
        %4516 = vmatpush1.msra.mxu0 0.0
        %4517 = vmatprep.subr.mxu0 0.0
        %4518 = vmatpush1.msra.mxu0 0.0
        %4519 = vmatprep.subr.mxu0 0.0
        %4520 = vmatpush1.msra.mxu0 0.0
        %4521 = vmatprep.subr.mxu0 0.0
        %4522 = vmatpush1.msra.mxu0 0.0
        %4523 = vmatprep.subr.mxu0 0.0
        %4524 = vmatpush1.msra.mxu0 0.0
        %4525 = vmatprep.subr.mxu0 0.0
        %4526 = vmatpush1.msra.mxu0 0.0
        %4527 = vmatprep.subr.mxu0 0.0
        %4528 = vmatpush1.msra.mxu0 0.0
        %4529 = vmatprep.subr.mxu0 0.0
        %4530 = vmatpush1.msra.mxu0 0.0
        %4531 = vmatprep.subr.mxu0 0.0
        %4532 = vmatpush1.msra.mxu0 0.0
        %4533 = vmatprep.subr.mxu0 0.0
        %4534 = vmatpush1.msra.mxu0 0.0
        %4535 = vmatprep.subr.mxu0 0.0
        %4536 = vmatpush1.msra.mxu0 0.0
        %4537 = vmatprep.subr.mxu0 0.0
        %4538 = vmatpush1.msra.mxu0 0.0
        %4539 = vmatprep.subr.mxu0 0.0
        %4540 = vmatpush1.msra.mxu0 0.0
        %4541 = vmatprep.subr.mxu0 0.0
        %4542 = vmatpush1.msra.mxu0 0.0
        %4543 = vmatprep.mubr.f32.mxu0 0.0
        %4544 = vmatmul.mubr.f32.gmra.mrb[0].mxu0 %v4474
        %v4545 = vpop.f32.mrb[0].mxu0
        %v4546 = vadd.f32 0.0, %v4545
        %v4547 = vpop.f32.mrb[0].mxu0
        %4548 = vmatprep.mubr.f32.mxu0 0.0
        %4549 = vmatmul.mubr.f32.gmra.mrb[0].mxu0 %v4477
        %v4550 = vpop.f32.mrb[0].mxu0
        %v4551 = vadd.f32 0.0, %v4550
        %v4552 = vpop.f32.mrb[0].mxu0
        %4553 = vdwg.mxu0
        %v4554 = vadd.f32 %v4382, %v4546
        %v4555 = vadd.f32 %v4383, %v4551
        %s4556 = scalar_lea.vmem %s6, 112
        %v4557 = vld [vmem:[%s4556] sm:$0xff]
        %v4558 = vld [vmem:[%s4556 + $0x8] sm:$0xff]
        %v4560 = vsel %vm3359, %v4557, 0
        %v4563 = vsel %vm3359, %v4558, 0
        %4565 = vmatprep.subr.mxu0 0.0
        %4566 = vmatpush1.msra.mxu0 %v3355
        %4567 = vmatprep.subr.mxu0 0.0
        %4568 = vmatpush1.msra.mxu0 %v3356
        %4569 = vmatprep.subr.mxu0 0.0
        %4570 = vmatpush1.msra.mxu0 0.0
        %4571 = vmatprep.subr.mxu0 0.0
        %4572 = vmatpush1.msra.mxu0 0.0
        %4573 = vmatprep.subr.mxu0 0.0
        %4574 = vmatpush1.msra.mxu0 0.0
        %4575 = vmatprep.subr.mxu0 0.0
        %4576 = vmatpush1.msra.mxu0 0.0
        %4577 = vmatprep.subr.mxu0 0.0
        %4578 = vmatpush1.msra.mxu0 0.0
        %4579 = vmatprep.subr.mxu0 0.0
        %4580 = vmatpush1.msra.mxu0 0.0
        %4581 = vmatprep.subr.mxu0 0.0
        %4582 = vmatpush1.msra.mxu0 0.0
        %4583 = vmatprep.subr.mxu0 0.0
        %4584 = vmatpush1.msra.mxu0 0.0
        %4585 = vmatprep.subr.mxu0 0.0
        %4586 = vmatpush1.msra.mxu0 0.0
        %4587 = vmatprep.subr.mxu0 0.0
        %4588 = vmatpush1.msra.mxu0 0.0
        %4589 = vmatprep.subr.mxu0 0.0
        %4590 = vmatpush1.msra.mxu0 0.0
        %4591 = vmatprep.subr.mxu0 0.0
        %4592 = vmatpush1.msra.mxu0 0.0
        %4593 = vmatprep.subr.mxu0 0.0
        %4594 = vmatpush1.msra.mxu0 0.0
        %4595 = vmatprep.subr.mxu0 0.0
        %4596 = vmatpush1.msra.mxu0 0.0
        %4597 = vmatprep.subr.mxu0 0.0
        %4598 = vmatpush1.msra.mxu0 0.0
        %4599 = vmatprep.subr.mxu0 0.0
        %4600 = vmatpush1.msra.mxu0 0.0
        %4601 = vmatprep.subr.mxu0 0.0
        %4602 = vmatpush1.msra.mxu0 0.0
        %4603 = vmatprep.subr.mxu0 0.0
        %4604 = vmatpush1.msra.mxu0 0.0
        %4605 = vmatprep.subr.mxu0 0.0
        %4606 = vmatpush1.msra.mxu0 0.0
        %4607 = vmatprep.subr.mxu0 0.0
        %4608 = vmatpush1.msra.mxu0 0.0
        %4609 = vmatprep.subr.mxu0 0.0
        %4610 = vmatpush1.msra.mxu0 0.0
        %4611 = vmatprep.subr.mxu0 0.0
        %4612 = vmatpush1.msra.mxu0 0.0
        %4613 = vmatprep.subr.mxu0 0.0
        %4614 = vmatpush1.msra.mxu0 0.0
        %4615 = vmatprep.subr.mxu0 0.0
        %4616 = vmatpush1.msra.mxu0 0.0
        %4617 = vmatprep.subr.mxu0 0.0
        %4618 = vmatpush1.msra.mxu0 0.0
        %4619 = vmatprep.subr.mxu0 0.0
        %4620 = vmatpush1.msra.mxu0 0.0
        %4621 = vmatprep.subr.mxu0 0.0
        %4622 = vmatpush1.msra.mxu0 0.0
        %4623 = vmatprep.subr.mxu0 0.0
        %4624 = vmatpush1.msra.mxu0 0.0
        %4625 = vmatprep.subr.mxu0 0.0
        %4626 = vmatpush1.msra.mxu0 0.0
        %4627 = vmatprep.subr.mxu0 0.0
        %4628 = vmatpush1.msra.mxu0 0.0
        %4629 = vmatprep.mubr.f32.mxu0 0.0
        %4630 = vmatmul.mubr.f32.gmra.mrb[0].mxu0 %v4560
        %v4631 = vpop.f32.mrb[0].mxu0
        %v4632 = vadd.f32 0.0, %v4631
        %v4633 = vpop.f32.mrb[0].mxu0
        %4634 = vmatprep.mubr.f32.mxu0 0.0
        %4635 = vmatmul.mubr.f32.gmra.mrb[0].mxu0 %v4563
        %v4636 = vpop.f32.mrb[0].mxu0
        %v4637 = vadd.f32 0.0, %v4636
        %v4638 = vpop.f32.mrb[0].mxu0
        %4639 = vdwg.mxu0
        %s4640 = scalar_lea.vmem %s7, 224
        %v4641 = vld [vmem:[%s4640] sm:$0xff]
        %v4642 = vld [vmem:[%s4640 + $0x8] sm:$0xff]
        %v4643 = vld [vmem:[%s4640 + $0x10] sm:$0xff]
        %v4644 = vld [vmem:[%s4640 + $0x18] sm:$0xff]
        %v4646 = vsel %vm775, %v4632, 0
        %v4649 = vsel %vm775, %v4637, 0
        %4651 = vmatprep.subr.mxu0 0.0
        %4652 = vmatpush1.msra.mxu0 %v4641
        %4653 = vmatprep.subr.mxu0 0.0
        %4654 = vmatpush1.msra.mxu0 %v4642
        %4655 = vmatprep.subr.mxu0 0.0
        %4656 = vmatpush1.msra.mxu0 %v4643
        %4657 = vmatprep.subr.mxu0 0.0
        %4658 = vmatpush1.msra.mxu0 %v4644
        %4659 = vmatprep.subr.mxu0 0.0
        %4660 = vmatpush1.msra.mxu0 0.0
        %4661 = vmatprep.subr.mxu0 0.0
        %4662 = vmatpush1.msra.mxu0 0.0
        %4663 = vmatprep.subr.mxu0 0.0
        %4664 = vmatpush1.msra.mxu0 0.0
        %4665 = vmatprep.subr.mxu0 0.0
        %4666 = vmatpush1.msra.mxu0 0.0
        %4667 = vmatprep.subr.mxu0 0.0
        %4668 = vmatpush1.msra.mxu0 0.0
        %4669 = vmatprep.subr.mxu0 0.0
        %4670 = vmatpush1.msra.mxu0 0.0
        %4671 = vmatprep.subr.mxu0 0.0
        %4672 = vmatpush1.msra.mxu0 0.0
        %4673 = vmatprep.subr.mxu0 0.0
        %4674 = vmatpush1.msra.mxu0 0.0
        %4675 = vmatprep.subr.mxu0 0.0
        %4676 = vmatpush1.msra.mxu0 0.0
        %4677 = vmatprep.subr.mxu0 0.0
        %4678 = vmatpush1.msra.mxu0 0.0
        %4679 = vmatprep.subr.mxu0 0.0
        %4680 = vmatpush1.msra.mxu0 0.0
        %4681 = vmatprep.subr.mxu0 0.0
        %4682 = vmatpush1.msra.mxu0 0.0
        %4683 = vmatprep.subr.mxu0 0.0
        %4684 = vmatpush1.msra.mxu0 0.0
        %4685 = vmatprep.subr.mxu0 0.0
        %4686 = vmatpush1.msra.mxu0 0.0
        %4687 = vmatprep.subr.mxu0 0.0
        %4688 = vmatpush1.msra.mxu0 0.0
        %4689 = vmatprep.subr.mxu0 0.0
        %4690 = vmatpush1.msra.mxu0 0.0
        %4691 = vmatprep.subr.mxu0 0.0
        %4692 = vmatpush1.msra.mxu0 0.0
        %4693 = vmatprep.subr.mxu0 0.0
        %4694 = vmatpush1.msra.mxu0 0.0
        %4695 = vmatprep.subr.mxu0 0.0
        %4696 = vmatpush1.msra.mxu0 0.0
        %4697 = vmatprep.subr.mxu0 0.0
        %4698 = vmatpush1.msra.mxu0 0.0
        %4699 = vmatprep.subr.mxu0 0.0
        %4700 = vmatpush1.msra.mxu0 0.0
        %4701 = vmatprep.subr.mxu0 0.0
        %4702 = vmatpush1.msra.mxu0 0.0
        %4703 = vmatprep.subr.mxu0 0.0
        %4704 = vmatpush1.msra.mxu0 0.0
        %4705 = vmatprep.subr.mxu0 0.0
        %4706 = vmatpush1.msra.mxu0 0.0
        %4707 = vmatprep.subr.mxu0 0.0
        %4708 = vmatpush1.msra.mxu0 0.0
        %4709 = vmatprep.subr.mxu0 0.0
        %4710 = vmatpush1.msra.mxu0 0.0
        %4711 = vmatprep.subr.mxu0 0.0
        %4712 = vmatpush1.msra.mxu0 0.0
        %4713 = vmatprep.subr.mxu0 0.0
        %4714 = vmatpush1.msra.mxu0 0.0
        %4715 = vmatprep.mubr.f32.mxu0 0.0
        %4716 = vmatmul.mubr.f32.gmra.mrb[0].mxu0 %v4646
        %v4717 = vpop.f32.mrb[0].mxu0
        %v4718 = vadd.f32 0.0, %v4717
        %v4719 = vpop.f32.mrb[0].mxu0
        %4720 = vmatprep.mubr.f32.mxu0 0.0
        %4721 = vmatmul.mubr.f32.gmra.mrb[0].mxu0 %v4649
        %v4722 = vpop.f32.mrb[0].mxu0
        %v4723 = vadd.f32 0.0, %v4722
        %v4724 = vpop.f32.mrb[0].mxu0
        %4725 = vdwg.mxu0
        %v4726 = vadd.f32 %v4554, %v4718
        %v4727 = vadd.f32 %v4555, %v4723
        %s4728 = scalar_lea.vmem %s6, 128
        %v4729 = vld [vmem:[%s4728] sm:$0xff]
        %v4730 = vld [vmem:[%s4728 + $0x8] sm:$0xff]
        %v4732 = vsel %vm3359, %v4729, 0
        %v4735 = vsel %vm3359, %v4730, 0
        %4737 = vmatprep.subr.mxu0 0.0
        %4738 = vmatpush1.msra.mxu0 %v3355
        %4739 = vmatprep.subr.mxu0 0.0
        %4740 = vmatpush1.msra.mxu0 %v3356
        %4741 = vmatprep.subr.mxu0 0.0
        %4742 = vmatpush1.msra.mxu0 0.0
        %4743 = vmatprep.subr.mxu0 0.0
        %4744 = vmatpush1.msra.mxu0 0.0
        %4745 = vmatprep.subr.mxu0 0.0
        %4746 = vmatpush1.msra.mxu0 0.0
        %4747 = vmatprep.subr.mxu0 0.0
        %4748 = vmatpush1.msra.mxu0 0.0
        %4749 = vmatprep.subr.mxu0 0.0
        %4750 = vmatpush1.msra.mxu0 0.0
        %4751 = vmatprep.subr.mxu0 0.0
        %4752 = vmatpush1.msra.mxu0 0.0
        %4753 = vmatprep.subr.mxu0 0.0
        %4754 = vmatpush1.msra.mxu0 0.0
        %4755 = vmatprep.subr.mxu0 0.0
        %4756 = vmatpush1.msra.mxu0 0.0
        %4757 = vmatprep.subr.mxu0 0.0
        %4758 = vmatpush1.msra.mxu0 0.0
        %4759 = vmatprep.subr.mxu0 0.0
        %4760 = vmatpush1.msra.mxu0 0.0
        %4761 = vmatprep.subr.mxu0 0.0
        %4762 = vmatpush1.msra.mxu0 0.0
        %4763 = vmatprep.subr.mxu0 0.0
        %4764 = vmatpush1.msra.mxu0 0.0
        %4765 = vmatprep.subr.mxu0 0.0
        %4766 = vmatpush1.msra.mxu0 0.0
        %4767 = vmatprep.subr.mxu0 0.0
        %4768 = vmatpush1.msra.mxu0 0.0
        %4769 = vmatprep.subr.mxu0 0.0
        %4770 = vmatpush1.msra.mxu0 0.0
        %4771 = vmatprep.subr.mxu0 0.0
        %4772 = vmatpush1.msra.mxu0 0.0
        %4773 = vmatprep.subr.mxu0 0.0
        %4774 = vmatpush1.msra.mxu0 0.0
        %4775 = vmatprep.subr.mxu0 0.0
        %4776 = vmatpush1.msra.mxu0 0.0
        %4777 = vmatprep.subr.mxu0 0.0
        %4778 = vmatpush1.msra.mxu0 0.0
        %4779 = vmatprep.subr.mxu0 0.0
        %4780 = vmatpush1.msra.mxu0 0.0
        %4781 = vmatprep.subr.mxu0 0.0
        %4782 = vmatpush1.msra.mxu0 0.0
        %4783 = vmatprep.subr.mxu0 0.0
        %4784 = vmatpush1.msra.mxu0 0.0
        %4785 = vmatprep.subr.mxu0 0.0
        %4786 = vmatpush1.msra.mxu0 0.0
        %4787 = vmatprep.subr.mxu0 0.0
        %4788 = vmatpush1.msra.mxu0 0.0
        %4789 = vmatprep.subr.mxu0 0.0
        %4790 = vmatpush1.msra.mxu0 0.0
        %4791 = vmatprep.subr.mxu0 0.0
        %4792 = vmatpush1.msra.mxu0 0.0
        %4793 = vmatprep.subr.mxu0 0.0
        %4794 = vmatpush1.msra.mxu0 0.0
        %4795 = vmatprep.subr.mxu0 0.0
        %4796 = vmatpush1.msra.mxu0 0.0
        %4797 = vmatprep.subr.mxu0 0.0
        %4798 = vmatpush1.msra.mxu0 0.0
        %4799 = vmatprep.subr.mxu0 0.0
        %4800 = vmatpush1.msra.mxu0 0.0
        %4801 = vmatprep.mubr.f32.mxu0 0.0
        %4802 = vmatmul.mubr.f32.gmra.mrb[0].mxu0 %v4732
        %v4803 = vpop.f32.mrb[0].mxu0
        %v4804 = vadd.f32 0.0, %v4803
        %v4805 = vpop.f32.mrb[0].mxu0
        %4806 = vmatprep.mubr.f32.mxu0 0.0
        %4807 = vmatmul.mubr.f32.gmra.mrb[0].mxu0 %v4735
        %v4808 = vpop.f32.mrb[0].mxu0
        %v4809 = vadd.f32 0.0, %v4808
        %v4810 = vpop.f32.mrb[0].mxu0
        %4811 = vdwg.mxu0
        %s4812 = scalar_lea.vmem %s7, 256
        %v4813 = vld [vmem:[%s4812] sm:$0xff]
        %v4814 = vld [vmem:[%s4812 + $0x8] sm:$0xff]
        %v4815 = vld [vmem:[%s4812 + $0x10] sm:$0xff]
        %v4816 = vld [vmem:[%s4812 + $0x18] sm:$0xff]
        %v4818 = vsel %vm775, %v4804, 0
        %v4821 = vsel %vm775, %v4809, 0
        %4823 = vmatprep.subr.mxu0 0.0
        %4824 = vmatpush1.msra.mxu0 %v4813
        %4825 = vmatprep.subr.mxu0 0.0
        %4826 = vmatpush1.msra.mxu0 %v4814
        %4827 = vmatprep.subr.mxu0 0.0
        %4828 = vmatpush1.msra.mxu0 %v4815
        %4829 = vmatprep.subr.mxu0 0.0
        %4830 = vmatpush1.msra.mxu0 %v4816
        %4831 = vmatprep.subr.mxu0 0.0
        %4832 = vmatpush1.msra.mxu0 0.0
        %4833 = vmatprep.subr.mxu0 0.0
        %4834 = vmatpush1.msra.mxu0 0.0
        %4835 = vmatprep.subr.mxu0 0.0
        %4836 = vmatpush1.msra.mxu0 0.0
        %4837 = vmatprep.subr.mxu0 0.0
        %4838 = vmatpush1.msra.mxu0 0.0
        %4839 = vmatprep.subr.mxu0 0.0
        %4840 = vmatpush1.msra.mxu0 0.0
        %4841 = vmatprep.subr.mxu0 0.0
        %4842 = vmatpush1.msra.mxu0 0.0
        %4843 = vmatprep.subr.mxu0 0.0
        %4844 = vmatpush1.msra.mxu0 0.0
        %4845 = vmatprep.subr.mxu0 0.0
        %4846 = vmatpush1.msra.mxu0 0.0
        %4847 = vmatprep.subr.mxu0 0.0
        %4848 = vmatpush1.msra.mxu0 0.0
        %4849 = vmatprep.subr.mxu0 0.0
        %4850 = vmatpush1.msra.mxu0 0.0
        %4851 = vmatprep.subr.mxu0 0.0
        %4852 = vmatpush1.msra.mxu0 0.0
        %4853 = vmatprep.subr.mxu0 0.0
        %4854 = vmatpush1.msra.mxu0 0.0
        %4855 = vmatprep.subr.mxu0 0.0
        %4856 = vmatpush1.msra.mxu0 0.0
        %4857 = vmatprep.subr.mxu0 0.0
        %4858 = vmatpush1.msra.mxu0 0.0
        %4859 = vmatprep.subr.mxu0 0.0
        %4860 = vmatpush1.msra.mxu0 0.0
        %4861 = vmatprep.subr.mxu0 0.0
        %4862 = vmatpush1.msra.mxu0 0.0
        %4863 = vmatprep.subr.mxu0 0.0
        %4864 = vmatpush1.msra.mxu0 0.0
        %4865 = vmatprep.subr.mxu0 0.0
        %4866 = vmatpush1.msra.mxu0 0.0
        %4867 = vmatprep.subr.mxu0 0.0
        %4868 = vmatpush1.msra.mxu0 0.0
        %4869 = vmatprep.subr.mxu0 0.0
        %4870 = vmatpush1.msra.mxu0 0.0
        %4871 = vmatprep.subr.mxu0 0.0
        %4872 = vmatpush1.msra.mxu0 0.0
        %4873 = vmatprep.subr.mxu0 0.0
        %4874 = vmatpush1.msra.mxu0 0.0
        %4875 = vmatprep.subr.mxu0 0.0
        %4876 = vmatpush1.msra.mxu0 0.0
        %4877 = vmatprep.subr.mxu0 0.0
        %4878 = vmatpush1.msra.mxu0 0.0
        %4879 = vmatprep.subr.mxu0 0.0
        %4880 = vmatpush1.msra.mxu0 0.0
        %4881 = vmatprep.subr.mxu0 0.0
        %4882 = vmatpush1.msra.mxu0 0.0
        %4883 = vmatprep.subr.mxu0 0.0
        %4884 = vmatpush1.msra.mxu0 0.0
        %4885 = vmatprep.subr.mxu0 0.0
        %4886 = vmatpush1.msra.mxu0 0.0
        %4887 = vmatprep.mubr.f32.mxu0 0.0
        %4888 = vmatmul.mubr.f32.gmra.mrb[0].mxu0 %v4818
        %v4889 = vpop.f32.mrb[0].mxu0
        %v4890 = vadd.f32 0.0, %v4889
        %v4891 = vpop.f32.mrb[0].mxu0
        %4892 = vmatprep.mubr.f32.mxu0 0.0
        %4893 = vmatmul.mubr.f32.gmra.mrb[0].mxu0 %v4821
        %v4894 = vpop.f32.mrb[0].mxu0
        %v4895 = vadd.f32 0.0, %v4894
        %v4896 = vpop.f32.mrb[0].mxu0
        %4897 = vdwg.mxu0
        %v4898 = vadd.f32 %v4726, %v4890
        %v4899 = vadd.f32 %v4727, %v4895
        %v4900 = vld [vmem:[%s8] sm:$0x1]
        %v4902 = vlaneseq
        %v4903 = vshrl.u32 %v4902, 7
        %v4904 = vsub.s32 0, %v4903
        %v4905 = vrot.slane %v4900, %v4904
        %v4907 = vadd.f32 %v4898, %v4905
        %v4908 = vadd.f32 %v4899, %v4905
        %v4909 = vmax.f32 %v4907, 0.0
        %v4910 = vmax.f32 %v4908, 0.0
        %v4911 = vld [vmem:[%s9] sm:$0xff]
        %v4912 = vld [vmem:[%s9 + $0x8] sm:$0xff]
        %v4913 = vld [vmem:[%s9 + $0x10] sm:$0xff]
        %v4914 = vld [vmem:[%s9 + $0x18] sm:$0xff]
        %v4916 = vsel %vm775, %v4909, 0
        %v4919 = vsel %vm775, %v4910, 0
        %4921 = vmatprep.subr.mxu0 0.0
        %4922 = vmatpush1.msra.mxu0 %v4911
        %4923 = vmatprep.subr.mxu0 0.0
        %4924 = vmatpush1.msra.mxu0 %v4912
        %4925 = vmatprep.subr.mxu0 0.0
        %4926 = vmatpush1.msra.mxu0 %v4913
        %4927 = vmatprep.subr.mxu0 0.0
        %4928 = vmatpush1.msra.mxu0 %v4914
        %4929 = vmatprep.subr.mxu0 0.0
        %4930 = vmatpush1.msra.mxu0 0.0
        %4931 = vmatprep.subr.mxu0 0.0
        %4932 = vmatpush1.msra.mxu0 0.0
        %4933 = vmatprep.subr.mxu0 0.0
        %4934 = vmatpush1.msra.mxu0 0.0
        %4935 = vmatprep.subr.mxu0 0.0
        %4936 = vmatpush1.msra.mxu0 0.0
        %4937 = vmatprep.subr.mxu0 0.0
        %4938 = vmatpush1.msra.mxu0 0.0
        %4939 = vmatprep.subr.mxu0 0.0
        %4940 = vmatpush1.msra.mxu0 0.0
        %4941 = vmatprep.subr.mxu0 0.0
        %4942 = vmatpush1.msra.mxu0 0.0
        %4943 = vmatprep.subr.mxu0 0.0
        %4944 = vmatpush1.msra.mxu0 0.0
        %4945 = vmatprep.subr.mxu0 0.0
        %4946 = vmatpush1.msra.mxu0 0.0
        %4947 = vmatprep.subr.mxu0 0.0
        %4948 = vmatpush1.msra.mxu0 0.0
        %4949 = vmatprep.subr.mxu0 0.0
        %4950 = vmatpush1.msra.mxu0 0.0
        %4951 = vmatprep.subr.mxu0 0.0
        %4952 = vmatpush1.msra.mxu0 0.0
        %4953 = vmatprep.subr.mxu0 0.0
        %4954 = vmatpush1.msra.mxu0 0.0
        %4955 = vmatprep.subr.mxu0 0.0
        %4956 = vmatpush1.msra.mxu0 0.0
        %4957 = vmatprep.subr.mxu0 0.0
        %4958 = vmatpush1.msra.mxu0 0.0
        %4959 = vmatprep.subr.mxu0 0.0
        %4960 = vmatpush1.msra.mxu0 0.0
        %4961 = vmatprep.subr.mxu0 0.0
        %4962 = vmatpush1.msra.mxu0 0.0
        %4963 = vmatprep.subr.mxu0 0.0
        %4964 = vmatpush1.msra.mxu0 0.0
        %4965 = vmatprep.subr.mxu0 0.0
        %4966 = vmatpush1.msra.mxu0 0.0
        %4967 = vmatprep.subr.mxu0 0.0
        %4968 = vmatpush1.msra.mxu0 0.0
        %4969 = vmatprep.subr.mxu0 0.0
        %4970 = vmatpush1.msra.mxu0 0.0
        %4971 = vmatprep.subr.mxu0 0.0
        %4972 = vmatpush1.msra.mxu0 0.0
        %4973 = vmatprep.subr.mxu0 0.0
        %4974 = vmatpush1.msra.mxu0 0.0
        %4975 = vmatprep.subr.mxu0 0.0
        %4976 = vmatpush1.msra.mxu0 0.0
        %4977 = vmatprep.subr.mxu0 0.0
        %4978 = vmatpush1.msra.mxu0 0.0
        %4979 = vmatprep.subr.mxu0 0.0
        %4980 = vmatpush1.msra.mxu0 0.0
        %4981 = vmatprep.subr.mxu0 0.0
        %4982 = vmatpush1.msra.mxu0 0.0
        %4983 = vmatprep.subr.mxu0 0.0
        %4984 = vmatpush1.msra.mxu0 0.0
        %4985 = vmatprep.mubr.f32.mxu0 0.0
        %4986 = vmatmul.mubr.f32.gmra.mrb[0].mxu0 %v4916
        %v4987 = vpop.f32.mrb[0].mxu0
        %v4988 = vadd.f32 0.0, %v4987
        %v4989 = vpop.f32.mrb[0].mxu0
        %4990 = vmatprep.mubr.f32.mxu0 0.0
        %4991 = vmatmul.mubr.f32.gmra.mrb[0].mxu0 %v4919
        %v4992 = vpop.f32.mrb[0].mxu0
        %v4993 = vadd.f32 0.0, %v4992
        %v4994 = vpop.f32.mrb[0].mxu0
        %4995 = vdwg.mxu0
        %v4996 = vadd.f32 %v3353, %v4988
        %v4997 = vadd.f32 %v3354, %v4993
        %v4998 = vld [vmem:[%s10] sm:$0x1]
        %v5000 = vlaneseq
        %v5001 = vshrl.u32 %v5000, 7
        %v5002 = vsub.s32 0, %v5001
        %v5003 = vrot.slane %v4998, %v5002
        %v5005 = vadd.f32 %v4996, %v5003
        %v5006 = vadd.f32 %v4997, %v5003
        %v5007 = vmax.f32 %v5005, 0.0
        %v5008 = vmax.f32 %v5006, 0.0
        %5009 = vmatprep.subr.mxu0 0.0
        %5010 = vmatpush1.msra.mxu0 %v5007
        %5011 = vmatprep.subr.mxu0 0.0
        %5012 = vmatpush1.msra.mxu0 %v5008
        %5013 = vmatprep.subr.mxu0 0.0
        %5014 = vmatpush1.msra.mxu0 0.0
        %5015 = vmatprep.subr.mxu0 0.0
        %5016 = vmatpush1.msra.mxu0 0.0
        %5017 = vmatprep.subr.mxu0 0.0
        %5018 = vmatpush1.msra.mxu0 0.0
        %5019 = vmatprep.subr.mxu0 0.0
        %5020 = vmatpush1.msra.mxu0 0.0
        %5021 = vmatprep.subr.mxu0 0.0
        %5022 = vmatpush1.msra.mxu0 0.0
        %5023 = vmatprep.subr.mxu0 0.0
        %5024 = vmatpush1.msra.mxu0 0.0
        %5025 = vmatprep.subr.mxu0 0.0
        %5026 = vmatpush1.msra.mxu0 0.0
        %5027 = vmatprep.subr.mxu0 0.0
        %5028 = vmatpush1.msra.mxu0 0.0
        %5029 = vmatprep.subr.mxu0 0.0
        %5030 = vmatpush1.msra.mxu0 0.0
        %5031 = vmatprep.subr.mxu0 0.0
        %5032 = vmatpush1.msra.mxu0 0.0
        %5033 = vmatprep.subr.mxu0 0.0
        %5034 = vmatpush1.msra.mxu0 0.0
        %5035 = vmatprep.subr.mxu0 0.0
        %5036 = vmatpush1.msra.mxu0 0.0
        %5037 = vmatprep.subr.mxu0 0.0
        %5038 = vmatpush1.msra.mxu0 0.0
        %5039 = vmatprep.subr.mxu0 0.0
        %5040 = vmatpush1.msra.mxu0 0.0
        %5041 = vmatprep.subr.mxu0 0.0
        %5042 = vmatpush1.msra.mxu0 0.0
        %5043 = vmatprep.subr.mxu0 0.0
        %5044 = vmatpush1.msra.mxu0 0.0
        %5045 = vmatprep.subr.mxu0 0.0
        %5046 = vmatpush1.msra.mxu0 0.0
        %5047 = vmatprep.subr.mxu0 0.0
        %5048 = vmatpush1.msra.mxu0 0.0
        %5049 = vmatprep.subr.mxu0 0.0
        %5050 = vmatpush1.msra.mxu0 0.0
        %5051 = vmatprep.subr.mxu0 0.0
        %5052 = vmatpush1.msra.mxu0 0.0
        %5053 = vmatprep.subr.mxu0 0.0
        %5054 = vmatpush1.msra.mxu0 0.0
        %5055 = vmatprep.subr.mxu0 0.0
        %5056 = vmatpush1.msra.mxu0 0.0
        %5057 = vmatprep.subr.mxu0 0.0
        %5058 = vmatpush1.msra.mxu0 0.0
        %5059 = vmatprep.subr.mxu0 0.0
        %5060 = vmatpush1.msra.mxu0 0.0
        %5061 = vmatprep.subr.mxu0 0.0
        %5062 = vmatpush1.msra.mxu0 0.0
        %5063 = vmatprep.subr.mxu0 0.0
        %5064 = vmatpush1.msra.mxu0 0.0
        %5065 = vmatprep.subr.mxu0 0.0
        %5066 = vmatpush1.msra.mxu0 0.0
        %5067 = vmatprep.subr.mxu0 0.0
        %5068 = vmatpush1.msra.mxu0 0.0
        %5069 = vmatprep.subr.mxu0 0.0
        %5070 = vmatpush1.msra.mxu0 0.0
        %5071 = vmatprep.subr.mxu0 0.0
        %5072 = vmatpush1.msra.mxu0 0.0
        %5073 = vmatprep.mubr.f32.mxu0 0.0
        %5074 = vmatmul.mubr.f32.gmra.mrb[0].mxu0 %v3361
        %v5075 = vpop.f32.mrb[0].mxu0
        %v5076 = vadd.f32 0.0, %v5075
        %v5077 = vpop.f32.mrb[0].mxu0
        %5078 = vmatprep.mubr.f32.mxu0 0.0
        %5079 = vmatmul.mubr.f32.gmra.mrb[0].mxu0 %v3364
        %v5080 = vpop.f32.mrb[0].mxu0
        %v5081 = vadd.f32 0.0, %v5080
        %v5082 = vpop.f32.mrb[0].mxu0
        %5083 = vdwg.mxu0
        %s5084 = scalar_lea.vmem %s7, 288
        %v5085 = vld [vmem:[%s5084] sm:$0xff]
        %v5086 = vld [vmem:[%s5084 + $0x8] sm:$0xff]
        %v5087 = vld [vmem:[%s5084 + $0x10] sm:$0xff]
        %v5088 = vld [vmem:[%s5084 + $0x18] sm:$0xff]
        %5089 = vmatprep.subr.mxu0 0.0
        %5090 = vmatpush1.msra.mxu0 %v5007
        %5091 = vmatprep.subr.mxu0 0.0
        %5092 = vmatpush1.msra.mxu0 %v5008
        %5093 = vmatprep.subr.mxu0 0.0
        %5094 = vmatpush1.msra.mxu0 0.0
        %5095 = vmatprep.subr.mxu0 0.0
        %5096 = vmatpush1.msra.mxu0 0.0
        %5097 = vmatprep.subr.mxu0 0.0
        %5098 = vmatpush1.msra.mxu0 0.0
        %5099 = vmatprep.subr.mxu0 0.0
        %5100 = vmatpush1.msra.mxu0 0.0
        %5101 = vmatprep.subr.mxu0 0.0
        %5102 = vmatpush1.msra.mxu0 0.0
        %5103 = vmatprep.subr.mxu0 0.0
        %5104 = vmatpush1.msra.mxu0 0.0
        %5105 = vmatprep.subr.mxu0 0.0
        %5106 = vmatpush1.msra.mxu0 0.0
        %5107 = vmatprep.subr.mxu0 0.0
        %5108 = vmatpush1.msra.mxu0 0.0
        %5109 = vmatprep.subr.mxu0 0.0
        %5110 = vmatpush1.msra.mxu0 0.0
        %5111 = vmatprep.subr.mxu0 0.0
        %5112 = vmatpush1.msra.mxu0 0.0
        %5113 = vmatprep.subr.mxu0 0.0
        %5114 = vmatpush1.msra.mxu0 0.0
        %5115 = vmatprep.subr.mxu0 0.0
        %5116 = vmatpush1.msra.mxu0 0.0
        %5117 = vmatprep.subr.mxu0 0.0
        %5118 = vmatpush1.msra.mxu0 0.0
        %5119 = vmatprep.subr.mxu0 0.0
        %5120 = vmatpush1.msra.mxu0 0.0
        %5121 = vmatprep.subr.mxu0 0.0
        %5122 = vmatpush1.msra.mxu0 0.0
        %5123 = vmatprep.subr.mxu0 0.0
        %5124 = vmatpush1.msra.mxu0 0.0
        %5125 = vmatprep.subr.mxu0 0.0
        %5126 = vmatpush1.msra.mxu0 0.0
        %5127 = vmatprep.subr.mxu0 0.0
        %5128 = vmatpush1.msra.mxu0 0.0
        %5129 = vmatprep.subr.mxu0 0.0
        %5130 = vmatpush1.msra.mxu0 0.0
        %5131 = vmatprep.subr.mxu0 0.0
        %5132 = vmatpush1.msra.mxu0 0.0
        %5133 = vmatprep.subr.mxu0 0.0
        %5134 = vmatpush1.msra.mxu0 0.0
        %5135 = vmatprep.subr.mxu0 0.0
        %5136 = vmatpush1.msra.mxu0 0.0
        %5137 = vmatprep.subr.mxu0 0.0
        %5138 = vmatpush1.msra.mxu0 0.0
        %5139 = vmatprep.subr.mxu0 0.0
        %5140 = vmatpush1.msra.mxu0 0.0
        %5141 = vmatprep.subr.mxu0 0.0
        %5142 = vmatpush1.msra.mxu0 0.0
        %5143 = vmatprep.subr.mxu0 0.0
        %5144 = vmatpush1.msra.mxu0 0.0
        %5145 = vmatprep.subr.mxu0 0.0
        %5146 = vmatpush1.msra.mxu0 0.0
        %5147 = vmatprep.subr.mxu0 0.0
        %5148 = vmatpush1.msra.mxu0 0.0
        %5149 = vmatprep.subr.mxu0 0.0
        %5150 = vmatpush1.msra.mxu0 0.0
        %5151 = vmatprep.subr.mxu0 0.0
        %5152 = vmatpush1.msra.mxu0 0.0
        %5153 = vmatprep.mubr.f32.mxu0 0.0
        %5154 = vmatmul.mubr.f32.gmra.mrb[0].mxu0 %v3449
        %v5155 = vpop.f32.mrb[0].mxu0
        %v5156 = vadd.f32 0.0, %v5155
        %v5157 = vpop.f32.mrb[0].mxu0
        %5158 = vmatprep.mubr.f32.mxu0 0.0
        %5159 = vmatmul.mubr.f32.gmra.mrb[0].mxu0 %v3452
        %v5160 = vpop.f32.mrb[0].mxu0
        %v5161 = vadd.f32 0.0, %v5160
        %v5162 = vpop.f32.mrb[0].mxu0
        %5163 = vdwg.mxu0
        %s5164 = scalar_lea.vmem %s7, 320
        %v5165 = vld [vmem:[%s5164] sm:$0xff]
        %v5166 = vld [vmem:[%s5164 + $0x8] sm:$0xff]
        %v5167 = vld [vmem:[%s5164 + $0x10] sm:$0xff]
        %v5168 = vld [vmem:[%s5164 + $0x18] sm:$0xff]
        %v5170 = vsel %vm775, %v5156, 0
        %v5173 = vsel %vm775, %v5161, 0
        %5175 = vmatprep.subr.mxu0 0.0
        %5176 = vmatpush1.msra.mxu0 %v5165
        %5177 = vmatprep.subr.mxu0 0.0
        %5178 = vmatpush1.msra.mxu0 %v5166
        %5179 = vmatprep.subr.mxu0 0.0
        %5180 = vmatpush1.msra.mxu0 %v5167
        %5181 = vmatprep.subr.mxu0 0.0
        %5182 = vmatpush1.msra.mxu0 %v5168
        %5183 = vmatprep.subr.mxu0 0.0
        %5184 = vmatpush1.msra.mxu0 0.0
        %5185 = vmatprep.subr.mxu0 0.0
        %5186 = vmatpush1.msra.mxu0 0.0
        %5187 = vmatprep.subr.mxu0 0.0
        %5188 = vmatpush1.msra.mxu0 0.0
        %5189 = vmatprep.subr.mxu0 0.0
        %5190 = vmatpush1.msra.mxu0 0.0
        %5191 = vmatprep.subr.mxu0 0.0
        %5192 = vmatpush1.msra.mxu0 0.0
        %5193 = vmatprep.subr.mxu0 0.0
        %5194 = vmatpush1.msra.mxu0 0.0
        %5195 = vmatprep.subr.mxu0 0.0
        %5196 = vmatpush1.msra.mxu0 0.0
        %5197 = vmatprep.subr.mxu0 0.0
        %5198 = vmatpush1.msra.mxu0 0.0
        %5199 = vmatprep.subr.mxu0 0.0
        %5200 = vmatpush1.msra.mxu0 0.0
        %5201 = vmatprep.subr.mxu0 0.0
        %5202 = vmatpush1.msra.mxu0 0.0
        %5203 = vmatprep.subr.mxu0 0.0
        %5204 = vmatpush1.msra.mxu0 0.0
        %5205 = vmatprep.subr.mxu0 0.0
        %5206 = vmatpush1.msra.mxu0 0.0
        %5207 = vmatprep.subr.mxu0 0.0
        %5208 = vmatpush1.msra.mxu0 0.0
        %5209 = vmatprep.subr.mxu0 0.0
        %5210 = vmatpush1.msra.mxu0 0.0
        %5211 = vmatprep.subr.mxu0 0.0
        %5212 = vmatpush1.msra.mxu0 0.0
        %5213 = vmatprep.subr.mxu0 0.0
        %5214 = vmatpush1.msra.mxu0 0.0
        %5215 = vmatprep.subr.mxu0 0.0
        %5216 = vmatpush1.msra.mxu0 0.0
        %5217 = vmatprep.subr.mxu0 0.0
        %5218 = vmatpush1.msra.mxu0 0.0
        %5219 = vmatprep.subr.mxu0 0.0
        %5220 = vmatpush1.msra.mxu0 0.0
        %5221 = vmatprep.subr.mxu0 0.0
        %5222 = vmatpush1.msra.mxu0 0.0
        %5223 = vmatprep.subr.mxu0 0.0
        %5224 = vmatpush1.msra.mxu0 0.0
        %5225 = vmatprep.subr.mxu0 0.0
        %5226 = vmatpush1.msra.mxu0 0.0
        %5227 = vmatprep.subr.mxu0 0.0
        %5228 = vmatpush1.msra.mxu0 0.0
        %5229 = vmatprep.subr.mxu0 0.0
        %5230 = vmatpush1.msra.mxu0 0.0
        %5231 = vmatprep.subr.mxu0 0.0
        %5232 = vmatpush1.msra.mxu0 0.0
        %5233 = vmatprep.subr.mxu0 0.0
        %5234 = vmatpush1.msra.mxu0 0.0
        %5235 = vmatprep.subr.mxu0 0.0
        %5236 = vmatpush1.msra.mxu0 0.0
        %5237 = vmatprep.subr.mxu0 0.0
        %5238 = vmatpush1.msra.mxu0 0.0
        %5239 = vmatprep.mubr.f32.mxu0 0.0
        %5240 = vmatmul.mubr.f32.gmra.mrb[0].mxu0 %v5170
        %v5241 = vpop.f32.mrb[0].mxu0
        %v5242 = vadd.f32 0.0, %v5241
        %v5243 = vpop.f32.mrb[0].mxu0
        %5244 = vmatprep.mubr.f32.mxu0 0.0
        %5245 = vmatmul.mubr.f32.gmra.mrb[0].mxu0 %v5173
        %v5246 = vpop.f32.mrb[0].mxu0
        %v5247 = vadd.f32 0.0, %v5246
        %v5248 = vpop.f32.mrb[0].mxu0
        %5249 = vdwg.mxu0
        %v5251 = vsel %vm775, %v5076, 0
        %v5254 = vsel %vm775, %v5081, 0
        %5256 = vmatprep.subr.mxu0 0.0
        %5257 = vmatpush1.msra.mxu0 %v5085
        %5258 = vmatprep.subr.mxu0 0.0
        %5259 = vmatpush1.msra.mxu0 %v5086
        %5260 = vmatprep.subr.mxu0 0.0
        %5261 = vmatpush1.msra.mxu0 %v5087
        %5262 = vmatprep.subr.mxu0 0.0
        %5263 = vmatpush1.msra.mxu0 %v5088
        %5264 = vmatprep.subr.mxu0 0.0
        %5265 = vmatpush1.msra.mxu0 0.0
        %5266 = vmatprep.subr.mxu0 0.0
        %5267 = vmatpush1.msra.mxu0 0.0
        %5268 = vmatprep.subr.mxu0 0.0
        %5269 = vmatpush1.msra.mxu0 0.0
        %5270 = vmatprep.subr.mxu0 0.0
        %5271 = vmatpush1.msra.mxu0 0.0
        %5272 = vmatprep.subr.mxu0 0.0
        %5273 = vmatpush1.msra.mxu0 0.0
        %5274 = vmatprep.subr.mxu0 0.0
        %5275 = vmatpush1.msra.mxu0 0.0
        %5276 = vmatprep.subr.mxu0 0.0
        %5277 = vmatpush1.msra.mxu0 0.0
        %5278 = vmatprep.subr.mxu0 0.0
        %5279 = vmatpush1.msra.mxu0 0.0
        %5280 = vmatprep.subr.mxu0 0.0
        %5281 = vmatpush1.msra.mxu0 0.0
        %5282 = vmatprep.subr.mxu0 0.0
        %5283 = vmatpush1.msra.mxu0 0.0
        %5284 = vmatprep.subr.mxu0 0.0
        %5285 = vmatpush1.msra.mxu0 0.0
        %5286 = vmatprep.subr.mxu0 0.0
        %5287 = vmatpush1.msra.mxu0 0.0
        %5288 = vmatprep.subr.mxu0 0.0
        %5289 = vmatpush1.msra.mxu0 0.0
        %5290 = vmatprep.subr.mxu0 0.0
        %5291 = vmatpush1.msra.mxu0 0.0
        %5292 = vmatprep.subr.mxu0 0.0
        %5293 = vmatpush1.msra.mxu0 0.0
        %5294 = vmatprep.subr.mxu0 0.0
        %5295 = vmatpush1.msra.mxu0 0.0
        %5296 = vmatprep.subr.mxu0 0.0
        %5297 = vmatpush1.msra.mxu0 0.0
        %5298 = vmatprep.subr.mxu0 0.0
        %5299 = vmatpush1.msra.mxu0 0.0
        %5300 = vmatprep.subr.mxu0 0.0
        %5301 = vmatpush1.msra.mxu0 0.0
        %5302 = vmatprep.subr.mxu0 0.0
        %5303 = vmatpush1.msra.mxu0 0.0
        %5304 = vmatprep.subr.mxu0 0.0
        %5305 = vmatpush1.msra.mxu0 0.0
        %5306 = vmatprep.subr.mxu0 0.0
        %5307 = vmatpush1.msra.mxu0 0.0
        %5308 = vmatprep.subr.mxu0 0.0
        %5309 = vmatpush1.msra.mxu0 0.0
        %5310 = vmatprep.subr.mxu0 0.0
        %5311 = vmatpush1.msra.mxu0 0.0
        %5312 = vmatprep.subr.mxu0 0.0
        %5313 = vmatpush1.msra.mxu0 0.0
        %5314 = vmatprep.subr.mxu0 0.0
        %5315 = vmatpush1.msra.mxu0 0.0
        %5316 = vmatprep.subr.mxu0 0.0
        %5317 = vmatpush1.msra.mxu0 0.0
        %5318 = vmatprep.subr.mxu0 0.0
        %5319 = vmatpush1.msra.mxu0 0.0
        %5320 = vmatprep.mubr.f32.mxu0 0.0
        %5321 = vmatmul.mubr.f32.gmra.mrb[0].mxu0 %v5251
        %v5322 = vpop.f32.mrb[0].mxu0
        %v5323 = vadd.f32 %v5242, %v5322
        %v5324 = vpop.f32.mrb[0].mxu0
        %5325 = vmatprep.mubr.f32.mxu0 0.0
        %5326 = vmatmul.mubr.f32.gmra.mrb[0].mxu0 %v5254
        %v5327 = vpop.f32.mrb[0].mxu0
        %v5328 = vadd.f32 %v5247, %v5327
        %v5329 = vpop.f32.mrb[0].mxu0
        %5330 = vdwg.mxu0
        %5331 = vmatprep.subr.mxu0 0.0
        %5332 = vmatpush1.msra.mxu0 %v5007
        %5333 = vmatprep.subr.mxu0 0.0
        %5334 = vmatpush1.msra.mxu0 %v5008
        %5335 = vmatprep.subr.mxu0 0.0
        %5336 = vmatpush1.msra.mxu0 0.0
        %5337 = vmatprep.subr.mxu0 0.0
        %5338 = vmatpush1.msra.mxu0 0.0
        %5339 = vmatprep.subr.mxu0 0.0
        %5340 = vmatpush1.msra.mxu0 0.0
        %5341 = vmatprep.subr.mxu0 0.0
        %5342 = vmatpush1.msra.mxu0 0.0
        %5343 = vmatprep.subr.mxu0 0.0
        %5344 = vmatpush1.msra.mxu0 0.0
        %5345 = vmatprep.subr.mxu0 0.0
        %5346 = vmatpush1.msra.mxu0 0.0
        %5347 = vmatprep.subr.mxu0 0.0
        %5348 = vmatpush1.msra.mxu0 0.0
        %5349 = vmatprep.subr.mxu0 0.0
        %5350 = vmatpush1.msra.mxu0 0.0
        %5351 = vmatprep.subr.mxu0 0.0
        %5352 = vmatpush1.msra.mxu0 0.0
        %5353 = vmatprep.subr.mxu0 0.0
        %5354 = vmatpush1.msra.mxu0 0.0
        %5355 = vmatprep.subr.mxu0 0.0
        %5356 = vmatpush1.msra.mxu0 0.0
        %5357 = vmatprep.subr.mxu0 0.0
        %5358 = vmatpush1.msra.mxu0 0.0
        %5359 = vmatprep.subr.mxu0 0.0
        %5360 = vmatpush1.msra.mxu0 0.0
        %5361 = vmatprep.subr.mxu0 0.0
        %5362 = vmatpush1.msra.mxu0 0.0
        %5363 = vmatprep.subr.mxu0 0.0
        %5364 = vmatpush1.msra.mxu0 0.0
        %5365 = vmatprep.subr.mxu0 0.0
        %5366 = vmatpush1.msra.mxu0 0.0
        %5367 = vmatprep.subr.mxu0 0.0
        %5368 = vmatpush1.msra.mxu0 0.0
        %5369 = vmatprep.subr.mxu0 0.0
        %5370 = vmatpush1.msra.mxu0 0.0
        %5371 = vmatprep.subr.mxu0 0.0
        %5372 = vmatpush1.msra.mxu0 0.0
        %5373 = vmatprep.subr.mxu0 0.0
        %5374 = vmatpush1.msra.mxu0 0.0
        %5375 = vmatprep.subr.mxu0 0.0
        %5376 = vmatpush1.msra.mxu0 0.0
        %5377 = vmatprep.subr.mxu0 0.0
        %5378 = vmatpush1.msra.mxu0 0.0
        %5379 = vmatprep.subr.mxu0 0.0
        %5380 = vmatpush1.msra.mxu0 0.0
        %5381 = vmatprep.subr.mxu0 0.0
        %5382 = vmatpush1.msra.mxu0 0.0
        %5383 = vmatprep.subr.mxu0 0.0
        %5384 = vmatpush1.msra.mxu0 0.0
        %5385 = vmatprep.subr.mxu0 0.0
        %5386 = vmatpush1.msra.mxu0 0.0
        %5387 = vmatprep.subr.mxu0 0.0
        %5388 = vmatpush1.msra.mxu0 0.0
        %5389 = vmatprep.subr.mxu0 0.0
        %5390 = vmatpush1.msra.mxu0 0.0
        %5391 = vmatprep.subr.mxu0 0.0
        %5392 = vmatpush1.msra.mxu0 0.0
        %5393 = vmatprep.subr.mxu0 0.0
        %5394 = vmatpush1.msra.mxu0 0.0
        %5395 = vmatprep.mubr.f32.mxu0 0.0
        %5396 = vmatmul.mubr.f32.gmra.mrb[0].mxu0 %v3700
        %v5397 = vpop.f32.mrb[0].mxu0
        %v5398 = vadd.f32 0.0, %v5397
        %v5399 = vpop.f32.mrb[0].mxu0
        %5400 = vmatprep.mubr.f32.mxu0 0.0
        %5401 = vmatmul.mubr.f32.gmra.mrb[0].mxu0 %v3703
        %v5402 = vpop.f32.mrb[0].mxu0
        %v5403 = vadd.f32 0.0, %v5402
        %v5404 = vpop.f32.mrb[0].mxu0
        %5405 = vdwg.mxu0
        %s5406 = scalar_lea.vmem %s7, 352
        %v5407 = vld [vmem:[%s5406] sm:$0xff]
        %v5408 = vld [vmem:[%s5406 + $0x8] sm:$0xff]
        %v5409 = vld [vmem:[%s5406 + $0x10] sm:$0xff]
        %v5410 = vld [vmem:[%s5406 + $0x18] sm:$0xff]
        %v5412 = vsel %vm775, %v5398, 0
        %v5415 = vsel %vm775, %v5403, 0
        %5417 = vmatprep.subr.mxu0 0.0
        %5418 = vmatpush1.msra.mxu0 %v5407
        %5419 = vmatprep.subr.mxu0 0.0
        %5420 = vmatpush1.msra.mxu0 %v5408
        %5421 = vmatprep.subr.mxu0 0.0
        %5422 = vmatpush1.msra.mxu0 %v5409
        %5423 = vmatprep.subr.mxu0 0.0
        %5424 = vmatpush1.msra.mxu0 %v5410
        %5425 = vmatprep.subr.mxu0 0.0
        %5426 = vmatpush1.msra.mxu0 0.0
        %5427 = vmatprep.subr.mxu0 0.0
        %5428 = vmatpush1.msra.mxu0 0.0
        %5429 = vmatprep.subr.mxu0 0.0
        %5430 = vmatpush1.msra.mxu0 0.0
        %5431 = vmatprep.subr.mxu0 0.0
        %5432 = vmatpush1.msra.mxu0 0.0
        %5433 = vmatprep.subr.mxu0 0.0
        %5434 = vmatpush1.msra.mxu0 0.0
        %5435 = vmatprep.subr.mxu0 0.0
        %5436 = vmatpush1.msra.mxu0 0.0
        %5437 = vmatprep.subr.mxu0 0.0
        %5438 = vmatpush1.msra.mxu0 0.0
        %5439 = vmatprep.subr.mxu0 0.0
        %5440 = vmatpush1.msra.mxu0 0.0
        %5441 = vmatprep.subr.mxu0 0.0
        %5442 = vmatpush1.msra.mxu0 0.0
        %5443 = vmatprep.subr.mxu0 0.0
        %5444 = vmatpush1.msra.mxu0 0.0
        %5445 = vmatprep.subr.mxu0 0.0
        %5446 = vmatpush1.msra.mxu0 0.0
        %5447 = vmatprep.subr.mxu0 0.0
        %5448 = vmatpush1.msra.mxu0 0.0
        %5449 = vmatprep.subr.mxu0 0.0
        %5450 = vmatpush1.msra.mxu0 0.0
        %5451 = vmatprep.subr.mxu0 0.0
        %5452 = vmatpush1.msra.mxu0 0.0
        %5453 = vmatprep.subr.mxu0 0.0
        %5454 = vmatpush1.msra.mxu0 0.0
        %5455 = vmatprep.subr.mxu0 0.0
        %5456 = vmatpush1.msra.mxu0 0.0
        %5457 = vmatprep.subr.mxu0 0.0
        %5458 = vmatpush1.msra.mxu0 0.0
        %5459 = vmatprep.subr.mxu0 0.0
        %5460 = vmatpush1.msra.mxu0 0.0
        %5461 = vmatprep.subr.mxu0 0.0
        %5462 = vmatpush1.msra.mxu0 0.0
        %5463 = vmatprep.subr.mxu0 0.0
        %5464 = vmatpush1.msra.mxu0 0.0
        %5465 = vmatprep.subr.mxu0 0.0
        %5466 = vmatpush1.msra.mxu0 0.0
        %5467 = vmatprep.subr.mxu0 0.0
        %5468 = vmatpush1.msra.mxu0 0.0
        %5469 = vmatprep.subr.mxu0 0.0
        %5470 = vmatpush1.msra.mxu0 0.0
        %5471 = vmatprep.subr.mxu0 0.0
        %5472 = vmatpush1.msra.mxu0 0.0
        %5473 = vmatprep.subr.mxu0 0.0
        %5474 = vmatpush1.msra.mxu0 0.0
        %5475 = vmatprep.subr.mxu0 0.0
        %5476 = vmatpush1.msra.mxu0 0.0
        %5477 = vmatprep.subr.mxu0 0.0
        %5478 = vmatpush1.msra.mxu0 0.0
        %5479 = vmatprep.subr.mxu0 0.0
        %5480 = vmatpush1.msra.mxu0 0.0
        %5481 = vmatprep.mubr.f32.mxu0 0.0
        %5482 = vmatmul.mubr.f32.gmra.mrb[0].mxu0 %v5412
        %v5483 = vpop.f32.mrb[0].mxu0
        %v5484 = vadd.f32 0.0, %v5483
        %v5485 = vpop.f32.mrb[0].mxu0
        %5486 = vmatprep.mubr.f32.mxu0 0.0
        %5487 = vmatmul.mubr.f32.gmra.mrb[0].mxu0 %v5415
        %v5488 = vpop.f32.mrb[0].mxu0
        %v5489 = vadd.f32 0.0, %v5488
        %v5490 = vpop.f32.mrb[0].mxu0
        %5491 = vdwg.mxu0
        %v5492 = vadd.f32 %v5323, %v5484
        %v5493 = vadd.f32 %v5328, %v5489
        %5494 = vmatprep.subr.mxu0 0.0
        %5495 = vmatpush1.msra.mxu0 %v5007
        %5496 = vmatprep.subr.mxu0 0.0
        %5497 = vmatpush1.msra.mxu0 %v5008
        %5498 = vmatprep.subr.mxu0 0.0
        %5499 = vmatpush1.msra.mxu0 0.0
        %5500 = vmatprep.subr.mxu0 0.0
        %5501 = vmatpush1.msra.mxu0 0.0
        %5502 = vmatprep.subr.mxu0 0.0
        %5503 = vmatpush1.msra.mxu0 0.0
        %5504 = vmatprep.subr.mxu0 0.0
        %5505 = vmatpush1.msra.mxu0 0.0
        %5506 = vmatprep.subr.mxu0 0.0
        %5507 = vmatpush1.msra.mxu0 0.0
        %5508 = vmatprep.subr.mxu0 0.0
        %5509 = vmatpush1.msra.mxu0 0.0
        %5510 = vmatprep.subr.mxu0 0.0
        %5511 = vmatpush1.msra.mxu0 0.0
        %5512 = vmatprep.subr.mxu0 0.0
        %5513 = vmatpush1.msra.mxu0 0.0
        %5514 = vmatprep.subr.mxu0 0.0
        %5515 = vmatpush1.msra.mxu0 0.0
        %5516 = vmatprep.subr.mxu0 0.0
        %5517 = vmatpush1.msra.mxu0 0.0
        %5518 = vmatprep.subr.mxu0 0.0
        %5519 = vmatpush1.msra.mxu0 0.0
        %5520 = vmatprep.subr.mxu0 0.0
        %5521 = vmatpush1.msra.mxu0 0.0
        %5522 = vmatprep.subr.mxu0 0.0
        %5523 = vmatpush1.msra.mxu0 0.0
        %5524 = vmatprep.subr.mxu0 0.0
        %5525 = vmatpush1.msra.mxu0 0.0
        %5526 = vmatprep.subr.mxu0 0.0
        %5527 = vmatpush1.msra.mxu0 0.0
        %5528 = vmatprep.subr.mxu0 0.0
        %5529 = vmatpush1.msra.mxu0 0.0
        %5530 = vmatprep.subr.mxu0 0.0
        %5531 = vmatpush1.msra.mxu0 0.0
        %5532 = vmatprep.subr.mxu0 0.0
        %5533 = vmatpush1.msra.mxu0 0.0
        %5534 = vmatprep.subr.mxu0 0.0
        %5535 = vmatpush1.msra.mxu0 0.0
        %5536 = vmatprep.subr.mxu0 0.0
        %5537 = vmatpush1.msra.mxu0 0.0
        %5538 = vmatprep.subr.mxu0 0.0
        %5539 = vmatpush1.msra.mxu0 0.0
        %5540 = vmatprep.subr.mxu0 0.0
        %5541 = vmatpush1.msra.mxu0 0.0
        %5542 = vmatprep.subr.mxu0 0.0
        %5543 = vmatpush1.msra.mxu0 0.0
        %5544 = vmatprep.subr.mxu0 0.0
        %5545 = vmatpush1.msra.mxu0 0.0
        %5546 = vmatprep.subr.mxu0 0.0
        %5547 = vmatpush1.msra.mxu0 0.0
        %5548 = vmatprep.subr.mxu0 0.0
        %5549 = vmatpush1.msra.mxu0 0.0
        %5550 = vmatprep.subr.mxu0 0.0
        %5551 = vmatpush1.msra.mxu0 0.0
        %5552 = vmatprep.subr.mxu0 0.0
        %5553 = vmatpush1.msra.mxu0 0.0
        %5554 = vmatprep.subr.mxu0 0.0
        %5555 = vmatpush1.msra.mxu0 0.0
        %5556 = vmatprep.subr.mxu0 0.0
        %5557 = vmatpush1.msra.mxu0 0.0
        %5558 = vmatprep.mubr.f32.mxu0 0.0
        %5559 = vmatmul.mubr.f32.gmra.mrb[0].mxu0 %v3872
        %v5560 = vpop.f32.mrb[0].mxu0
        %v5561 = vadd.f32 0.0, %v5560
        %v5562 = vpop.f32.mrb[0].mxu0
        %5563 = vmatprep.mubr.f32.mxu0 0.0
        %5564 = vmatmul.mubr.f32.gmra.mrb[0].mxu0 %v3875
        %v5565 = vpop.f32.mrb[0].mxu0
        %v5566 = vadd.f32 0.0, %v5565
        %v5567 = vpop.f32.mrb[0].mxu0
        %5568 = vdwg.mxu0
        %s5569 = scalar_lea.vmem %s7, 384
        %v5570 = vld [vmem:[%s5569] sm:$0xff]
        %v5571 = vld [vmem:[%s5569 + $0x8] sm:$0xff]
        %v5572 = vld [vmem:[%s5569 + $0x10] sm:$0xff]
        %v5573 = vld [vmem:[%s5569 + $0x18] sm:$0xff]
        %v5575 = vsel %vm775, %v5561, 0
        %v5578 = vsel %vm775, %v5566, 0
        %5580 = vmatprep.subr.mxu0 0.0
        %5581 = vmatpush1.msra.mxu0 %v5570
        %5582 = vmatprep.subr.mxu0 0.0
        %5583 = vmatpush1.msra.mxu0 %v5571
        %5584 = vmatprep.subr.mxu0 0.0
        %5585 = vmatpush1.msra.mxu0 %v5572
        %5586 = vmatprep.subr.mxu0 0.0
        %5587 = vmatpush1.msra.mxu0 %v5573
        %5588 = vmatprep.subr.mxu0 0.0
        %5589 = vmatpush1.msra.mxu0 0.0
        %5590 = vmatprep.subr.mxu0 0.0
        %5591 = vmatpush1.msra.mxu0 0.0
        %5592 = vmatprep.subr.mxu0 0.0
        %5593 = vmatpush1.msra.mxu0 0.0
        %5594 = vmatprep.subr.mxu0 0.0
        %5595 = vmatpush1.msra.mxu0 0.0
        %5596 = vmatprep.subr.mxu0 0.0
        %5597 = vmatpush1.msra.mxu0 0.0
        %5598 = vmatprep.subr.mxu0 0.0
        %5599 = vmatpush1.msra.mxu0 0.0
        %5600 = vmatprep.subr.mxu0 0.0
        %5601 = vmatpush1.msra.mxu0 0.0
        %5602 = vmatprep.subr.mxu0 0.0
        %5603 = vmatpush1.msra.mxu0 0.0
        %5604 = vmatprep.subr.mxu0 0.0
        %5605 = vmatpush1.msra.mxu0 0.0
        %5606 = vmatprep.subr.mxu0 0.0
        %5607 = vmatpush1.msra.mxu0 0.0
        %5608 = vmatprep.subr.mxu0 0.0
        %5609 = vmatpush1.msra.mxu0 0.0
        %5610 = vmatprep.subr.mxu0 0.0
        %5611 = vmatpush1.msra.mxu0 0.0
        %5612 = vmatprep.subr.mxu0 0.0
        %5613 = vmatpush1.msra.mxu0 0.0
        %5614 = vmatprep.subr.mxu0 0.0
        %5615 = vmatpush1.msra.mxu0 0.0
        %5616 = vmatprep.subr.mxu0 0.0
        %5617 = vmatpush1.msra.mxu0 0.0
        %5618 = vmatprep.subr.mxu0 0.0
        %5619 = vmatpush1.msra.mxu0 0.0
        %5620 = vmatprep.subr.mxu0 0.0
        %5621 = vmatpush1.msra.mxu0 0.0
        %5622 = vmatprep.subr.mxu0 0.0
        %5623 = vmatpush1.msra.mxu0 0.0
        %5624 = vmatprep.subr.mxu0 0.0
        %5625 = vmatpush1.msra.mxu0 0.0
        %5626 = vmatprep.subr.mxu0 0.0
        %5627 = vmatpush1.msra.mxu0 0.0
        %5628 = vmatprep.subr.mxu0 0.0
        %5629 = vmatpush1.msra.mxu0 0.0
        %5630 = vmatprep.subr.mxu0 0.0
        %5631 = vmatpush1.msra.mxu0 0.0
        %5632 = vmatprep.subr.mxu0 0.0
        %5633 = vmatpush1.msra.mxu0 0.0
        %5634 = vmatprep.subr.mxu0 0.0
        %5635 = vmatpush1.msra.mxu0 0.0
        %5636 = vmatprep.subr.mxu0 0.0
        %5637 = vmatpush1.msra.mxu0 0.0
        %5638 = vmatprep.subr.mxu0 0.0
        %5639 = vmatpush1.msra.mxu0 0.0
        %5640 = vmatprep.subr.mxu0 0.0
        %5641 = vmatpush1.msra.mxu0 0.0
        %5642 = vmatprep.subr.mxu0 0.0
        %5643 = vmatpush1.msra.mxu0 0.0
        %5644 = vmatprep.mubr.f32.mxu0 0.0
        %5645 = vmatmul.mubr.f32.gmra.mrb[0].mxu0 %v5575
        %v5646 = vpop.f32.mrb[0].mxu0
        %v5647 = vadd.f32 0.0, %v5646
        %v5648 = vpop.f32.mrb[0].mxu0
        %5649 = vmatprep.mubr.f32.mxu0 0.0
        %5650 = vmatmul.mubr.f32.gmra.mrb[0].mxu0 %v5578
        %v5651 = vpop.f32.mrb[0].mxu0
        %v5652 = vadd.f32 0.0, %v5651
        %v5653 = vpop.f32.mrb[0].mxu0
        %5654 = vdwg.mxu0
        %v5655 = vadd.f32 %v5492, %v5647
        %v5656 = vadd.f32 %v5493, %v5652
        %5657 = vmatprep.subr.mxu0 0.0
        %5658 = vmatpush1.msra.mxu0 %v5007
        %5659 = vmatprep.subr.mxu0 0.0
        %5660 = vmatpush1.msra.mxu0 %v5008
        %5661 = vmatprep.subr.mxu0 0.0
        %5662 = vmatpush1.msra.mxu0 0.0
        %5663 = vmatprep.subr.mxu0 0.0
        %5664 = vmatpush1.msra.mxu0 0.0
        %5665 = vmatprep.subr.mxu0 0.0
        %5666 = vmatpush1.msra.mxu0 0.0
        %5667 = vmatprep.subr.mxu0 0.0
        %5668 = vmatpush1.msra.mxu0 0.0
        %5669 = vmatprep.subr.mxu0 0.0
        %5670 = vmatpush1.msra.mxu0 0.0
        %5671 = vmatprep.subr.mxu0 0.0
        %5672 = vmatpush1.msra.mxu0 0.0
        %5673 = vmatprep.subr.mxu0 0.0
        %5674 = vmatpush1.msra.mxu0 0.0
        %5675 = vmatprep.subr.mxu0 0.0
        %5676 = vmatpush1.msra.mxu0 0.0
        %5677 = vmatprep.subr.mxu0 0.0
        %5678 = vmatpush1.msra.mxu0 0.0
        %5679 = vmatprep.subr.mxu0 0.0
        %5680 = vmatpush1.msra.mxu0 0.0
        %5681 = vmatprep.subr.mxu0 0.0
        %5682 = vmatpush1.msra.mxu0 0.0
        %5683 = vmatprep.subr.mxu0 0.0
        %5684 = vmatpush1.msra.mxu0 0.0
        %5685 = vmatprep.subr.mxu0 0.0
        %5686 = vmatpush1.msra.mxu0 0.0
        %5687 = vmatprep.subr.mxu0 0.0
        %5688 = vmatpush1.msra.mxu0 0.0
        %5689 = vmatprep.subr.mxu0 0.0
        %5690 = vmatpush1.msra.mxu0 0.0
        %5691 = vmatprep.subr.mxu0 0.0
        %5692 = vmatpush1.msra.mxu0 0.0
        %5693 = vmatprep.subr.mxu0 0.0
        %5694 = vmatpush1.msra.mxu0 0.0
        %5695 = vmatprep.subr.mxu0 0.0
        %5696 = vmatpush1.msra.mxu0 0.0
        %5697 = vmatprep.subr.mxu0 0.0
        %5698 = vmatpush1.msra.mxu0 0.0
        %5699 = vmatprep.subr.mxu0 0.0
        %5700 = vmatpush1.msra.mxu0 0.0
        %5701 = vmatprep.subr.mxu0 0.0
        %5702 = vmatpush1.msra.mxu0 0.0
        %5703 = vmatprep.subr.mxu0 0.0
        %5704 = vmatpush1.msra.mxu0 0.0
        %5705 = vmatprep.subr.mxu0 0.0
        %5706 = vmatpush1.msra.mxu0 0.0
        %5707 = vmatprep.subr.mxu0 0.0
        %5708 = vmatpush1.msra.mxu0 0.0
        %5709 = vmatprep.subr.mxu0 0.0
        %5710 = vmatpush1.msra.mxu0 0.0
        %5711 = vmatprep.subr.mxu0 0.0
        %5712 = vmatpush1.msra.mxu0 0.0
        %5713 = vmatprep.subr.mxu0 0.0
        %5714 = vmatpush1.msra.mxu0 0.0
        %5715 = vmatprep.subr.mxu0 0.0
        %5716 = vmatpush1.msra.mxu0 0.0
        %5717 = vmatprep.subr.mxu0 0.0
        %5718 = vmatpush1.msra.mxu0 0.0
        %5719 = vmatprep.subr.mxu0 0.0
        %5720 = vmatpush1.msra.mxu0 0.0
        %5721 = vmatprep.mubr.f32.mxu0 0.0
        %5722 = vmatmul.mubr.f32.gmra.mrb[0].mxu0 %v4044
        %v5723 = vpop.f32.mrb[0].mxu0
        %v5724 = vadd.f32 0.0, %v5723
        %v5725 = vpop.f32.mrb[0].mxu0
        %5726 = vmatprep.mubr.f32.mxu0 0.0
        %5727 = vmatmul.mubr.f32.gmra.mrb[0].mxu0 %v4047
        %v5728 = vpop.f32.mrb[0].mxu0
        %v5729 = vadd.f32 0.0, %v5728
        %v5730 = vpop.f32.mrb[0].mxu0
        %5731 = vdwg.mxu0
        %s5732 = scalar_lea.vmem %s7, 416
        %v5733 = vld [vmem:[%s5732] sm:$0xff]
        %v5734 = vld [vmem:[%s5732 + $0x8] sm:$0xff]
        %v5735 = vld [vmem:[%s5732 + $0x10] sm:$0xff]
        %v5736 = vld [vmem:[%s5732 + $0x18] sm:$0xff]
        %v5738 = vsel %vm775, %v5724, 0
        %v5741 = vsel %vm775, %v5729, 0
        %5743 = vmatprep.subr.mxu0 0.0
        %5744 = vmatpush1.msra.mxu0 %v5733
        %5745 = vmatprep.subr.mxu0 0.0
        %5746 = vmatpush1.msra.mxu0 %v5734
        %5747 = vmatprep.subr.mxu0 0.0
        %5748 = vmatpush1.msra.mxu0 %v5735
        %5749 = vmatprep.subr.mxu0 0.0
        %5750 = vmatpush1.msra.mxu0 %v5736
        %5751 = vmatprep.subr.mxu0 0.0
        %5752 = vmatpush1.msra.mxu0 0.0
        %5753 = vmatprep.subr.mxu0 0.0
        %5754 = vmatpush1.msra.mxu0 0.0
        %5755 = vmatprep.subr.mxu0 0.0
        %5756 = vmatpush1.msra.mxu0 0.0
        %5757 = vmatprep.subr.mxu0 0.0
        %5758 = vmatpush1.msra.mxu0 0.0
        %5759 = vmatprep.subr.mxu0 0.0
        %5760 = vmatpush1.msra.mxu0 0.0
        %5761 = vmatprep.subr.mxu0 0.0
        %5762 = vmatpush1.msra.mxu0 0.0
        %5763 = vmatprep.subr.mxu0 0.0
        %5764 = vmatpush1.msra.mxu0 0.0
        %5765 = vmatprep.subr.mxu0 0.0
        %5766 = vmatpush1.msra.mxu0 0.0
        %5767 = vmatprep.subr.mxu0 0.0
        %5768 = vmatpush1.msra.mxu0 0.0
        %5769 = vmatprep.subr.mxu0 0.0
        %5770 = vmatpush1.msra.mxu0 0.0
        %5771 = vmatprep.subr.mxu0 0.0
        %5772 = vmatpush1.msra.mxu0 0.0
        %5773 = vmatprep.subr.mxu0 0.0
        %5774 = vmatpush1.msra.mxu0 0.0
        %5775 = vmatprep.subr.mxu0 0.0
        %5776 = vmatpush1.msra.mxu0 0.0
        %5777 = vmatprep.subr.mxu0 0.0
        %5778 = vmatpush1.msra.mxu0 0.0
        %5779 = vmatprep.subr.mxu0 0.0
        %5780 = vmatpush1.msra.mxu0 0.0
        %5781 = vmatprep.subr.mxu0 0.0
        %5782 = vmatpush1.msra.mxu0 0.0
        %5783 = vmatprep.subr.mxu0 0.0
        %5784 = vmatpush1.msra.mxu0 0.0
        %5785 = vmatprep.subr.mxu0 0.0
        %5786 = vmatpush1.msra.mxu0 0.0
        %5787 = vmatprep.subr.mxu0 0.0
        %5788 = vmatpush1.msra.mxu0 0.0
        %5789 = vmatprep.subr.mxu0 0.0
        %5790 = vmatpush1.msra.mxu0 0.0
        %5791 = vmatprep.subr.mxu0 0.0
        %5792 = vmatpush1.msra.mxu0 0.0
        %5793 = vmatprep.subr.mxu0 0.0
        %5794 = vmatpush1.msra.mxu0 0.0
        %5795 = vmatprep.subr.mxu0 0.0
        %5796 = vmatpush1.msra.mxu0 0.0
        %5797 = vmatprep.subr.mxu0 0.0
        %5798 = vmatpush1.msra.mxu0 0.0
        %5799 = vmatprep.subr.mxu0 0.0
        %5800 = vmatpush1.msra.mxu0 0.0
        %5801 = vmatprep.subr.mxu0 0.0
        %5802 = vmatpush1.msra.mxu0 0.0
        %5803 = vmatprep.subr.mxu0 0.0
        %5804 = vmatpush1.msra.mxu0 0.0
        %5805 = vmatprep.subr.mxu0 0.0
        %5806 = vmatpush1.msra.mxu0 0.0
        %5807 = vmatprep.mubr.f32.mxu0 0.0
        %5808 = vmatmul.mubr.f32.gmra.mrb[0].mxu0 %v5738
        %v5809 = vpop.f32.mrb[0].mxu0
        %v5810 = vadd.f32 0.0, %v5809
        %v5811 = vpop.f32.mrb[0].mxu0
        %5812 = vmatprep.mubr.f32.mxu0 0.0
        %5813 = vmatmul.mubr.f32.gmra.mrb[0].mxu0 %v5741
        %v5814 = vpop.f32.mrb[0].mxu0
        %v5815 = vadd.f32 0.0, %v5814
        %v5816 = vpop.f32.mrb[0].mxu0
        %5817 = vdwg.mxu0
        %v5818 = vadd.f32 %v5655, %v5810
        %v5819 = vadd.f32 %v5656, %v5815
        %5820 = vmatprep.subr.mxu0 0.0
        %5821 = vmatpush1.msra.mxu0 %v5007
        %5822 = vmatprep.subr.mxu0 0.0
        %5823 = vmatpush1.msra.mxu0 %v5008
        %5824 = vmatprep.subr.mxu0 0.0
        %5825 = vmatpush1.msra.mxu0 0.0
        %5826 = vmatprep.subr.mxu0 0.0
        %5827 = vmatpush1.msra.mxu0 0.0
        %5828 = vmatprep.subr.mxu0 0.0
        %5829 = vmatpush1.msra.mxu0 0.0
        %5830 = vmatprep.subr.mxu0 0.0
        %5831 = vmatpush1.msra.mxu0 0.0
        %5832 = vmatprep.subr.mxu0 0.0
        %5833 = vmatpush1.msra.mxu0 0.0
        %5834 = vmatprep.subr.mxu0 0.0
        %5835 = vmatpush1.msra.mxu0 0.0
        %5836 = vmatprep.subr.mxu0 0.0
        %5837 = vmatpush1.msra.mxu0 0.0
        %5838 = vmatprep.subr.mxu0 0.0
        %5839 = vmatpush1.msra.mxu0 0.0
        %5840 = vmatprep.subr.mxu0 0.0
        %5841 = vmatpush1.msra.mxu0 0.0
        %5842 = vmatprep.subr.mxu0 0.0
        %5843 = vmatpush1.msra.mxu0 0.0
        %5844 = vmatprep.subr.mxu0 0.0
        %5845 = vmatpush1.msra.mxu0 0.0
        %5846 = vmatprep.subr.mxu0 0.0
        %5847 = vmatpush1.msra.mxu0 0.0
        %5848 = vmatprep.subr.mxu0 0.0
        %5849 = vmatpush1.msra.mxu0 0.0
        %5850 = vmatprep.subr.mxu0 0.0
        %5851 = vmatpush1.msra.mxu0 0.0
        %5852 = vmatprep.subr.mxu0 0.0
        %5853 = vmatpush1.msra.mxu0 0.0
        %5854 = vmatprep.subr.mxu0 0.0
        %5855 = vmatpush1.msra.mxu0 0.0
        %5856 = vmatprep.subr.mxu0 0.0
        %5857 = vmatpush1.msra.mxu0 0.0
        %5858 = vmatprep.subr.mxu0 0.0
        %5859 = vmatpush1.msra.mxu0 0.0
        %5860 = vmatprep.subr.mxu0 0.0
        %5861 = vmatpush1.msra.mxu0 0.0
        %5862 = vmatprep.subr.mxu0 0.0
        %5863 = vmatpush1.msra.mxu0 0.0
        %5864 = vmatprep.subr.mxu0 0.0
        %5865 = vmatpush1.msra.mxu0 0.0
        %5866 = vmatprep.subr.mxu0 0.0
        %5867 = vmatpush1.msra.mxu0 0.0
        %5868 = vmatprep.subr.mxu0 0.0
        %5869 = vmatpush1.msra.mxu0 0.0
        %5870 = vmatprep.subr.mxu0 0.0
        %5871 = vmatpush1.msra.mxu0 0.0
        %5872 = vmatprep.subr.mxu0 0.0
        %5873 = vmatpush1.msra.mxu0 0.0
        %5874 = vmatprep.subr.mxu0 0.0
        %5875 = vmatpush1.msra.mxu0 0.0
        %5876 = vmatprep.subr.mxu0 0.0
        %5877 = vmatpush1.msra.mxu0 0.0
        %5878 = vmatprep.subr.mxu0 0.0
        %5879 = vmatpush1.msra.mxu0 0.0
        %5880 = vmatprep.subr.mxu0 0.0
        %5881 = vmatpush1.msra.mxu0 0.0
        %5882 = vmatprep.subr.mxu0 0.0
        %5883 = vmatpush1.msra.mxu0 0.0
        %5884 = vmatprep.mubr.f32.mxu0 0.0
        %5885 = vmatmul.mubr.f32.gmra.mrb[0].mxu0 %v4216
        %v5886 = vpop.f32.mrb[0].mxu0
        %v5887 = vadd.f32 0.0, %v5886
        %v5888 = vpop.f32.mrb[0].mxu0
        %5889 = vmatprep.mubr.f32.mxu0 0.0
        %5890 = vmatmul.mubr.f32.gmra.mrb[0].mxu0 %v4219
        %v5891 = vpop.f32.mrb[0].mxu0
        %v5892 = vadd.f32 0.0, %v5891
        %v5893 = vpop.f32.mrb[0].mxu0
        %5894 = vdwg.mxu0
        %s5895 = scalar_lea.vmem %s7, 448
        %v5896 = vld [vmem:[%s5895] sm:$0xff]
        %v5897 = vld [vmem:[%s5895 + $0x8] sm:$0xff]
        %v5898 = vld [vmem:[%s5895 + $0x10] sm:$0xff]
        %v5899 = vld [vmem:[%s5895 + $0x18] sm:$0xff]
        %v5901 = vsel %vm775, %v5887, 0
        %v5904 = vsel %vm775, %v5892, 0
        %5906 = vmatprep.subr.mxu0 0.0
        %5907 = vmatpush1.msra.mxu0 %v5896
        %5908 = vmatprep.subr.mxu0 0.0
        %5909 = vmatpush1.msra.mxu0 %v5897
        %5910 = vmatprep.subr.mxu0 0.0
        %5911 = vmatpush1.msra.mxu0 %v5898
        %5912 = vmatprep.subr.mxu0 0.0
        %5913 = vmatpush1.msra.mxu0 %v5899
        %5914 = vmatprep.subr.mxu0 0.0
        %5915 = vmatpush1.msra.mxu0 0.0
        %5916 = vmatprep.subr.mxu0 0.0
        %5917 = vmatpush1.msra.mxu0 0.0
        %5918 = vmatprep.subr.mxu0 0.0
        %5919 = vmatpush1.msra.mxu0 0.0
        %5920 = vmatprep.subr.mxu0 0.0
        %5921 = vmatpush1.msra.mxu0 0.0
        %5922 = vmatprep.subr.mxu0 0.0
        %5923 = vmatpush1.msra.mxu0 0.0
        %5924 = vmatprep.subr.mxu0 0.0
        %5925 = vmatpush1.msra.mxu0 0.0
        %5926 = vmatprep.subr.mxu0 0.0
        %5927 = vmatpush1.msra.mxu0 0.0
        %5928 = vmatprep.subr.mxu0 0.0
        %5929 = vmatpush1.msra.mxu0 0.0
        %5930 = vmatprep.subr.mxu0 0.0
        %5931 = vmatpush1.msra.mxu0 0.0
        %5932 = vmatprep.subr.mxu0 0.0
        %5933 = vmatpush1.msra.mxu0 0.0
        %5934 = vmatprep.subr.mxu0 0.0
        %5935 = vmatpush1.msra.mxu0 0.0
        %5936 = vmatprep.subr.mxu0 0.0
        %5937 = vmatpush1.msra.mxu0 0.0
        %5938 = vmatprep.subr.mxu0 0.0
        %5939 = vmatpush1.msra.mxu0 0.0
        %5940 = vmatprep.subr.mxu0 0.0
        %5941 = vmatpush1.msra.mxu0 0.0
        %5942 = vmatprep.subr.mxu0 0.0
        %5943 = vmatpush1.msra.mxu0 0.0
        %5944 = vmatprep.subr.mxu0 0.0
        %5945 = vmatpush1.msra.mxu0 0.0
        %5946 = vmatprep.subr.mxu0 0.0
        %5947 = vmatpush1.msra.mxu0 0.0
        %5948 = vmatprep.subr.mxu0 0.0
        %5949 = vmatpush1.msra.mxu0 0.0
        %5950 = vmatprep.subr.mxu0 0.0
        %5951 = vmatpush1.msra.mxu0 0.0
        %5952 = vmatprep.subr.mxu0 0.0
        %5953 = vmatpush1.msra.mxu0 0.0
        %5954 = vmatprep.subr.mxu0 0.0
        %5955 = vmatpush1.msra.mxu0 0.0
        %5956 = vmatprep.subr.mxu0 0.0
        %5957 = vmatpush1.msra.mxu0 0.0
        %5958 = vmatprep.subr.mxu0 0.0
        %5959 = vmatpush1.msra.mxu0 0.0
        %5960 = vmatprep.subr.mxu0 0.0
        %5961 = vmatpush1.msra.mxu0 0.0
        %5962 = vmatprep.subr.mxu0 0.0
        %5963 = vmatpush1.msra.mxu0 0.0
        %5964 = vmatprep.subr.mxu0 0.0
        %5965 = vmatpush1.msra.mxu0 0.0
        %5966 = vmatprep.subr.mxu0 0.0
        %5967 = vmatpush1.msra.mxu0 0.0
        %5968 = vmatprep.subr.mxu0 0.0
        %5969 = vmatpush1.msra.mxu0 0.0
        %5970 = vmatprep.mubr.f32.mxu0 0.0
        %5971 = vmatmul.mubr.f32.gmra.mrb[0].mxu0 %v5901
        %v5972 = vpop.f32.mrb[0].mxu0
        %v5973 = vadd.f32 0.0, %v5972
        %v5974 = vpop.f32.mrb[0].mxu0
        %5975 = vmatprep.mubr.f32.mxu0 0.0
        %5976 = vmatmul.mubr.f32.gmra.mrb[0].mxu0 %v5904
        %v5977 = vpop.f32.mrb[0].mxu0
        %v5978 = vadd.f32 0.0, %v5977
        %v5979 = vpop.f32.mrb[0].mxu0
        %5980 = vdwg.mxu0
        %v5981 = vadd.f32 %v5818, %v5973
        %v5982 = vadd.f32 %v5819, %v5978
        %5983 = vmatprep.subr.mxu0 0.0
        %5984 = vmatpush1.msra.mxu0 %v5007
        %5985 = vmatprep.subr.mxu0 0.0
        %5986 = vmatpush1.msra.mxu0 %v5008
        %5987 = vmatprep.subr.mxu0 0.0
        %5988 = vmatpush1.msra.mxu0 0.0
        %5989 = vmatprep.subr.mxu0 0.0
        %5990 = vmatpush1.msra.mxu0 0.0
        %5991 = vmatprep.subr.mxu0 0.0
        %5992 = vmatpush1.msra.mxu0 0.0
        %5993 = vmatprep.subr.mxu0 0.0
        %5994 = vmatpush1.msra.mxu0 0.0
        %5995 = vmatprep.subr.mxu0 0.0
        %5996 = vmatpush1.msra.mxu0 0.0
        %5997 = vmatprep.subr.mxu0 0.0
        %5998 = vmatpush1.msra.mxu0 0.0
        %5999 = vmatprep.subr.mxu0 0.0
        %6000 = vmatpush1.msra.mxu0 0.0
        %6001 = vmatprep.subr.mxu0 0.0
        %6002 = vmatpush1.msra.mxu0 0.0
        %6003 = vmatprep.subr.mxu0 0.0
        %6004 = vmatpush1.msra.mxu0 0.0
        %6005 = vmatprep.subr.mxu0 0.0
        %6006 = vmatpush1.msra.mxu0 0.0
        %6007 = vmatprep.subr.mxu0 0.0
        %6008 = vmatpush1.msra.mxu0 0.0
        %6009 = vmatprep.subr.mxu0 0.0
        %6010 = vmatpush1.msra.mxu0 0.0
        %6011 = vmatprep.subr.mxu0 0.0
        %6012 = vmatpush1.msra.mxu0 0.0
        %6013 = vmatprep.subr.mxu0 0.0
        %6014 = vmatpush1.msra.mxu0 0.0
        %6015 = vmatprep.subr.mxu0 0.0
        %6016 = vmatpush1.msra.mxu0 0.0
        %6017 = vmatprep.subr.mxu0 0.0
        %6018 = vmatpush1.msra.mxu0 0.0
        %6019 = vmatprep.subr.mxu0 0.0
        %6020 = vmatpush1.msra.mxu0 0.0
        %6021 = vmatprep.subr.mxu0 0.0
        %6022 = vmatpush1.msra.mxu0 0.0
        %6023 = vmatprep.subr.mxu0 0.0
        %6024 = vmatpush1.msra.mxu0 0.0
        %6025 = vmatprep.subr.mxu0 0.0
        %6026 = vmatpush1.msra.mxu0 0.0
        %6027 = vmatprep.subr.mxu0 0.0
        %6028 = vmatpush1.msra.mxu0 0.0
        %6029 = vmatprep.subr.mxu0 0.0
        %6030 = vmatpush1.msra.mxu0 0.0
        %6031 = vmatprep.subr.mxu0 0.0
        %6032 = vmatpush1.msra.mxu0 0.0
        %6033 = vmatprep.subr.mxu0 0.0
        %6034 = vmatpush1.msra.mxu0 0.0
        %6035 = vmatprep.subr.mxu0 0.0
        %6036 = vmatpush1.msra.mxu0 0.0
        %6037 = vmatprep.subr.mxu0 0.0
        %6038 = vmatpush1.msra.mxu0 0.0
        %6039 = vmatprep.subr.mxu0 0.0
        %6040 = vmatpush1.msra.mxu0 0.0
        %6041 = vmatprep.subr.mxu0 0.0
        %6042 = vmatpush1.msra.mxu0 0.0
        %6043 = vmatprep.subr.mxu0 0.0
        %6044 = vmatpush1.msra.mxu0 0.0
        %6045 = vmatprep.subr.mxu0 0.0
        %6046 = vmatpush1.msra.mxu0 0.0
        %6047 = vmatprep.mubr.f32.mxu0 0.0
        %6048 = vmatmul.mubr.f32.gmra.mrb[0].mxu0 %v4388
        %v6049 = vpop.f32.mrb[0].mxu0
        %v6050 = vadd.f32 0.0, %v6049
        %v6051 = vpop.f32.mrb[0].mxu0
        %6052 = vmatprep.mubr.f32.mxu0 0.0
        %6053 = vmatmul.mubr.f32.gmra.mrb[0].mxu0 %v4391
        %v6054 = vpop.f32.mrb[0].mxu0
        %v6055 = vadd.f32 0.0, %v6054
        %v6056 = vpop.f32.mrb[0].mxu0
        %6057 = vdwg.mxu0
        %s6058 = scalar_lea.vmem %s7, 480
        %v6059 = vld [vmem:[%s6058] sm:$0xff]
        %v6060 = vld [vmem:[%s6058 + $0x8] sm:$0xff]
        %v6061 = vld [vmem:[%s6058 + $0x10] sm:$0xff]
        %v6062 = vld [vmem:[%s6058 + $0x18] sm:$0xff]
        %v6064 = vsel %vm775, %v6050, 0
        %v6067 = vsel %vm775, %v6055, 0
        %6069 = vmatprep.subr.mxu0 0.0
        %6070 = vmatpush1.msra.mxu0 %v6059
        %6071 = vmatprep.subr.mxu0 0.0
        %6072 = vmatpush1.msra.mxu0 %v6060
        %6073 = vmatprep.subr.mxu0 0.0
        %6074 = vmatpush1.msra.mxu0 %v6061
        %6075 = vmatprep.subr.mxu0 0.0
        %6076 = vmatpush1.msra.mxu0 %v6062
        %6077 = vmatprep.subr.mxu0 0.0
        %6078 = vmatpush1.msra.mxu0 0.0
        %6079 = vmatprep.subr.mxu0 0.0
        %6080 = vmatpush1.msra.mxu0 0.0
        %6081 = vmatprep.subr.mxu0 0.0
        %6082 = vmatpush1.msra.mxu0 0.0
        %6083 = vmatprep.subr.mxu0 0.0
        %6084 = vmatpush1.msra.mxu0 0.0
        %6085 = vmatprep.subr.mxu0 0.0
        %6086 = vmatpush1.msra.mxu0 0.0
        %6087 = vmatprep.subr.mxu0 0.0
        %6088 = vmatpush1.msra.mxu0 0.0
        %6089 = vmatprep.subr.mxu0 0.0
        %6090 = vmatpush1.msra.mxu0 0.0
        %6091 = vmatprep.subr.mxu0 0.0
        %6092 = vmatpush1.msra.mxu0 0.0
        %6093 = vmatprep.subr.mxu0 0.0
        %6094 = vmatpush1.msra.mxu0 0.0
        %6095 = vmatprep.subr.mxu0 0.0
        %6096 = vmatpush1.msra.mxu0 0.0
        %6097 = vmatprep.subr.mxu0 0.0
        %6098 = vmatpush1.msra.mxu0 0.0
        %6099 = vmatprep.subr.mxu0 0.0
        %6100 = vmatpush1.msra.mxu0 0.0
        %6101 = vmatprep.subr.mxu0 0.0
        %6102 = vmatpush1.msra.mxu0 0.0
        %6103 = vmatprep.subr.mxu0 0.0
        %6104 = vmatpush1.msra.mxu0 0.0
        %6105 = vmatprep.subr.mxu0 0.0
        %6106 = vmatpush1.msra.mxu0 0.0
        %6107 = vmatprep.subr.mxu0 0.0
        %6108 = vmatpush1.msra.mxu0 0.0
        %6109 = vmatprep.subr.mxu0 0.0
        %6110 = vmatpush1.msra.mxu0 0.0
        %6111 = vmatprep.subr.mxu0 0.0
        %6112 = vmatpush1.msra.mxu0 0.0
        %6113 = vmatprep.subr.mxu0 0.0
        %6114 = vmatpush1.msra.mxu0 0.0
        %6115 = vmatprep.subr.mxu0 0.0
        %6116 = vmatpush1.msra.mxu0 0.0
        %6117 = vmatprep.subr.mxu0 0.0
        %6118 = vmatpush1.msra.mxu0 0.0
        %6119 = vmatprep.subr.mxu0 0.0
        %6120 = vmatpush1.msra.mxu0 0.0
        %6121 = vmatprep.subr.mxu0 0.0
        %6122 = vmatpush1.msra.mxu0 0.0
        %6123 = vmatprep.subr.mxu0 0.0
        %6124 = vmatpush1.msra.mxu0 0.0
        %6125 = vmatprep.subr.mxu0 0.0
        %6126 = vmatpush1.msra.mxu0 0.0
        %6127 = vmatprep.subr.mxu0 0.0
        %6128 = vmatpush1.msra.mxu0 0.0
        %6129 = vmatprep.subr.mxu0 0.0
        %6130 = vmatpush1.msra.mxu0 0.0
        %6131 = vmatprep.subr.mxu0 0.0
        %6132 = vmatpush1.msra.mxu0 0.0
        %6133 = vmatprep.mubr.f32.mxu0 0.0
        %6134 = vmatmul.mubr.f32.gmra.mrb[0].mxu0 %v6064
        %v6135 = vpop.f32.mrb[0].mxu0
        %v6136 = vadd.f32 0.0, %v6135
        %v6137 = vpop.f32.mrb[0].mxu0
        %6138 = vmatprep.mubr.f32.mxu0 0.0
        %6139 = vmatmul.mubr.f32.gmra.mrb[0].mxu0 %v6067
        %v6140 = vpop.f32.mrb[0].mxu0
        %v6141 = vadd.f32 0.0, %v6140
        %v6142 = vpop.f32.mrb[0].mxu0
        %6143 = vdwg.mxu0
        %v6144 = vadd.f32 %v5981, %v6136
        %v6145 = vadd.f32 %v5982, %v6141
        %6146 = vmatprep.subr.mxu0 0.0
        %6147 = vmatpush1.msra.mxu0 %v5007
        %6148 = vmatprep.subr.mxu0 0.0
        %6149 = vmatpush1.msra.mxu0 %v5008
        %6150 = vmatprep.subr.mxu0 0.0
        %6151 = vmatpush1.msra.mxu0 0.0
        %6152 = vmatprep.subr.mxu0 0.0
        %6153 = vmatpush1.msra.mxu0 0.0
        %6154 = vmatprep.subr.mxu0 0.0
        %6155 = vmatpush1.msra.mxu0 0.0
        %6156 = vmatprep.subr.mxu0 0.0
        %6157 = vmatpush1.msra.mxu0 0.0
        %6158 = vmatprep.subr.mxu0 0.0
        %6159 = vmatpush1.msra.mxu0 0.0
        %6160 = vmatprep.subr.mxu0 0.0
        %6161 = vmatpush1.msra.mxu0 0.0
        %6162 = vmatprep.subr.mxu0 0.0
        %6163 = vmatpush1.msra.mxu0 0.0
        %6164 = vmatprep.subr.mxu0 0.0
        %6165 = vmatpush1.msra.mxu0 0.0
        %6166 = vmatprep.subr.mxu0 0.0
        %6167 = vmatpush1.msra.mxu0 0.0
        %6168 = vmatprep.subr.mxu0 0.0
        %6169 = vmatpush1.msra.mxu0 0.0
        %6170 = vmatprep.subr.mxu0 0.0
        %6171 = vmatpush1.msra.mxu0 0.0
        %6172 = vmatprep.subr.mxu0 0.0
        %6173 = vmatpush1.msra.mxu0 0.0
        %6174 = vmatprep.subr.mxu0 0.0
        %6175 = vmatpush1.msra.mxu0 0.0
        %6176 = vmatprep.subr.mxu0 0.0
        %6177 = vmatpush1.msra.mxu0 0.0
        %6178 = vmatprep.subr.mxu0 0.0
        %6179 = vmatpush1.msra.mxu0 0.0
        %6180 = vmatprep.subr.mxu0 0.0
        %6181 = vmatpush1.msra.mxu0 0.0
        %6182 = vmatprep.subr.mxu0 0.0
        %6183 = vmatpush1.msra.mxu0 0.0
        %6184 = vmatprep.subr.mxu0 0.0
        %6185 = vmatpush1.msra.mxu0 0.0
        %6186 = vmatprep.subr.mxu0 0.0
        %6187 = vmatpush1.msra.mxu0 0.0
        %6188 = vmatprep.subr.mxu0 0.0
        %6189 = vmatpush1.msra.mxu0 0.0
        %6190 = vmatprep.subr.mxu0 0.0
        %6191 = vmatpush1.msra.mxu0 0.0
        %6192 = vmatprep.subr.mxu0 0.0
        %6193 = vmatpush1.msra.mxu0 0.0
        %6194 = vmatprep.subr.mxu0 0.0
        %6195 = vmatpush1.msra.mxu0 0.0
        %6196 = vmatprep.subr.mxu0 0.0
        %6197 = vmatpush1.msra.mxu0 0.0
        %6198 = vmatprep.subr.mxu0 0.0
        %6199 = vmatpush1.msra.mxu0 0.0
        %6200 = vmatprep.subr.mxu0 0.0
        %6201 = vmatpush1.msra.mxu0 0.0
        %6202 = vmatprep.subr.mxu0 0.0
        %6203 = vmatpush1.msra.mxu0 0.0
        %6204 = vmatprep.subr.mxu0 0.0
        %6205 = vmatpush1.msra.mxu0 0.0
        %6206 = vmatprep.subr.mxu0 0.0
        %6207 = vmatpush1.msra.mxu0 0.0
        %6208 = vmatprep.subr.mxu0 0.0
        %6209 = vmatpush1.msra.mxu0 0.0
        %6210 = vmatprep.mubr.f32.mxu0 0.0
        %6211 = vmatmul.mubr.f32.gmra.mrb[0].mxu0 %v4560
        %v6212 = vpop.f32.mrb[0].mxu0
        %v6213 = vadd.f32 0.0, %v6212
        %v6214 = vpop.f32.mrb[0].mxu0
        %6215 = vmatprep.mubr.f32.mxu0 0.0
        %6216 = vmatmul.mubr.f32.gmra.mrb[0].mxu0 %v4563
        %v6217 = vpop.f32.mrb[0].mxu0
        %v6218 = vadd.f32 0.0, %v6217
        %v6219 = vpop.f32.mrb[0].mxu0
        %6220 = vdwg.mxu0
        %s6221 = scalar_lea.vmem %s7, 512
        %v6222 = vld [vmem:[%s6221] sm:$0xff]
        %v6223 = vld [vmem:[%s6221 + $0x8] sm:$0xff]
        %v6224 = vld [vmem:[%s6221 + $0x10] sm:$0xff]
        %v6225 = vld [vmem:[%s6221 + $0x18] sm:$0xff]
        %v6227 = vsel %vm775, %v6213, 0
        %v6230 = vsel %vm775, %v6218, 0
        %6232 = vmatprep.subr.mxu0 0.0
        %6233 = vmatpush1.msra.mxu0 %v6222
        %6234 = vmatprep.subr.mxu0 0.0
        %6235 = vmatpush1.msra.mxu0 %v6223
        %6236 = vmatprep.subr.mxu0 0.0
        %6237 = vmatpush1.msra.mxu0 %v6224
        %6238 = vmatprep.subr.mxu0 0.0
        %6239 = vmatpush1.msra.mxu0 %v6225
        %6240 = vmatprep.subr.mxu0 0.0
        %6241 = vmatpush1.msra.mxu0 0.0
        %6242 = vmatprep.subr.mxu0 0.0
        %6243 = vmatpush1.msra.mxu0 0.0
        %6244 = vmatprep.subr.mxu0 0.0
        %6245 = vmatpush1.msra.mxu0 0.0
        %6246 = vmatprep.subr.mxu0 0.0
        %6247 = vmatpush1.msra.mxu0 0.0
        %6248 = vmatprep.subr.mxu0 0.0
        %6249 = vmatpush1.msra.mxu0 0.0
        %6250 = vmatprep.subr.mxu0 0.0
        %6251 = vmatpush1.msra.mxu0 0.0
        %6252 = vmatprep.subr.mxu0 0.0
        %6253 = vmatpush1.msra.mxu0 0.0
        %6254 = vmatprep.subr.mxu0 0.0
        %6255 = vmatpush1.msra.mxu0 0.0
        %6256 = vmatprep.subr.mxu0 0.0
        %6257 = vmatpush1.msra.mxu0 0.0
        %6258 = vmatprep.subr.mxu0 0.0
        %6259 = vmatpush1.msra.mxu0 0.0
        %6260 = vmatprep.subr.mxu0 0.0
        %6261 = vmatpush1.msra.mxu0 0.0
        %6262 = vmatprep.subr.mxu0 0.0
        %6263 = vmatpush1.msra.mxu0 0.0
        %6264 = vmatprep.subr.mxu0 0.0
        %6265 = vmatpush1.msra.mxu0 0.0
        %6266 = vmatprep.subr.mxu0 0.0
        %6267 = vmatpush1.msra.mxu0 0.0
        %6268 = vmatprep.subr.mxu0 0.0
        %6269 = vmatpush1.msra.mxu0 0.0
        %6270 = vmatprep.subr.mxu0 0.0
        %6271 = vmatpush1.msra.mxu0 0.0
        %6272 = vmatprep.subr.mxu0 0.0
        %6273 = vmatpush1.msra.mxu0 0.0
        %6274 = vmatprep.subr.mxu0 0.0
        %6275 = vmatpush1.msra.mxu0 0.0
        %6276 = vmatprep.subr.mxu0 0.0
        %6277 = vmatpush1.msra.mxu0 0.0
        %6278 = vmatprep.subr.mxu0 0.0
        %6279 = vmatpush1.msra.mxu0 0.0
        %6280 = vmatprep.subr.mxu0 0.0
        %6281 = vmatpush1.msra.mxu0 0.0
        %6282 = vmatprep.subr.mxu0 0.0
        %6283 = vmatpush1.msra.mxu0 0.0
        %6284 = vmatprep.subr.mxu0 0.0
        %6285 = vmatpush1.msra.mxu0 0.0
        %6286 = vmatprep.subr.mxu0 0.0
        %6287 = vmatpush1.msra.mxu0 0.0
        %6288 = vmatprep.subr.mxu0 0.0
        %6289 = vmatpush1.msra.mxu0 0.0
        %6290 = vmatprep.subr.mxu0 0.0
        %6291 = vmatpush1.msra.mxu0 0.0
        %6292 = vmatprep.subr.mxu0 0.0
        %6293 = vmatpush1.msra.mxu0 0.0
        %6294 = vmatprep.subr.mxu0 0.0
        %6295 = vmatpush1.msra.mxu0 0.0
        %6296 = vmatprep.mubr.f32.mxu0 0.0
        %6297 = vmatmul.mubr.f32.gmra.mrb[0].mxu0 %v6227
        %v6298 = vpop.f32.mrb[0].mxu0
        %v6299 = vadd.f32 0.0, %v6298
        %v6300 = vpop.f32.mrb[0].mxu0
        %6301 = vmatprep.mubr.f32.mxu0 0.0
        %6302 = vmatmul.mubr.f32.gmra.mrb[0].mxu0 %v6230
        %v6303 = vpop.f32.mrb[0].mxu0
        %v6304 = vadd.f32 0.0, %v6303
        %v6305 = vpop.f32.mrb[0].mxu0
        %6306 = vdwg.mxu0
        %v6307 = vadd.f32 %v6144, %v6299
        %v6308 = vadd.f32 %v6145, %v6304
        %6309 = vmatprep.subr.mxu0 0.0
        %6310 = vmatpush1.msra.mxu0 %v5007
        %6311 = vmatprep.subr.mxu0 0.0
        %6312 = vmatpush1.msra.mxu0 %v5008
        %6313 = vmatprep.subr.mxu0 0.0
        %6314 = vmatpush1.msra.mxu0 0.0
        %6315 = vmatprep.subr.mxu0 0.0
        %6316 = vmatpush1.msra.mxu0 0.0
        %6317 = vmatprep.subr.mxu0 0.0
        %6318 = vmatpush1.msra.mxu0 0.0
        %6319 = vmatprep.subr.mxu0 0.0
        %6320 = vmatpush1.msra.mxu0 0.0
        %6321 = vmatprep.subr.mxu0 0.0
        %6322 = vmatpush1.msra.mxu0 0.0
        %6323 = vmatprep.subr.mxu0 0.0
        %6324 = vmatpush1.msra.mxu0 0.0
        %6325 = vmatprep.subr.mxu0 0.0
        %6326 = vmatpush1.msra.mxu0 0.0
        %6327 = vmatprep.subr.mxu0 0.0
        %6328 = vmatpush1.msra.mxu0 0.0
        %6329 = vmatprep.subr.mxu0 0.0
        %6330 = vmatpush1.msra.mxu0 0.0
        %6331 = vmatprep.subr.mxu0 0.0
        %6332 = vmatpush1.msra.mxu0 0.0
        %6333 = vmatprep.subr.mxu0 0.0
        %6334 = vmatpush1.msra.mxu0 0.0
        %6335 = vmatprep.subr.mxu0 0.0
        %6336 = vmatpush1.msra.mxu0 0.0
        %6337 = vmatprep.subr.mxu0 0.0
        %6338 = vmatpush1.msra.mxu0 0.0
        %6339 = vmatprep.subr.mxu0 0.0
        %6340 = vmatpush1.msra.mxu0 0.0
        %6341 = vmatprep.subr.mxu0 0.0
        %6342 = vmatpush1.msra.mxu0 0.0
        %6343 = vmatprep.subr.mxu0 0.0
        %6344 = vmatpush1.msra.mxu0 0.0
        %6345 = vmatprep.subr.mxu0 0.0
        %6346 = vmatpush1.msra.mxu0 0.0
        %6347 = vmatprep.subr.mxu0 0.0
        %6348 = vmatpush1.msra.mxu0 0.0
        %6349 = vmatprep.subr.mxu0 0.0
        %6350 = vmatpush1.msra.mxu0 0.0
        %6351 = vmatprep.subr.mxu0 0.0
        %6352 = vmatpush1.msra.mxu0 0.0
        %6353 = vmatprep.subr.mxu0 0.0
        %6354 = vmatpush1.msra.mxu0 0.0
        %6355 = vmatprep.subr.mxu0 0.0
        %6356 = vmatpush1.msra.mxu0 0.0
        %6357 = vmatprep.subr.mxu0 0.0
        %6358 = vmatpush1.msra.mxu0 0.0
        %6359 = vmatprep.subr.mxu0 0.0
        %6360 = vmatpush1.msra.mxu0 0.0
        %6361 = vmatprep.subr.mxu0 0.0
        %6362 = vmatpush1.msra.mxu0 0.0
        %6363 = vmatprep.subr.mxu0 0.0
        %6364 = vmatpush1.msra.mxu0 0.0
        %6365 = vmatprep.subr.mxu0 0.0
        %6366 = vmatpush1.msra.mxu0 0.0
        %6367 = vmatprep.subr.mxu0 0.0
        %6368 = vmatpush1.msra.mxu0 0.0
        %6369 = vmatprep.subr.mxu0 0.0
        %6370 = vmatpush1.msra.mxu0 0.0
        %6371 = vmatprep.subr.mxu0 0.0
        %6372 = vmatpush1.msra.mxu0 0.0
        %6373 = vmatprep.mubr.f32.mxu0 0.0
        %6374 = vmatmul.mubr.f32.gmra.mrb[0].mxu0 %v4732
        %v6375 = vpop.f32.mrb[0].mxu0
        %v6376 = vadd.f32 0.0, %v6375
        %v6377 = vpop.f32.mrb[0].mxu0
        %6378 = vmatprep.mubr.f32.mxu0 0.0
        %6379 = vmatmul.mubr.f32.gmra.mrb[0].mxu0 %v4735
        %v6380 = vpop.f32.mrb[0].mxu0
        %v6381 = vadd.f32 0.0, %v6380
        %v6382 = vpop.f32.mrb[0].mxu0
        %6383 = vdwg.mxu0
        %s6384 = scalar_lea.vmem %s7, 544
        %v6385 = vld [vmem:[%s6384] sm:$0xff]
        %v6386 = vld [vmem:[%s6384 + $0x8] sm:$0xff]
        %v6387 = vld [vmem:[%s6384 + $0x10] sm:$0xff]
        %v6388 = vld [vmem:[%s6384 + $0x18] sm:$0xff]
        %v6390 = vsel %vm775, %v6376, 0
        %v6393 = vsel %vm775, %v6381, 0
        %6395 = vmatprep.subr.mxu0 0.0
        %6396 = vmatpush1.msra.mxu0 %v6385
        %6397 = vmatprep.subr.mxu0 0.0
        %6398 = vmatpush1.msra.mxu0 %v6386
        %6399 = vmatprep.subr.mxu0 0.0
        %6400 = vmatpush1.msra.mxu0 %v6387
        %6401 = vmatprep.subr.mxu0 0.0
        %6402 = vmatpush1.msra.mxu0 %v6388
        %6403 = vmatprep.subr.mxu0 0.0
        %6404 = vmatpush1.msra.mxu0 0.0
        %6405 = vmatprep.subr.mxu0 0.0
        %6406 = vmatpush1.msra.mxu0 0.0
        %6407 = vmatprep.subr.mxu0 0.0
        %6408 = vmatpush1.msra.mxu0 0.0
        %6409 = vmatprep.subr.mxu0 0.0
        %6410 = vmatpush1.msra.mxu0 0.0
        %6411 = vmatprep.subr.mxu0 0.0
        %6412 = vmatpush1.msra.mxu0 0.0
        %6413 = vmatprep.subr.mxu0 0.0
        %6414 = vmatpush1.msra.mxu0 0.0
        %6415 = vmatprep.subr.mxu0 0.0
        %6416 = vmatpush1.msra.mxu0 0.0
        %6417 = vmatprep.subr.mxu0 0.0
        %6418 = vmatpush1.msra.mxu0 0.0
        %6419 = vmatprep.subr.mxu0 0.0
        %6420 = vmatpush1.msra.mxu0 0.0
        %6421 = vmatprep.subr.mxu0 0.0
        %6422 = vmatpush1.msra.mxu0 0.0
        %6423 = vmatprep.subr.mxu0 0.0
        %6424 = vmatpush1.msra.mxu0 0.0
        %6425 = vmatprep.subr.mxu0 0.0
        %6426 = vmatpush1.msra.mxu0 0.0
        %6427 = vmatprep.subr.mxu0 0.0
        %6428 = vmatpush1.msra.mxu0 0.0
        %6429 = vmatprep.subr.mxu0 0.0
        %6430 = vmatpush1.msra.mxu0 0.0
        %6431 = vmatprep.subr.mxu0 0.0
        %6432 = vmatpush1.msra.mxu0 0.0
        %6433 = vmatprep.subr.mxu0 0.0
        %6434 = vmatpush1.msra.mxu0 0.0
        %6435 = vmatprep.subr.mxu0 0.0
        %6436 = vmatpush1.msra.mxu0 0.0
        %6437 = vmatprep.subr.mxu0 0.0
        %6438 = vmatpush1.msra.mxu0 0.0
        %6439 = vmatprep.subr.mxu0 0.0
        %6440 = vmatpush1.msra.mxu0 0.0
        %6441 = vmatprep.subr.mxu0 0.0
        %6442 = vmatpush1.msra.mxu0 0.0
        %6443 = vmatprep.subr.mxu0 0.0
        %6444 = vmatpush1.msra.mxu0 0.0
        %6445 = vmatprep.subr.mxu0 0.0
        %6446 = vmatpush1.msra.mxu0 0.0
        %6447 = vmatprep.subr.mxu0 0.0
        %6448 = vmatpush1.msra.mxu0 0.0
        %6449 = vmatprep.subr.mxu0 0.0
        %6450 = vmatpush1.msra.mxu0 0.0
        %6451 = vmatprep.subr.mxu0 0.0
        %6452 = vmatpush1.msra.mxu0 0.0
        %6453 = vmatprep.subr.mxu0 0.0
        %6454 = vmatpush1.msra.mxu0 0.0
        %6455 = vmatprep.subr.mxu0 0.0
        %6456 = vmatpush1.msra.mxu0 0.0
        %6457 = vmatprep.subr.mxu0 0.0
        %6458 = vmatpush1.msra.mxu0 0.0
        %6459 = vmatprep.mubr.f32.mxu0 0.0
        %6460 = vmatmul.mubr.f32.gmra.mrb[0].mxu0 %v6390
        %v6461 = vpop.f32.mrb[0].mxu0
        %v6462 = vadd.f32 0.0, %v6461
        %v6463 = vpop.f32.mrb[0].mxu0
        %6464 = vmatprep.mubr.f32.mxu0 0.0
        %6465 = vmatmul.mubr.f32.gmra.mrb[0].mxu0 %v6393
        %v6466 = vpop.f32.mrb[0].mxu0
        %v6467 = vadd.f32 0.0, %v6466
        %v6468 = vpop.f32.mrb[0].mxu0
        %6469 = vdwg.mxu0
        %v6470 = vadd.f32 %v6307, %v6462
        %v6471 = vadd.f32 %v6308, %v6467
        %s6472 = scalar_lea.vmem %s8, 1
        %v6473 = vld [vmem:[%s6472] sm:$0x1]
        %v6475 = vlaneseq
        %v6476 = vshrl.u32 %v6475, 7
        %v6477 = vsub.s32 0, %v6476
        %v6478 = vrot.slane %v6473, %v6477
        %v6480 = vadd.f32 %v6470, %v6478
        %v6481 = vadd.f32 %v6471, %v6478
        %v6482 = vmax.f32 %v6480, 0.0
        %v6483 = vmax.f32 %v6481, 0.0
        %s6484 = scalar_lea.vmem %s9, 32
        %v6485 = vld [vmem:[%s6484] sm:$0xff]
        %v6486 = vld [vmem:[%s6484 + $0x8] sm:$0xff]
        %v6487 = vld [vmem:[%s6484 + $0x10] sm:$0xff]
        %v6488 = vld [vmem:[%s6484 + $0x18] sm:$0xff]
        %v6490 = vsel %vm775, %v6482, 0
        %v6493 = vsel %vm775, %v6483, 0
        %6495 = vmatprep.subr.mxu0 0.0
        %6496 = vmatpush1.msra.mxu0 %v6485
        %6497 = vmatprep.subr.mxu0 0.0
        %6498 = vmatpush1.msra.mxu0 %v6486
        %6499 = vmatprep.subr.mxu0 0.0
        %6500 = vmatpush1.msra.mxu0 %v6487
        %6501 = vmatprep.subr.mxu0 0.0
        %6502 = vmatpush1.msra.mxu0 %v6488
        %6503 = vmatprep.subr.mxu0 0.0
        %6504 = vmatpush1.msra.mxu0 0.0
        %6505 = vmatprep.subr.mxu0 0.0
        %6506 = vmatpush1.msra.mxu0 0.0
        %6507 = vmatprep.subr.mxu0 0.0
        %6508 = vmatpush1.msra.mxu0 0.0
        %6509 = vmatprep.subr.mxu0 0.0
        %6510 = vmatpush1.msra.mxu0 0.0
        %6511 = vmatprep.subr.mxu0 0.0
        %6512 = vmatpush1.msra.mxu0 0.0
        %6513 = vmatprep.subr.mxu0 0.0
        %6514 = vmatpush1.msra.mxu0 0.0
        %6515 = vmatprep.subr.mxu0 0.0
        %6516 = vmatpush1.msra.mxu0 0.0
        %6517 = vmatprep.subr.mxu0 0.0
        %6518 = vmatpush1.msra.mxu0 0.0
        %6519 = vmatprep.subr.mxu0 0.0
        %6520 = vmatpush1.msra.mxu0 0.0
        %6521 = vmatprep.subr.mxu0 0.0
        %6522 = vmatpush1.msra.mxu0 0.0
        %6523 = vmatprep.subr.mxu0 0.0
        %6524 = vmatpush1.msra.mxu0 0.0
        %6525 = vmatprep.subr.mxu0 0.0
        %6526 = vmatpush1.msra.mxu0 0.0
        %6527 = vmatprep.subr.mxu0 0.0
        %6528 = vmatpush1.msra.mxu0 0.0
        %6529 = vmatprep.subr.mxu0 0.0
        %6530 = vmatpush1.msra.mxu0 0.0
        %6531 = vmatprep.subr.mxu0 0.0
        %6532 = vmatpush1.msra.mxu0 0.0
        %6533 = vmatprep.subr.mxu0 0.0
        %6534 = vmatpush1.msra.mxu0 0.0
        %6535 = vmatprep.subr.mxu0 0.0
        %6536 = vmatpush1.msra.mxu0 0.0
        %6537 = vmatprep.subr.mxu0 0.0
        %6538 = vmatpush1.msra.mxu0 0.0
        %6539 = vmatprep.subr.mxu0 0.0
        %6540 = vmatpush1.msra.mxu0 0.0
        %6541 = vmatprep.subr.mxu0 0.0
        %6542 = vmatpush1.msra.mxu0 0.0
        %6543 = vmatprep.subr.mxu0 0.0
        %6544 = vmatpush1.msra.mxu0 0.0
        %6545 = vmatprep.subr.mxu0 0.0
        %6546 = vmatpush1.msra.mxu0 0.0
        %6547 = vmatprep.subr.mxu0 0.0
        %6548 = vmatpush1.msra.mxu0 0.0
        %6549 = vmatprep.subr.mxu0 0.0
        %6550 = vmatpush1.msra.mxu0 0.0
        %6551 = vmatprep.subr.mxu0 0.0
        %6552 = vmatpush1.msra.mxu0 0.0
        %6553 = vmatprep.subr.mxu0 0.0
        %6554 = vmatpush1.msra.mxu0 0.0
        %6555 = vmatprep.subr.mxu0 0.0
        %6556 = vmatpush1.msra.mxu0 0.0
        %6557 = vmatprep.subr.mxu0 0.0
        %6558 = vmatpush1.msra.mxu0 0.0
        %6559 = vmatprep.mubr.f32.mxu0 0.0
        %6560 = vmatmul.mubr.f32.gmra.mrb[0].mxu0 %v6490
        %v6561 = vpop.f32.mrb[0].mxu0
        %v6562 = vadd.f32 0.0, %v6561
        %v6563 = vpop.f32.mrb[0].mxu0
        %6564 = vmatprep.mubr.f32.mxu0 0.0
        %6565 = vmatmul.mubr.f32.gmra.mrb[0].mxu0 %v6493
        %v6566 = vpop.f32.mrb[0].mxu0
        %v6567 = vadd.f32 0.0, %v6566
        %v6568 = vpop.f32.mrb[0].mxu0
        %6569 = vdwg.mxu0
        %v6570 = vadd.f32 %v5005, %v6562
        %v6571 = vadd.f32 %v5006, %v6567
        %s6572 = scalar_lea.vmem %s10, 1
        %v6573 = vld [vmem:[%s6572] sm:$0x1]
        %v6575 = vlaneseq
        %v6576 = vshrl.u32 %v6575, 7
        %v6577 = vsub.s32 0, %v6576
        %v6578 = vrot.slane %v6573, %v6577
        %v6580 = vadd.f32 %v6570, %v6578
        %v6581 = vadd.f32 %v6571, %v6578
        %v6582 = vld [vmem:[%s11] sm:$0xff]
        %v6583 = vld [vmem:[%s11 + $0x8] sm:$0xff]
        %v6584 = vld [vmem:[%s11 + $0x10] sm:$0xff]
        %v6585 = vld [vmem:[%s11 + $0x18] sm:$0xff]
        %v6586 = vld [vmem:[%s12] sm:$0x1]
        %v6588 = vlaneseq
        %v6589 = vshrl.u32 %v6588, 7
        %v6590 = vsub.s32 0, %v6589
        %v6591 = vrot.slane %v6586, %v6590
        %v6594 = vsel %vm775, %v6580, 0
        %v6597 = vsel %vm775, %v6581, 0
        %6599 = vmatprep.subr.mxu0 0.0
        %6600 = vmatpush1.msra.mxu0 %v6582
        %6601 = vmatprep.subr.mxu0 0.0
        %6602 = vmatpush1.msra.mxu0 %v6583
        %6603 = vmatprep.subr.mxu0 0.0
        %6604 = vmatpush1.msra.mxu0 %v6584
        %6605 = vmatprep.subr.mxu0 0.0
        %6606 = vmatpush1.msra.mxu0 %v6585
        %6607 = vmatprep.subr.mxu0 0.0
        %6608 = vmatpush1.msra.mxu0 0.0
        %6609 = vmatprep.subr.mxu0 0.0
        %6610 = vmatpush1.msra.mxu0 0.0
        %6611 = vmatprep.subr.mxu0 0.0
        %6612 = vmatpush1.msra.mxu0 0.0
        %6613 = vmatprep.subr.mxu0 0.0
        %6614 = vmatpush1.msra.mxu0 0.0
        %6615 = vmatprep.subr.mxu0 0.0
        %6616 = vmatpush1.msra.mxu0 0.0
        %6617 = vmatprep.subr.mxu0 0.0
        %6618 = vmatpush1.msra.mxu0 0.0
        %6619 = vmatprep.subr.mxu0 0.0
        %6620 = vmatpush1.msra.mxu0 0.0
        %6621 = vmatprep.subr.mxu0 0.0
        %6622 = vmatpush1.msra.mxu0 0.0
        %6623 = vmatprep.subr.mxu0 0.0
        %6624 = vmatpush1.msra.mxu0 0.0
        %6625 = vmatprep.subr.mxu0 0.0
        %6626 = vmatpush1.msra.mxu0 0.0
        %6627 = vmatprep.subr.mxu0 0.0
        %6628 = vmatpush1.msra.mxu0 0.0
        %6629 = vmatprep.subr.mxu0 0.0
        %6630 = vmatpush1.msra.mxu0 0.0
        %6631 = vmatprep.subr.mxu0 0.0
        %6632 = vmatpush1.msra.mxu0 0.0
        %6633 = vmatprep.subr.mxu0 0.0
        %6634 = vmatpush1.msra.mxu0 0.0
        %6635 = vmatprep.subr.mxu0 0.0
        %6636 = vmatpush1.msra.mxu0 0.0
        %6637 = vmatprep.subr.mxu0 0.0
        %6638 = vmatpush1.msra.mxu0 0.0
        %6639 = vmatprep.subr.mxu0 0.0
        %6640 = vmatpush1.msra.mxu0 0.0
        %6641 = vmatprep.subr.mxu0 0.0
        %6642 = vmatpush1.msra.mxu0 0.0
        %6643 = vmatprep.subr.mxu0 0.0
        %6644 = vmatpush1.msra.mxu0 0.0
        %6645 = vmatprep.subr.mxu0 0.0
        %6646 = vmatpush1.msra.mxu0 0.0
        %6647 = vmatprep.subr.mxu0 0.0
        %6648 = vmatpush1.msra.mxu0 0.0
        %6649 = vmatprep.subr.mxu0 0.0
        %6650 = vmatpush1.msra.mxu0 0.0
        %6651 = vmatprep.subr.mxu0 0.0
        %6652 = vmatpush1.msra.mxu0 0.0
        %6653 = vmatprep.subr.mxu0 0.0
        %6654 = vmatpush1.msra.mxu0 0.0
        %6655 = vmatprep.subr.mxu0 0.0
        %6656 = vmatpush1.msra.mxu0 0.0
        %6657 = vmatprep.subr.mxu0 0.0
        %6658 = vmatpush1.msra.mxu0 0.0
        %6659 = vmatprep.subr.mxu0 0.0
        %6660 = vmatpush1.msra.mxu0 0.0
        %6661 = vmatprep.subr.mxu0 0.0
        %6662 = vmatpush1.msra.mxu0 0.0
        %6663 = vmatprep.mubr.f32.mxu0 0.0
        %6664 = vmatmul.mubr.f32.gmra.mrb[0].mxu0 %v6594
        %v6665 = vpop.f32.mrb[0].mxu0
        %v6666 = vadd.f32 %v6591, %v6665
        %v6667 = vpop.f32.mrb[0].mxu0
        %6668 = vmatprep.mubr.f32.mxu0 0.0
        %6669 = vmatmul.mubr.f32.gmra.mrb[0].mxu0 %v6597
        %v6670 = vpop.f32.mrb[0].mxu0
        %v6671 = vadd.f32 %v6591, %v6670
        %v6672 = vpop.f32.mrb[0].mxu0
        %6673 = vdwg.mxu0
        %vm6674 = vcmask 64512
        %6675 = vst.msk [vmem:[%s433] sm:$0xff] %vm6674, %v6666
        %6676 = vst.msk [vmem:[%s433 + $0x8] sm:$0xff] %vm6674, %v6671
        %s6677 = sand.u32 %s313, 1
        %s6678 = scalar_lea.sflag [#allocation3], %s6677
        %s6679 = sand.u32 %s313, 1
        %s6680 = smul.addr %s6679, 16
        %s6681 = scalar_lea.vmem [#allocation2], %s6680
        // Predicated region
        $region73: #{encoder_forward_pallas.1} parent=71 // pred_check
          %p6682 = pneg %p323
        $region74: #{encoder_forward_pallas.1} parent=71 // pred_check_branch
          %6684 = sbr.rel (%p6682) target = $region76
        $region75: #{encoder_forward_pallas.1} parent=71 // pred_region
          %s6686 = ssub.s32 256, 256
          %6687 = vsyncadd %s6678, %s6686
          %s6688 = smul.addr %s27, 2
          %s6689 = smul.addr %s6688, 128
          %s6690 = scalar_lea.hbm %s13, %s6689
          %s6691 = sshll.u32 %s6681, 4
          %s6692 = int_to_ptr.vmem [resolvable:$true] %s6691
          %6697 = dma.vmem_to_hbm [thread:$0]  %s6692, 256, %s6690, %s6678, 128, 128, 8
        $region76: #{encoder_forward_pallas.1} parent=71 // pred_fallthru
          _
      $region72: #{encoder_forward_pallas.1} parent=5 // pred_fallthru
        _
      %p6698 = scmp.le.s32.totalorder 2, %s22
      // Predicated region
      $region77: #{encoder_forward_pallas.1} parent=5 // pred_check
        %p6699 = pneg %p6698
      $region78: #{encoder_forward_pallas.1} parent=5 // pred_check_branch
        %6701 = sbr.rel (%p6699) target = $region80
      $region79: #{encoder_forward_pallas.1} parent=5 // pred_region
        %s6702 = ssub.s32 %s22, 2
        // Predicated region
        $region81: #{encoder_forward_pallas.1} parent=79 // pred_check
          %p6703 = pneg %p329
        $region82: #{encoder_forward_pallas.1} parent=79 // pred_check_branch
          %6705 = sbr.rel (%p6703) target = $region84
        $region83: #{encoder_forward_pallas.1} parent=79 // pred_region
          %s6706 = sand.u32 %s314, 1
          %s6707 = scalar_lea.sflag [#allocation3], %s6706
          %s6708 = sand.u32 %s314, 1
          %s6709 = smul.addr %s6708, 16
          %s6710 = scalar_lea.vmem [#allocation2], %s6709
          %6711 = dma.done %s6707, 256
        $region84: #{encoder_forward_pallas.1} parent=79 // pred_fallthru
          _
      $region80: #{encoder_forward_pallas.1} parent=5 // pred_fallthru
        _
    $region6: #{encoder_forward_pallas.1} parent=1 // loop_footer
      %s26 = sadd.s32 1, %s22
    $region7: #{encoder_forward_pallas.1} parent=1 // loop_footer_branch
      %21 = sbr.rel target = $region3
    $region8: #{encoder_forward_pallas.1} parent=1 // loop_exit
      _
    %6712 = vsyncpa [#allocation3], 1
    %s6713 = scalar_lea.sflag [#allocation3], 1
    %6714 = vsyncpa %s6713, 1

</llo_original>
